<compile_context>
chip_gen: v7x
topology: tpu7x:2x2x1
jax: 0.10.0
libtpu: 0.0.40
codegen_flags: <defaults>
</compile_context>

<pallas_src>
import numpy as np
import jax
import jax.numpy as jnp
from jax.experimental import pallas as pl
from jax.experimental.pallas import tpu as pltpu

# ----------------------------- configuration --------------------------------
BATCH     = 2
DIM       = 128                    # channels (lane-dense)
INPUT_RES = (8, 8)                 # (H, W)
DEPTH     = 2                      # number of SwinBlocks in the BasicLayer
NUM_HEADS = 4
WINDOW    = 8                      # window_size handed to BasicLayer
DIM_MLP   = 256                    # MLP hidden dim

H, W = INPUT_RES
L = H * W
# SwinBlock: if min(input_resolution) <= window_size -> shift_size = 0 and
# window_size = min(input_resolution).
WS = min(min(INPUT_RES), WINDOW)
N_WIN = WS * WS
HEAD_DIM = DIM // NUM_HEADS
SCALE = HEAD_DIM ** (-0.5)
LN_EPS = 1e-5
BF16 = jnp.bfloat16

assert WS == H == W, "kernel implements the (forced) shift=0 / one-window case"
# TODO(synk): general window_partition (window < min(H, W)) and the shifted-window
# attention-mask path are not exercised at this configuration (the module forces
# shift_size = 0) and are not implemented.


# ------------------------------ in-kernel helpers ----------------------------
def _layer_norm(x2, g, b):
    """torch.nn.LayerNorm over the last dim (biased variance). x2:(L,C), g/b:(1,C)."""
    mu = jnp.mean(x2, axis=-1, keepdims=True)
    var = jnp.mean(jnp.square(x2 - mu), axis=-1, keepdims=True)
    return (x2 - mu) * jax.lax.rsqrt(var + LN_EPS) * g + b


def _gelu(x):
    # tanh-approx GELU (EUP tanh); difference vs exact-erf GELU << tolerance.
    return 0.5 * x * (1.0 + jnp.tanh(0.7978845608028654 * (x + 0.044715 * x * x * x)))


# -------------------- fused BasicLayer kernel (one batch row) ----------------
def basic_layer_kernel(x_ref, ln1g_ref, ln1b_ref, qkvw_ref, qkvb_ref,
                       projw_ref, projb_ref, rpb_ref, ln2g_ref, ln2b_ref,
                       fc1w_ref, fc1b_ref, fc2w_ref, fc2b_ref,
                       convw_ref, convb_ref, o_ref, pad_ref):
    x2 = x_ref[0]                                   # (L, C) f32 residual carry

    # -------------------- depth SwinBlocks, all weights VMEM-resident --------
    for d in range(DEPTH):                          # static unroll (DEPTH small)
        # ---- W-MSA: LN -> fused QKV matmul -> per-head attention -> proj ----
        y2 = _layer_norm(x2, ln1g_ref[d], ln1b_ref[d])
        qkv = jnp.dot(y2.astype(BF16), qkvw_ref[d],
                      preferred_element_type=jnp.float32) + qkvb_ref[d]
        rpb = rpb_ref[d]                            # (heads, N, N) f32

        heads_out = []
        for h in range(NUM_HEADS):                  # static unroll, heads small
            lo = h * HEAD_DIM
            qh = (qkv[:, lo:lo + HEAD_DIM] * SCALE).astype(BF16)
            kh = qkv[:, DIM + lo:DIM + lo + HEAD_DIM].astype(BF16)
            vh = qkv[:, 2 * DIM + lo:2 * DIM + lo + HEAD_DIM].astype(BF16)
            s = jax.lax.dot_general(qh, kh, (((1,), (1,)), ((), ())),
                                    preferred_element_type=jnp.float32)
            s = s + rpb[h]
            s = s - jnp.max(s, axis=-1, keepdims=True)
            p = jnp.exp(s)
            p = p * pl.reciprocal(jnp.sum(p, axis=-1, keepdims=True), approx=True)
            heads_out.append(jnp.dot(p.astype(BF16), vh,
                                     preferred_element_type=jnp.float32))
        # single K=128 output projection on the concatenated heads
        attn = jnp.concatenate(heads_out, axis=-1)          # (L, C)
        attn = jnp.dot(attn.astype(BF16), projw_ref[d],
                       preferred_element_type=jnp.float32) + projb_ref[d]
        x2 = x2 + attn                                       # residual 1

        # ---- MLP: LN -> fc1 -> GELU -> fc2 ----------------------------------
        y2 = _layer_norm(x2, ln2g_ref[d], ln2b_ref[d])
        y2 = jnp.dot(y2.astype(BF16), fc1w_ref[d],
                     preferred_element_type=jnp.float32) + fc1b_ref[d]
        y2 = _gelu(y2)
        y2 = jnp.dot(y2.astype(BF16), fc2w_ref[d],
                     preferred_element_type=jnp.float32) + fc2b_ref[d]
        x2 = x2 + y2                                         # residual 2

    # -------------------- fused Conv2d(3x3, pad=1) + ReLU --------------------
    # zero-padded NHWC tile built in a VMEM scratch (no wrapper-side jnp.pad)
    pad_ref[...] = jnp.zeros_like(pad_ref)
    pad_ref[1:H + 1, 1:W + 1, :] = x2.reshape(H, W, DIM)
    xp = pad_ref[...]                                        # (H+2, W+2, C)

    # im2col slab (L, 9*C) in bf16 -> one K=9*C matmul on the MXU
    taps = []
    for ky in range(3):
        for kx in range(3):
            taps.append(xp[ky:ky + H, kx:kx + W, :].reshape(L, DIM).astype(BF16))
    col = jnp.concatenate(taps, axis=-1)                     # (L, 9*C)
    y = jnp.dot(col, convw_ref[...], preferred_element_type=jnp.float32)
    y = jnp.maximum(y + convb_ref[...], 0.0)
    o_ref[...] = y[None]                                     # (1, L, C)


# ------------------------------ forward wrapper ------------------------------
def _resident_spec(a):
    """Full-array block with a constant index map -> weight stays VMEM-resident."""
    nd = a.ndim
    return pl.BlockSpec(a.shape, lambda b, _nd=nd: (0,) * _nd)


def basic_layer_forward(params, x):
    B, Lx, C = x.shape
    assert (Lx, C) == (L, DIM)

    blk = params["blocks"]
    w_args = (blk["ln1_g"], blk["ln1_b"], blk["qkv_w"], blk["qkv_b"],
              blk["proj_w"], blk["proj_b"], blk["rpb"],
              blk["ln2_g"], blk["ln2_b"],
              blk["fc1_w"], blk["fc1_b"], blk["fc2_w"], blk["fc2_b"],
              params["conv_w"], params["conv_b"])

    x_spec = pl.BlockSpec((1, L, DIM), lambda b: (b, 0, 0))
    return pl.pallas_call(
        basic_layer_kernel,
        out_shape=jax.ShapeDtypeStruct((B, L, DIM), jnp.float32),
        grid=(B,),
        in_specs=[x_spec] + [_resident_spec(a) for a in w_args],
        out_specs=x_spec,
        scratch_shapes=[pltpu.VMEM((H + 2, W + 2, DIM), jnp.float32)],
        compiler_params=pltpu.CompilerParams(
            dimension_semantics=("parallel",)),
    )(x, *w_args)


# ------------------------------ parameters -----------------------------------
def _rel_position_index(ws):
    coords = np.stack(np.meshgrid(np.arange(ws), np.arange(ws), indexing="ij"))
    flat = coords.reshape(2, -1)
    rel = (flat[:, :, None] - flat[:, None, :]).transpose(1, 2, 0).astype(np.int64)
    rel[:, :, 0] += ws - 1
    rel[:, :, 1] += ws - 1
    rel[:, :, 0] *= 2 * ws - 1
    return rel.sum(-1)                         # (ws*ws, ws*ws)


def init_params(seed=0):
    keys = iter(jax.random.split(jax.random.PRNGKey(seed), 64))
    nrm = lambda shape, s: jax.random.normal(next(keys), shape, jnp.float32) * s

    rel_idx = jnp.asarray(_rel_position_index(WS).reshape(-1), jnp.int32)
    blocks = {k: [] for k in ("ln1_g", "ln1_b", "qkv_w", "qkv_b", "proj_w",
                              "proj_b", "rpb", "ln2_g", "ln2_b",
                              "fc1_w", "fc1_b", "fc2_w", "fc2_b")}
    for _ in range(DEPTH):
        blocks["ln1_g"].append(jnp.ones((1, DIM), jnp.float32))
        blocks["ln1_b"].append(jnp.zeros((1, DIM), jnp.float32))
        blocks["qkv_w"].append(nrm((DIM, 3 * DIM), 0.02))
        blocks["qkv_b"].append(nrm((1, 3 * DIM), 0.01))
        blocks["proj_w"].append(nrm((DIM, DIM), 0.02))
        blocks["proj_b"].append(nrm((1, DIM), 0.01))
        table = nrm(((2 * WS - 1) ** 2, NUM_HEADS), 0.02)
        bias = jnp.take(table, rel_idx, axis=0).reshape(N_WIN, N_WIN, NUM_HEADS)
        blocks["rpb"].append(jnp.transpose(bias, (2, 0, 1)))   # (heads, N, N)
        blocks["ln2_g"].append(jnp.ones((1, DIM), jnp.float32))
        blocks["ln2_b"].append(jnp.zeros((1, DIM), jnp.float32))
        blocks["fc1_w"].append(nrm((DIM, DIM_MLP), 0.02))
        blocks["fc1_b"].append(nrm((1, DIM_MLP), 0.01))
        blocks["fc2_w"].append(nrm((DIM_MLP, DIM), 0.02))
        blocks["fc2_b"].append(nrm((1, DIM), 0.01))
    blocks = {k: jnp.stack(v, axis=0) for k, v in blocks.items()}
    # matmul weights stored in bf16 (f32 accumulation in-kernel)
    for k in ("qkv_w", "proj_w", "fc1_w", "fc2_w"):
        blocks[k] = blocks[k].astype(BF16)
    conv_w = nrm((3, 3, DIM, DIM), 0.02)        # HWIO
    return dict(blocks=blocks,
                conv_w=conv_w.reshape(9 * DIM, DIM).astype(BF16),  # im2col layout
                conv_b=nrm((1, DIM), 0.01))


# ------------------------------ pure-JAX reference ----------------------------
def _ref_forward(params, x):
    HI = jax.lax.Precision.HIGHEST
    blk = params["blocks"]
    B = x.shape[0]
    f32 = lambda a: a.astype(jnp.float32)

    def ln(v, g, b):
        mu = jnp.mean(v, axis=-1, keepdims=True)
        var = jnp.mean(jnp.square(v - mu), axis=-1, keepdims=True)
        return (v - mu) * jax.lax.rsqrt(var + LN_EPS) * g + b

    for d in range(DEPTH):
        shortcut = x
        y = ln(x, blk["ln1_g"][d, 0], blk["ln1_b"][d, 0])
        # window_partition == identity reshape here (WS == H == W, shift = 0)
        qkv = jnp.einsum('blc,cd->bld', y, f32(blk["qkv_w"][d]),
                         precision=HI) + blk["qkv_b"][d, 0]
        qkv = qkv.reshape(B, L, 3, NUM_HEADS, HEAD_DIM).transpose(2, 0, 3, 1, 4)
        q, k, v = qkv[0] * SCALE, qkv[1], qkv[2]
        attn = jnp.einsum('bhnd,bhmd->bhnm', q, k, precision=HI) + blk["rpb"][d][None]
        attn = jax.nn.softmax(attn, axis=-1)
        o = jnp.einsum('bhnm,bhmd->bhnd', attn, v, precision=HI)
        o = o.transpose(0, 2, 1, 3).reshape(B, L, DIM)
        o = jnp.einsum('blc,cd->bld', o, f32(blk["proj_w"][d]),
                       precision=HI) + blk["proj_b"][d, 0]
        x = shortcut + o
        y = ln(x, blk["ln2_g"][d, 0], blk["ln2_b"][d, 0])
        y = jnp.einsum('blc,cd->bld', y, f32(blk["fc1_w"][d]),
                       precision=HI) + blk["fc1_b"][d, 0]
        y = jax.nn.gelu(y, approximate=False)
        y = jnp.einsum('blc,cd->bld', y, f32(blk["fc2_w"][d]),
                       precision=HI) + blk["fc2_b"][d, 0]
        x = x + y

    conv_w = f32(params["conv_w"]).reshape(3, 3, DIM, DIM)
    xh = x.reshape(B, H, W, DIM)
    y = jax.lax.conv_general_dilated(
        xh, conv_w, window_strides=(1, 1), padding=((1, 1), (1, 1)),
        dimension_numbers=('NHWC', 'HWIO', 'NHWC'), precision=HI)
    y = jnp.maximum(y + params["conv_b"].reshape(1, 1, 1, DIM), 0.0)
    return y.reshape(B, L, DIM)


# ----------------------------------- main -------------------------------------
if __name__ == "__main__":
    params = init_params(seed=0)
    x = jax.random.normal(jax.random.PRNGKey(0), (BATCH, L, DIM), jnp.float32)

    out = jax.jit(basic_layer_forward)(params, x)
    jax.block_until_ready(out)

    assert out.shape == (BATCH, L, DIM)
    assert bool(jnp.all(jnp.isfinite(out)))

    ref = jax.jit(_ref_forward)(params, x)
    err = float(jnp.max(jnp.abs(out - ref)))
    assert err < 5e-2, f"mismatch vs pure-JAX reference: max abs err {err}"

    print("KERNEL_OK")
</pallas_src>

<mosaic_0001>
module attributes {stable_mosaic.version = 11 : i64} {
  func.func @basic_layer_kernel(%arg0: i32, %arg1: memref<1x64x128xf32, #tpu.memory_space<vmem>>, %arg2: memref<2x1x128xf32, #tpu.memory_space<vmem>>, %arg3: memref<2x1x128xf32, #tpu.memory_space<vmem>>, %arg4: memref<2x128x384xbf16, #tpu.memory_space<vmem>>, %arg5: memref<2x1x384xf32, #tpu.memory_space<vmem>>, %arg6: memref<2x128x128xbf16, #tpu.memory_space<vmem>>, %arg7: memref<2x1x128xf32, #tpu.memory_space<vmem>>, %arg8: memref<2x4x64x64xf32, #tpu.memory_space<vmem>>, %arg9: memref<2x1x128xf32, #tpu.memory_space<vmem>>, %arg10: memref<2x1x128xf32, #tpu.memory_space<vmem>>, %arg11: memref<2x128x256xbf16, #tpu.memory_space<vmem>>, %arg12: memref<2x1x256xf32, #tpu.memory_space<vmem>>, %arg13: memref<2x256x128xbf16, #tpu.memory_space<vmem>>, %arg14: memref<2x1x128xf32, #tpu.memory_space<vmem>>, %arg15: memref<1152x128xbf16, #tpu.memory_space<vmem>>, %arg16: memref<1x128xf32, #tpu.memory_space<vmem>>, %arg17: memref<1x64x128xf32, #tpu.memory_space<vmem>>, %arg18: memref<10x10x128xf32, #tpu.memory_space<vmem>>) attributes {dimension_semantics = [#tpu.dimension_semantics<parallel>], iteration_bounds = array<i64: 2>, scalar_prefetch = 0 : i64, scratch_operands = 1 : i64, tpu.core_type = #tpu.core_type<tc>, window_params = [{transform_indices = @transform_0, window_bounds = array<i64: 1, 64, 128>}, {pipeline_mode = #tpu.pipeline_mode<synchronous>, transform_indices = @transform_1, window_bounds = array<i64: 2, 1, 128>}, {pipeline_mode = #tpu.pipeline_mode<synchronous>, transform_indices = @transform_2, window_bounds = array<i64: 2, 1, 128>}, {pipeline_mode = #tpu.pipeline_mode<synchronous>, transform_indices = @transform_3, window_bounds = array<i64: 2, 128, 384>}, {pipeline_mode = #tpu.pipeline_mode<synchronous>, transform_indices = @transform_4, window_bounds = array<i64: 2, 1, 384>}, {pipeline_mode = #tpu.pipeline_mode<synchronous>, transform_indices = @transform_5, window_bounds = array<i64: 2, 128, 128>}, {pipeline_mode = #tpu.pipeline_mode<synchronous>, transform_indices = @transform_6, window_bounds = array<i64: 2, 1, 128>}, {pipeline_mode = #tpu.pipeline_mode<synchronous>, transform_indices = @transform_7, window_bounds = array<i64: 2, 4, 64, 64>}, {pipeline_mode = #tpu.pipeline_mode<synchronous>, transform_indices = @transform_8, window_bounds = array<i64: 2, 1, 128>}, {pipeline_mode = #tpu.pipeline_mode<synchronous>, transform_indices = @transform_9, window_bounds = array<i64: 2, 1, 128>}, {pipeline_mode = #tpu.pipeline_mode<synchronous>, transform_indices = @transform_10, window_bounds = array<i64: 2, 128, 256>}, {pipeline_mode = #tpu.pipeline_mode<synchronous>, transform_indices = @transform_11, window_bounds = array<i64: 2, 1, 256>}, {pipeline_mode = #tpu.pipeline_mode<synchronous>, transform_indices = @transform_12, window_bounds = array<i64: 2, 256, 128>}, {pipeline_mode = #tpu.pipeline_mode<synchronous>, transform_indices = @transform_13, window_bounds = array<i64: 2, 1, 128>}, {pipeline_mode = #tpu.pipeline_mode<synchronous>, transform_indices = @transform_14, window_bounds = array<i64: 1152, 128>}, {pipeline_mode = #tpu.pipeline_mode<synchronous>, transform_indices = @transform_15, window_bounds = array<i64: 1, 128>}, {transform_indices = @transform_16, window_bounds = array<i64: 1, 64, 128>}]} {
    %c0 = arith.constant 0 : index
    %c0_0 = arith.constant 0 : index
    %c0_1 = arith.constant 0 : index
    %0 = vector.load %arg1[%c0, %c0_0, %c0_1] : memref<1x64x128xf32, #tpu.memory_space<vmem>>, vector<1x64x128xf32>
    %1 = vector.shape_cast %0 : vector<1x64x128xf32> to vector<64x128xf32>
    %c0_2 = arith.constant 0 : index
    %c0_3 = arith.constant 0 : index
    %c0_4 = arith.constant 0 : index
    %2 = vector.load %arg2[%c0_2, %c0_3, %c0_4] : memref<2x1x128xf32, #tpu.memory_space<vmem>>, vector<1x1x128xf32>
    %3 = vector.shape_cast %2 : vector<1x1x128xf32> to vector<1x128xf32>
    %c0_5 = arith.constant 0 : index
    %c0_6 = arith.constant 0 : index
    %c0_7 = arith.constant 0 : index
    %4 = vector.load %arg3[%c0_5, %c0_6, %c0_7] : memref<2x1x128xf32, #tpu.memory_space<vmem>>, vector<1x1x128xf32>
    %5 = vector.shape_cast %4 : vector<1x1x128xf32> to vector<1x128xf32>
    %cst = arith.constant dense<0.000000e+00> : vector<64xf32>
    %6 = vector.multi_reduction <add>, %1, %cst [1] : vector<64x128xf32> to vector<64xf32>
    %7 = vector.shape_cast %6 : vector<64xf32> to vector<64x1xf32>
    %cst_8 = arith.constant 1.280000e+02 : f32
    %8 = vector.broadcast %cst_8 : f32 to vector<64x1xf32>
    %9 = arith.divf %7, %8 : vector<64x1xf32>
    %10 = vector.broadcast %9 : vector<64x1xf32> to vector<64x128xf32>
    %11 = arith.subf %1, %10 : vector<64x128xf32>
    %12 = arith.mulf %11, %11 : vector<64x128xf32>
    %cst_9 = arith.constant dense<0.000000e+00> : vector<64xf32>
    %13 = vector.multi_reduction <add>, %12, %cst_9 [1] : vector<64x128xf32> to vector<64xf32>
    %14 = vector.shape_cast %13 : vector<64xf32> to vector<64x1xf32>
    %cst_10 = arith.constant 1.280000e+02 : f32
    %15 = vector.broadcast %cst_10 : f32 to vector<64x1xf32>
    %16 = arith.divf %14, %15 : vector<64x1xf32>
    %17 = vector.broadcast %9 : vector<64x1xf32> to vector<64x128xf32>
    %18 = arith.subf %1, %17 : vector<64x128xf32>
    %cst_11 = arith.constant 9.99999974E-6 : f32
    %19 = vector.broadcast %cst_11 : f32 to vector<64x1xf32>
    %20 = arith.addf %16, %19 : vector<64x1xf32>
    %21 = math.rsqrt %20 : vector<64x1xf32>
    %22 = vector.broadcast %21 : vector<64x1xf32> to vector<64x128xf32>
    %23 = arith.mulf %18, %22 : vector<64x128xf32>
    %24 = vector.broadcast %3 : vector<1x128xf32> to vector<64x128xf32>
    %25 = arith.mulf %23, %24 : vector<64x128xf32>
    %26 = vector.broadcast %5 : vector<1x128xf32> to vector<64x128xf32>
    %27 = arith.addf %25, %26 : vector<64x128xf32>
    %28 = arith.truncf %27 : vector<64x128xf32> to vector<64x128xbf16>
    %c0_12 = arith.constant 0 : index
    %c0_13 = arith.constant 0 : index
    %c0_14 = arith.constant 0 : index
    %29 = vector.load %arg4[%c0_12, %c0_13, %c0_14] : memref<2x128x384xbf16, #tpu.memory_space<vmem>>, vector<1x128x384xbf16>
    %30 = vector.shape_cast %29 : vector<1x128x384xbf16> to vector<128x384xbf16>
    %cst_15 = arith.constant dense<0.000000e+00> : vector<64x384xf32>
    %31 = tpu.matmul %28, %30, %cst_15 {dimension_numbers = #tpu.dot_dimension_numbers<[1], [0], [0], [1], [0, 0, 1, 1], [], []>} : vector<64x128xbf16>, vector<128x384xbf16>, vector<64x384xf32> -> vector<64x384xf32>
    %c0_16 = arith.constant 0 : index
    %c0_17 = arith.constant 0 : index
    %c0_18 = arith.constant 0 : index
    %32 = vector.load %arg5[%c0_16, %c0_17, %c0_18] : memref<2x1x384xf32, #tpu.memory_space<vmem>>, vector<1x1x384xf32>
    %33 = vector.shape_cast %32 : vector<1x1x384xf32> to vector<1x384xf32>
    %34 = vector.broadcast %33 : vector<1x384xf32> to vector<64x384xf32>
    %35 = arith.addf %31, %34 : vector<64x384xf32>
    %c0_19 = arith.constant 0 : index
    %c0_20 = arith.constant 0 : index
    %c0_21 = arith.constant 0 : index
    %c0_22 = arith.constant 0 : index
    %36 = vector.load %arg8[%c0_19, %c0_20, %c0_21, %c0_22] : memref<2x4x64x64xf32, #tpu.memory_space<vmem>>, vector<1x4x64x64xf32>
    %37 = vector.shape_cast %36 : vector<1x4x64x64xf32> to vector<4x64x64xf32>
    %38 = vector.extract_strided_slice %35 {offsets = [0, 0], sizes = [64, 32], strides = [1, 1]} : vector<64x384xf32> to vector<64x32xf32>
    %cst_23 = arith.constant 0.176776692 : f32
    %39 = vector.broadcast %cst_23 : f32 to vector<64x32xf32>
    %40 = arith.mulf %38, %39 : vector<64x32xf32>
    %41 = arith.truncf %40 : vector<64x32xf32> to vector<64x32xbf16>
    %42 = vector.extract_strided_slice %35 {offsets = [0, 128], sizes = [64, 32], strides = [1, 1]} : vector<64x384xf32> to vector<64x32xf32>
    %43 = arith.truncf %42 : vector<64x32xf32> to vector<64x32xbf16>
    %44 = vector.extract_strided_slice %35 {offsets = [0, 256], sizes = [64, 32], strides = [1, 1]} : vector<64x384xf32> to vector<64x32xf32>
    %45 = arith.truncf %44 : vector<64x32xf32> to vector<64x32xbf16>
    %cst_24 = arith.constant dense<0.000000e+00> : vector<64x64xf32>
    %46 = tpu.matmul %41, %43, %cst_24 {dimension_numbers = #tpu.dot_dimension_numbers<[1], [1], [0], [0], [0, 0, 1, 0], [], []>} : vector<64x32xbf16>, vector<64x32xbf16>, vector<64x64xf32> -> vector<64x64xf32>
    %47 = vector.extract_strided_slice %37 {offsets = [0, 0, 0], sizes = [1, 64, 64], strides = [1, 1, 1]} : vector<4x64x64xf32> to vector<1x64x64xf32>
    %48 = vector.shape_cast %47 : vector<1x64x64xf32> to vector<64x64xf32>
    %49 = arith.addf %46, %48 : vector<64x64xf32>
    %cst_25 = arith.constant dense<0xFF800000> : vector<64xf32>
    %50 = vector.multi_reduction <maximumf>, %49, %cst_25 [1] : vector<64x64xf32> to vector<64xf32>
    %51 = vector.shape_cast %50 : vector<64xf32> to vector<64x1xf32>
    %52 = vector.broadcast %51 : vector<64x1xf32> to vector<64x64xf32>
    %53 = arith.subf %49, %52 : vector<64x64xf32>
    %54 = math.exp %53 : vector<64x64xf32>
    %cst_26 = arith.constant dense<0.000000e+00> : vector<64xf32>
    %55 = vector.multi_reduction <add>, %54, %cst_26 [1] : vector<64x64xf32> to vector<64xf32>
    %56 = vector.shape_cast %55 : vector<64xf32> to vector<64x1xf32>
    %57 = tpu.reciprocal %56 {approx = true} : vector<64x1xf32> -> vector<64x1xf32>
    %58 = vector.broadcast %57 : vector<64x1xf32> to vector<64x64xf32>
    %59 = arith.mulf %54, %58 : vector<64x64xf32>
    %60 = arith.truncf %59 : vector<64x64xf32> to vector<64x64xbf16>
    %cst_27 = arith.constant dense<0.000000e+00> : vector<64x32xf32>
    %61 = tpu.matmul %60, %45, %cst_27 {dimension_numbers = #tpu.dot_dimension_numbers<[1], [0], [0], [1], [0, 0, 1, 1], [], []>} : vector<64x64xbf16>, vector<64x32xbf16>, vector<64x32xf32> -> vector<64x32xf32>
    %62 = vector.extract_strided_slice %35 {offsets = [0, 32], sizes = [64, 32], strides = [1, 1]} : vector<64x384xf32> to vector<64x32xf32>
    %cst_28 = arith.constant 0.176776692 : f32
    %63 = vector.broadcast %cst_28 : f32 to vector<64x32xf32>
    %64 = arith.mulf %62, %63 : vector<64x32xf32>
    %65 = arith.truncf %64 : vector<64x32xf32> to vector<64x32xbf16>
    %66 = vector.extract_strided_slice %35 {offsets = [0, 160], sizes = [64, 32], strides = [1, 1]} : vector<64x384xf32> to vector<64x32xf32>
    %67 = arith.truncf %66 : vector<64x32xf32> to vector<64x32xbf16>
    %68 = vector.extract_strided_slice %35 {offsets = [0, 288], sizes = [64, 32], strides = [1, 1]} : vector<64x384xf32> to vector<64x32xf32>
    %69 = arith.truncf %68 : vector<64x32xf32> to vector<64x32xbf16>
    %cst_29 = arith.constant dense<0.000000e+00> : vector<64x64xf32>
    %70 = tpu.matmul %65, %67, %cst_29 {dimension_numbers = #tpu.dot_dimension_numbers<[1], [1], [0], [0], [0, 0, 1, 0], [], []>} : vector<64x32xbf16>, vector<64x32xbf16>, vector<64x64xf32> -> vector<64x64xf32>
    %71 = vector.extract_strided_slice %37 {offsets = [1, 0, 0], sizes = [1, 64, 64], strides = [1, 1, 1]} : vector<4x64x64xf32> to vector<1x64x64xf32>
    %72 = vector.shape_cast %71 : vector<1x64x64xf32> to vector<64x64xf32>
    %73 = arith.addf %70, %72 : vector<64x64xf32>
    %cst_30 = arith.constant dense<0xFF800000> : vector<64xf32>
    %74 = vector.multi_reduction <maximumf>, %73, %cst_30 [1] : vector<64x64xf32> to vector<64xf32>
    %75 = vector.shape_cast %74 : vector<64xf32> to vector<64x1xf32>
    %76 = vector.broadcast %75 : vector<64x1xf32> to vector<64x64xf32>
    %77 = arith.subf %73, %76 : vector<64x64xf32>
    %78 = math.exp %77 : vector<64x64xf32>
    %cst_31 = arith.constant dense<0.000000e+00> : vector<64xf32>
    %79 = vector.multi_reduction <add>, %78, %cst_31 [1] : vector<64x64xf32> to vector<64xf32>
    %80 = vector.shape_cast %79 : vector<64xf32> to vector<64x1xf32>
    %81 = tpu.reciprocal %80 {approx = true} : vector<64x1xf32> -> vector<64x1xf32>
    %82 = vector.broadcast %81 : vector<64x1xf32> to vector<64x64xf32>
    %83 = arith.mulf %78, %82 : vector<64x64xf32>
    %84 = arith.truncf %83 : vector<64x64xf32> to vector<64x64xbf16>
    %cst_32 = arith.constant dense<0.000000e+00> : vector<64x32xf32>
    %85 = tpu.matmul %84, %69, %cst_32 {dimension_numbers = #tpu.dot_dimension_numbers<[1], [0], [0], [1], [0, 0, 1, 1], [], []>} : vector<64x64xbf16>, vector<64x32xbf16>, vector<64x32xf32> -> vector<64x32xf32>
    %86 = vector.extract_strided_slice %35 {offsets = [0, 64], sizes = [64, 32], strides = [1, 1]} : vector<64x384xf32> to vector<64x32xf32>
    %cst_33 = arith.constant 0.176776692 : f32
    %87 = vector.broadcast %cst_33 : f32 to vector<64x32xf32>
    %88 = arith.mulf %86, %87 : vector<64x32xf32>
    %89 = arith.truncf %88 : vector<64x32xf32> to vector<64x32xbf16>
    %90 = vector.extract_strided_slice %35 {offsets = [0, 192], sizes = [64, 32], strides = [1, 1]} : vector<64x384xf32> to vector<64x32xf32>
    %91 = arith.truncf %90 : vector<64x32xf32> to vector<64x32xbf16>
    %92 = vector.extract_strided_slice %35 {offsets = [0, 320], sizes = [64, 32], strides = [1, 1]} : vector<64x384xf32> to vector<64x32xf32>
    %93 = arith.truncf %92 : vector<64x32xf32> to vector<64x32xbf16>
    %cst_34 = arith.constant dense<0.000000e+00> : vector<64x64xf32>
    %94 = tpu.matmul %89, %91, %cst_34 {dimension_numbers = #tpu.dot_dimension_numbers<[1], [1], [0], [0], [0, 0, 1, 0], [], []>} : vector<64x32xbf16>, vector<64x32xbf16>, vector<64x64xf32> -> vector<64x64xf32>
    %95 = vector.extract_strided_slice %37 {offsets = [2, 0, 0], sizes = [1, 64, 64], strides = [1, 1, 1]} : vector<4x64x64xf32> to vector<1x64x64xf32>
    %96 = vector.shape_cast %95 : vector<1x64x64xf32> to vector<64x64xf32>
    %97 = arith.addf %94, %96 : vector<64x64xf32>
    %cst_35 = arith.constant dense<0xFF800000> : vector<64xf32>
    %98 = vector.multi_reduction <maximumf>, %97, %cst_35 [1] : vector<64x64xf32> to vector<64xf32>
    %99 = vector.shape_cast %98 : vector<64xf32> to vector<64x1xf32>
    %100 = vector.broadcast %99 : vector<64x1xf32> to vector<64x64xf32>
    %101 = arith.subf %97, %100 : vector<64x64xf32>
    %102 = math.exp %101 : vector<64x64xf32>
    %cst_36 = arith.constant dense<0.000000e+00> : vector<64xf32>
    %103 = vector.multi_reduction <add>, %102, %cst_36 [1] : vector<64x64xf32> to vector<64xf32>
    %104 = vector.shape_cast %103 : vector<64xf32> to vector<64x1xf32>
    %105 = tpu.reciprocal %104 {approx = true} : vector<64x1xf32> -> vector<64x1xf32>
    %106 = vector.broadcast %105 : vector<64x1xf32> to vector<64x64xf32>
    %107 = arith.mulf %102, %106 : vector<64x64xf32>
    %108 = arith.truncf %107 : vector<64x64xf32> to vector<64x64xbf16>
    %cst_37 = arith.constant dense<0.000000e+00> : vector<64x32xf32>
    %109 = tpu.matmul %108, %93, %cst_37 {dimension_numbers = #tpu.dot_dimension_numbers<[1], [0], [0], [1], [0, 0, 1, 1], [], []>} : vector<64x64xbf16>, vector<64x32xbf16>, vector<64x32xf32> -> vector<64x32xf32>
    %110 = vector.extract_strided_slice %35 {offsets = [0, 96], sizes = [64, 32], strides = [1, 1]} : vector<64x384xf32> to vector<64x32xf32>
    %cst_38 = arith.constant 0.176776692 : f32
    %111 = vector.broadcast %cst_38 : f32 to vector<64x32xf32>
    %112 = arith.mulf %110, %111 : vector<64x32xf32>
    %113 = arith.truncf %112 : vector<64x32xf32> to vector<64x32xbf16>
    %114 = vector.extract_strided_slice %35 {offsets = [0, 224], sizes = [64, 32], strides = [1, 1]} : vector<64x384xf32> to vector<64x32xf32>
    %115 = arith.truncf %114 : vector<64x32xf32> to vector<64x32xbf16>
    %116 = vector.extract_strided_slice %35 {offsets = [0, 352], sizes = [64, 32], strides = [1, 1]} : vector<64x384xf32> to vector<64x32xf32>
    %117 = arith.truncf %116 : vector<64x32xf32> to vector<64x32xbf16>
    %cst_39 = arith.constant dense<0.000000e+00> : vector<64x64xf32>
    %118 = tpu.matmul %113, %115, %cst_39 {dimension_numbers = #tpu.dot_dimension_numbers<[1], [1], [0], [0], [0, 0, 1, 0], [], []>} : vector<64x32xbf16>, vector<64x32xbf16>, vector<64x64xf32> -> vector<64x64xf32>
    %119 = vector.extract_strided_slice %37 {offsets = [3, 0, 0], sizes = [1, 64, 64], strides = [1, 1, 1]} : vector<4x64x64xf32> to vector<1x64x64xf32>
    %120 = vector.shape_cast %119 : vector<1x64x64xf32> to vector<64x64xf32>
    %121 = arith.addf %118, %120 : vector<64x64xf32>
    %cst_40 = arith.constant dense<0xFF800000> : vector<64xf32>
    %122 = vector.multi_reduction <maximumf>, %121, %cst_40 [1] : vector<64x64xf32> to vector<64xf32>
    %123 = vector.shape_cast %122 : vector<64xf32> to vector<64x1xf32>
    %124 = vector.broadcast %123 : vector<64x1xf32> to vector<64x64xf32>
    %125 = arith.subf %121, %124 : vector<64x64xf32>
    %126 = math.exp %125 : vector<64x64xf32>
    %cst_41 = arith.constant dense<0.000000e+00> : vector<64xf32>
    %127 = vector.multi_reduction <add>, %126, %cst_41 [1] : vector<64x64xf32> to vector<64xf32>
    %128 = vector.shape_cast %127 : vector<64xf32> to vector<64x1xf32>
    %129 = tpu.reciprocal %128 {approx = true} : vector<64x1xf32> -> vector<64x1xf32>
    %130 = vector.broadcast %129 : vector<64x1xf32> to vector<64x64xf32>
    %131 = arith.mulf %126, %130 : vector<64x64xf32>
    %132 = arith.truncf %131 : vector<64x64xf32> to vector<64x64xbf16>
    %cst_42 = arith.constant dense<0.000000e+00> : vector<64x32xf32>
    %133 = tpu.matmul %132, %117, %cst_42 {dimension_numbers = #tpu.dot_dimension_numbers<[1], [0], [0], [1], [0, 0, 1, 1], [], []>} : vector<64x64xbf16>, vector<64x32xbf16>, vector<64x32xf32> -> vector<64x32xf32>
    %134 = tpu.concatenate %61, %85, %109, %133 in 1 : vector<64x32xf32>, vector<64x32xf32>, vector<64x32xf32>, vector<64x32xf32> -> vector<64x128xf32>
    %135 = arith.truncf %134 : vector<64x128xf32> to vector<64x128xbf16>
    %c0_43 = arith.constant 0 : index
    %c0_44 = arith.constant 0 : index
    %c0_45 = arith.constant 0 : index
    %136 = vector.load %arg6[%c0_43, %c0_44, %c0_45] : memref<2x128x128xbf16, #tpu.memory_space<vmem>>, vector<1x128x128xbf16>
    %137 = vector.shape_cast %136 : vector<1x128x128xbf16> to vector<128x128xbf16>
    %cst_46 = arith.constant dense<0.000000e+00> : vector<64x128xf32>
    %138 = tpu.matmul %135, %137, %cst_46 {dimension_numbers = #tpu.dot_dimension_numbers<[1], [0], [0], [1], [0, 0, 1, 1], [], []>} : vector<64x128xbf16>, vector<128x128xbf16>, vector<64x128xf32> -> vector<64x128xf32>
    %c0_47 = arith.constant 0 : index
    %c0_48 = arith.constant 0 : index
    %c0_49 = arith.constant 0 : index
    %139 = vector.load %arg7[%c0_47, %c0_48, %c0_49] : memref<2x1x128xf32, #tpu.memory_space<vmem>>, vector<1x1x128xf32>
    %140 = vector.shape_cast %139 : vector<1x1x128xf32> to vector<1x128xf32>
    %141 = vector.broadcast %140 : vector<1x128xf32> to vector<64x128xf32>
    %142 = arith.addf %138, %141 : vector<64x128xf32>
    %143 = arith.addf %1, %142 : vector<64x128xf32>
    %c0_50 = arith.constant 0 : index
    %c0_51 = arith.constant 0 : index
    %c0_52 = arith.constant 0 : index
    %144 = vector.load %arg9[%c0_50, %c0_51, %c0_52] : memref<2x1x128xf32, #tpu.memory_space<vmem>>, vector<1x1x128xf32>
    %145 = vector.shape_cast %144 : vector<1x1x128xf32> to vector<1x128xf32>
    %c0_53 = arith.constant 0 : index
    %c0_54 = arith.constant 0 : index
    %c0_55 = arith.constant 0 : index
    %146 = vector.load %arg10[%c0_53, %c0_54, %c0_55] : memref<2x1x128xf32, #tpu.memory_space<vmem>>, vector<1x1x128xf32>
    %147 = vector.shape_cast %146 : vector<1x1x128xf32> to vector<1x128xf32>
    %cst_56 = arith.constant dense<0.000000e+00> : vector<64xf32>
    %148 = vector.multi_reduction <add>, %143, %cst_56 [1] : vector<64x128xf32> to vector<64xf32>
    %149 = vector.shape_cast %148 : vector<64xf32> to vector<64x1xf32>
    %cst_57 = arith.constant 1.280000e+02 : f32
    %150 = vector.broadcast %cst_57 : f32 to vector<64x1xf32>
    %151 = arith.divf %149, %150 : vector<64x1xf32>
    %152 = vector.broadcast %151 : vector<64x1xf32> to vector<64x128xf32>
    %153 = arith.subf %143, %152 : vector<64x128xf32>
    %154 = arith.mulf %153, %153 : vector<64x128xf32>
    %cst_58 = arith.constant dense<0.000000e+00> : vector<64xf32>
    %155 = vector.multi_reduction <add>, %154, %cst_58 [1] : vector<64x128xf32> to vector<64xf32>
    %156 = vector.shape_cast %155 : vector<64xf32> to vector<64x1xf32>
    %cst_59 = arith.constant 1.280000e+02 : f32
    %157 = vector.broadcast %cst_59 : f32 to vector<64x1xf32>
    %158 = arith.divf %156, %157 : vector<64x1xf32>
    %159 = vector.broadcast %151 : vector<64x1xf32> to vector<64x128xf32>
    %160 = arith.subf %143, %159 : vector<64x128xf32>
    %cst_60 = arith.constant 9.99999974E-6 : f32
    %161 = vector.broadcast %cst_60 : f32 to vector<64x1xf32>
    %162 = arith.addf %158, %161 : vector<64x1xf32>
    %163 = math.rsqrt %162 : vector<64x1xf32>
    %164 = vector.broadcast %163 : vector<64x1xf32> to vector<64x128xf32>
    %165 = arith.mulf %160, %164 : vector<64x128xf32>
    %166 = vector.broadcast %145 : vector<1x128xf32> to vector<64x128xf32>
    %167 = arith.mulf %165, %166 : vector<64x128xf32>
    %168 = vector.broadcast %147 : vector<1x128xf32> to vector<64x128xf32>
    %169 = arith.addf %167, %168 : vector<64x128xf32>
    %170 = arith.truncf %169 : vector<64x128xf32> to vector<64x128xbf16>
    %c0_61 = arith.constant 0 : index
    %c0_62 = arith.constant 0 : index
    %c0_63 = arith.constant 0 : index
    %171 = vector.load %arg11[%c0_61, %c0_62, %c0_63] : memref<2x128x256xbf16, #tpu.memory_space<vmem>>, vector<1x128x256xbf16>
    %172 = vector.shape_cast %171 : vector<1x128x256xbf16> to vector<128x256xbf16>
    %cst_64 = arith.constant dense<0.000000e+00> : vector<64x256xf32>
    %173 = tpu.matmul %170, %172, %cst_64 {dimension_numbers = #tpu.dot_dimension_numbers<[1], [0], [0], [1], [0, 0, 1, 1], [], []>} : vector<64x128xbf16>, vector<128x256xbf16>, vector<64x256xf32> -> vector<64x256xf32>
    %c0_65 = arith.constant 0 : index
    %c0_66 = arith.constant 0 : index
    %c0_67 = arith.constant 0 : index
    %174 = vector.load %arg12[%c0_65, %c0_66, %c0_67] : memref<2x1x256xf32, #tpu.memory_space<vmem>>, vector<1x1x256xf32>
    %175 = vector.shape_cast %174 : vector<1x1x256xf32> to vector<1x256xf32>
    %176 = vector.broadcast %175 : vector<1x256xf32> to vector<64x256xf32>
    %177 = arith.addf %173, %176 : vector<64x256xf32>
    %cst_68 = arith.constant 5.000000e-01 : f32
    %178 = vector.broadcast %cst_68 : f32 to vector<64x256xf32>
    %179 = arith.mulf %178, %177 : vector<64x256xf32>
    %cst_69 = arith.constant 4.471500e-02 : f32
    %180 = vector.broadcast %cst_69 : f32 to vector<64x256xf32>
    %181 = arith.mulf %180, %177 : vector<64x256xf32>
    %182 = arith.mulf %181, %177 : vector<64x256xf32>
    %183 = arith.mulf %182, %177 : vector<64x256xf32>
    %184 = arith.addf %177, %183 : vector<64x256xf32>
    %cst_70 = arith.constant 0.797884583 : f32
    %185 = vector.broadcast %cst_70 : f32 to vector<64x256xf32>
    %186 = arith.mulf %185, %184 : vector<64x256xf32>
    %187 = math.tanh %186 : vector<64x256xf32>
    %cst_71 = arith.constant 1.000000e+00 : f32
    %188 = vector.broadcast %cst_71 : f32 to vector<64x256xf32>
    %189 = arith.addf %188, %187 : vector<64x256xf32>
    %190 = arith.mulf %179, %189 : vector<64x256xf32>
    %191 = arith.truncf %190 : vector<64x256xf32> to vector<64x256xbf16>
    %c0_72 = arith.constant 0 : index
    %c0_73 = arith.constant 0 : index
    %c0_74 = arith.constant 0 : index
    %192 = vector.load %arg13[%c0_72, %c0_73, %c0_74] : memref<2x256x128xbf16, #tpu.memory_space<vmem>>, vector<1x256x128xbf16>
    %193 = vector.shape_cast %192 : vector<1x256x128xbf16> to vector<256x128xbf16>
    %cst_75 = arith.constant dense<0.000000e+00> : vector<64x128xf32>
    %194 = tpu.matmul %191, %193, %cst_75 {dimension_numbers = #tpu.dot_dimension_numbers<[1], [0], [0], [1], [0, 0, 1, 1], [], []>} : vector<64x256xbf16>, vector<256x128xbf16>, vector<64x128xf32> -> vector<64x128xf32>
    %c0_76 = arith.constant 0 : index
    %c0_77 = arith.constant 0 : index
    %c0_78 = arith.constant 0 : index
    %195 = vector.load %arg14[%c0_76, %c0_77, %c0_78] : memref<2x1x128xf32, #tpu.memory_space<vmem>>, vector<1x1x128xf32>
    %196 = vector.shape_cast %195 : vector<1x1x128xf32> to vector<1x128xf32>
    %197 = vector.broadcast %196 : vector<1x128xf32> to vector<64x128xf32>
    %198 = arith.addf %194, %197 : vector<64x128xf32>
    %199 = arith.addf %143, %198 : vector<64x128xf32>
    %c1 = arith.constant 1 : index
    %c0_79 = arith.constant 0 : index
    %c0_80 = arith.constant 0 : index
    %200 = vector.load %arg2[%c1, %c0_79, %c0_80] : memref<2x1x128xf32, #tpu.memory_space<vmem>>, vector<1x1x128xf32>
    %201 = vector.shape_cast %200 : vector<1x1x128xf32> to vector<1x128xf32>
    %c1_81 = arith.constant 1 : index
    %c0_82 = arith.constant 0 : index
    %c0_83 = arith.constant 0 : index
    %202 = vector.load %arg3[%c1_81, %c0_82, %c0_83] : memref<2x1x128xf32, #tpu.memory_space<vmem>>, vector<1x1x128xf32>
    %203 = vector.shape_cast %202 : vector<1x1x128xf32> to vector<1x128xf32>
    %cst_84 = arith.constant dense<0.000000e+00> : vector<64xf32>
    %204 = vector.multi_reduction <add>, %199, %cst_84 [1] : vector<64x128xf32> to vector<64xf32>
    %205 = vector.shape_cast %204 : vector<64xf32> to vector<64x1xf32>
    %cst_85 = arith.constant 1.280000e+02 : f32
    %206 = vector.broadcast %cst_85 : f32 to vector<64x1xf32>
    %207 = arith.divf %205, %206 : vector<64x1xf32>
    %208 = vector.broadcast %207 : vector<64x1xf32> to vector<64x128xf32>
    %209 = arith.subf %199, %208 : vector<64x128xf32>
    %210 = arith.mulf %209, %209 : vector<64x128xf32>
    %cst_86 = arith.constant dense<0.000000e+00> : vector<64xf32>
    %211 = vector.multi_reduction <add>, %210, %cst_86 [1] : vector<64x128xf32> to vector<64xf32>
    %212 = vector.shape_cast %211 : vector<64xf32> to vector<64x1xf32>
    %cst_87 = arith.constant 1.280000e+02 : f32
    %213 = vector.broadcast %cst_87 : f32 to vector<64x1xf32>
    %214 = arith.divf %212, %213 : vector<64x1xf32>
    %215 = vector.broadcast %207 : vector<64x1xf32> to vector<64x128xf32>
    %216 = arith.subf %199, %215 : vector<64x128xf32>
    %cst_88 = arith.constant 9.99999974E-6 : f32
    %217 = vector.broadcast %cst_88 : f32 to vector<64x1xf32>
    %218 = arith.addf %214, %217 : vector<64x1xf32>
    %219 = math.rsqrt %218 : vector<64x1xf32>
    %220 = vector.broadcast %219 : vector<64x1xf32> to vector<64x128xf32>
    %221 = arith.mulf %216, %220 : vector<64x128xf32>
    %222 = vector.broadcast %201 : vector<1x128xf32> to vector<64x128xf32>
    %223 = arith.mulf %221, %222 : vector<64x128xf32>
    %224 = vector.broadcast %203 : vector<1x128xf32> to vector<64x128xf32>
    %225 = arith.addf %223, %224 : vector<64x128xf32>
    %226 = arith.truncf %225 : vector<64x128xf32> to vector<64x128xbf16>
    %c1_89 = arith.constant 1 : index
    %c0_90 = arith.constant 0 : index
    %c0_91 = arith.constant 0 : index
    %227 = vector.load %arg4[%c1_89, %c0_90, %c0_91] : memref<2x128x384xbf16, #tpu.memory_space<vmem>>, vector<1x128x384xbf16>
    %228 = vector.shape_cast %227 : vector<1x128x384xbf16> to vector<128x384xbf16>
    %cst_92 = arith.constant dense<0.000000e+00> : vector<64x384xf32>
    %229 = tpu.matmul %226, %228, %cst_92 {dimension_numbers = #tpu.dot_dimension_numbers<[1], [0], [0], [1], [0, 0, 1, 1], [], []>} : vector<64x128xbf16>, vector<128x384xbf16>, vector<64x384xf32> -> vector<64x384xf32>
    %c1_93 = arith.constant 1 : index
    %c0_94 = arith.constant 0 : index
    %c0_95 = arith.constant 0 : index
    %230 = vector.load %arg5[%c1_93, %c0_94, %c0_95] : memref<2x1x384xf32, #tpu.memory_space<vmem>>, vector<1x1x384xf32>
    %231 = vector.shape_cast %230 : vector<1x1x384xf32> to vector<1x384xf32>
    %232 = vector.broadcast %231 : vector<1x384xf32> to vector<64x384xf32>
    %233 = arith.addf %229, %232 : vector<64x384xf32>
    %c1_96 = arith.constant 1 : index
    %c0_97 = arith.constant 0 : index
    %c0_98 = arith.constant 0 : index
    %c0_99 = arith.constant 0 : index
    %234 = vector.load %arg8[%c1_96, %c0_97, %c0_98, %c0_99] : memref<2x4x64x64xf32, #tpu.memory_space<vmem>>, vector<1x4x64x64xf32>
    %235 = vector.shape_cast %234 : vector<1x4x64x64xf32> to vector<4x64x64xf32>
    %236 = vector.extract_strided_slice %233 {offsets = [0, 0], sizes = [64, 32], strides = [1, 1]} : vector<64x384xf32> to vector<64x32xf32>
    %cst_100 = arith.constant 0.176776692 : f32
    %237 = vector.broadcast %cst_100 : f32 to vector<64x32xf32>
    %238 = arith.mulf %236, %237 : vector<64x32xf32>
    %239 = arith.truncf %238 : vector<64x32xf32> to vector<64x32xbf16>
    %240 = vector.extract_strided_slice %233 {offsets = [0, 128], sizes = [64, 32], strides = [1, 1]} : vector<64x384xf32> to vector<64x32xf32>
    %241 = arith.truncf %240 : vector<64x32xf32> to vector<64x32xbf16>
    %242 = vector.extract_strided_slice %233 {offsets = [0, 256], sizes = [64, 32], strides = [1, 1]} : vector<64x384xf32> to vector<64x32xf32>
    %243 = arith.truncf %242 : vector<64x32xf32> to vector<64x32xbf16>
    %cst_101 = arith.constant dense<0.000000e+00> : vector<64x64xf32>
    %244 = tpu.matmul %239, %241, %cst_101 {dimension_numbers = #tpu.dot_dimension_numbers<[1], [1], [0], [0], [0, 0, 1, 0], [], []>} : vector<64x32xbf16>, vector<64x32xbf16>, vector<64x64xf32> -> vector<64x64xf32>
    %245 = vector.extract_strided_slice %235 {offsets = [0, 0, 0], sizes = [1, 64, 64], strides = [1, 1, 1]} : vector<4x64x64xf32> to vector<1x64x64xf32>
    %246 = vector.shape_cast %245 : vector<1x64x64xf32> to vector<64x64xf32>
    %247 = arith.addf %244, %246 : vector<64x64xf32>
    %cst_102 = arith.constant dense<0xFF800000> : vector<64xf32>
    %248 = vector.multi_reduction <maximumf>, %247, %cst_102 [1] : vector<64x64xf32> to vector<64xf32>
    %249 = vector.shape_cast %248 : vector<64xf32> to vector<64x1xf32>
    %250 = vector.broadcast %249 : vector<64x1xf32> to vector<64x64xf32>
    %251 = arith.subf %247, %250 : vector<64x64xf32>
    %252 = math.exp %251 : vector<64x64xf32>
    %cst_103 = arith.constant dense<0.000000e+00> : vector<64xf32>
    %253 = vector.multi_reduction <add>, %252, %cst_103 [1] : vector<64x64xf32> to vector<64xf32>
    %254 = vector.shape_cast %253 : vector<64xf32> to vector<64x1xf32>
    %255 = tpu.reciprocal %254 {approx = true} : vector<64x1xf32> -> vector<64x1xf32>
    %256 = vector.broadcast %255 : vector<64x1xf32> to vector<64x64xf32>
    %257 = arith.mulf %252, %256 : vector<64x64xf32>
    %258 = arith.truncf %257 : vector<64x64xf32> to vector<64x64xbf16>
    %cst_104 = arith.constant dense<0.000000e+00> : vector<64x32xf32>
    %259 = tpu.matmul %258, %243, %cst_104 {dimension_numbers = #tpu.dot_dimension_numbers<[1], [0], [0], [1], [0, 0, 1, 1], [], []>} : vector<64x64xbf16>, vector<64x32xbf16>, vector<64x32xf32> -> vector<64x32xf32>
    %260 = vector.extract_strided_slice %233 {offsets = [0, 32], sizes = [64, 32], strides = [1, 1]} : vector<64x384xf32> to vector<64x32xf32>
    %cst_105 = arith.constant 0.176776692 : f32
    %261 = vector.broadcast %cst_105 : f32 to vector<64x32xf32>
    %262 = arith.mulf %260, %261 : vector<64x32xf32>
    %263 = arith.truncf %262 : vector<64x32xf32> to vector<64x32xbf16>
    %264 = vector.extract_strided_slice %233 {offsets = [0, 160], sizes = [64, 32], strides = [1, 1]} : vector<64x384xf32> to vector<64x32xf32>
    %265 = arith.truncf %264 : vector<64x32xf32> to vector<64x32xbf16>
    %266 = vector.extract_strided_slice %233 {offsets = [0, 288], sizes = [64, 32], strides = [1, 1]} : vector<64x384xf32> to vector<64x32xf32>
    %267 = arith.truncf %266 : vector<64x32xf32> to vector<64x32xbf16>
    %cst_106 = arith.constant dense<0.000000e+00> : vector<64x64xf32>
    %268 = tpu.matmul %263, %265, %cst_106 {dimension_numbers = #tpu.dot_dimension_numbers<[1], [1], [0], [0], [0, 0, 1, 0], [], []>} : vector<64x32xbf16>, vector<64x32xbf16>, vector<64x64xf32> -> vector<64x64xf32>
    %269 = vector.extract_strided_slice %235 {offsets = [1, 0, 0], sizes = [1, 64, 64], strides = [1, 1, 1]} : vector<4x64x64xf32> to vector<1x64x64xf32>
    %270 = vector.shape_cast %269 : vector<1x64x64xf32> to vector<64x64xf32>
    %271 = arith.addf %268, %270 : vector<64x64xf32>
    %cst_107 = arith.constant dense<0xFF800000> : vector<64xf32>
    %272 = vector.multi_reduction <maximumf>, %271, %cst_107 [1] : vector<64x64xf32> to vector<64xf32>
    %273 = vector.shape_cast %272 : vector<64xf32> to vector<64x1xf32>
    %274 = vector.broadcast %273 : vector<64x1xf32> to vector<64x64xf32>
    %275 = arith.subf %271, %274 : vector<64x64xf32>
    %276 = math.exp %275 : vector<64x64xf32>
    %cst_108 = arith.constant dense<0.000000e+00> : vector<64xf32>
    %277 = vector.multi_reduction <add>, %276, %cst_108 [1] : vector<64x64xf32> to vector<64xf32>
    %278 = vector.shape_cast %277 : vector<64xf32> to vector<64x1xf32>
    %279 = tpu.reciprocal %278 {approx = true} : vector<64x1xf32> -> vector<64x1xf32>
    %280 = vector.broadcast %279 : vector<64x1xf32> to vector<64x64xf32>
    %281 = arith.mulf %276, %280 : vector<64x64xf32>
    %282 = arith.truncf %281 : vector<64x64xf32> to vector<64x64xbf16>
    %cst_109 = arith.constant dense<0.000000e+00> : vector<64x32xf32>
    %283 = tpu.matmul %282, %267, %cst_109 {dimension_numbers = #tpu.dot_dimension_numbers<[1], [0], [0], [1], [0, 0, 1, 1], [], []>} : vector<64x64xbf16>, vector<64x32xbf16>, vector<64x32xf32> -> vector<64x32xf32>
    %284 = vector.extract_strided_slice %233 {offsets = [0, 64], sizes = [64, 32], strides = [1, 1]} : vector<64x384xf32> to vector<64x32xf32>
    %cst_110 = arith.constant 0.176776692 : f32
    %285 = vector.broadcast %cst_110 : f32 to vector<64x32xf32>
    %286 = arith.mulf %284, %285 : vector<64x32xf32>
    %287 = arith.truncf %286 : vector<64x32xf32> to vector<64x32xbf16>
    %288 = vector.extract_strided_slice %233 {offsets = [0, 192], sizes = [64, 32], strides = [1, 1]} : vector<64x384xf32> to vector<64x32xf32>
    %289 = arith.truncf %288 : vector<64x32xf32> to vector<64x32xbf16>
    %290 = vector.extract_strided_slice %233 {offsets = [0, 320], sizes = [64, 32], strides = [1, 1]} : vector<64x384xf32> to vector<64x32xf32>
    %291 = arith.truncf %290 : vector<64x32xf32> to vector<64x32xbf16>
    %cst_111 = arith.constant dense<0.000000e+00> : vector<64x64xf32>
    %292 = tpu.matmul %287, %289, %cst_111 {dimension_numbers = #tpu.dot_dimension_numbers<[1], [1], [0], [0], [0, 0, 1, 0], [], []>} : vector<64x32xbf16>, vector<64x32xbf16>, vector<64x64xf32> -> vector<64x64xf32>
    %293 = vector.extract_strided_slice %235 {offsets = [2, 0, 0], sizes = [1, 64, 64], strides = [1, 1, 1]} : vector<4x64x64xf32> to vector<1x64x64xf32>
    %294 = vector.shape_cast %293 : vector<1x64x64xf32> to vector<64x64xf32>
    %295 = arith.addf %292, %294 : vector<64x64xf32>
    %cst_112 = arith.constant dense<0xFF800000> : vector<64xf32>
    %296 = vector.multi_reduction <maximumf>, %295, %cst_112 [1] : vector<64x64xf32> to vector<64xf32>
    %297 = vector.shape_cast %296 : vector<64xf32> to vector<64x1xf32>
    %298 = vector.broadcast %297 : vector<64x1xf32> to vector<64x64xf32>
    %299 = arith.subf %295, %298 : vector<64x64xf32>
    %300 = math.exp %299 : vector<64x64xf32>
    %cst_113 = arith.constant dense<0.000000e+00> : vector<64xf32>
    %301 = vector.multi_reduction <add>, %300, %cst_113 [1] : vector<64x64xf32> to vector<64xf32>
    %302 = vector.shape_cast %301 : vector<64xf32> to vector<64x1xf32>
    %303 = tpu.reciprocal %302 {approx = true} : vector<64x1xf32> -> vector<64x1xf32>
    %304 = vector.broadcast %303 : vector<64x1xf32> to vector<64x64xf32>
    %305 = arith.mulf %300, %304 : vector<64x64xf32>
    %306 = arith.truncf %305 : vector<64x64xf32> to vector<64x64xbf16>
    %cst_114 = arith.constant dense<0.000000e+00> : vector<64x32xf32>
    %307 = tpu.matmul %306, %291, %cst_114 {dimension_numbers = #tpu.dot_dimension_numbers<[1], [0], [0], [1], [0, 0, 1, 1], [], []>} : vector<64x64xbf16>, vector<64x32xbf16>, vector<64x32xf32> -> vector<64x32xf32>
    %308 = vector.extract_strided_slice %233 {offsets = [0, 96], sizes = [64, 32], strides = [1, 1]} : vector<64x384xf32> to vector<64x32xf32>
    %cst_115 = arith.constant 0.176776692 : f32
    %309 = vector.broadcast %cst_115 : f32 to vector<64x32xf32>
    %310 = arith.mulf %308, %309 : vector<64x32xf32>
    %311 = arith.truncf %310 : vector<64x32xf32> to vector<64x32xbf16>
    %312 = vector.extract_strided_slice %233 {offsets = [0, 224], sizes = [64, 32], strides = [1, 1]} : vector<64x384xf32> to vector<64x32xf32>
    %313 = arith.truncf %312 : vector<64x32xf32> to vector<64x32xbf16>
    %314 = vector.extract_strided_slice %233 {offsets = [0, 352], sizes = [64, 32], strides = [1, 1]} : vector<64x384xf32> to vector<64x32xf32>
    %315 = arith.truncf %314 : vector<64x32xf32> to vector<64x32xbf16>
    %cst_116 = arith.constant dense<0.000000e+00> : vector<64x64xf32>
    %316 = tpu.matmul %311, %313, %cst_116 {dimension_numbers = #tpu.dot_dimension_numbers<[1], [1], [0], [0], [0, 0, 1, 0], [], []>} : vector<64x32xbf16>, vector<64x32xbf16>, vector<64x64xf32> -> vector<64x64xf32>
    %317 = vector.extract_strided_slice %235 {offsets = [3, 0, 0], sizes = [1, 64, 64], strides = [1, 1, 1]} : vector<4x64x64xf32> to vector<1x64x64xf32>
    %318 = vector.shape_cast %317 : vector<1x64x64xf32> to vector<64x64xf32>
    %319 = arith.addf %316, %318 : vector<64x64xf32>
    %cst_117 = arith.constant dense<0xFF800000> : vector<64xf32>
    %320 = vector.multi_reduction <maximumf>, %319, %cst_117 [1] : vector<64x64xf32> to vector<64xf32>
    %321 = vector.shape_cast %320 : vector<64xf32> to vector<64x1xf32>
    %322 = vector.broadcast %321 : vector<64x1xf32> to vector<64x64xf32>
    %323 = arith.subf %319, %322 : vector<64x64xf32>
    %324 = math.exp %323 : vector<64x64xf32>
    %cst_118 = arith.constant dense<0.000000e+00> : vector<64xf32>
    %325 = vector.multi_reduction <add>, %324, %cst_118 [1] : vector<64x64xf32> to vector<64xf32>
    %326 = vector.shape_cast %325 : vector<64xf32> to vector<64x1xf32>
    %327 = tpu.reciprocal %326 {approx = true} : vector<64x1xf32> -> vector<64x1xf32>
    %328 = vector.broadcast %327 : vector<64x1xf32> to vector<64x64xf32>
    %329 = arith.mulf %324, %328 : vector<64x64xf32>
    %330 = arith.truncf %329 : vector<64x64xf32> to vector<64x64xbf16>
    %cst_119 = arith.constant dense<0.000000e+00> : vector<64x32xf32>
    %331 = tpu.matmul %330, %315, %cst_119 {dimension_numbers = #tpu.dot_dimension_numbers<[1], [0], [0], [1], [0, 0, 1, 1], [], []>} : vector<64x64xbf16>, vector<64x32xbf16>, vector<64x32xf32> -> vector<64x32xf32>
    %332 = tpu.concatenate %259, %283, %307, %331 in 1 : vector<64x32xf32>, vector<64x32xf32>, vector<64x32xf32>, vector<64x32xf32> -> vector<64x128xf32>
    %333 = arith.truncf %332 : vector<64x128xf32> to vector<64x128xbf16>
    %c1_120 = arith.constant 1 : index
    %c0_121 = arith.constant 0 : index
    %c0_122 = arith.constant 0 : index
    %334 = vector.load %arg6[%c1_120, %c0_121, %c0_122] : memref<2x128x128xbf16, #tpu.memory_space<vmem>>, vector<1x128x128xbf16>
    %335 = vector.shape_cast %334 : vector<1x128x128xbf16> to vector<128x128xbf16>
    %cst_123 = arith.constant dense<0.000000e+00> : vector<64x128xf32>
    %336 = tpu.matmul %333, %335, %cst_123 {dimension_numbers = #tpu.dot_dimension_numbers<[1], [0], [0], [1], [0, 0, 1, 1], [], []>} : vector<64x128xbf16>, vector<128x128xbf16>, vector<64x128xf32> -> vector<64x128xf32>
    %c1_124 = arith.constant 1 : index
    %c0_125 = arith.constant 0 : index
    %c0_126 = arith.constant 0 : index
    %337 = vector.load %arg7[%c1_124, %c0_125, %c0_126] : memref<2x1x128xf32, #tpu.memory_space<vmem>>, vector<1x1x128xf32>
    %338 = vector.shape_cast %337 : vector<1x1x128xf32> to vector<1x128xf32>
    %339 = vector.broadcast %338 : vector<1x128xf32> to vector<64x128xf32>
    %340 = arith.addf %336, %339 : vector<64x128xf32>
    %341 = arith.addf %199, %340 : vector<64x128xf32>
    %c1_127 = arith.constant 1 : index
    %c0_128 = arith.constant 0 : index
    %c0_129 = arith.constant 0 : index
    %342 = vector.load %arg9[%c1_127, %c0_128, %c0_129] : memref<2x1x128xf32, #tpu.memory_space<vmem>>, vector<1x1x128xf32>
    %343 = vector.shape_cast %342 : vector<1x1x128xf32> to vector<1x128xf32>
    %c1_130 = arith.constant 1 : index
    %c0_131 = arith.constant 0 : index
    %c0_132 = arith.constant 0 : index
    %344 = vector.load %arg10[%c1_130, %c0_131, %c0_132] : memref<2x1x128xf32, #tpu.memory_space<vmem>>, vector<1x1x128xf32>
    %345 = vector.shape_cast %344 : vector<1x1x128xf32> to vector<1x128xf32>
    %cst_133 = arith.constant dense<0.000000e+00> : vector<64xf32>
    %346 = vector.multi_reduction <add>, %341, %cst_133 [1] : vector<64x128xf32> to vector<64xf32>
    %347 = vector.shape_cast %346 : vector<64xf32> to vector<64x1xf32>
    %cst_134 = arith.constant 1.280000e+02 : f32
    %348 = vector.broadcast %cst_134 : f32 to vector<64x1xf32>
    %349 = arith.divf %347, %348 : vector<64x1xf32>
    %350 = vector.broadcast %349 : vector<64x1xf32> to vector<64x128xf32>
    %351 = arith.subf %341, %350 : vector<64x128xf32>
    %352 = arith.mulf %351, %351 : vector<64x128xf32>
    %cst_135 = arith.constant dense<0.000000e+00> : vector<64xf32>
    %353 = vector.multi_reduction <add>, %352, %cst_135 [1] : vector<64x128xf32> to vector<64xf32>
    %354 = vector.shape_cast %353 : vector<64xf32> to vector<64x1xf32>
    %cst_136 = arith.constant 1.280000e+02 : f32
    %355 = vector.broadcast %cst_136 : f32 to vector<64x1xf32>
    %356 = arith.divf %354, %355 : vector<64x1xf32>
    %357 = vector.broadcast %349 : vector<64x1xf32> to vector<64x128xf32>
    %358 = arith.subf %341, %357 : vector<64x128xf32>
    %cst_137 = arith.constant 9.99999974E-6 : f32
    %359 = vector.broadcast %cst_137 : f32 to vector<64x1xf32>
    %360 = arith.addf %356, %359 : vector<64x1xf32>
    %361 = math.rsqrt %360 : vector<64x1xf32>
    %362 = vector.broadcast %361 : vector<64x1xf32> to vector<64x128xf32>
    %363 = arith.mulf %358, %362 : vector<64x128xf32>
    %364 = vector.broadcast %343 : vector<1x128xf32> to vector<64x128xf32>
    %365 = arith.mulf %363, %364 : vector<64x128xf32>
    %366 = vector.broadcast %345 : vector<1x128xf32> to vector<64x128xf32>
    %367 = arith.addf %365, %366 : vector<64x128xf32>
    %368 = arith.truncf %367 : vector<64x128xf32> to vector<64x128xbf16>
    %c1_138 = arith.constant 1 : index
    %c0_139 = arith.constant 0 : index
    %c0_140 = arith.constant 0 : index
    %369 = vector.load %arg11[%c1_138, %c0_139, %c0_140] : memref<2x128x256xbf16, #tpu.memory_space<vmem>>, vector<1x128x256xbf16>
    %370 = vector.shape_cast %369 : vector<1x128x256xbf16> to vector<128x256xbf16>
    %cst_141 = arith.constant dense<0.000000e+00> : vector<64x256xf32>
    %371 = tpu.matmul %368, %370, %cst_141 {dimension_numbers = #tpu.dot_dimension_numbers<[1], [0], [0], [1], [0, 0, 1, 1], [], []>} : vector<64x128xbf16>, vector<128x256xbf16>, vector<64x256xf32> -> vector<64x256xf32>
    %c1_142 = arith.constant 1 : index
    %c0_143 = arith.constant 0 : index
    %c0_144 = arith.constant 0 : index
    %372 = vector.load %arg12[%c1_142, %c0_143, %c0_144] : memref<2x1x256xf32, #tpu.memory_space<vmem>>, vector<1x1x256xf32>
    %373 = vector.shape_cast %372 : vector<1x1x256xf32> to vector<1x256xf32>
    %374 = vector.broadcast %373 : vector<1x256xf32> to vector<64x256xf32>
    %375 = arith.addf %371, %374 : vector<64x256xf32>
    %cst_145 = arith.constant 5.000000e-01 : f32
    %376 = vector.broadcast %cst_145 : f32 to vector<64x256xf32>
    %377 = arith.mulf %376, %375 : vector<64x256xf32>
    %cst_146 = arith.constant 4.471500e-02 : f32
    %378 = vector.broadcast %cst_146 : f32 to vector<64x256xf32>
    %379 = arith.mulf %378, %375 : vector<64x256xf32>
    %380 = arith.mulf %379, %375 : vector<64x256xf32>
    %381 = arith.mulf %380, %375 : vector<64x256xf32>
    %382 = arith.addf %375, %381 : vector<64x256xf32>
    %cst_147 = arith.constant 0.797884583 : f32
    %383 = vector.broadcast %cst_147 : f32 to vector<64x256xf32>
    %384 = arith.mulf %383, %382 : vector<64x256xf32>
    %385 = math.tanh %384 : vector<64x256xf32>
    %cst_148 = arith.constant 1.000000e+00 : f32
    %386 = vector.broadcast %cst_148 : f32 to vector<64x256xf32>
    %387 = arith.addf %386, %385 : vector<64x256xf32>
    %388 = arith.mulf %377, %387 : vector<64x256xf32>
    %389 = arith.truncf %388 : vector<64x256xf32> to vector<64x256xbf16>
    %c1_149 = arith.constant 1 : index
    %c0_150 = arith.constant 0 : index
    %c0_151 = arith.constant 0 : index
    %390 = vector.load %arg13[%c1_149, %c0_150, %c0_151] : memref<2x256x128xbf16, #tpu.memory_space<vmem>>, vector<1x256x128xbf16>
    %391 = vector.shape_cast %390 : vector<1x256x128xbf16> to vector<256x128xbf16>
    %cst_152 = arith.constant dense<0.000000e+00> : vector<64x128xf32>
    %392 = tpu.matmul %389, %391, %cst_152 {dimension_numbers = #tpu.dot_dimension_numbers<[1], [0], [0], [1], [0, 0, 1, 1], [], []>} : vector<64x256xbf16>, vector<256x128xbf16>, vector<64x128xf32> -> vector<64x128xf32>
    %c1_153 = arith.constant 1 : index
    %c0_154 = arith.constant 0 : index
    %c0_155 = arith.constant 0 : index
    %393 = vector.load %arg14[%c1_153, %c0_154, %c0_155] : memref<2x1x128xf32, #tpu.memory_space<vmem>>, vector<1x1x128xf32>
    %394 = vector.shape_cast %393 : vector<1x1x128xf32> to vector<1x128xf32>
    %395 = vector.broadcast %394 : vector<1x128xf32> to vector<64x128xf32>
    %396 = arith.addf %392, %395 : vector<64x128xf32>
    %397 = arith.addf %341, %396 : vector<64x128xf32>
    %cst_156 = arith.constant 0.000000e+00 : f32
    %398 = vector.broadcast %cst_156 : f32 to vector<10x10x128xf32>
    %c0_157 = arith.constant 0 : index
    %c0_158 = arith.constant 0 : index
    %c0_159 = arith.constant 0 : index
    %399 = vector.load %arg18[%c0_157, %c0_158, %c0_159] : memref<10x10x128xf32, #tpu.memory_space<vmem>>, vector<10x10x128xf32>
    tpu.vector_store %arg18[%c0_157, %c0_158, %c0_159], %398 {strides = array<i32>} : memref<10x10x128xf32, #tpu.memory_space<vmem>>, vector<10x10x128xf32>,
    %400 = vector.shape_cast %397 : vector<64x128xf32> to vector<8x8x128xf32>
    %c1_160 = arith.constant 1 : index
    %c1_161 = arith.constant 1 : index
    %c0_162 = arith.constant 0 : index
    %401 = vector.load %arg18[%c1_160, %c1_161, %c0_162] : memref<10x10x128xf32, #tpu.memory_space<vmem>>, vector<8x8x128xf32>
    tpu.vector_store %arg18[%c1_160, %c1_161, %c0_162], %400 {strides = array<i32>} : memref<10x10x128xf32, #tpu.memory_space<vmem>>, vector<8x8x128xf32>,
    %c0_163 = arith.constant 0 : index
    %c0_164 = arith.constant 0 : index
    %c0_165 = arith.constant 0 : index
    %402 = vector.load %arg18[%c0_163, %c0_164, %c0_165] : memref<10x10x128xf32, #tpu.memory_space<vmem>>, vector<10x10x128xf32>
    %403 = vector.extract_strided_slice %402 {offsets = [0, 0, 0], sizes = [8, 8, 128], strides = [1, 1, 1]} : vector<10x10x128xf32> to vector<8x8x128xf32>
    %404 = vector.shape_cast %403 : vector<8x8x128xf32> to vector<64x128xf32>
    %405 = arith.truncf %404 : vector<64x128xf32> to vector<64x128xbf16>
    %406 = vector.extract_strided_slice %402 {offsets = [0, 1, 0], sizes = [8, 8, 128], strides = [1, 1, 1]} : vector<10x10x128xf32> to vector<8x8x128xf32>
    %407 = vector.shape_cast %406 : vector<8x8x128xf32> to vector<64x128xf32>
    %408 = arith.truncf %407 : vector<64x128xf32> to vector<64x128xbf16>
    %409 = vector.extract_strided_slice %402 {offsets = [0, 2, 0], sizes = [8, 8, 128], strides = [1, 1, 1]} : vector<10x10x128xf32> to vector<8x8x128xf32>
    %410 = vector.shape_cast %409 : vector<8x8x128xf32> to vector<64x128xf32>
    %411 = arith.truncf %410 : vector<64x128xf32> to vector<64x128xbf16>
    %412 = vector.extract_strided_slice %402 {offsets = [1, 0, 0], sizes = [8, 8, 128], strides = [1, 1, 1]} : vector<10x10x128xf32> to vector<8x8x128xf32>
    %413 = vector.shape_cast %412 : vector<8x8x128xf32> to vector<64x128xf32>
    %414 = arith.truncf %413 : vector<64x128xf32> to vector<64x128xbf16>
    %415 = vector.extract_strided_slice %402 {offsets = [1, 1, 0], sizes = [8, 8, 128], strides = [1, 1, 1]} : vector<10x10x128xf32> to vector<8x8x128xf32>
    %416 = vector.shape_cast %415 : vector<8x8x128xf32> to vector<64x128xf32>
    %417 = arith.truncf %416 : vector<64x128xf32> to vector<64x128xbf16>
    %418 = vector.extract_strided_slice %402 {offsets = [1, 2, 0], sizes = [8, 8, 128], strides = [1, 1, 1]} : vector<10x10x128xf32> to vector<8x8x128xf32>
    %419 = vector.shape_cast %418 : vector<8x8x128xf32> to vector<64x128xf32>
    %420 = arith.truncf %419 : vector<64x128xf32> to vector<64x128xbf16>
    %421 = vector.extract_strided_slice %402 {offsets = [2, 0, 0], sizes = [8, 8, 128], strides = [1, 1, 1]} : vector<10x10x128xf32> to vector<8x8x128xf32>
    %422 = vector.shape_cast %421 : vector<8x8x128xf32> to vector<64x128xf32>
    %423 = arith.truncf %422 : vector<64x128xf32> to vector<64x128xbf16>
    %424 = vector.extract_strided_slice %402 {offsets = [2, 1, 0], sizes = [8, 8, 128], strides = [1, 1, 1]} : vector<10x10x128xf32> to vector<8x8x128xf32>
    %425 = vector.shape_cast %424 : vector<8x8x128xf32> to vector<64x128xf32>
    %426 = arith.truncf %425 : vector<64x128xf32> to vector<64x128xbf16>
    %427 = vector.extract_strided_slice %402 {offsets = [2, 2, 0], sizes = [8, 8, 128], strides = [1, 1, 1]} : vector<10x10x128xf32> to vector<8x8x128xf32>
    %428 = vector.shape_cast %427 : vector<8x8x128xf32> to vector<64x128xf32>
    %429 = arith.truncf %428 : vector<64x128xf32> to vector<64x128xbf16>
    %430 = tpu.concatenate %405, %408, %411, %414, %417, %420, %423, %426, %429 in 1 : vector<64x128xbf16>, vector<64x128xbf16>, vector<64x128xbf16>, vector<64x128xbf16>, vector<64x128xbf16>, vector<64x128xbf16>, vector<64x128xbf16>, vector<64x128xbf16>, vector<64x128xbf16> -> vector<64x1152xbf16>
    %c0_166 = arith.constant 0 : index
    %c0_167 = arith.constant 0 : index
    %431 = vector.load %arg15[%c0_166, %c0_167] : memref<1152x128xbf16, #tpu.memory_space<vmem>>, vector<1152x128xbf16>
    %cst_168 = arith.constant dense<0.000000e+00> : vector<64x128xf32>
    %432 = tpu.matmul %430, %431, %cst_168 {dimension_numbers = #tpu.dot_dimension_numbers<[1], [0], [0], [1], [0, 0, 1, 1], [], []>} : vector<64x1152xbf16>, vector<1152x128xbf16>, vector<64x128xf32> -> vector<64x128xf32>
    %c0_169 = arith.constant 0 : index
    %c0_170 = arith.constant 0 : index
    %433 = vector.load %arg16[%c0_169, %c0_170] : memref<1x128xf32, #tpu.memory_space<vmem>>, vector<1x128xf32>
    %434 = vector.broadcast %433 : vector<1x128xf32> to vector<64x128xf32>
    %435 = arith.addf %432, %434 : vector<64x128xf32>
    %cst_171 = arith.constant 0.000000e+00 : f32
    %436 = vector.broadcast %cst_171 : f32 to vector<64x128xf32>
    %437 = arith.maximumf %435, %436 : vector<64x128xf32>
    %438 = vector.shape_cast %437 : vector<64x128xf32> to vector<1x64x128xf32>
    %c0_172 = arith.constant 0 : index
    %c0_173 = arith.constant 0 : index
    %c0_174 = arith.constant 0 : index
    %439 = vector.load %arg17[%c0_172, %c0_173, %c0_174] : memref<1x64x128xf32, #tpu.memory_space<vmem>>, vector<1x64x128xf32>
    tpu.vector_store %arg17[%c0_172, %c0_173, %c0_174], %438 {strides = array<i32>} : memref<1x64x128xf32, #tpu.memory_space<vmem>>, vector<1x64x128xf32>,
    return
  }
  func.func @transform_0(%arg0: i32) -> (i32, i32, i32) {
    %c0_i32 = arith.constant 0 : i32
    %c0_i32_0 = arith.constant 0 : i32
    %c0_i32_1 = arith.constant 0 : i32
    return %arg0, %c0_i32, %c0_i32_0 : i32, i32, i32
  }
  func.func @transform_1(%arg0: i32) -> (i32, i32, i32) {
    %c0_i32 = arith.constant 0 : i32
    %c0_i32_0 = arith.constant 0 : i32
    %c0_i32_1 = arith.constant 0 : i32
    %c0_i32_2 = arith.constant 0 : i32
    return %c0_i32, %c0_i32_0, %c0_i32_1 : i32, i32, i32
  }
  func.func @transform_2(%arg0: i32) -> (i32, i32, i32) {
    %c0_i32 = arith.constant 0 : i32
    %c0_i32_0 = arith.constant 0 : i32
    %c0_i32_1 = arith.constant 0 : i32
    %c0_i32_2 = arith.constant 0 : i32
    return %c0_i32, %c0_i32_0, %c0_i32_1 : i32, i32, i32
  }
  func.func @transform_3(%arg0: i32) -> (i32, i32, i32) {
    %c0_i32 = arith.constant 0 : i32
    %c0_i32_0 = arith.constant 0 : i32
    %c0_i32_1 = arith.constant 0 : i32
    %c0_i32_2 = arith.constant 0 : i32
    return %c0_i32, %c0_i32_0, %c0_i32_1 : i32, i32, i32
  }
  func.func @transform_4(%arg0: i32) -> (i32, i32, i32) {
    %c0_i32 = arith.constant 0 : i32
    %c0_i32_0 = arith.constant 0 : i32
    %c0_i32_1 = arith.constant 0 : i32
    %c0_i32_2 = arith.constant 0 : i32
    return %c0_i32, %c0_i32_0, %c0_i32_1 : i32, i32, i32
  }
  func.func @transform_5(%arg0: i32) -> (i32, i32, i32) {
    %c0_i32 = arith.constant 0 : i32
    %c0_i32_0 = arith.constant 0 : i32
    %c0_i32_1 = arith.constant 0 : i32
    %c0_i32_2 = arith.constant 0 : i32
    return %c0_i32, %c0_i32_0, %c0_i32_1 : i32, i32, i32
  }
  func.func @transform_6(%arg0: i32) -> (i32, i32, i32) {
    %c0_i32 = arith.constant 0 : i32
    %c0_i32_0 = arith.constant 0 : i32
    %c0_i32_1 = arith.constant 0 : i32
    %c0_i32_2 = arith.constant 0 : i32
    return %c0_i32, %c0_i32_0, %c0_i32_1 : i32, i32, i32
  }
  func.func @transform_7(%arg0: i32) -> (i32, i32, i32, i32) {
    %c0_i32 = arith.constant 0 : i32
    %c0_i32_0 = arith.constant 0 : i32
    %c0_i32_1 = arith.constant 0 : i32
    %c0_i32_2 = arith.constant 0 : i32
    %c0_i32_3 = arith.constant 0 : i32
    return %c0_i32, %c0_i32_0, %c0_i32_1, %c0_i32_2 : i32, i32, i32, i32
  }
  func.func @transform_8(%arg0: i32) -> (i32, i32, i32) {
    %c0_i32 = arith.constant 0 : i32
    %c0_i32_0 = arith.constant 0 : i32
    %c0_i32_1 = arith.constant 0 : i32
    %c0_i32_2 = arith.constant 0 : i32
    return %c0_i32, %c0_i32_0, %c0_i32_1 : i32, i32, i32
  }
  func.func @transform_9(%arg0: i32) -> (i32, i32, i32) {
    %c0_i32 = arith.constant 0 : i32
    %c0_i32_0 = arith.constant 0 : i32
    %c0_i32_1 = arith.constant 0 : i32
    %c0_i32_2 = arith.constant 0 : i32
    return %c0_i32, %c0_i32_0, %c0_i32_1 : i32, i32, i32
  }
  func.func @transform_10(%arg0: i32) -> (i32, i32, i32) {
    %c0_i32 = arith.constant 0 : i32
    %c0_i32_0 = arith.constant 0 : i32
    %c0_i32_1 = arith.constant 0 : i32
    %c0_i32_2 = arith.constant 0 : i32
    return %c0_i32, %c0_i32_0, %c0_i32_1 : i32, i32, i32
  }
  func.func @transform_11(%arg0: i32) -> (i32, i32, i32) {
    %c0_i32 = arith.constant 0 : i32
    %c0_i32_0 = arith.constant 0 : i32
    %c0_i32_1 = arith.constant 0 : i32
    %c0_i32_2 = arith.constant 0 : i32
    return %c0_i32, %c0_i32_0, %c0_i32_1 : i32, i32, i32
  }
  func.func @transform_12(%arg0: i32) -> (i32, i32, i32) {
    %c0_i32 = arith.constant 0 : i32
    %c0_i32_0 = arith.constant 0 : i32
    %c0_i32_1 = arith.constant 0 : i32
    %c0_i32_2 = arith.constant 0 : i32
    return %c0_i32, %c0_i32_0, %c0_i32_1 : i32, i32, i32
  }
  func.func @transform_13(%arg0: i32) -> (i32, i32, i32) {
    %c0_i32 = arith.constant 0 : i32
    %c0_i32_0 = arith.constant 0 : i32
    %c0_i32_1 = arith.constant 0 : i32
    %c0_i32_2 = arith.constant 0 : i32
    return %c0_i32, %c0_i32_0, %c0_i32_1 : i32, i32, i32
  }
  func.func @transform_14(%arg0: i32) -> (i32, i32) {
    %c0_i32 = arith.constant 0 : i32
    %c0_i32_0 = arith.constant 0 : i32
    %c0_i32_1 = arith.constant 0 : i32
    return %c0_i32, %c0_i32_0 : i32, i32
  }
  func.func @transform_15(%arg0: i32) -> (i32, i32) {
    %c0_i32 = arith.constant 0 : i32
    %c0_i32_0 = arith.constant 0 : i32
    %c0_i32_1 = arith.constant 0 : i32
    return %c0_i32, %c0_i32_0 : i32, i32
  }
  func.func @transform_16(%arg0: i32) -> (i32, i32, i32) {
    %c0_i32 = arith.constant 0 : i32
    %c0_i32_0 = arith.constant 0 : i32
    %c0_i32_1 = arith.constant 0 : i32
    return %arg0, %c0_i32, %c0_i32_0 : i32, i32, i32
  }
}

</mosaic_0001>

<llo_original>
// kernel: basic_layer_forward.1
$region0: #{basic_layer_forward.1}
  #allocation0 [shape = 'u32[]', space=smem, size = 0x4, offset = 0x4, fixed_abs, tag = 'smem constant byte address 0x4 - core index']
  #allocation1 [shape = 'u32[144,128]{1,0:T(1,128)}', space=vmem, size = 0x12000, scoped, tag = 'internal scratch']
  #allocation2 [shape = 'f32[10,10,128]{2,1,0:T(8,128)}', space=vmem, size = 0x14000, scoped, tag = 'scratch operand']
  %s0 = inlined_call_operand.hbm [shape: f32[2,64,128], index: 0, kind: input, shape index: {}]
  %s1 = inlined_call_operand.vmem [shape: f32[2,1,128], index: 1, kind: input, shape index: {}]
  %s2 = inlined_call_operand.vmem [shape: f32[2,1,128], index: 2, kind: input, shape index: {}]
  %s3 = inlined_call_operand.hbm [shape: bf16[2,128,384], index: 3, kind: input, shape index: {}]
  %s4 = inlined_call_operand.vmem [shape: f32[2,1,384], index: 4, kind: input, shape index: {}]
  %s5 = inlined_call_operand.hbm [shape: bf16[2,128,128], index: 5, kind: input, shape index: {}]
  %s6 = inlined_call_operand.vmem [shape: f32[2,1,128], index: 6, kind: input, shape index: {}]
  %s7 = inlined_call_operand.hbm [shape: f32[2,4,64,64], index: 7, kind: input, shape index: {}]
  %s8 = inlined_call_operand.vmem [shape: f32[2,1,128], index: 8, kind: input, shape index: {}]
  %s9 = inlined_call_operand.vmem [shape: f32[2,1,128], index: 9, kind: input, shape index: {}]
  %s10 = inlined_call_operand.hbm [shape: bf16[2,128,256], index: 10, kind: input, shape index: {}]
  %s11 = inlined_call_operand.hbm [shape: f32[2,1,256], index: 11, kind: input, shape index: {}]
  %s12 = inlined_call_operand.hbm [shape: bf16[2,256,128], index: 12, kind: input, shape index: {}]
  %s13 = inlined_call_operand.hbm [shape: f32[2,1,128], index: 13, kind: input, shape index: {}]
  %s14 = inlined_call_operand.hbm [shape: bf16[1152,128], index: 14, kind: input, shape index: {}]
  %s15 = inlined_call_operand.vmem [shape: f32[1,128], index: 15, kind: input, shape index: {}]
  %s16 = inlined_call_operand.hbm [shape: f32[2,64,128], index: 16, kind: output, shape index: {}]
  %s17 = sld [smem:[#allocation0]]
  $region133: #{basic_layer_forward.1} parent=0
    _
  %s19 = ssub.s32 1, %s17
  %s20 = scalar_select 0, %s19, %s17
  $region1: #{basic_layer_forward.1} parent=0
    #allocation3 [shape = 'u8[65536]{0}', space=vmem, size = 0x10000, scoped, tag = 'input window, operand 0']
    #allocation4 [shape = 's32[2]{0}', space=sflag, size = 0x8, scoped, tag = 'scoped memory for basic_layer_forward.1']
    #allocation5 [shape = 's32[2]{0}', space=sflag, size = 0x8, scoped, tag = 'scoped memory for basic_layer_forward.1']
    #allocation6 [shape = 'u8[196608]{0}', space=vmem, size = 0x30000, scoped, tag = 'input window, operand 3, single buffered']
    #allocation7 [shape = 's32[1]{0}', space=sflag, size = 0x4, scoped, tag = 'scoped memory for basic_layer_forward.1']
    #allocation8 [shape = 'u8[65536]{0}', space=vmem, size = 0x10000, scoped, tag = 'input window, operand 5, single buffered']
    #allocation9 [shape = 'u8[262144]{0}', space=vmem, size = 0x40000, scoped, tag = 'input window, operand 7, single buffered']
    #allocation10 [shape = 's32[1]{0}', space=sflag, size = 0x4, scoped, tag = 'scoped memory for basic_layer_forward.1']
    #allocation11 [shape = 'u8[131072]{0}', space=vmem, size = 0x20000, scoped, tag = 'input window, operand 10, single buffered']
    #allocation12 [shape = 'u8[2048]{0}', space=vmem, size = 0x800, scoped, tag = 'input window, operand 11, single buffered']
    #allocation13 [shape = 's32[1]{0}', space=sflag, size = 0x4, scoped, tag = 'scoped memory for basic_layer_forward.1']
    #allocation14 [shape = 'u8[131072]{0}', space=vmem, size = 0x20000, scoped, tag = 'input window, operand 12, single buffered']
    #allocation15 [shape = 'u8[1024]{0}', space=vmem, size = 0x400, scoped, tag = 'input window, operand 13, single buffered']
    #allocation16 [shape = 's32[1]{0}', space=sflag, size = 0x4, scoped, tag = 'scoped memory for basic_layer_forward.1']
    #allocation17 [shape = 'u8[294912]{0}', space=vmem, size = 0x48000, scoped, tag = 'input window, operand 14, single buffered']
    #allocation18 [shape = 'u8[65536]{0}', space=vmem, size = 0x10000, scoped, tag = 'output window, operand 0']
    %21 = vsyncpa [#allocation4], 0
    %s22 = scalar_lea.sflag [#allocation4], 1
    %23 = vsyncpa %s22, 0
    %24 = vsyncpa [#allocation7], 0
    %25 = vsyncpa [#allocation10], 0
    %26 = vsyncpa [#allocation13], 0
    %27 = vsyncpa [#allocation16], 0
    %28 = vsyncpa [#allocation5], 0
    %s29 = scalar_lea.sflag [#allocation5], 1
    %30 = vsyncpa %s29, 0
    loop: start=0, step=1, limit=4
    $region2: #{basic_layer_forward.1} parent=1 // loop_pre_header
      _
    $region3: #{basic_layer_forward.1} parent=1 // loop_header
      %s32 = sphi 0, %s36
      %p33 = scmp.ge.s32.totalorder %s32, 4
      %s42 = sphi 0, %s44
      %s45 = sphi 0, %s42
      %s46 = sphi 0, %s45
      %s62 = sphi 0, %s46
      %s66 = sphi 0, %s66
      %s68 = sphi 0, %s66
      %s69 = sphi 0, %s68
      %s83 = sphi 0, %s69
      %s87 = sphi 0, %s87
      %s89 = sphi 0, %s87
      %s90 = sphi 0, %s89
      %s104 = sphi 0, %s90
      %s108 = sphi 0, %s108
      %s110 = sphi 0, %s108
      %s111 = sphi 0, %s110
      %s125 = sphi 0, %s111
      %s129 = sphi 0, %s129
      %s131 = sphi 0, %s129
      %s132 = sphi 0, %s131
      %s146 = sphi 0, %s132
      %s150 = sphi 0, %s150
      %s152 = sphi 0, %s150
      %s153 = sphi 0, %s152
      %s167 = sphi 0, %s153
      %s171 = sphi 0, %s171
      %s173 = sphi 0, %s171
      %s174 = sphi 0, %s173
      %s188 = sphi 0, %s174
      %s192 = sphi 0, %s192
      %s194 = sphi 0, %s192
      %s195 = sphi 0, %s194
      %s209 = sphi 0, %s195
      %s213 = sphi 0, %s213
      %s215 = sphi 0, %s213
      %s216 = sphi 0, %s215
      %s230 = sphi 0, %s216
      %s234 = sphi 0, %s234
      %s236 = sphi 0, %s234
      %s237 = sphi 0, %s236
      %s251 = sphi 0, %s237
      %s255 = sphi 0, %s255
      %s257 = sphi 0, %s255
      %s258 = sphi 0, %s257
      %s272 = sphi 0, %s258
      %s276 = sphi 0, %s276
      %s278 = sphi 0, %s276
      %s279 = sphi 0, %s278
      %s293 = sphi 0, %s279
      %s297 = sphi 0, %s297
      %s299 = sphi 0, %s297
      %s300 = sphi 0, %s299
      %s314 = sphi 0, %s300
      %s318 = sphi 0, %s318
      %s320 = sphi 0, %s318
      %s321 = sphi 0, %s320
      %s335 = sphi 0, %s321
      %s339 = sphi 0, %s339
      %s341 = sphi 0, %s339
      %s342 = sphi 0, %s341
      %s356 = sphi 0, %s342
      %s360 = sphi 0, %s360
      %s362 = sphi 0, %s360
      %s363 = sphi 0, %s362
      %s377 = sphi 0, %s363
      %s383 = sphi 0, %s385
      %s386 = sphi 0, %s383
      %s387 = sphi 0, %s386
      %s403 = sphi 0, %s387
    $region4: #{basic_layer_forward.1} parent=1 // loop_header_branch
      %35 = sbr.rel (%p33) target = $region8
    $region5: #{basic_layer_forward.1} parent=1 // loop_body
      %s37 = ssub.s32 %s32, 1
      %s38 = ssub.s32 %s32, 2
      %s39 = sadd.s32 %s32, 1
      %s40 = ssub.s32 %s32, %s39
      %p41 = scmp.eq.s32.totalorder %s40, 0
      %s43 = sadd.s32 %s42, 1
      %s44 = scalar_select %p41, %s42, %s43
      %p47 = pneg %p41
      %p48 = scmp.eq.s32.totalorder %s32, 1
      %p49 = por %p47, %p48
      %p50 = scmp.ne.s32.totalorder %s42, %s45
      %p51 = scmp.eq.s32.totalorder %s32, 0
      %p52 = por %p50, %p51
      %p53 = scmp.ne.s32.totalorder %s42, %s45
      %p54 = scmp.eq.s32.totalorder %s37, 1
      %p55 = por %p53, %p54
      %p56 = scmp.ne.s32.totalorder %s45, %s46
      %p57 = scmp.eq.s32.totalorder %s37, 0
      %p58 = por %p56, %p57
      %p59 = scmp.ne.s32.totalorder %s45, %s46
      %p60 = scmp.eq.s32.totalorder %s38, 1
      %p61 = por %p59, %p60
      %p63 = scmp.ne.s32.totalorder %s46, %s62
      %p64 = scmp.eq.s32.totalorder %s38, 0
      %p65 = por %p63, %p64
      %s67 = sadd.s32 %s66, 1
      %p70 = scmp.eq.s32.totalorder %s32, 1
      %p71 = scmp.ne.s32.totalorder %s66, %s68
      %p72 = scmp.eq.s32.totalorder %s32, 0
      %p73 = por %p71, %p72
      %p74 = scmp.ne.s32.totalorder %s66, %s68
      %p75 = scmp.eq.s32.totalorder %s37, 1
      %p76 = por %p74, %p75
      %p77 = scmp.ne.s32.totalorder %s68, %s69
      %p78 = scmp.eq.s32.totalorder %s37, 0
      %p79 = por %p77, %p78
      %p80 = scmp.ne.s32.totalorder %s68, %s69
      %p81 = scmp.eq.s32.totalorder %s38, 1
      %p82 = por %p80, %p81
      %p84 = scmp.ne.s32.totalorder %s69, %s83
      %p85 = scmp.eq.s32.totalorder %s38, 0
      %p86 = por %p84, %p85
      %s88 = sadd.s32 %s87, 1
      %p91 = scmp.eq.s32.totalorder %s32, 1
      %p92 = scmp.ne.s32.totalorder %s87, %s89
      %p93 = scmp.eq.s32.totalorder %s32, 0
      %p94 = por %p92, %p93
      %p95 = scmp.ne.s32.totalorder %s87, %s89
      %p96 = scmp.eq.s32.totalorder %s37, 1
      %p97 = por %p95, %p96
      %p98 = scmp.ne.s32.totalorder %s89, %s90
      %p99 = scmp.eq.s32.totalorder %s37, 0
      %p100 = por %p98, %p99
      %p101 = scmp.ne.s32.totalorder %s89, %s90
      %p102 = scmp.eq.s32.totalorder %s38, 1
      %p103 = por %p101, %p102
      %p105 = scmp.ne.s32.totalorder %s90, %s104
      %p106 = scmp.eq.s32.totalorder %s38, 0
      %p107 = por %p105, %p106
      %s109 = sadd.s32 %s108, 1
      %p112 = scmp.eq.s32.totalorder %s32, 1
      %p113 = scmp.ne.s32.totalorder %s108, %s110
      %p114 = scmp.eq.s32.totalorder %s32, 0
      %p115 = por %p113, %p114
      %p116 = scmp.ne.s32.totalorder %s108, %s110
      %p117 = scmp.eq.s32.totalorder %s37, 1
      %p118 = por %p116, %p117
      %p119 = scmp.ne.s32.totalorder %s110, %s111
      %p120 = scmp.eq.s32.totalorder %s37, 0
      %p121 = por %p119, %p120
      %p122 = scmp.ne.s32.totalorder %s110, %s111
      %p123 = scmp.eq.s32.totalorder %s38, 1
      %p124 = por %p122, %p123
      %p126 = scmp.ne.s32.totalorder %s111, %s125
      %p127 = scmp.eq.s32.totalorder %s38, 0
      %p128 = por %p126, %p127
      %s130 = sadd.s32 %s129, 1
      %p133 = scmp.eq.s32.totalorder %s32, 1
      %p134 = scmp.ne.s32.totalorder %s129, %s131
      %p135 = scmp.eq.s32.totalorder %s32, 0
      %p136 = por %p134, %p135
      %p137 = scmp.ne.s32.totalorder %s129, %s131
      %p138 = scmp.eq.s32.totalorder %s37, 1
      %p139 = por %p137, %p138
      %p140 = scmp.ne.s32.totalorder %s131, %s132
      %p141 = scmp.eq.s32.totalorder %s37, 0
      %p142 = por %p140, %p141
      %p143 = scmp.ne.s32.totalorder %s131, %s132
      %p144 = scmp.eq.s32.totalorder %s38, 1
      %p145 = por %p143, %p144
      %p147 = scmp.ne.s32.totalorder %s132, %s146
      %p148 = scmp.eq.s32.totalorder %s38, 0
      %p149 = por %p147, %p148
      %s151 = sadd.s32 %s150, 1
      %p154 = scmp.eq.s32.totalorder %s32, 1
      %p155 = scmp.ne.s32.totalorder %s150, %s152
      %p156 = scmp.eq.s32.totalorder %s32, 0
      %p157 = por %p155, %p156
      %p158 = scmp.ne.s32.totalorder %s150, %s152
      %p159 = scmp.eq.s32.totalorder %s37, 1
      %p160 = por %p158, %p159
      %p161 = scmp.ne.s32.totalorder %s152, %s153
      %p162 = scmp.eq.s32.totalorder %s37, 0
      %p163 = por %p161, %p162
      %p164 = scmp.ne.s32.totalorder %s152, %s153
      %p165 = scmp.eq.s32.totalorder %s38, 1
      %p166 = por %p164, %p165
      %p168 = scmp.ne.s32.totalorder %s153, %s167
      %p169 = scmp.eq.s32.totalorder %s38, 0
      %p170 = por %p168, %p169
      %s172 = sadd.s32 %s171, 1
      %p175 = scmp.eq.s32.totalorder %s32, 1
      %p176 = scmp.ne.s32.totalorder %s171, %s173
      %p177 = scmp.eq.s32.totalorder %s32, 0
      %p178 = por %p176, %p177
      %p179 = scmp.ne.s32.totalorder %s171, %s173
      %p180 = scmp.eq.s32.totalorder %s37, 1
      %p181 = por %p179, %p180
      %p182 = scmp.ne.s32.totalorder %s173, %s174
      %p183 = scmp.eq.s32.totalorder %s37, 0
      %p184 = por %p182, %p183
      %p185 = scmp.ne.s32.totalorder %s173, %s174
      %p186 = scmp.eq.s32.totalorder %s38, 1
      %p187 = por %p185, %p186
      %p189 = scmp.ne.s32.totalorder %s174, %s188
      %p190 = scmp.eq.s32.totalorder %s38, 0
      %p191 = por %p189, %p190
      %s193 = sadd.s32 %s192, 1
      %p196 = scmp.eq.s32.totalorder %s32, 1
      %p197 = scmp.ne.s32.totalorder %s192, %s194
      %p198 = scmp.eq.s32.totalorder %s32, 0
      %p199 = por %p197, %p198
      %p200 = scmp.ne.s32.totalorder %s192, %s194
      %p201 = scmp.eq.s32.totalorder %s37, 1
      %p202 = por %p200, %p201
      %p203 = scmp.ne.s32.totalorder %s194, %s195
      %p204 = scmp.eq.s32.totalorder %s37, 0
      %p205 = por %p203, %p204
      %p206 = scmp.ne.s32.totalorder %s194, %s195
      %p207 = scmp.eq.s32.totalorder %s38, 1
      %p208 = por %p206, %p207
      %p210 = scmp.ne.s32.totalorder %s195, %s209
      %p211 = scmp.eq.s32.totalorder %s38, 0
      %p212 = por %p210, %p211
      %s214 = sadd.s32 %s213, 1
      %p217 = scmp.eq.s32.totalorder %s32, 1
      %p218 = scmp.ne.s32.totalorder %s213, %s215
      %p219 = scmp.eq.s32.totalorder %s32, 0
      %p220 = por %p218, %p219
      %p221 = scmp.ne.s32.totalorder %s213, %s215
      %p222 = scmp.eq.s32.totalorder %s37, 1
      %p223 = por %p221, %p222
      %p224 = scmp.ne.s32.totalorder %s215, %s216
      %p225 = scmp.eq.s32.totalorder %s37, 0
      %p226 = por %p224, %p225
      %p227 = scmp.ne.s32.totalorder %s215, %s216
      %p228 = scmp.eq.s32.totalorder %s38, 1
      %p229 = por %p227, %p228
      %p231 = scmp.ne.s32.totalorder %s216, %s230
      %p232 = scmp.eq.s32.totalorder %s38, 0
      %p233 = por %p231, %p232
      %s235 = sadd.s32 %s234, 1
      %p238 = scmp.eq.s32.totalorder %s32, 1
      %p239 = scmp.ne.s32.totalorder %s234, %s236
      %p240 = scmp.eq.s32.totalorder %s32, 0
      %p241 = por %p239, %p240
      %p242 = scmp.ne.s32.totalorder %s234, %s236
      %p243 = scmp.eq.s32.totalorder %s37, 1
      %p244 = por %p242, %p243
      %p245 = scmp.ne.s32.totalorder %s236, %s237
      %p246 = scmp.eq.s32.totalorder %s37, 0
      %p247 = por %p245, %p246
      %p248 = scmp.ne.s32.totalorder %s236, %s237
      %p249 = scmp.eq.s32.totalorder %s38, 1
      %p250 = por %p248, %p249
      %p252 = scmp.ne.s32.totalorder %s237, %s251
      %p253 = scmp.eq.s32.totalorder %s38, 0
      %p254 = por %p252, %p253
      %s256 = sadd.s32 %s255, 1
      %p259 = scmp.eq.s32.totalorder %s32, 1
      %p260 = scmp.ne.s32.totalorder %s255, %s257
      %p261 = scmp.eq.s32.totalorder %s32, 0
      %p262 = por %p260, %p261
      %p263 = scmp.ne.s32.totalorder %s255, %s257
      %p264 = scmp.eq.s32.totalorder %s37, 1
      %p265 = por %p263, %p264
      %p266 = scmp.ne.s32.totalorder %s257, %s258
      %p267 = scmp.eq.s32.totalorder %s37, 0
      %p268 = por %p266, %p267
      %p269 = scmp.ne.s32.totalorder %s257, %s258
      %p270 = scmp.eq.s32.totalorder %s38, 1
      %p271 = por %p269, %p270
      %p273 = scmp.ne.s32.totalorder %s258, %s272
      %p274 = scmp.eq.s32.totalorder %s38, 0
      %p275 = por %p273, %p274
      %s277 = sadd.s32 %s276, 1
      %p280 = scmp.eq.s32.totalorder %s32, 1
      %p281 = scmp.ne.s32.totalorder %s276, %s278
      %p282 = scmp.eq.s32.totalorder %s32, 0
      %p283 = por %p281, %p282
      %p284 = scmp.ne.s32.totalorder %s276, %s278
      %p285 = scmp.eq.s32.totalorder %s37, 1
      %p286 = por %p284, %p285
      %p287 = scmp.ne.s32.totalorder %s278, %s279
      %p288 = scmp.eq.s32.totalorder %s37, 0
      %p289 = por %p287, %p288
      %p290 = scmp.ne.s32.totalorder %s278, %s279
      %p291 = scmp.eq.s32.totalorder %s38, 1
      %p292 = por %p290, %p291
      %p294 = scmp.ne.s32.totalorder %s279, %s293
      %p295 = scmp.eq.s32.totalorder %s38, 0
      %p296 = por %p294, %p295
      %s298 = sadd.s32 %s297, 1
      %p301 = scmp.eq.s32.totalorder %s32, 1
      %p302 = scmp.ne.s32.totalorder %s297, %s299
      %p303 = scmp.eq.s32.totalorder %s32, 0
      %p304 = por %p302, %p303
      %p305 = scmp.ne.s32.totalorder %s297, %s299
      %p306 = scmp.eq.s32.totalorder %s37, 1
      %p307 = por %p305, %p306
      %p308 = scmp.ne.s32.totalorder %s299, %s300
      %p309 = scmp.eq.s32.totalorder %s37, 0
      %p310 = por %p308, %p309
      %p311 = scmp.ne.s32.totalorder %s299, %s300
      %p312 = scmp.eq.s32.totalorder %s38, 1
      %p313 = por %p311, %p312
      %p315 = scmp.ne.s32.totalorder %s300, %s314
      %p316 = scmp.eq.s32.totalorder %s38, 0
      %p317 = por %p315, %p316
      %s319 = sadd.s32 %s318, 1
      %p322 = scmp.eq.s32.totalorder %s32, 1
      %p323 = scmp.ne.s32.totalorder %s318, %s320
      %p324 = scmp.eq.s32.totalorder %s32, 0
      %p325 = por %p323, %p324
      %p326 = scmp.ne.s32.totalorder %s318, %s320
      %p327 = scmp.eq.s32.totalorder %s37, 1
      %p328 = por %p326, %p327
      %p329 = scmp.ne.s32.totalorder %s320, %s321
      %p330 = scmp.eq.s32.totalorder %s37, 0
      %p331 = por %p329, %p330
      %p332 = scmp.ne.s32.totalorder %s320, %s321
      %p333 = scmp.eq.s32.totalorder %s38, 1
      %p334 = por %p332, %p333
      %p336 = scmp.ne.s32.totalorder %s321, %s335
      %p337 = scmp.eq.s32.totalorder %s38, 0
      %p338 = por %p336, %p337
      %s340 = sadd.s32 %s339, 1
      %p343 = scmp.eq.s32.totalorder %s32, 1
      %p344 = scmp.ne.s32.totalorder %s339, %s341
      %p345 = scmp.eq.s32.totalorder %s32, 0
      %p346 = por %p344, %p345
      %p347 = scmp.ne.s32.totalorder %s339, %s341
      %p348 = scmp.eq.s32.totalorder %s37, 1
      %p349 = por %p347, %p348
      %p350 = scmp.ne.s32.totalorder %s341, %s342
      %p351 = scmp.eq.s32.totalorder %s37, 0
      %p352 = por %p350, %p351
      %p353 = scmp.ne.s32.totalorder %s341, %s342
      %p354 = scmp.eq.s32.totalorder %s38, 1
      %p355 = por %p353, %p354
      %p357 = scmp.ne.s32.totalorder %s342, %s356
      %p358 = scmp.eq.s32.totalorder %s38, 0
      %p359 = por %p357, %p358
      %s361 = sadd.s32 %s360, 1
      %p364 = scmp.eq.s32.totalorder %s32, 1
      %p365 = scmp.ne.s32.totalorder %s360, %s362
      %p366 = scmp.eq.s32.totalorder %s32, 0
      %p367 = por %p365, %p366
      %p368 = scmp.ne.s32.totalorder %s360, %s362
      %p369 = scmp.eq.s32.totalorder %s37, 1
      %p370 = por %p368, %p369
      %p371 = scmp.ne.s32.totalorder %s362, %s363
      %p372 = scmp.eq.s32.totalorder %s37, 0
      %p373 = por %p371, %p372
      %p374 = scmp.ne.s32.totalorder %s362, %s363
      %p375 = scmp.eq.s32.totalorder %s38, 1
      %p376 = por %p374, %p375
      %p378 = scmp.ne.s32.totalorder %s363, %s377
      %p379 = scmp.eq.s32.totalorder %s38, 0
      %p380 = por %p378, %p379
      %s381 = ssub.s32 %s32, %s39
      %p382 = scmp.eq.s32.totalorder %s381, 0
      %s384 = sadd.s32 %s383, 1
      %s385 = scalar_select %p382, %s383, %s384
      %p388 = pneg %p382
      %p389 = scmp.eq.s32.totalorder %s32, 1
      %p390 = por %p388, %p389
      %p391 = scmp.ne.s32.totalorder %s383, %s386
      %p392 = scmp.eq.s32.totalorder %s32, 0
      %p393 = por %p391, %p392
      %p394 = scmp.ne.s32.totalorder %s383, %s386
      %p395 = scmp.eq.s32.totalorder %s37, 1
      %p396 = por %p394, %p395
      %p397 = scmp.ne.s32.totalorder %s386, %s387
      %p398 = scmp.eq.s32.totalorder %s37, 0
      %p399 = por %p397, %p398
      %p400 = scmp.ne.s32.totalorder %s386, %s387
      %p401 = scmp.eq.s32.totalorder %s38, 1
      %p402 = por %p400, %p401
      %p404 = scmp.ne.s32.totalorder %s387, %s403
      %p405 = scmp.eq.s32.totalorder %s38, 0
      %p406 = por %p404, %p405
      %p407 = scmp.le.s32.totalorder 1, %s32
      %p408 = scmp.lt.s32.totalorder %s32, 3
      %p409 = pnand %p407, %p408
      %p410 = pneg %p409
      // Predicated region
      $region9: #{basic_layer_forward.1} parent=5 // pred_check
        _
      $region10: #{basic_layer_forward.1} parent=5 // pred_check_branch
        %412 = sbr.rel (%p409) target = $region12
      $region11: #{basic_layer_forward.1} parent=5 // pred_region
        %s413 = ssub.s32 %s32, 1
        // Predicated region
        $region13: #{basic_layer_forward.1} parent=11 // pred_check
          %p414 = pneg %p79
        $region14: #{basic_layer_forward.1} parent=11 // pred_check_branch
          %416 = sbr.rel (%p414) target = $region16
        $region15: #{basic_layer_forward.1} parent=11 // pred_region
          _
        $region16: #{basic_layer_forward.1} parent=11 // pred_fallthru
          _
        // Predicated region
        $region17: #{basic_layer_forward.1} parent=11 // pred_check
          %p417 = pneg %p100
        $region18: #{basic_layer_forward.1} parent=11 // pred_check_branch
          %419 = sbr.rel (%p417) target = $region20
        $region19: #{basic_layer_forward.1} parent=11 // pred_region
          _
        $region20: #{basic_layer_forward.1} parent=11 // pred_fallthru
          _
        // Predicated region
        $region21: #{basic_layer_forward.1} parent=11 // pred_check
          %p420 = pneg %p121
        $region22: #{basic_layer_forward.1} parent=11 // pred_check_branch
          %422 = sbr.rel (%p420) target = $region24
        $region23: #{basic_layer_forward.1} parent=11 // pred_region
          %s424 = ssub.s32 6144, 6144
          %425 = vsyncadd [#allocation7], %s424
          %s426 = sshll.u32 [#allocation6], 4
          %s427 = int_to_ptr.vmem [resolvable:$true] %s426
          %432 = dma.hbm_to_vmem [thread:$0]  %s3, 6144, %s427, [#allocation7], 192, 192, 12
        $region24: #{basic_layer_forward.1} parent=11 // pred_fallthru
          _
        // Predicated region
        $region25: #{basic_layer_forward.1} parent=11 // pred_check
          %p433 = pneg %p142
        $region26: #{basic_layer_forward.1} parent=11 // pred_check_branch
          %435 = sbr.rel (%p433) target = $region28
        $region27: #{basic_layer_forward.1} parent=11 // pred_region
          _
        $region28: #{basic_layer_forward.1} parent=11 // pred_fallthru
          _
        // Predicated region
        $region29: #{basic_layer_forward.1} parent=11 // pred_check
          %p436 = pneg %p163
        $region30: #{basic_layer_forward.1} parent=11 // pred_check_branch
          %438 = sbr.rel (%p436) target = $region32
        $region31: #{basic_layer_forward.1} parent=11 // pred_region
          %s440 = ssub.s32 2048, 2048
          %441 = vsyncadd [#allocation7], %s440
          %s442 = sshll.u32 [#allocation8], 4
          %s443 = int_to_ptr.vmem [resolvable:$true] %s442
          %448 = dma.hbm_to_vmem [thread:$0]  %s5, 2048, %s443, [#allocation7], 64, 64, 4
        $region32: #{basic_layer_forward.1} parent=11 // pred_fallthru
          _
        // Predicated region
        $region33: #{basic_layer_forward.1} parent=11 // pred_check
          %p449 = pneg %p184
        $region34: #{basic_layer_forward.1} parent=11 // pred_check_branch
          %451 = sbr.rel (%p449) target = $region36
        $region35: #{basic_layer_forward.1} parent=11 // pred_region
          _
        $region36: #{basic_layer_forward.1} parent=11 // pred_fallthru
          _
        // Predicated region
        $region37: #{basic_layer_forward.1} parent=11 // pred_check
          %p452 = pneg %p205
        $region38: #{basic_layer_forward.1} parent=11 // pred_check_branch
          %454 = sbr.rel (%p452) target = $region40
        $region39: #{basic_layer_forward.1} parent=11 // pred_region
          %s456 = ssub.s32 8192, 8192
          %457 = vsyncadd [#allocation10], %s456
          %s458 = sshll.u32 [#allocation9], 4
          %s459 = int_to_ptr.vmem [resolvable:$true] %s458
          %464 = dma.hbm_to_vmem [thread:$0]  %s7, 8192, %s459, [#allocation10], 128, 128, 8
        $region40: #{basic_layer_forward.1} parent=11 // pred_fallthru
          _
        // Predicated region
        $region41: #{basic_layer_forward.1} parent=11 // pred_check
          %p465 = pneg %p226
        $region42: #{basic_layer_forward.1} parent=11 // pred_check_branch
          %467 = sbr.rel (%p465) target = $region44
        $region43: #{basic_layer_forward.1} parent=11 // pred_region
          _
        $region44: #{basic_layer_forward.1} parent=11 // pred_fallthru
          _
        // Predicated region
        $region45: #{basic_layer_forward.1} parent=11 // pred_check
          %p468 = pneg %p247
        $region46: #{basic_layer_forward.1} parent=11 // pred_check_branch
          %470 = sbr.rel (%p468) target = $region48
        $region47: #{basic_layer_forward.1} parent=11 // pred_region
          _
        $region48: #{basic_layer_forward.1} parent=11 // pred_fallthru
          _
        // Predicated region
        $region49: #{basic_layer_forward.1} parent=11 // pred_check
          %p471 = pneg %p268
        $region50: #{basic_layer_forward.1} parent=11 // pred_check_branch
          %473 = sbr.rel (%p471) target = $region52
        $region51: #{basic_layer_forward.1} parent=11 // pred_region
          %s475 = ssub.s32 4096, 4096
          %476 = vsyncadd [#allocation10], %s475
          %s477 = sshll.u32 [#allocation11], 4
          %s478 = int_to_ptr.vmem [resolvable:$true] %s477
          %483 = dma.hbm_to_vmem [thread:$0]  %s10, 4096, %s478, [#allocation10], 128, 128, 8
        $region52: #{basic_layer_forward.1} parent=11 // pred_fallthru
          _
        // Predicated region
        $region53: #{basic_layer_forward.1} parent=11 // pred_check
          %p484 = pneg %p289
        $region54: #{basic_layer_forward.1} parent=11 // pred_check_branch
          %486 = sbr.rel (%p484) target = $region56
        $region55: #{basic_layer_forward.1} parent=11 // pred_region
          %s488 = ssub.s32 64, 64
          %489 = vsyncadd [#allocation13], %s488
          %s490 = sshll.u32 [#allocation12], 4
          %s491 = int_to_ptr.vmem [resolvable:$true] %s490
          %496 = dma.hbm_to_vmem [thread:$0]  %s11, 64, %s491, [#allocation13], 32, 32, 2
        $region56: #{basic_layer_forward.1} parent=11 // pred_fallthru
          _
        // Predicated region
        $region57: #{basic_layer_forward.1} parent=11 // pred_check
          %p497 = pneg %p310
        $region58: #{basic_layer_forward.1} parent=11 // pred_check_branch
          %499 = sbr.rel (%p497) target = $region60
        $region59: #{basic_layer_forward.1} parent=11 // pred_region
          %s501 = ssub.s32 4096, 4096
          %502 = vsyncadd [#allocation13], %s501
          %s503 = sshll.u32 [#allocation14], 4
          %s504 = int_to_ptr.vmem [resolvable:$true] %s503
          %509 = dma.hbm_to_vmem [thread:$0]  %s12, 4096, %s504, [#allocation13], 64, 64, 4
        $region60: #{basic_layer_forward.1} parent=11 // pred_fallthru
          _
        // Predicated region
        $region61: #{basic_layer_forward.1} parent=11 // pred_check
          %p510 = pneg %p331
        $region62: #{basic_layer_forward.1} parent=11 // pred_check_branch
          %512 = sbr.rel (%p510) target = $region64
        $region63: #{basic_layer_forward.1} parent=11 // pred_region
          %s514 = ssub.s32 32, 32
          %515 = vsyncadd [#allocation16], %s514
          %s516 = sshll.u32 [#allocation15], 4
          %s517 = int_to_ptr.vmem [resolvable:$true] %s516
          %522 = dma.hbm_to_vmem [thread:$0]  %s13, 32, %s517, [#allocation16], 16, 16, 1
        $region64: #{basic_layer_forward.1} parent=11 // pred_fallthru
          _
        // Predicated region
        $region65: #{basic_layer_forward.1} parent=11 // pred_check
          %p523 = pneg %p352
        $region66: #{basic_layer_forward.1} parent=11 // pred_check_branch
          %525 = sbr.rel (%p523) target = $region68
        $region67: #{basic_layer_forward.1} parent=11 // pred_region
          %s527 = ssub.s32 9216, 9216
          %528 = vsyncadd [#allocation16], %s527
          %s529 = sshll.u32 [#allocation17], 4
          %s530 = int_to_ptr.vmem [resolvable:$true] %s529
          %535 = dma.hbm_to_vmem [thread:$0]  %s14, 9216, %s530, [#allocation16], 64, 64, 4
        $region68: #{basic_layer_forward.1} parent=11 // pred_fallthru
          _
        // Predicated region
        $region69: #{basic_layer_forward.1} parent=11 // pred_check
          %p536 = pneg %p373
        $region70: #{basic_layer_forward.1} parent=11 // pred_check_branch
          %538 = sbr.rel (%p536) target = $region72
        $region71: #{basic_layer_forward.1} parent=11 // pred_region
          _
        $region72: #{basic_layer_forward.1} parent=11 // pred_fallthru
          _
      $region12: #{basic_layer_forward.1} parent=5 // pred_fallthru
        _
      %p539 = scmp.lt.s32.totalorder %s32, 2
      // Predicated region
      $region73: #{basic_layer_forward.1} parent=5 // pred_check
        %p540 = pneg %p539
      $region74: #{basic_layer_forward.1} parent=5 // pred_check_branch
        %542 = sbr.rel (%p540) target = $region76
      $region75: #{basic_layer_forward.1} parent=5 // pred_region
        // Predicated region
        $region77: #{basic_layer_forward.1} parent=75 // pred_check
          %p543 = pneg %p52
        $region78: #{basic_layer_forward.1} parent=75 // pred_check_branch
          %545 = sbr.rel (%p543) target = $region80
        $region79: #{basic_layer_forward.1} parent=75 // pred_region
          %s546 = sand.u32 %s42, 1
          %s547 = scalar_lea.sflag [#allocation4], %s546
          %s548 = sand.u32 %s42, 1
          %s549 = smul.addr %s548, 64
          %s550 = scalar_lea.vmem [#allocation3], %s549
          %s552 = ssub.s32 1024, 1024
          %553 = vsyncadd %s547, %s552
          %s554 = smul.addr %s32, 8
          %s555 = smul.addr %s554, 128
          %s556 = scalar_lea.hbm %s0, %s555
          %s557 = sshll.u32 %s550, 4
          %s558 = int_to_ptr.vmem [resolvable:$true] %s557
          %563 = dma.hbm_to_vmem [thread:$0]  %s556, 1024, %s558, %s547, 128, 128, 8
        $region80: #{basic_layer_forward.1} parent=75 // pred_fallthru
          _
      $region76: #{basic_layer_forward.1} parent=5 // pred_fallthru
        _
      %p564 = scmp.le.s32.totalorder 1, %s32
      %p565 = scmp.lt.s32.totalorder %s32, 3
      %p566 = pnand %p564, %p565
      %p567 = pneg %p566
      // Predicated region
      $region81: #{basic_layer_forward.1} parent=5 // pred_check
        _
      $region82: #{basic_layer_forward.1} parent=5 // pred_check_branch
        %569 = sbr.rel (%p566) target = $region84
      $region83: #{basic_layer_forward.1} parent=5 // pred_region
        %s570 = ssub.s32 %s32, 1
        %s571 = sand.u32 %s45, 1
        %s572 = scalar_lea.sflag [#allocation4], %s571
        %s573 = sand.u32 %s45, 1
        %s574 = smul.addr %s573, 64
        %s575 = scalar_lea.vmem [#allocation3], %s574
        // Predicated region
        $region85: #{basic_layer_forward.1} parent=83 // pred_check
          %p576 = pneg %p58
        $region86: #{basic_layer_forward.1} parent=83 // pred_check_branch
          %578 = sbr.rel (%p576) target = $region88
        $region87: #{basic_layer_forward.1} parent=83 // pred_region
          %579 = dma.done %s572, 1024
        $region88: #{basic_layer_forward.1} parent=83 // pred_fallthru
          _
        // Predicated region
        $region89: #{basic_layer_forward.1} parent=83 // pred_check
          %p580 = pneg %p121
        $region90: #{basic_layer_forward.1} parent=83 // pred_check_branch
          %582 = sbr.rel (%p580) target = $region92
        $region91: #{basic_layer_forward.1} parent=83 // pred_region
          %583 = dma.done [#allocation7], 6144
        $region92: #{basic_layer_forward.1} parent=83 // pred_fallthru
          _
        // Predicated region
        $region93: #{basic_layer_forward.1} parent=83 // pred_check
          %p584 = pneg %p163
        $region94: #{basic_layer_forward.1} parent=83 // pred_check_branch
          %586 = sbr.rel (%p584) target = $region96
        $region95: #{basic_layer_forward.1} parent=83 // pred_region
          %587 = dma.done [#allocation7], 2048
        $region96: #{basic_layer_forward.1} parent=83 // pred_fallthru
          _
        // Predicated region
        $region97: #{basic_layer_forward.1} parent=83 // pred_check
          %p588 = pneg %p205
        $region98: #{basic_layer_forward.1} parent=83 // pred_check_branch
          %590 = sbr.rel (%p588) target = $region100
        $region99: #{basic_layer_forward.1} parent=83 // pred_region
          %591 = dma.done [#allocation10], 8192
        $region100: #{basic_layer_forward.1} parent=83 // pred_fallthru
          _
        // Predicated region
        $region101: #{basic_layer_forward.1} parent=83 // pred_check
          %p592 = pneg %p268
        $region102: #{basic_layer_forward.1} parent=83 // pred_check_branch
          %594 = sbr.rel (%p592) target = $region104
        $region103: #{basic_layer_forward.1} parent=83 // pred_region
          %595 = dma.done [#allocation10], 4096
        $region104: #{basic_layer_forward.1} parent=83 // pred_fallthru
          _
        // Predicated region
        $region105: #{basic_layer_forward.1} parent=83 // pred_check
          %p596 = pneg %p289
        $region106: #{basic_layer_forward.1} parent=83 // pred_check_branch
          %598 = sbr.rel (%p596) target = $region108
        $region107: #{basic_layer_forward.1} parent=83 // pred_region
          %599 = dma.done [#allocation13], 64
        $region108: #{basic_layer_forward.1} parent=83 // pred_fallthru
          _
        // Predicated region
        $region109: #{basic_layer_forward.1} parent=83 // pred_check
          %p600 = pneg %p310
        $region110: #{basic_layer_forward.1} parent=83 // pred_check_branch
          %602 = sbr.rel (%p600) target = $region112
        $region111: #{basic_layer_forward.1} parent=83 // pred_region
          %603 = dma.done [#allocation13], 4096
        $region112: #{basic_layer_forward.1} parent=83 // pred_fallthru
          _
        // Predicated region
        $region113: #{basic_layer_forward.1} parent=83 // pred_check
          %p604 = pneg %p331
        $region114: #{basic_layer_forward.1} parent=83 // pred_check_branch
          %606 = sbr.rel (%p604) target = $region116
        $region115: #{basic_layer_forward.1} parent=83 // pred_region
          %607 = dma.done [#allocation16], 32
        $region116: #{basic_layer_forward.1} parent=83 // pred_fallthru
          _
        // Predicated region
        $region117: #{basic_layer_forward.1} parent=83 // pred_check
          %p608 = pneg %p352
        $region118: #{basic_layer_forward.1} parent=83 // pred_check_branch
          %610 = sbr.rel (%p608) target = $region120
        $region119: #{basic_layer_forward.1} parent=83 // pred_region
          %611 = dma.done [#allocation16], 9216
        $region120: #{basic_layer_forward.1} parent=83 // pred_fallthru
          _
        %s612 = sand.u32 %s45, 1
        %s613 = scalar_lea.sflag [#allocation4], %s612
        %s614 = sand.u32 %s45, 1
        %s615 = smul.addr %s614, 64
        %s616 = scalar_lea.vmem [#allocation3], %s615
        %p617 = pneg %p58
        %p618 = pneg %p55
        %p619 = pneg %p79
        %p620 = pneg %p76
        %p621 = pneg %p100
        %p622 = pneg %p97
        %p623 = pneg %p121
        %p624 = pneg %p118
        %p625 = pneg %p142
        %p626 = pneg %p139
        %p627 = pneg %p163
        %p628 = pneg %p160
        %p629 = pneg %p184
        %p630 = pneg %p181
        %p631 = pneg %p205
        %p632 = pneg %p202
        %p633 = pneg %p226
        %p634 = pneg %p223
        %p635 = pneg %p247
        %p636 = pneg %p244
        %p637 = pneg %p268
        %p638 = pneg %p265
        %p639 = pneg %p289
        %p640 = pneg %p286
        %p641 = pneg %p310
        %p642 = pneg %p307
        %p643 = pneg %p331
        %p644 = pneg %p328
        %p645 = pneg %p352
        %p646 = pneg %p349
        %p647 = pneg %p373
        %p648 = pneg %p370
        %p649 = pneg %p399
        %p650 = pneg %p396
        %s651 = sand.u32 %s386, 1
        %s652 = scalar_lea.sflag [#allocation5], %s651
        %s653 = sand.u32 %s386, 1
        %s654 = smul.addr %s653, 64
        %s655 = scalar_lea.vmem [#allocation18], %s654
        %v657 = vld [vmem:[%s575] sm:$0xff]
        %v658 = vld [vmem:[%s575 + $0x8] sm:$0xff]
        %v659 = vld [vmem:[%s575 + $0x10] sm:$0xff]
        %v660 = vld [vmem:[%s575 + $0x18] sm:$0xff]
        %v661 = vld [vmem:[%s575 + $0x20] sm:$0xff]
        %v662 = vld [vmem:[%s575 + $0x28] sm:$0xff]
        %v663 = vld [vmem:[%s575 + $0x30] sm:$0xff]
        %v664 = vld [vmem:[%s575 + $0x38] sm:$0xff]
        %v665 = vld [vmem:[%s1] sm:$0x1]
        %v666 = vld [vmem:[%s2] sm:$0x1]
        %667 = vadd.xlane.f32.xlu0 %v657
        %v668 = vpop.xlane.xlu0 %667
        %669 = vadd.xlane.f32.xlu0 %v658
        %v670 = vpop.xlane.xlu0 %669
        %671 = vadd.xlane.f32.xlu0 %v659
        %v672 = vpop.xlane.xlu0 %671
        %673 = vadd.xlane.f32.xlu0 %v660
        %v674 = vpop.xlane.xlu0 %673
        %675 = vadd.xlane.f32.xlu0 %v661
        %v676 = vpop.xlane.xlu0 %675
        %677 = vadd.xlane.f32.xlu0 %v662
        %v678 = vpop.xlane.xlu0 %677
        %679 = vadd.xlane.f32.xlu0 %v663
        %v680 = vpop.xlane.xlu0 %679
        %681 = vadd.xlane.f32.xlu0 %v664
        %v682 = vpop.xlane.xlu0 %681
        %v683 = vrcp.pop 128.0
        %v684 = vmul.f32 %v668, %v683
        %v685 = vmul.f32 %v670, %v683
        %v686 = vmul.f32 %v672, %v683
        %v687 = vmul.f32 %v674, %v683
        %v688 = vmul.f32 %v676, %v683
        %v689 = vmul.f32 %v678, %v683
        %v690 = vmul.f32 %v680, %v683
        %v691 = vmul.f32 %v682, %v683
        %v692 = vsub.f32 %v657, %v684
        %v693 = vsub.f32 %v658, %v685
        %v694 = vsub.f32 %v659, %v686
        %v695 = vsub.f32 %v660, %v687
        %v696 = vsub.f32 %v661, %v688
        %v697 = vsub.f32 %v662, %v689
        %v698 = vsub.f32 %v663, %v690
        %v699 = vsub.f32 %v664, %v691
        %v700 = vmul.f32 %v692, %v692
        %v701 = vmul.f32 %v693, %v693
        %v702 = vmul.f32 %v694, %v694
        %v703 = vmul.f32 %v695, %v695
        %v704 = vmul.f32 %v696, %v696
        %v705 = vmul.f32 %v697, %v697
        %v706 = vmul.f32 %v698, %v698
        %v707 = vmul.f32 %v699, %v699
        %708 = vadd.xlane.f32.xlu0 %v700
        %v709 = vpop.xlane.xlu0 %708
        %710 = vadd.xlane.f32.xlu0 %v701
        %v711 = vpop.xlane.xlu0 %710
        %712 = vadd.xlane.f32.xlu0 %v702
        %v713 = vpop.xlane.xlu0 %712
        %714 = vadd.xlane.f32.xlu0 %v703
        %v715 = vpop.xlane.xlu0 %714
        %716 = vadd.xlane.f32.xlu0 %v704
        %v717 = vpop.xlane.xlu0 %716
        %718 = vadd.xlane.f32.xlu0 %v705
        %v719 = vpop.xlane.xlu0 %718
        %720 = vadd.xlane.f32.xlu0 %v706
        %v721 = vpop.xlane.xlu0 %720
        %722 = vadd.xlane.f32.xlu0 %v707
        %v723 = vpop.xlane.xlu0 %722
        %v724 = vmul.f32 %v709, %v683
        %v725 = vmul.f32 %v711, %v683
        %v726 = vmul.f32 %v713, %v683
        %v727 = vmul.f32 %v715, %v683
        %v728 = vmul.f32 %v717, %v683
        %v729 = vmul.f32 %v719, %v683
        %v730 = vmul.f32 %v721, %v683
        %v731 = vmul.f32 %v723, %v683
        %v732 = vadd.f32 %v724, 1e-05
        %v733 = vadd.f32 %v725, 1e-05
        %v734 = vadd.f32 %v726, 1e-05
        %v735 = vadd.f32 %v727, 1e-05
        %v736 = vadd.f32 %v728, 1e-05
        %v737 = vadd.f32 %v729, 1e-05
        %v738 = vadd.f32 %v730, 1e-05
        %v739 = vadd.f32 %v731, 1e-05
        %v740 = vrsqrt.pop %v732
        %v741 = vrsqrt.pop %v733
        %v742 = vrsqrt.pop %v734
        %v743 = vrsqrt.pop %v735
        %v744 = vrsqrt.pop %v736
        %v745 = vrsqrt.pop %v737
        %v746 = vrsqrt.pop %v738
        %v747 = vrsqrt.pop %v739
        %v748 = vmul.f32 %v692, %v740
        %v749 = vmul.f32 %v693, %v741
        %v750 = vmul.f32 %v694, %v742
        %v751 = vmul.f32 %v695, %v743
        %v752 = vmul.f32 %v696, %v744
        %v753 = vmul.f32 %v697, %v745
        %v754 = vmul.f32 %v698, %v746
        %v755 = vmul.f32 %v699, %v747
        %v757 = vlaneseq
        %v758 = vshrl.u32 %v757, 7
        %v759 = vsub.s32 0, %v758
        %v760 = vrot.slane %v665, %v759
        %v762 = vmul.f32 %v748, %v760
        %v763 = vmul.f32 %v749, %v760
        %v764 = vmul.f32 %v750, %v760
        %v765 = vmul.f32 %v751, %v760
        %v766 = vmul.f32 %v752, %v760
        %v767 = vmul.f32 %v753, %v760
        %v768 = vmul.f32 %v754, %v760
        %v769 = vmul.f32 %v755, %v760
        %v771 = vlaneseq
        %v772 = vshrl.u32 %v771, 7
        %v773 = vsub.s32 0, %v772
        %v774 = vrot.slane %v666, %v773
        %v776 = vadd.f32 %v762, %v774
        %v777 = vadd.f32 %v763, %v774
        %v778 = vadd.f32 %v764, %v774
        %v779 = vadd.f32 %v765, %v774
        %v780 = vadd.f32 %v766, %v774
        %v781 = vadd.f32 %v767, %v774
        %v782 = vadd.f32 %v768, %v774
        %v783 = vadd.f32 %v769, %v774
        %v784 = vpack.c.bf16 %v777, %v776
        %v785 = vpack.c.bf16 %v779, %v778
        %v786 = vpack.c.bf16 %v781, %v780
        %v787 = vpack.c.bf16 %v783, %v782
        %v788 = vld [vmem:[#allocation6] sm:$0xff]
        %v789 = vld [vmem:[#allocation6 + $0x8] sm:$0xf]
        %v790 = vld [vmem:[#allocation6 + $0xc] sm:$0xff]
        %v791 = vld [vmem:[#allocation6 + $0x14] sm:$0xf]
        %v792 = vld [vmem:[#allocation6 + $0x18] sm:$0xff]
        %v793 = vld [vmem:[#allocation6 + $0x20] sm:$0xf]
        %v794 = vld [vmem:[#allocation6 + $0x24] sm:$0xff]
        %v795 = vld [vmem:[#allocation6 + $0x2c] sm:$0xf]
        %v796 = vld [vmem:[#allocation6 + $0x30] sm:$0xff]
        %v797 = vld [vmem:[#allocation6 + $0x38] sm:$0xf]
        %v798 = vld [vmem:[#allocation6 + $0x3c] sm:$0xff]
        %v799 = vld [vmem:[#allocation6 + $0x44] sm:$0xf]
        %v800 = vld [vmem:[#allocation6 + $0x48] sm:$0xff]
        %v801 = vld [vmem:[#allocation6 + $0x50] sm:$0xf]
        %v802 = vld [vmem:[#allocation6 + $0x54] sm:$0xff]
        %v803 = vld [vmem:[#allocation6 + $0x5c] sm:$0xf]
        %v804 = vld [vmem:[#allocation6 + $0x60] sm:$0xff]
        %v805 = vld [vmem:[#allocation6 + $0x68] sm:$0xf]
        %v806 = vld [vmem:[#allocation6 + $0x6c] sm:$0xff]
        %v807 = vld [vmem:[#allocation6 + $0x74] sm:$0xf]
        %v808 = vld [vmem:[#allocation6 + $0x78] sm:$0xff]
        %v809 = vld [vmem:[#allocation6 + $0x80] sm:$0xf]
        %v810 = vld [vmem:[#allocation6 + $0x84] sm:$0xff]
        %v811 = vld [vmem:[#allocation6 + $0x8c] sm:$0xf]
        %v812 = vld [vmem:[#allocation6 + $0x90] sm:$0xff]
        %v813 = vld [vmem:[#allocation6 + $0x98] sm:$0xf]
        %v814 = vld [vmem:[#allocation6 + $0x9c] sm:$0xff]
        %v815 = vld [vmem:[#allocation6 + $0xa4] sm:$0xf]
        %v816 = vld [vmem:[#allocation6 + $0xa8] sm:$0xff]
        %v817 = vld [vmem:[#allocation6 + $0xb0] sm:$0xf]
        %v818 = vld [vmem:[#allocation6 + $0xb4] sm:$0xff]
        %v819 = vld [vmem:[#allocation6 + $0xbc] sm:$0xf]
        %v820 = vld [vmem:[%s4] sm:$0x7]
        %v822 = vlaneseq
        %v823 = vshrl.u32 %v822, 7
        %v824 = vsub.s32 0, %v823
        %v825 = vrot.slane %v820, %v824
        %v826 = vlaneseq
        %v827 = vshrl.u32 %v826, 7
        %v828 = vsub.s32 1, %v827
        %v829 = vrot.slane %v820, %v828
        %v830 = vlaneseq
        %v831 = vshrl.u32 %v830, 7
        %v832 = vsub.s32 2, %v831
        %v833 = vrot.slane %v820, %v832
        %v869 = vunpack.c.l.b16 %v788
        %v870 = vunpack.c.h.b16 %v788
        %v871 = vunpack.c.l.b16 %v789
        %v872 = vunpack.c.l.b16 %v790
        %v873 = vunpack.c.h.b16 %v790
        %v874 = vunpack.c.l.b16 %v791
        %v875 = vunpack.c.l.b16 %v792
        %v876 = vunpack.c.h.b16 %v792
        %v877 = vunpack.c.l.b16 %v793
        %v878 = vunpack.c.l.b16 %v794
        %v879 = vunpack.c.h.b16 %v794
        %v880 = vunpack.c.l.b16 %v795
        %v881 = vunpack.c.l.b16 %v796
        %v882 = vunpack.c.h.b16 %v796
        %v883 = vunpack.c.l.b16 %v797
        %v884 = vunpack.c.l.b16 %v798
        %v885 = vunpack.c.h.b16 %v798
        %v886 = vunpack.c.l.b16 %v799
        %v887 = vunpack.c.l.b16 %v800
        %v888 = vunpack.c.h.b16 %v800
        %v889 = vunpack.c.l.b16 %v801
        %v890 = vunpack.c.l.b16 %v802
        %v891 = vunpack.c.h.b16 %v802
        %v892 = vunpack.c.l.b16 %v803
        %v893 = vunpack.c.l.b16 %v804
        %v894 = vunpack.c.h.b16 %v804
        %v895 = vunpack.c.l.b16 %v805
        %v896 = vunpack.c.l.b16 %v806
        %v897 = vunpack.c.h.b16 %v806
        %v898 = vunpack.c.l.b16 %v807
        %v899 = vunpack.c.l.b16 %v808
        %v900 = vunpack.c.h.b16 %v808
        %v901 = vunpack.c.l.b16 %v809
        %v902 = vunpack.c.l.b16 %v810
        %v903 = vunpack.c.h.b16 %v810
        %v904 = vunpack.c.l.b16 %v811
        %v905 = vunpack.c.l.b16 %v812
        %v906 = vunpack.c.h.b16 %v812
        %v907 = vunpack.c.l.b16 %v813
        %v908 = vunpack.c.l.b16 %v814
        %v909 = vunpack.c.h.b16 %v814
        %v910 = vunpack.c.l.b16 %v815
        %v911 = vunpack.c.l.b16 %v816
        %v912 = vunpack.c.h.b16 %v816
        %v913 = vunpack.c.l.b16 %v817
        %v914 = vunpack.c.l.b16 %v818
        %v915 = vunpack.c.h.b16 %v818
        %v916 = vunpack.c.l.b16 %v819
        %v917 = vpack.c.b16 %v872, %v869
        %v918 = vpack.c.b16 %v873, %v870
        %v919 = vpack.c.b16 %v874, %v871
        %v920 = vpack.c.b16 %v878, %v875
        %v921 = vpack.c.b16 %v879, %v876
        %v922 = vpack.c.b16 %v880, %v877
        %v923 = vpack.c.b16 %v884, %v881
        %v924 = vpack.c.b16 %v885, %v882
        %v925 = vpack.c.b16 %v886, %v883
        %v926 = vpack.c.b16 %v890, %v887
        %v927 = vpack.c.b16 %v891, %v888
        %v928 = vpack.c.b16 %v892, %v889
        %v929 = vpack.c.b16 %v896, %v893
        %v930 = vpack.c.b16 %v897, %v894
        %v931 = vpack.c.b16 %v898, %v895
        %v932 = vpack.c.b16 %v902, %v899
        %v933 = vpack.c.b16 %v903, %v900
        %v934 = vpack.c.b16 %v904, %v901
        %v935 = vpack.c.b16 %v908, %v905
        %v936 = vpack.c.b16 %v909, %v906
        %v937 = vpack.c.b16 %v910, %v907
        %v938 = vpack.c.b16 %v914, %v911
        %v939 = vpack.c.b16 %v915, %v912
        %v940 = vpack.c.b16 %v916, %v913
        %965 = vmatprep.subr.bf16.mxu0 %v918
        %966 = vmatpush1.bf16.msra.mxu0 %v917
        %967 = vmatprep.subr.bf16.mxu0 %v921
        %968 = vmatpush1.bf16.msra.mxu0 %v920
        %969 = vmatprep.subr.bf16.mxu0 %v924
        %970 = vmatpush1.bf16.msra.mxu0 %v923
        %971 = vmatprep.subr.bf16.mxu0 %v927
        %972 = vmatpush1.bf16.msra.mxu0 %v926
        %973 = vmatprep.subr.bf16.mxu0 %v930
        %974 = vmatpush1.bf16.msra.mxu0 %v929
        %975 = vmatprep.subr.bf16.mxu0 %v933
        %976 = vmatpush1.bf16.msra.mxu0 %v932
        %977 = vmatprep.subr.bf16.mxu0 %v936
        %978 = vmatpush1.bf16.msra.mxu0 %v935
        %979 = vmatprep.subr.bf16.mxu0 %v939
        %980 = vmatpush1.bf16.msra.mxu0 %v938
        %981 = vmatprep.subr.bf16.mxu0 0
        %982 = vmatpush1.bf16.msra.mxu0 0
        %983 = vmatprep.subr.bf16.mxu0 0
        %984 = vmatpush1.bf16.msra.mxu0 0
        %985 = vmatprep.subr.bf16.mxu0 0
        %986 = vmatpush1.bf16.msra.mxu0 0
        %987 = vmatprep.subr.bf16.mxu0 0
        %988 = vmatpush1.bf16.msra.mxu0 0
        %989 = vmatprep.subr.bf16.mxu0 0
        %990 = vmatpush1.bf16.msra.mxu0 0
        %991 = vmatprep.subr.bf16.mxu0 0
        %992 = vmatpush1.bf16.msra.mxu0 0
        %993 = vmatprep.subr.bf16.mxu0 0
        %994 = vmatpush1.bf16.msra.mxu0 0
        %995 = vmatprep.subr.bf16.mxu0 0
        %996 = vmatpush1.bf16.msra.mxu0 0
        %997 = vmatprep.mubr.bf16.mxu0 0
        %998 = vmatmul.mubr.bf16.gmra.mrb[0].mxu0 %v784
        %v999 = vpop.f32.mrb[0].mxu0
        %v1000 = vadd.f32 %v825, %v999
        %v1001 = vpop.f32.mrb[0].mxu0
        %v1002 = vadd.f32 %v829, %v1001
        %v1003 = vpop.f32.mrb[0].mxu0
        %v1004 = vadd.f32 %v825, %v1003
        %v1005 = vpop.f32.mrb[0].mxu0
        %v1006 = vadd.f32 %v829, %v1005
        %1007 = vmatprep.mubr.bf16.mxu0 0
        %1008 = vmatmul.mubr.bf16.gmra.mrb[0].mxu0 %v785
        %v1009 = vpop.f32.mrb[0].mxu0
        %v1010 = vadd.f32 %v825, %v1009
        %v1011 = vpop.f32.mrb[0].mxu0
        %v1012 = vadd.f32 %v829, %v1011
        %v1013 = vpop.f32.mrb[0].mxu0
        %v1014 = vadd.f32 %v825, %v1013
        %v1015 = vpop.f32.mrb[0].mxu0
        %v1016 = vadd.f32 %v829, %v1015
        %1017 = vmatprep.mubr.bf16.mxu0 0
        %1018 = vmatmul.mubr.bf16.gmra.mrb[0].mxu0 %v786
        %v1019 = vpop.f32.mrb[0].mxu0
        %v1020 = vadd.f32 %v825, %v1019
        %v1021 = vpop.f32.mrb[0].mxu0
        %v1022 = vadd.f32 %v829, %v1021
        %v1023 = vpop.f32.mrb[0].mxu0
        %v1024 = vadd.f32 %v825, %v1023
        %v1025 = vpop.f32.mrb[0].mxu0
        %v1026 = vadd.f32 %v829, %v1025
        %1027 = vmatprep.mubr.bf16.mxu0 0
        %1028 = vmatmul.mubr.bf16.gmra.mrb[0].mxu0 %v787
        %v1029 = vpop.f32.mrb[0].mxu0
        %v1030 = vadd.f32 %v825, %v1029
        %v1031 = vpop.f32.mrb[0].mxu0
        %v1032 = vadd.f32 %v829, %v1031
        %v1033 = vpop.f32.mrb[0].mxu0
        %v1034 = vadd.f32 %v825, %v1033
        %v1035 = vpop.f32.mrb[0].mxu0
        %v1036 = vadd.f32 %v829, %v1035
        %1037 = vdwg.mxu0
        %1038 = vmatprep.subr.bf16.mxu0 0
        %1039 = vmatpush1.bf16.msra.mxu0 %v919
        %1040 = vmatprep.subr.bf16.mxu0 0
        %1041 = vmatpush1.bf16.msra.mxu0 %v922
        %1042 = vmatprep.subr.bf16.mxu0 0
        %1043 = vmatpush1.bf16.msra.mxu0 %v925
        %1044 = vmatprep.subr.bf16.mxu0 0
        %1045 = vmatpush1.bf16.msra.mxu0 %v928
        %1046 = vmatprep.subr.bf16.mxu0 0
        %1047 = vmatpush1.bf16.msra.mxu0 %v931
        %1048 = vmatprep.subr.bf16.mxu0 0
        %1049 = vmatpush1.bf16.msra.mxu0 %v934
        %1050 = vmatprep.subr.bf16.mxu0 0
        %1051 = vmatpush1.bf16.msra.mxu0 %v937
        %1052 = vmatprep.subr.bf16.mxu0 0
        %1053 = vmatpush1.bf16.msra.mxu0 %v940
        %1054 = vmatprep.subr.bf16.mxu0 0
        %1055 = vmatpush1.bf16.msra.mxu0 0
        %1056 = vmatprep.subr.bf16.mxu0 0
        %1057 = vmatpush1.bf16.msra.mxu0 0
        %1058 = vmatprep.subr.bf16.mxu0 0
        %1059 = vmatpush1.bf16.msra.mxu0 0
        %1060 = vmatprep.subr.bf16.mxu0 0
        %1061 = vmatpush1.bf16.msra.mxu0 0
        %1062 = vmatprep.subr.bf16.mxu0 0
        %1063 = vmatpush1.bf16.msra.mxu0 0
        %1064 = vmatprep.subr.bf16.mxu0 0
        %1065 = vmatpush1.bf16.msra.mxu0 0
        %1066 = vmatprep.subr.bf16.mxu0 0
        %1067 = vmatpush1.bf16.msra.mxu0 0
        %1068 = vmatprep.subr.bf16.mxu0 0
        %1069 = vmatpush1.bf16.msra.mxu0 0
        %1070 = vmatprep.mubr.bf16.mxu0 0
        %1071 = vmatmul.mubr.bf16.gmra.mrb[0].mxu0 %v784
        %v1072 = vpop.f32.mrb[0].mxu0
        %v1073 = vadd.f32 %v833, %v1072
        %v1074 = vpop.f32.mrb[0].mxu0
        %v1075 = vpop.f32.mrb[0].mxu0
        %v1076 = vadd.f32 %v833, %v1075
        %v1077 = vpop.f32.mrb[0].mxu0
        %1078 = vmatprep.mubr.bf16.mxu0 0
        %1079 = vmatmul.mubr.bf16.gmra.mrb[0].mxu0 %v785
        %v1080 = vpop.f32.mrb[0].mxu0
        %v1081 = vadd.f32 %v833, %v1080
        %v1082 = vpop.f32.mrb[0].mxu0
        %v1083 = vpop.f32.mrb[0].mxu0
        %v1084 = vadd.f32 %v833, %v1083
        %v1085 = vpop.f32.mrb[0].mxu0
        %1086 = vmatprep.mubr.bf16.mxu0 0
        %1087 = vmatmul.mubr.bf16.gmra.mrb[0].mxu0 %v786
        %v1088 = vpop.f32.mrb[0].mxu0
        %v1089 = vadd.f32 %v833, %v1088
        %v1090 = vpop.f32.mrb[0].mxu0
        %v1091 = vpop.f32.mrb[0].mxu0
        %v1092 = vadd.f32 %v833, %v1091
        %v1093 = vpop.f32.mrb[0].mxu0
        %1094 = vmatprep.mubr.bf16.mxu0 0
        %1095 = vmatmul.mubr.bf16.gmra.mrb[0].mxu0 %v787
        %v1096 = vpop.f32.mrb[0].mxu0
        %v1097 = vadd.f32 %v833, %v1096
        %v1098 = vpop.f32.mrb[0].mxu0
        %v1099 = vpop.f32.mrb[0].mxu0
        %v1100 = vadd.f32 %v833, %v1099
        %v1101 = vpop.f32.mrb[0].mxu0
        %1102 = vdwg.mxu0
        %v1103 = vld [vmem:[#allocation9] sm:$0xff]
        %v1104 = vld [vmem:[#allocation9 + $0x8] sm:$0xff]
        %v1105 = vld [vmem:[#allocation9 + $0x10] sm:$0xff]
        %v1106 = vld [vmem:[#allocation9 + $0x18] sm:$0xff]
        %v1107 = vld [vmem:[#allocation9 + $0x20] sm:$0xff]
        %v1108 = vld [vmem:[#allocation9 + $0x28] sm:$0xff]
        %v1109 = vld [vmem:[#allocation9 + $0x30] sm:$0xff]
        %v1110 = vld [vmem:[#allocation9 + $0x38] sm:$0xff]
        %v1111 = vld [vmem:[#allocation9 + $0x40] sm:$0xff]
        %v1112 = vld [vmem:[#allocation9 + $0x48] sm:$0xff]
        %v1113 = vld [vmem:[#allocation9 + $0x50] sm:$0xff]
        %v1114 = vld [vmem:[#allocation9 + $0x58] sm:$0xff]
        %v1115 = vld [vmem:[#allocation9 + $0x60] sm:$0xff]
        %v1116 = vld [vmem:[#allocation9 + $0x68] sm:$0xff]
        %v1117 = vld [vmem:[#allocation9 + $0x70] sm:$0xff]
        %v1118 = vld [vmem:[#allocation9 + $0x78] sm:$0xff]
        %v1119 = vld [vmem:[#allocation9 + $0x80] sm:$0xff]
        %v1120 = vld [vmem:[#allocation9 + $0x88] sm:$0xff]
        %v1121 = vld [vmem:[#allocation9 + $0x90] sm:$0xff]
        %v1122 = vld [vmem:[#allocation9 + $0x98] sm:$0xff]
        %v1123 = vld [vmem:[#allocation9 + $0xa0] sm:$0xff]
        %v1124 = vld [vmem:[#allocation9 + $0xa8] sm:$0xff]
        %v1125 = vld [vmem:[#allocation9 + $0xb0] sm:$0xff]
        %v1126 = vld [vmem:[#allocation9 + $0xb8] sm:$0xff]
        %v1127 = vld [vmem:[#allocation9 + $0xc0] sm:$0xff]
        %v1128 = vld [vmem:[#allocation9 + $0xc8] sm:$0xff]
        %v1129 = vld [vmem:[#allocation9 + $0xd0] sm:$0xff]
        %v1130 = vld [vmem:[#allocation9 + $0xd8] sm:$0xff]
        %v1131 = vld [vmem:[#allocation9 + $0xe0] sm:$0xff]
        %v1132 = vld [vmem:[#allocation9 + $0xe8] sm:$0xff]
        %v1133 = vld [vmem:[#allocation9 + $0xf0] sm:$0xff]
        %v1134 = vld [vmem:[#allocation9 + $0xf8] sm:$0xff]
        %v1135 = vmul.f32 %v1000, 0.17677669
        %v1136 = vmul.f32 %v1004, 0.17677669
        %v1137 = vmul.f32 %v1010, 0.17677669
        %v1138 = vmul.f32 %v1014, 0.17677669
        %v1139 = vmul.f32 %v1020, 0.17677669
        %v1140 = vmul.f32 %v1024, 0.17677669
        %v1141 = vmul.f32 %v1030, 0.17677669
        %v1142 = vmul.f32 %v1034, 0.17677669
        %v1143 = vpack.c.bf16 %v1136, %v1135
        %v1144 = vpack.c.bf16 %v1138, %v1137
        %v1145 = vpack.c.bf16 %v1140, %v1139
        %v1146 = vpack.c.bf16 %v1142, %v1141
        %v1147 = vpack.c.bf16 %v1006, %v1002
        %v1148 = vpack.c.bf16 %v1016, %v1012
        %v1149 = vpack.c.bf16 %v1026, %v1022
        %v1150 = vpack.c.bf16 %v1036, %v1032
        %v1151 = vpack.c.bf16 %v1076, %v1073
        %v1152 = vpack.c.bf16 %v1084, %v1081
        %v1153 = vpack.c.bf16 %v1092, %v1089
        %v1154 = vpack.c.bf16 %v1100, %v1097
        %vm1155 = vcmask 261120
        %v1157 = vsel %vm1155, %v1143, 0
        %v1160 = vsel %vm1155, %v1144, 0
        %v1163 = vsel %vm1155, %v1145, 0
        %v1166 = vsel %vm1155, %v1146, 0
        %v1169 = vsel %vm1155, %v1147, 0
        %v1172 = vsel %vm1155, %v1148, 0
        %v1175 = vsel %vm1155, %v1149, 0
        %v1178 = vsel %vm1155, %v1150, 0
        %1180 = vmatprep.subr.bf16.mxu0 0
        %1181 = vmatpush1.bf16.xpose.msra.mxu0 %v1169
        %1182 = vmatprep.subr.bf16.mxu0 0
        %1183 = vmatpush1.bf16.xpose.msra.mxu0 %v1172
        %1184 = vmatprep.subr.bf16.mxu0 0
        %1185 = vmatpush1.bf16.xpose.msra.mxu0 %v1175
        %1186 = vmatprep.subr.bf16.mxu0 0
        %1187 = vmatpush1.bf16.xpose.msra.mxu0 %v1178
        %1188 = vmatprep.subr.bf16.mxu0 0
        %1189 = vmatpush1.bf16.xpose.msra.mxu0 0
        %1190 = vmatprep.subr.bf16.mxu0 0
        %1191 = vmatpush1.bf16.xpose.msra.mxu0 0
        %1192 = vmatprep.subr.bf16.mxu0 0
        %1193 = vmatpush1.bf16.xpose.msra.mxu0 0
        %1194 = vmatprep.subr.bf16.mxu0 0
        %1195 = vmatpush1.bf16.xpose.msra.mxu0 0
        %1196 = vmatprep.subr.bf16.mxu0 0
        %1197 = vmatpush1.bf16.xpose.msra.mxu0 0
        %1198 = vmatprep.subr.bf16.mxu0 0
        %1199 = vmatpush1.bf16.xpose.msra.mxu0 0
        %1200 = vmatprep.subr.bf16.mxu0 0
        %1201 = vmatpush1.bf16.xpose.msra.mxu0 0
        %1202 = vmatprep.subr.bf16.mxu0 0
        %1203 = vmatpush1.bf16.xpose.msra.mxu0 0
        %1204 = vmatprep.subr.bf16.mxu0 0
        %1205 = vmatpush1.bf16.xpose.msra.mxu0 0
        %1206 = vmatprep.subr.bf16.mxu0 0
        %1207 = vmatpush1.bf16.xpose.msra.mxu0 0
        %1208 = vmatprep.subr.bf16.mxu0 0
        %1209 = vmatpush1.bf16.xpose.msra.mxu0 0
        %1210 = vmatprep.subr.bf16.mxu0 0
        %1211 = vmatpush1.bf16.xpose.msra.mxu0 0
        %1212 = vmatprep.mubr.bf16.mxu0 0
        %1213 = vmatmul.mubr.bf16.gmra.mrb[0].mxu0 %v1157
        %v1214 = vpop.f32.mrb[0].mxu0
        %v1215 = vadd.f32 %v1103, %v1214
        %v1216 = vpop.f32.mrb[0].mxu0
        %v1217 = vpop.f32.mrb[0].mxu0
        %v1218 = vadd.f32 %v1104, %v1217
        %v1219 = vpop.f32.mrb[0].mxu0
        %1220 = vmatprep.mubr.bf16.mxu0 0
        %1221 = vmatmul.mubr.bf16.gmra.mrb[0].mxu0 %v1160
        %v1222 = vpop.f32.mrb[0].mxu0
        %v1223 = vadd.f32 %v1105, %v1222
        %v1224 = vpop.f32.mrb[0].mxu0
        %v1225 = vpop.f32.mrb[0].mxu0
        %v1226 = vadd.f32 %v1106, %v1225
        %v1227 = vpop.f32.mrb[0].mxu0
        %1228 = vmatprep.mubr.bf16.mxu0 0
        %1229 = vmatmul.mubr.bf16.gmra.mrb[0].mxu0 %v1163
        %v1230 = vpop.f32.mrb[0].mxu0
        %v1231 = vadd.f32 %v1107, %v1230
        %v1232 = vpop.f32.mrb[0].mxu0
        %v1233 = vpop.f32.mrb[0].mxu0
        %v1234 = vadd.f32 %v1108, %v1233
        %v1235 = vpop.f32.mrb[0].mxu0
        %1236 = vmatprep.mubr.bf16.mxu0 0
        %1237 = vmatmul.mubr.bf16.gmra.mrb[0].mxu0 %v1166
        %v1238 = vpop.f32.mrb[0].mxu0
        %v1239 = vadd.f32 %v1109, %v1238
        %v1240 = vpop.f32.mrb[0].mxu0
        %v1241 = vpop.f32.mrb[0].mxu0
        %v1242 = vadd.f32 %v1110, %v1241
        %v1243 = vpop.f32.mrb[0].mxu0
        %1244 = vdwg.mxu0
        %vm1245 = vcmask 523264
        %v1246 = vsel %vm1245, %v1215, -inf
        %1247 = vmax.xlane.f32.xlu0 %v1246
        %v1248 = vpop.xlane.xlu0 %1247
        %v1249 = vsel %vm1245, %v1218, -inf
        %1250 = vmax.xlane.f32.xlu0 %v1249
        %v1251 = vpop.xlane.xlu0 %1250
        %v1252 = vsel %vm1245, %v1223, -inf
        %1253 = vmax.xlane.f32.xlu0 %v1252
        %v1254 = vpop.xlane.xlu0 %1253
        %v1255 = vsel %vm1245, %v1226, -inf
        %1256 = vmax.xlane.f32.xlu0 %v1255
        %v1257 = vpop.xlane.xlu0 %1256
        %v1258 = vsel %vm1245, %v1231, -inf
        %1259 = vmax.xlane.f32.xlu0 %v1258
        %v1260 = vpop.xlane.xlu0 %1259
        %v1261 = vsel %vm1245, %v1234, -inf
        %1262 = vmax.xlane.f32.xlu0 %v1261
        %v1263 = vpop.xlane.xlu0 %1262
        %v1264 = vsel %vm1245, %v1239, -inf
        %1265 = vmax.xlane.f32.xlu0 %v1264
        %v1266 = vpop.xlane.xlu0 %1265
        %v1267 = vsel %vm1245, %v1242, -inf
        %1268 = vmax.xlane.f32.xlu0 %v1267
        %v1269 = vpop.xlane.xlu0 %1268
        %v1270 = vsub.f32 %v1215, %v1248
        %v1271 = vsub.f32 %v1218, %v1251
        %v1272 = vsub.f32 %v1223, %v1254
        %v1273 = vsub.f32 %v1226, %v1257
        %v1274 = vsub.f32 %v1231, %v1260
        %v1275 = vsub.f32 %v1234, %v1263
        %v1276 = vsub.f32 %v1239, %v1266
        %v1277 = vsub.f32 %v1242, %v1269
        %v1278 = vmul.f32 %v1270, 1.442695
        %v1279 = vpow.pop %v1278
        %v1280 = vmul.f32 %v1271, 1.442695
        %v1281 = vpow.pop %v1280
        %v1282 = vmul.f32 %v1272, 1.442695
        %v1283 = vpow.pop %v1282
        %v1284 = vmul.f32 %v1273, 1.442695
        %v1285 = vpow.pop %v1284
        %v1286 = vmul.f32 %v1274, 1.442695
        %v1287 = vpow.pop %v1286
        %v1288 = vmul.f32 %v1275, 1.442695
        %v1289 = vpow.pop %v1288
        %v1290 = vmul.f32 %v1276, 1.442695
        %v1291 = vpow.pop %v1290
        %v1292 = vmul.f32 %v1277, 1.442695
        %v1293 = vpow.pop %v1292
        %v1294 = vsel %vm1245, %v1279, 0.0
        %1295 = vadd.xlane.f32.xlu0 %v1294
        %v1296 = vpop.xlane.xlu0 %1295
        %v1297 = vsel %vm1245, %v1281, 0.0
        %1298 = vadd.xlane.f32.xlu0 %v1297
        %v1299 = vpop.xlane.xlu0 %1298
        %v1300 = vsel %vm1245, %v1283, 0.0
        %1301 = vadd.xlane.f32.xlu0 %v1300
        %v1302 = vpop.xlane.xlu0 %1301
        %v1303 = vsel %vm1245, %v1285, 0.0
        %1304 = vadd.xlane.f32.xlu0 %v1303
        %v1305 = vpop.xlane.xlu0 %1304
        %v1306 = vsel %vm1245, %v1287, 0.0
        %1307 = vadd.xlane.f32.xlu0 %v1306
        %v1308 = vpop.xlane.xlu0 %1307
        %v1309 = vsel %vm1245, %v1289, 0.0
        %1310 = vadd.xlane.f32.xlu0 %v1309
        %v1311 = vpop.xlane.xlu0 %1310
        %v1312 = vsel %vm1245, %v1291, 0.0
        %1313 = vadd.xlane.f32.xlu0 %v1312
        %v1314 = vpop.xlane.xlu0 %1313
        %v1315 = vsel %vm1245, %v1293, 0.0
        %1316 = vadd.xlane.f32.xlu0 %v1315
        %v1317 = vpop.xlane.xlu0 %1316
        %v1318 = vrcp.pop %v1296
        %v1319 = vrcp.pop %v1299
        %v1320 = vrcp.pop %v1302
        %v1321 = vrcp.pop %v1305
        %v1322 = vrcp.pop %v1308
        %v1323 = vrcp.pop %v1311
        %v1324 = vrcp.pop %v1314
        %v1325 = vrcp.pop %v1317
        %v1326 = vmul.f32 %v1279, %v1318
        %v1327 = vmul.f32 %v1281, %v1319
        %v1328 = vmul.f32 %v1283, %v1320
        %v1329 = vmul.f32 %v1285, %v1321
        %v1330 = vmul.f32 %v1287, %v1322
        %v1331 = vmul.f32 %v1289, %v1323
        %v1332 = vmul.f32 %v1291, %v1324
        %v1333 = vmul.f32 %v1293, %v1325
        %v1334 = vpack.c.bf16 %v1327, %v1326
        %v1335 = vpack.c.bf16 %v1329, %v1328
        %v1336 = vpack.c.bf16 %v1331, %v1330
        %v1337 = vpack.c.bf16 %v1333, %v1332
        %v1339 = vsel %vm1245, %v1334, 0
        %v1342 = vsel %vm1245, %v1335, 0
        %v1345 = vsel %vm1245, %v1336, 0
        %v1348 = vsel %vm1245, %v1337, 0
        %1350 = vmatprep.subr.bf16.mxu0 0
        %1351 = vmatpush1.bf16.msra.mxu0 %v1151
        %1352 = vmatprep.subr.bf16.mxu0 0
        %1353 = vmatpush1.bf16.msra.mxu0 %v1152
        %1354 = vmatprep.subr.bf16.mxu0 0
        %1355 = vmatpush1.bf16.msra.mxu0 %v1153
        %1356 = vmatprep.subr.bf16.mxu0 0
        %1357 = vmatpush1.bf16.msra.mxu0 %v1154
        %1358 = vmatprep.subr.bf16.mxu0 0
        %1359 = vmatpush1.bf16.msra.mxu0 0
        %1360 = vmatprep.subr.bf16.mxu0 0
        %1361 = vmatpush1.bf16.msra.mxu0 0
        %1362 = vmatprep.subr.bf16.mxu0 0
        %1363 = vmatpush1.bf16.msra.mxu0 0
        %1364 = vmatprep.subr.bf16.mxu0 0
        %1365 = vmatpush1.bf16.msra.mxu0 0
        %1366 = vmatprep.subr.bf16.mxu0 0
        %1367 = vmatpush1.bf16.msra.mxu0 0
        %1368 = vmatprep.subr.bf16.mxu0 0
        %1369 = vmatpush1.bf16.msra.mxu0 0
        %1370 = vmatprep.subr.bf16.mxu0 0
        %1371 = vmatpush1.bf16.msra.mxu0 0
        %1372 = vmatprep.subr.bf16.mxu0 0
        %1373 = vmatpush1.bf16.msra.mxu0 0
        %1374 = vmatprep.subr.bf16.mxu0 0
        %1375 = vmatpush1.bf16.msra.mxu0 0
        %1376 = vmatprep.subr.bf16.mxu0 0
        %1377 = vmatpush1.bf16.msra.mxu0 0
        %1378 = vmatprep.subr.bf16.mxu0 0
        %1379 = vmatpush1.bf16.msra.mxu0 0
        %1380 = vmatprep.subr.bf16.mxu0 0
        %1381 = vmatpush1.bf16.msra.mxu0 0
        %1382 = vmatprep.mubr.bf16.mxu0 0
        %1383 = vmatmul.mubr.bf16.gmra.mrb[0].mxu0 %v1339
        %v1384 = vpop.f32.mrb[0].mxu0
        %v1385 = vadd.f32 0.0, %v1384
        %v1386 = vpop.f32.mrb[0].mxu0
        %v1387 = vpop.f32.mrb[0].mxu0
        %v1388 = vadd.f32 0.0, %v1387
        %v1389 = vpop.f32.mrb[0].mxu0
        %1390 = vmatprep.mubr.bf16.mxu0 0
        %1391 = vmatmul.mubr.bf16.gmra.mrb[0].mxu0 %v1342
        %v1392 = vpop.f32.mrb[0].mxu0
        %v1393 = vadd.f32 0.0, %v1392
        %v1394 = vpop.f32.mrb[0].mxu0
        %v1395 = vpop.f32.mrb[0].mxu0
        %v1396 = vadd.f32 0.0, %v1395
        %v1397 = vpop.f32.mrb[0].mxu0
        %1398 = vmatprep.mubr.bf16.mxu0 0
        %1399 = vmatmul.mubr.bf16.gmra.mrb[0].mxu0 %v1345
        %v1400 = vpop.f32.mrb[0].mxu0
        %v1401 = vadd.f32 0.0, %v1400
        %v1402 = vpop.f32.mrb[0].mxu0
        %v1403 = vpop.f32.mrb[0].mxu0
        %v1404 = vadd.f32 0.0, %v1403
        %v1405 = vpop.f32.mrb[0].mxu0
        %1406 = vmatprep.mubr.bf16.mxu0 0
        %1407 = vmatmul.mubr.bf16.gmra.mrb[0].mxu0 %v1348
        %v1408 = vpop.f32.mrb[0].mxu0
        %v1409 = vadd.f32 0.0, %v1408
        %v1410 = vpop.f32.mrb[0].mxu0
        %v1411 = vpop.f32.mrb[0].mxu0
        %v1412 = vadd.f32 0.0, %v1411
        %v1413 = vpop.f32.mrb[0].mxu0
        %1414 = vdwg.mxu0
        %1419 = vrot.lane.b32.xlu0 %v1143, 96
        %v1420 = vpop.permute.xlu0 %1419
        %1421 = vrot.lane.b32.xlu0 %v1144, 96
        %v1422 = vpop.permute.xlu0 %1421
        %1423 = vrot.lane.b32.xlu0 %v1145, 96
        %v1424 = vpop.permute.xlu0 %1423
        %1425 = vrot.lane.b32.xlu0 %v1146, 96
        %v1426 = vpop.permute.xlu0 %1425
        %1431 = vrot.lane.b32.xlu0 %v1147, 96
        %v1432 = vpop.permute.xlu0 %1431
        %1433 = vrot.lane.b32.xlu0 %v1148, 96
        %v1434 = vpop.permute.xlu0 %1433
        %1435 = vrot.lane.b32.xlu0 %v1149, 96
        %v1436 = vpop.permute.xlu0 %1435
        %1437 = vrot.lane.b32.xlu0 %v1150, 96
        %v1438 = vpop.permute.xlu0 %1437
        %v1440 = vsel %vm1155, %v1420, 0
        %v1443 = vsel %vm1155, %v1422, 0
        %v1446 = vsel %vm1155, %v1424, 0
        %v1449 = vsel %vm1155, %v1426, 0
        %v1452 = vsel %vm1155, %v1432, 0
        %v1455 = vsel %vm1155, %v1434, 0
        %v1458 = vsel %vm1155, %v1436, 0
        %v1461 = vsel %vm1155, %v1438, 0
        %1463 = vmatprep.subr.bf16.mxu0 0
        %1464 = vmatpush1.bf16.xpose.msra.mxu0 %v1452
        %1465 = vmatprep.subr.bf16.mxu0 0
        %1466 = vmatpush1.bf16.xpose.msra.mxu0 %v1455
        %1467 = vmatprep.subr.bf16.mxu0 0
        %1468 = vmatpush1.bf16.xpose.msra.mxu0 %v1458
        %1469 = vmatprep.subr.bf16.mxu0 0
        %1470 = vmatpush1.bf16.xpose.msra.mxu0 %v1461
        %1471 = vmatprep.subr.bf16.mxu0 0
        %1472 = vmatpush1.bf16.xpose.msra.mxu0 0
        %1473 = vmatprep.subr.bf16.mxu0 0
        %1474 = vmatpush1.bf16.xpose.msra.mxu0 0
        %1475 = vmatprep.subr.bf16.mxu0 0
        %1476 = vmatpush1.bf16.xpose.msra.mxu0 0
        %1477 = vmatprep.subr.bf16.mxu0 0
        %1478 = vmatpush1.bf16.xpose.msra.mxu0 0
        %1479 = vmatprep.subr.bf16.mxu0 0
        %1480 = vmatpush1.bf16.xpose.msra.mxu0 0
        %1481 = vmatprep.subr.bf16.mxu0 0
        %1482 = vmatpush1.bf16.xpose.msra.mxu0 0
        %1483 = vmatprep.subr.bf16.mxu0 0
        %1484 = vmatpush1.bf16.xpose.msra.mxu0 0
        %1485 = vmatprep.subr.bf16.mxu0 0
        %1486 = vmatpush1.bf16.xpose.msra.mxu0 0
        %1487 = vmatprep.subr.bf16.mxu0 0
        %1488 = vmatpush1.bf16.xpose.msra.mxu0 0
        %1489 = vmatprep.subr.bf16.mxu0 0
        %1490 = vmatpush1.bf16.xpose.msra.mxu0 0
        %1491 = vmatprep.subr.bf16.mxu0 0
        %1492 = vmatpush1.bf16.xpose.msra.mxu0 0
        %1493 = vmatprep.subr.bf16.mxu0 0
        %1494 = vmatpush1.bf16.xpose.msra.mxu0 0
        %1495 = vmatprep.mubr.bf16.mxu0 0
        %1496 = vmatmul.mubr.bf16.gmra.mrb[0].mxu0 %v1440
        %v1497 = vpop.f32.mrb[0].mxu0
        %v1498 = vadd.f32 %v1111, %v1497
        %v1499 = vpop.f32.mrb[0].mxu0
        %v1500 = vpop.f32.mrb[0].mxu0
        %v1501 = vadd.f32 %v1112, %v1500
        %v1502 = vpop.f32.mrb[0].mxu0
        %1503 = vmatprep.mubr.bf16.mxu0 0
        %1504 = vmatmul.mubr.bf16.gmra.mrb[0].mxu0 %v1443
        %v1505 = vpop.f32.mrb[0].mxu0
        %v1506 = vadd.f32 %v1113, %v1505
        %v1507 = vpop.f32.mrb[0].mxu0
        %v1508 = vpop.f32.mrb[0].mxu0
        %v1509 = vadd.f32 %v1114, %v1508
        %v1510 = vpop.f32.mrb[0].mxu0
        %1511 = vmatprep.mubr.bf16.mxu0 0
        %1512 = vmatmul.mubr.bf16.gmra.mrb[0].mxu0 %v1446
        %v1513 = vpop.f32.mrb[0].mxu0
        %v1514 = vadd.f32 %v1115, %v1513
        %v1515 = vpop.f32.mrb[0].mxu0
        %v1516 = vpop.f32.mrb[0].mxu0
        %v1517 = vadd.f32 %v1116, %v1516
        %v1518 = vpop.f32.mrb[0].mxu0
        %1519 = vmatprep.mubr.bf16.mxu0 0
        %1520 = vmatmul.mubr.bf16.gmra.mrb[0].mxu0 %v1449
        %v1521 = vpop.f32.mrb[0].mxu0
        %v1522 = vadd.f32 %v1117, %v1521
        %v1523 = vpop.f32.mrb[0].mxu0
        %v1524 = vpop.f32.mrb[0].mxu0
        %v1525 = vadd.f32 %v1118, %v1524
        %v1526 = vpop.f32.mrb[0].mxu0
        %1527 = vdwg.mxu0
        %v1528 = vsel %vm1245, %v1498, -inf
        %1529 = vmax.xlane.f32.xlu0 %v1528
        %v1530 = vpop.xlane.xlu0 %1529
        %v1531 = vsel %vm1245, %v1501, -inf
        %1532 = vmax.xlane.f32.xlu0 %v1531
        %v1533 = vpop.xlane.xlu0 %1532
        %v1534 = vsel %vm1245, %v1506, -inf
        %1535 = vmax.xlane.f32.xlu0 %v1534
        %v1536 = vpop.xlane.xlu0 %1535
        %v1537 = vsel %vm1245, %v1509, -inf
        %1538 = vmax.xlane.f32.xlu0 %v1537
        %v1539 = vpop.xlane.xlu0 %1538
        %v1540 = vsel %vm1245, %v1514, -inf
        %1541 = vmax.xlane.f32.xlu0 %v1540
        %v1542 = vpop.xlane.xlu0 %1541
        %v1543 = vsel %vm1245, %v1517, -inf
        %1544 = vmax.xlane.f32.xlu0 %v1543
        %v1545 = vpop.xlane.xlu0 %1544
        %v1546 = vsel %vm1245, %v1522, -inf
        %1547 = vmax.xlane.f32.xlu0 %v1546
        %v1548 = vpop.xlane.xlu0 %1547
        %v1549 = vsel %vm1245, %v1525, -inf
        %1550 = vmax.xlane.f32.xlu0 %v1549
        %v1551 = vpop.xlane.xlu0 %1550
        %v1552 = vsub.f32 %v1498, %v1530
        %v1553 = vsub.f32 %v1501, %v1533
        %v1554 = vsub.f32 %v1506, %v1536
        %v1555 = vsub.f32 %v1509, %v1539
        %v1556 = vsub.f32 %v1514, %v1542
        %v1557 = vsub.f32 %v1517, %v1545
        %v1558 = vsub.f32 %v1522, %v1548
        %v1559 = vsub.f32 %v1525, %v1551
        %v1560 = vmul.f32 %v1552, 1.442695
        %v1561 = vpow.pop %v1560
        %v1562 = vmul.f32 %v1553, 1.442695
        %v1563 = vpow.pop %v1562
        %v1564 = vmul.f32 %v1554, 1.442695
        %v1565 = vpow.pop %v1564
        %v1566 = vmul.f32 %v1555, 1.442695
        %v1567 = vpow.pop %v1566
        %v1568 = vmul.f32 %v1556, 1.442695
        %v1569 = vpow.pop %v1568
        %v1570 = vmul.f32 %v1557, 1.442695
        %v1571 = vpow.pop %v1570
        %v1572 = vmul.f32 %v1558, 1.442695
        %v1573 = vpow.pop %v1572
        %v1574 = vmul.f32 %v1559, 1.442695
        %v1575 = vpow.pop %v1574
        %v1576 = vsel %vm1245, %v1561, 0.0
        %1577 = vadd.xlane.f32.xlu0 %v1576
        %v1578 = vpop.xlane.xlu0 %1577
        %v1579 = vsel %vm1245, %v1563, 0.0
        %1580 = vadd.xlane.f32.xlu0 %v1579
        %v1581 = vpop.xlane.xlu0 %1580
        %v1582 = vsel %vm1245, %v1565, 0.0
        %1583 = vadd.xlane.f32.xlu0 %v1582
        %v1584 = vpop.xlane.xlu0 %1583
        %v1585 = vsel %vm1245, %v1567, 0.0
        %1586 = vadd.xlane.f32.xlu0 %v1585
        %v1587 = vpop.xlane.xlu0 %1586
        %v1588 = vsel %vm1245, %v1569, 0.0
        %1589 = vadd.xlane.f32.xlu0 %v1588
        %v1590 = vpop.xlane.xlu0 %1589
        %v1591 = vsel %vm1245, %v1571, 0.0
        %1592 = vadd.xlane.f32.xlu0 %v1591
        %v1593 = vpop.xlane.xlu0 %1592
        %v1594 = vsel %vm1245, %v1573, 0.0
        %1595 = vadd.xlane.f32.xlu0 %v1594
        %v1596 = vpop.xlane.xlu0 %1595
        %v1597 = vsel %vm1245, %v1575, 0.0
        %1598 = vadd.xlane.f32.xlu0 %v1597
        %v1599 = vpop.xlane.xlu0 %1598
        %v1600 = vrcp.pop %v1578
        %v1601 = vrcp.pop %v1581
        %v1602 = vrcp.pop %v1584
        %v1603 = vrcp.pop %v1587
        %v1604 = vrcp.pop %v1590
        %v1605 = vrcp.pop %v1593
        %v1606 = vrcp.pop %v1596
        %v1607 = vrcp.pop %v1599
        %v1608 = vmul.f32 %v1561, %v1600
        %v1609 = vmul.f32 %v1563, %v1601
        %v1610 = vmul.f32 %v1565, %v1602
        %v1611 = vmul.f32 %v1567, %v1603
        %v1612 = vmul.f32 %v1569, %v1604
        %v1613 = vmul.f32 %v1571, %v1605
        %v1614 = vmul.f32 %v1573, %v1606
        %v1615 = vmul.f32 %v1575, %v1607
        %v1616 = vpack.c.bf16 %v1609, %v1608
        %v1617 = vpack.c.bf16 %v1611, %v1610
        %v1618 = vpack.c.bf16 %v1613, %v1612
        %v1619 = vpack.c.bf16 %v1615, %v1614
        %1624 = vrot.lane.b32.xlu0 %v1151, 96
        %v1625 = vpop.permute.xlu0 %1624
        %1626 = vrot.lane.b32.xlu0 %v1152, 96
        %v1627 = vpop.permute.xlu0 %1626
        %1628 = vrot.lane.b32.xlu0 %v1153, 96
        %v1629 = vpop.permute.xlu0 %1628
        %1630 = vrot.lane.b32.xlu0 %v1154, 96
        %v1631 = vpop.permute.xlu0 %1630
        %v1637 = vsel %vm1245, %v1616, 0
        %v1640 = vsel %vm1245, %v1617, 0
        %v1643 = vsel %vm1245, %v1618, 0
        %v1646 = vsel %vm1245, %v1619, 0
        %1648 = vmatprep.subr.bf16.mxu0 0
        %1649 = vmatpush1.bf16.msra.mxu0 %v1625
        %1650 = vmatprep.subr.bf16.mxu0 0
        %1651 = vmatpush1.bf16.msra.mxu0 %v1627
        %1652 = vmatprep.subr.bf16.mxu0 0
        %1653 = vmatpush1.bf16.msra.mxu0 %v1629
        %1654 = vmatprep.subr.bf16.mxu0 0
        %1655 = vmatpush1.bf16.msra.mxu0 %v1631
        %1656 = vmatprep.subr.bf16.mxu0 0
        %1657 = vmatpush1.bf16.msra.mxu0 0
        %1658 = vmatprep.subr.bf16.mxu0 0
        %1659 = vmatpush1.bf16.msra.mxu0 0
        %1660 = vmatprep.subr.bf16.mxu0 0
        %1661 = vmatpush1.bf16.msra.mxu0 0
        %1662 = vmatprep.subr.bf16.mxu0 0
        %1663 = vmatpush1.bf16.msra.mxu0 0
        %1664 = vmatprep.subr.bf16.mxu0 0
        %1665 = vmatpush1.bf16.msra.mxu0 0
        %1666 = vmatprep.subr.bf16.mxu0 0
        %1667 = vmatpush1.bf16.msra.mxu0 0
        %1668 = vmatprep.subr.bf16.mxu0 0
        %1669 = vmatpush1.bf16.msra.mxu0 0
        %1670 = vmatprep.subr.bf16.mxu0 0
        %1671 = vmatpush1.bf16.msra.mxu0 0
        %1672 = vmatprep.subr.bf16.mxu0 0
        %1673 = vmatpush1.bf16.msra.mxu0 0
        %1674 = vmatprep.subr.bf16.mxu0 0
        %1675 = vmatpush1.bf16.msra.mxu0 0
        %1676 = vmatprep.subr.bf16.mxu0 0
        %1677 = vmatpush1.bf16.msra.mxu0 0
        %1678 = vmatprep.subr.bf16.mxu0 0
        %1679 = vmatpush1.bf16.msra.mxu0 0
        %1680 = vmatprep.mubr.bf16.mxu0 0
        %1681 = vmatmul.mubr.bf16.gmra.mrb[0].mxu0 %v1637
        %v1682 = vpop.f32.mrb[0].mxu0
        %v1683 = vadd.f32 0.0, %v1682
        %v1684 = vpop.f32.mrb[0].mxu0
        %v1685 = vpop.f32.mrb[0].mxu0
        %v1686 = vadd.f32 0.0, %v1685
        %v1687 = vpop.f32.mrb[0].mxu0
        %1688 = vmatprep.mubr.bf16.mxu0 0
        %1689 = vmatmul.mubr.bf16.gmra.mrb[0].mxu0 %v1640
        %v1690 = vpop.f32.mrb[0].mxu0
        %v1691 = vadd.f32 0.0, %v1690
        %v1692 = vpop.f32.mrb[0].mxu0
        %v1693 = vpop.f32.mrb[0].mxu0
        %v1694 = vadd.f32 0.0, %v1693
        %v1695 = vpop.f32.mrb[0].mxu0
        %1696 = vmatprep.mubr.bf16.mxu0 0
        %1697 = vmatmul.mubr.bf16.gmra.mrb[0].mxu0 %v1643
        %v1698 = vpop.f32.mrb[0].mxu0
        %v1699 = vadd.f32 0.0, %v1698
        %v1700 = vpop.f32.mrb[0].mxu0
        %v1701 = vpop.f32.mrb[0].mxu0
        %v1702 = vadd.f32 0.0, %v1701
        %v1703 = vpop.f32.mrb[0].mxu0
        %1704 = vmatprep.mubr.bf16.mxu0 0
        %1705 = vmatmul.mubr.bf16.gmra.mrb[0].mxu0 %v1646
        %v1706 = vpop.f32.mrb[0].mxu0
        %v1707 = vadd.f32 0.0, %v1706
        %v1708 = vpop.f32.mrb[0].mxu0
        %v1709 = vpop.f32.mrb[0].mxu0
        %v1710 = vadd.f32 0.0, %v1709
        %v1711 = vpop.f32.mrb[0].mxu0
        %1712 = vdwg.mxu0
        %1713 = vrot.lane.b32.xlu0 %v1143, 64
        %v1714 = vpop.permute.xlu0 %1713
        %1715 = vrot.lane.b32.xlu0 %v1144, 64
        %v1716 = vpop.permute.xlu0 %1715
        %1717 = vrot.lane.b32.xlu0 %v1145, 64
        %v1718 = vpop.permute.xlu0 %1717
        %1719 = vrot.lane.b32.xlu0 %v1146, 64
        %v1720 = vpop.permute.xlu0 %1719
        %1721 = vrot.lane.b32.xlu0 %v1147, 64
        %v1722 = vpop.permute.xlu0 %1721
        %1723 = vrot.lane.b32.xlu0 %v1148, 64
        %v1724 = vpop.permute.xlu0 %1723
        %1725 = vrot.lane.b32.xlu0 %v1149, 64
        %v1726 = vpop.permute.xlu0 %1725
        %1727 = vrot.lane.b32.xlu0 %v1150, 64
        %v1728 = vpop.permute.xlu0 %1727
        %v1730 = vsel %vm1155, %v1714, 0
        %v1733 = vsel %vm1155, %v1716, 0
        %v1736 = vsel %vm1155, %v1718, 0
        %v1739 = vsel %vm1155, %v1720, 0
        %v1742 = vsel %vm1155, %v1722, 0
        %v1745 = vsel %vm1155, %v1724, 0
        %v1748 = vsel %vm1155, %v1726, 0
        %v1751 = vsel %vm1155, %v1728, 0
        %1753 = vmatprep.subr.bf16.mxu0 0
        %1754 = vmatpush1.bf16.xpose.msra.mxu0 %v1742
        %1755 = vmatprep.subr.bf16.mxu0 0
        %1756 = vmatpush1.bf16.xpose.msra.mxu0 %v1745
        %1757 = vmatprep.subr.bf16.mxu0 0
        %1758 = vmatpush1.bf16.xpose.msra.mxu0 %v1748
        %1759 = vmatprep.subr.bf16.mxu0 0
        %1760 = vmatpush1.bf16.xpose.msra.mxu0 %v1751
        %1761 = vmatprep.subr.bf16.mxu0 0
        %1762 = vmatpush1.bf16.xpose.msra.mxu0 0
        %1763 = vmatprep.subr.bf16.mxu0 0
        %1764 = vmatpush1.bf16.xpose.msra.mxu0 0
        %1765 = vmatprep.subr.bf16.mxu0 0
        %1766 = vmatpush1.bf16.xpose.msra.mxu0 0
        %1767 = vmatprep.subr.bf16.mxu0 0
        %1768 = vmatpush1.bf16.xpose.msra.mxu0 0
        %1769 = vmatprep.subr.bf16.mxu0 0
        %1770 = vmatpush1.bf16.xpose.msra.mxu0 0
        %1771 = vmatprep.subr.bf16.mxu0 0
        %1772 = vmatpush1.bf16.xpose.msra.mxu0 0
        %1773 = vmatprep.subr.bf16.mxu0 0
        %1774 = vmatpush1.bf16.xpose.msra.mxu0 0
        %1775 = vmatprep.subr.bf16.mxu0 0
        %1776 = vmatpush1.bf16.xpose.msra.mxu0 0
        %1777 = vmatprep.subr.bf16.mxu0 0
        %1778 = vmatpush1.bf16.xpose.msra.mxu0 0
        %1779 = vmatprep.subr.bf16.mxu0 0
        %1780 = vmatpush1.bf16.xpose.msra.mxu0 0
        %1781 = vmatprep.subr.bf16.mxu0 0
        %1782 = vmatpush1.bf16.xpose.msra.mxu0 0
        %1783 = vmatprep.subr.bf16.mxu0 0
        %1784 = vmatpush1.bf16.xpose.msra.mxu0 0
        %1785 = vmatprep.mubr.bf16.mxu0 0
        %1786 = vmatmul.mubr.bf16.gmra.mrb[0].mxu0 %v1730
        %v1787 = vpop.f32.mrb[0].mxu0
        %v1788 = vadd.f32 %v1119, %v1787
        %v1789 = vpop.f32.mrb[0].mxu0
        %v1790 = vpop.f32.mrb[0].mxu0
        %v1791 = vadd.f32 %v1120, %v1790
        %v1792 = vpop.f32.mrb[0].mxu0
        %1793 = vmatprep.mubr.bf16.mxu0 0
        %1794 = vmatmul.mubr.bf16.gmra.mrb[0].mxu0 %v1733
        %v1795 = vpop.f32.mrb[0].mxu0
        %v1796 = vadd.f32 %v1121, %v1795
        %v1797 = vpop.f32.mrb[0].mxu0
        %v1798 = vpop.f32.mrb[0].mxu0
        %v1799 = vadd.f32 %v1122, %v1798
        %v1800 = vpop.f32.mrb[0].mxu0
        %1801 = vmatprep.mubr.bf16.mxu0 0
        %1802 = vmatmul.mubr.bf16.gmra.mrb[0].mxu0 %v1736
        %v1803 = vpop.f32.mrb[0].mxu0
        %v1804 = vadd.f32 %v1123, %v1803
        %v1805 = vpop.f32.mrb[0].mxu0
        %v1806 = vpop.f32.mrb[0].mxu0
        %v1807 = vadd.f32 %v1124, %v1806
        %v1808 = vpop.f32.mrb[0].mxu0
        %1809 = vmatprep.mubr.bf16.mxu0 0
        %1810 = vmatmul.mubr.bf16.gmra.mrb[0].mxu0 %v1739
        %v1811 = vpop.f32.mrb[0].mxu0
        %v1812 = vadd.f32 %v1125, %v1811
        %v1813 = vpop.f32.mrb[0].mxu0
        %v1814 = vpop.f32.mrb[0].mxu0
        %v1815 = vadd.f32 %v1126, %v1814
        %v1816 = vpop.f32.mrb[0].mxu0
        %1817 = vdwg.mxu0
        %v1818 = vsel %vm1245, %v1788, -inf
        %1819 = vmax.xlane.f32.xlu0 %v1818
        %v1820 = vpop.xlane.xlu0 %1819
        %v1821 = vsel %vm1245, %v1791, -inf
        %1822 = vmax.xlane.f32.xlu0 %v1821
        %v1823 = vpop.xlane.xlu0 %1822
        %v1824 = vsel %vm1245, %v1796, -inf
        %1825 = vmax.xlane.f32.xlu0 %v1824
        %v1826 = vpop.xlane.xlu0 %1825
        %v1827 = vsel %vm1245, %v1799, -inf
        %1828 = vmax.xlane.f32.xlu0 %v1827
        %v1829 = vpop.xlane.xlu0 %1828
        %v1830 = vsel %vm1245, %v1804, -inf
        %1831 = vmax.xlane.f32.xlu0 %v1830
        %v1832 = vpop.xlane.xlu0 %1831
        %v1833 = vsel %vm1245, %v1807, -inf
        %1834 = vmax.xlane.f32.xlu0 %v1833
        %v1835 = vpop.xlane.xlu0 %1834
        %v1836 = vsel %vm1245, %v1812, -inf
        %1837 = vmax.xlane.f32.xlu0 %v1836
        %v1838 = vpop.xlane.xlu0 %1837
        %v1839 = vsel %vm1245, %v1815, -inf
        %1840 = vmax.xlane.f32.xlu0 %v1839
        %v1841 = vpop.xlane.xlu0 %1840
        %v1842 = vsub.f32 %v1788, %v1820
        %v1843 = vsub.f32 %v1791, %v1823
        %v1844 = vsub.f32 %v1796, %v1826
        %v1845 = vsub.f32 %v1799, %v1829
        %v1846 = vsub.f32 %v1804, %v1832
        %v1847 = vsub.f32 %v1807, %v1835
        %v1848 = vsub.f32 %v1812, %v1838
        %v1849 = vsub.f32 %v1815, %v1841
        %v1850 = vmul.f32 %v1842, 1.442695
        %v1851 = vpow.pop %v1850
        %v1852 = vmul.f32 %v1843, 1.442695
        %v1853 = vpow.pop %v1852
        %v1854 = vmul.f32 %v1844, 1.442695
        %v1855 = vpow.pop %v1854
        %v1856 = vmul.f32 %v1845, 1.442695
        %v1857 = vpow.pop %v1856
        %v1858 = vmul.f32 %v1846, 1.442695
        %v1859 = vpow.pop %v1858
        %v1860 = vmul.f32 %v1847, 1.442695
        %v1861 = vpow.pop %v1860
        %v1862 = vmul.f32 %v1848, 1.442695
        %v1863 = vpow.pop %v1862
        %v1864 = vmul.f32 %v1849, 1.442695
        %v1865 = vpow.pop %v1864
        %v1866 = vsel %vm1245, %v1851, 0.0
        %1867 = vadd.xlane.f32.xlu0 %v1866
        %v1868 = vpop.xlane.xlu0 %1867
        %v1869 = vsel %vm1245, %v1853, 0.0
        %1870 = vadd.xlane.f32.xlu0 %v1869
        %v1871 = vpop.xlane.xlu0 %1870
        %v1872 = vsel %vm1245, %v1855, 0.0
        %1873 = vadd.xlane.f32.xlu0 %v1872
        %v1874 = vpop.xlane.xlu0 %1873
        %v1875 = vsel %vm1245, %v1857, 0.0
        %1876 = vadd.xlane.f32.xlu0 %v1875
        %v1877 = vpop.xlane.xlu0 %1876
        %v1878 = vsel %vm1245, %v1859, 0.0
        %1879 = vadd.xlane.f32.xlu0 %v1878
        %v1880 = vpop.xlane.xlu0 %1879
        %v1881 = vsel %vm1245, %v1861, 0.0
        %1882 = vadd.xlane.f32.xlu0 %v1881
        %v1883 = vpop.xlane.xlu0 %1882
        %v1884 = vsel %vm1245, %v1863, 0.0
        %1885 = vadd.xlane.f32.xlu0 %v1884
        %v1886 = vpop.xlane.xlu0 %1885
        %v1887 = vsel %vm1245, %v1865, 0.0
        %1888 = vadd.xlane.f32.xlu0 %v1887
        %v1889 = vpop.xlane.xlu0 %1888
        %v1890 = vrcp.pop %v1868
        %v1891 = vrcp.pop %v1871
        %v1892 = vrcp.pop %v1874
        %v1893 = vrcp.pop %v1877
        %v1894 = vrcp.pop %v1880
        %v1895 = vrcp.pop %v1883
        %v1896 = vrcp.pop %v1886
        %v1897 = vrcp.pop %v1889
        %v1898 = vmul.f32 %v1851, %v1890
        %v1899 = vmul.f32 %v1853, %v1891
        %v1900 = vmul.f32 %v1855, %v1892
        %v1901 = vmul.f32 %v1857, %v1893
        %v1902 = vmul.f32 %v1859, %v1894
        %v1903 = vmul.f32 %v1861, %v1895
        %v1904 = vmul.f32 %v1863, %v1896
        %v1905 = vmul.f32 %v1865, %v1897
        %v1906 = vpack.c.bf16 %v1899, %v1898
        %v1907 = vpack.c.bf16 %v1901, %v1900
        %v1908 = vpack.c.bf16 %v1903, %v1902
        %v1909 = vpack.c.bf16 %v1905, %v1904
        %1910 = vrot.lane.b32.xlu0 %v1151, 64
        %v1911 = vpop.permute.xlu0 %1910
        %1912 = vrot.lane.b32.xlu0 %v1152, 64
        %v1913 = vpop.permute.xlu0 %1912
        %1914 = vrot.lane.b32.xlu0 %v1153, 64
        %v1915 = vpop.permute.xlu0 %1914
        %1916 = vrot.lane.b32.xlu0 %v1154, 64
        %v1917 = vpop.permute.xlu0 %1916
        %v1923 = vsel %vm1245, %v1906, 0
        %v1926 = vsel %vm1245, %v1907, 0
        %v1929 = vsel %vm1245, %v1908, 0
        %v1932 = vsel %vm1245, %v1909, 0
        %1934 = vmatprep.subr.bf16.mxu0 0
        %1935 = vmatpush1.bf16.msra.mxu0 %v1911
        %1936 = vmatprep.subr.bf16.mxu0 0
        %1937 = vmatpush1.bf16.msra.mxu0 %v1913
        %1938 = vmatprep.subr.bf16.mxu0 0
        %1939 = vmatpush1.bf16.msra.mxu0 %v1915
        %1940 = vmatprep.subr.bf16.mxu0 0
        %1941 = vmatpush1.bf16.msra.mxu0 %v1917
        %1942 = vmatprep.subr.bf16.mxu0 0
        %1943 = vmatpush1.bf16.msra.mxu0 0
        %1944 = vmatprep.subr.bf16.mxu0 0
        %1945 = vmatpush1.bf16.msra.mxu0 0
        %1946 = vmatprep.subr.bf16.mxu0 0
        %1947 = vmatpush1.bf16.msra.mxu0 0
        %1948 = vmatprep.subr.bf16.mxu0 0
        %1949 = vmatpush1.bf16.msra.mxu0 0
        %1950 = vmatprep.subr.bf16.mxu0 0
        %1951 = vmatpush1.bf16.msra.mxu0 0
        %1952 = vmatprep.subr.bf16.mxu0 0
        %1953 = vmatpush1.bf16.msra.mxu0 0
        %1954 = vmatprep.subr.bf16.mxu0 0
        %1955 = vmatpush1.bf16.msra.mxu0 0
        %1956 = vmatprep.subr.bf16.mxu0 0
        %1957 = vmatpush1.bf16.msra.mxu0 0
        %1958 = vmatprep.subr.bf16.mxu0 0
        %1959 = vmatpush1.bf16.msra.mxu0 0
        %1960 = vmatprep.subr.bf16.mxu0 0
        %1961 = vmatpush1.bf16.msra.mxu0 0
        %1962 = vmatprep.subr.bf16.mxu0 0
        %1963 = vmatpush1.bf16.msra.mxu0 0
        %1964 = vmatprep.subr.bf16.mxu0 0
        %1965 = vmatpush1.bf16.msra.mxu0 0
        %1966 = vmatprep.mubr.bf16.mxu0 0
        %1967 = vmatmul.mubr.bf16.gmra.mrb[0].mxu0 %v1923
        %v1968 = vpop.f32.mrb[0].mxu0
        %v1969 = vadd.f32 0.0, %v1968
        %v1970 = vpop.f32.mrb[0].mxu0
        %v1971 = vpop.f32.mrb[0].mxu0
        %v1972 = vadd.f32 0.0, %v1971
        %v1973 = vpop.f32.mrb[0].mxu0
        %1974 = vmatprep.mubr.bf16.mxu0 0
        %1975 = vmatmul.mubr.bf16.gmra.mrb[0].mxu0 %v1926
        %v1976 = vpop.f32.mrb[0].mxu0
        %v1977 = vadd.f32 0.0, %v1976
        %v1978 = vpop.f32.mrb[0].mxu0
        %v1979 = vpop.f32.mrb[0].mxu0
        %v1980 = vadd.f32 0.0, %v1979
        %v1981 = vpop.f32.mrb[0].mxu0
        %1982 = vmatprep.mubr.bf16.mxu0 0
        %1983 = vmatmul.mubr.bf16.gmra.mrb[0].mxu0 %v1929
        %v1984 = vpop.f32.mrb[0].mxu0
        %v1985 = vadd.f32 0.0, %v1984
        %v1986 = vpop.f32.mrb[0].mxu0
        %v1987 = vpop.f32.mrb[0].mxu0
        %v1988 = vadd.f32 0.0, %v1987
        %v1989 = vpop.f32.mrb[0].mxu0
        %1990 = vmatprep.mubr.bf16.mxu0 0
        %1991 = vmatmul.mubr.bf16.gmra.mrb[0].mxu0 %v1932
        %v1992 = vpop.f32.mrb[0].mxu0
        %v1993 = vadd.f32 0.0, %v1992
        %v1994 = vpop.f32.mrb[0].mxu0
        %v1995 = vpop.f32.mrb[0].mxu0
        %v1996 = vadd.f32 0.0, %v1995
        %v1997 = vpop.f32.mrb[0].mxu0
        %1998 = vdwg.mxu0
        %1999 = vrot.lane.b32.xlu0 %v1143, 32
        %v2000 = vpop.permute.xlu0 %1999
        %2001 = vrot.lane.b32.xlu0 %v1144, 32
        %v2002 = vpop.permute.xlu0 %2001
        %2003 = vrot.lane.b32.xlu0 %v1145, 32
        %v2004 = vpop.permute.xlu0 %2003
        %2005 = vrot.lane.b32.xlu0 %v1146, 32
        %v2006 = vpop.permute.xlu0 %2005
        %2007 = vrot.lane.b32.xlu0 %v1147, 32
        %v2008 = vpop.permute.xlu0 %2007
        %2009 = vrot.lane.b32.xlu0 %v1148, 32
        %v2010 = vpop.permute.xlu0 %2009
        %2011 = vrot.lane.b32.xlu0 %v1149, 32
        %v2012 = vpop.permute.xlu0 %2011
        %2013 = vrot.lane.b32.xlu0 %v1150, 32
        %v2014 = vpop.permute.xlu0 %2013
        %v2016 = vsel %vm1155, %v2000, 0
        %v2019 = vsel %vm1155, %v2002, 0
        %v2022 = vsel %vm1155, %v2004, 0
        %v2025 = vsel %vm1155, %v2006, 0
        %v2028 = vsel %vm1155, %v2008, 0
        %v2031 = vsel %vm1155, %v2010, 0
        %v2034 = vsel %vm1155, %v2012, 0
        %v2037 = vsel %vm1155, %v2014, 0
        %2039 = vmatprep.subr.bf16.mxu0 0
        %2040 = vmatpush1.bf16.xpose.msra.mxu0 %v2028
        %2041 = vmatprep.subr.bf16.mxu0 0
        %2042 = vmatpush1.bf16.xpose.msra.mxu0 %v2031
        %2043 = vmatprep.subr.bf16.mxu0 0
        %2044 = vmatpush1.bf16.xpose.msra.mxu0 %v2034
        %2045 = vmatprep.subr.bf16.mxu0 0
        %2046 = vmatpush1.bf16.xpose.msra.mxu0 %v2037
        %2047 = vmatprep.subr.bf16.mxu0 0
        %2048 = vmatpush1.bf16.xpose.msra.mxu0 0
        %2049 = vmatprep.subr.bf16.mxu0 0
        %2050 = vmatpush1.bf16.xpose.msra.mxu0 0
        %2051 = vmatprep.subr.bf16.mxu0 0
        %2052 = vmatpush1.bf16.xpose.msra.mxu0 0
        %2053 = vmatprep.subr.bf16.mxu0 0
        %2054 = vmatpush1.bf16.xpose.msra.mxu0 0
        %2055 = vmatprep.subr.bf16.mxu0 0
        %2056 = vmatpush1.bf16.xpose.msra.mxu0 0
        %2057 = vmatprep.subr.bf16.mxu0 0
        %2058 = vmatpush1.bf16.xpose.msra.mxu0 0
        %2059 = vmatprep.subr.bf16.mxu0 0
        %2060 = vmatpush1.bf16.xpose.msra.mxu0 0
        %2061 = vmatprep.subr.bf16.mxu0 0
        %2062 = vmatpush1.bf16.xpose.msra.mxu0 0
        %2063 = vmatprep.subr.bf16.mxu0 0
        %2064 = vmatpush1.bf16.xpose.msra.mxu0 0
        %2065 = vmatprep.subr.bf16.mxu0 0
        %2066 = vmatpush1.bf16.xpose.msra.mxu0 0
        %2067 = vmatprep.subr.bf16.mxu0 0
        %2068 = vmatpush1.bf16.xpose.msra.mxu0 0
        %2069 = vmatprep.subr.bf16.mxu0 0
        %2070 = vmatpush1.bf16.xpose.msra.mxu0 0
        %2071 = vmatprep.mubr.bf16.mxu0 0
        %2072 = vmatmul.mubr.bf16.gmra.mrb[0].mxu0 %v2016
        %v2073 = vpop.f32.mrb[0].mxu0
        %v2074 = vadd.f32 %v1127, %v2073
        %v2075 = vpop.f32.mrb[0].mxu0
        %v2076 = vpop.f32.mrb[0].mxu0
        %v2077 = vadd.f32 %v1128, %v2076
        %v2078 = vpop.f32.mrb[0].mxu0
        %2079 = vmatprep.mubr.bf16.mxu0 0
        %2080 = vmatmul.mubr.bf16.gmra.mrb[0].mxu0 %v2019
        %v2081 = vpop.f32.mrb[0].mxu0
        %v2082 = vadd.f32 %v1129, %v2081
        %v2083 = vpop.f32.mrb[0].mxu0
        %v2084 = vpop.f32.mrb[0].mxu0
        %v2085 = vadd.f32 %v1130, %v2084
        %v2086 = vpop.f32.mrb[0].mxu0
        %2087 = vmatprep.mubr.bf16.mxu0 0
        %2088 = vmatmul.mubr.bf16.gmra.mrb[0].mxu0 %v2022
        %v2089 = vpop.f32.mrb[0].mxu0
        %v2090 = vadd.f32 %v1131, %v2089
        %v2091 = vpop.f32.mrb[0].mxu0
        %v2092 = vpop.f32.mrb[0].mxu0
        %v2093 = vadd.f32 %v1132, %v2092
        %v2094 = vpop.f32.mrb[0].mxu0
        %2095 = vmatprep.mubr.bf16.mxu0 0
        %2096 = vmatmul.mubr.bf16.gmra.mrb[0].mxu0 %v2025
        %v2097 = vpop.f32.mrb[0].mxu0
        %v2098 = vadd.f32 %v1133, %v2097
        %v2099 = vpop.f32.mrb[0].mxu0
        %v2100 = vpop.f32.mrb[0].mxu0
        %v2101 = vadd.f32 %v1134, %v2100
        %v2102 = vpop.f32.mrb[0].mxu0
        %2103 = vdwg.mxu0
        %v2104 = vsel %vm1245, %v2074, -inf
        %2105 = vmax.xlane.f32.xlu0 %v2104
        %v2106 = vpop.xlane.xlu0 %2105
        %v2107 = vsel %vm1245, %v2077, -inf
        %2108 = vmax.xlane.f32.xlu0 %v2107
        %v2109 = vpop.xlane.xlu0 %2108
        %v2110 = vsel %vm1245, %v2082, -inf
        %2111 = vmax.xlane.f32.xlu0 %v2110
        %v2112 = vpop.xlane.xlu0 %2111
        %v2113 = vsel %vm1245, %v2085, -inf
        %2114 = vmax.xlane.f32.xlu0 %v2113
        %v2115 = vpop.xlane.xlu0 %2114
        %v2116 = vsel %vm1245, %v2090, -inf
        %2117 = vmax.xlane.f32.xlu0 %v2116
        %v2118 = vpop.xlane.xlu0 %2117
        %v2119 = vsel %vm1245, %v2093, -inf
        %2120 = vmax.xlane.f32.xlu0 %v2119
        %v2121 = vpop.xlane.xlu0 %2120
        %v2122 = vsel %vm1245, %v2098, -inf
        %2123 = vmax.xlane.f32.xlu0 %v2122
        %v2124 = vpop.xlane.xlu0 %2123
        %v2125 = vsel %vm1245, %v2101, -inf
        %2126 = vmax.xlane.f32.xlu0 %v2125
        %v2127 = vpop.xlane.xlu0 %2126
        %v2128 = vsub.f32 %v2074, %v2106
        %v2129 = vsub.f32 %v2077, %v2109
        %v2130 = vsub.f32 %v2082, %v2112
        %v2131 = vsub.f32 %v2085, %v2115
        %v2132 = vsub.f32 %v2090, %v2118
        %v2133 = vsub.f32 %v2093, %v2121
        %v2134 = vsub.f32 %v2098, %v2124
        %v2135 = vsub.f32 %v2101, %v2127
        %v2136 = vmul.f32 %v2128, 1.442695
        %v2137 = vpow.pop %v2136
        %v2138 = vmul.f32 %v2129, 1.442695
        %v2139 = vpow.pop %v2138
        %v2140 = vmul.f32 %v2130, 1.442695
        %v2141 = vpow.pop %v2140
        %v2142 = vmul.f32 %v2131, 1.442695
        %v2143 = vpow.pop %v2142
        %v2144 = vmul.f32 %v2132, 1.442695
        %v2145 = vpow.pop %v2144
        %v2146 = vmul.f32 %v2133, 1.442695
        %v2147 = vpow.pop %v2146
        %v2148 = vmul.f32 %v2134, 1.442695
        %v2149 = vpow.pop %v2148
        %v2150 = vmul.f32 %v2135, 1.442695
        %v2151 = vpow.pop %v2150
        %v2152 = vsel %vm1245, %v2137, 0.0
        %2153 = vadd.xlane.f32.xlu0 %v2152
        %v2154 = vpop.xlane.xlu0 %2153
        %v2155 = vsel %vm1245, %v2139, 0.0
        %2156 = vadd.xlane.f32.xlu0 %v2155
        %v2157 = vpop.xlane.xlu0 %2156
        %v2158 = vsel %vm1245, %v2141, 0.0
        %2159 = vadd.xlane.f32.xlu0 %v2158
        %v2160 = vpop.xlane.xlu0 %2159
        %v2161 = vsel %vm1245, %v2143, 0.0
        %2162 = vadd.xlane.f32.xlu0 %v2161
        %v2163 = vpop.xlane.xlu0 %2162
        %v2164 = vsel %vm1245, %v2145, 0.0
        %2165 = vadd.xlane.f32.xlu0 %v2164
        %v2166 = vpop.xlane.xlu0 %2165
        %v2167 = vsel %vm1245, %v2147, 0.0
        %2168 = vadd.xlane.f32.xlu0 %v2167
        %v2169 = vpop.xlane.xlu0 %2168
        %v2170 = vsel %vm1245, %v2149, 0.0
        %2171 = vadd.xlane.f32.xlu0 %v2170
        %v2172 = vpop.xlane.xlu0 %2171
        %v2173 = vsel %vm1245, %v2151, 0.0
        %2174 = vadd.xlane.f32.xlu0 %v2173
        %v2175 = vpop.xlane.xlu0 %2174
        %v2176 = vrcp.pop %v2154
        %v2177 = vrcp.pop %v2157
        %v2178 = vrcp.pop %v2160
        %v2179 = vrcp.pop %v2163
        %v2180 = vrcp.pop %v2166
        %v2181 = vrcp.pop %v2169
        %v2182 = vrcp.pop %v2172
        %v2183 = vrcp.pop %v2175
        %v2184 = vmul.f32 %v2137, %v2176
        %v2185 = vmul.f32 %v2139, %v2177
        %v2186 = vmul.f32 %v2141, %v2178
        %v2187 = vmul.f32 %v2143, %v2179
        %v2188 = vmul.f32 %v2145, %v2180
        %v2189 = vmul.f32 %v2147, %v2181
        %v2190 = vmul.f32 %v2149, %v2182
        %v2191 = vmul.f32 %v2151, %v2183
        %v2192 = vpack.c.bf16 %v2185, %v2184
        %v2193 = vpack.c.bf16 %v2187, %v2186
        %v2194 = vpack.c.bf16 %v2189, %v2188
        %v2195 = vpack.c.bf16 %v2191, %v2190
        %2196 = vrot.lane.b32.xlu0 %v1151, 32
        %v2197 = vpop.permute.xlu0 %2196
        %2198 = vrot.lane.b32.xlu0 %v1152, 32
        %v2199 = vpop.permute.xlu0 %2198
        %2200 = vrot.lane.b32.xlu0 %v1153, 32
        %v2201 = vpop.permute.xlu0 %2200
        %2202 = vrot.lane.b32.xlu0 %v1154, 32
        %v2203 = vpop.permute.xlu0 %2202
        %v2209 = vsel %vm1245, %v2192, 0
        %v2212 = vsel %vm1245, %v2193, 0
        %v2215 = vsel %vm1245, %v2194, 0
        %v2218 = vsel %vm1245, %v2195, 0
        %2220 = vmatprep.subr.bf16.mxu0 0
        %2221 = vmatpush1.bf16.msra.mxu0 %v2197
        %2222 = vmatprep.subr.bf16.mxu0 0
        %2223 = vmatpush1.bf16.msra.mxu0 %v2199
        %2224 = vmatprep.subr.bf16.mxu0 0
        %2225 = vmatpush1.bf16.msra.mxu0 %v2201
        %2226 = vmatprep.subr.bf16.mxu0 0
        %2227 = vmatpush1.bf16.msra.mxu0 %v2203
        %2228 = vmatprep.subr.bf16.mxu0 0
        %2229 = vmatpush1.bf16.msra.mxu0 0
        %2230 = vmatprep.subr.bf16.mxu0 0
        %2231 = vmatpush1.bf16.msra.mxu0 0
        %2232 = vmatprep.subr.bf16.mxu0 0
        %2233 = vmatpush1.bf16.msra.mxu0 0
        %2234 = vmatprep.subr.bf16.mxu0 0
        %2235 = vmatpush1.bf16.msra.mxu0 0
        %2236 = vmatprep.subr.bf16.mxu0 0
        %2237 = vmatpush1.bf16.msra.mxu0 0
        %2238 = vmatprep.subr.bf16.mxu0 0
        %2239 = vmatpush1.bf16.msra.mxu0 0
        %2240 = vmatprep.subr.bf16.mxu0 0
        %2241 = vmatpush1.bf16.msra.mxu0 0
        %2242 = vmatprep.subr.bf16.mxu0 0
        %2243 = vmatpush1.bf16.msra.mxu0 0
        %2244 = vmatprep.subr.bf16.mxu0 0
        %2245 = vmatpush1.bf16.msra.mxu0 0
        %2246 = vmatprep.subr.bf16.mxu0 0
        %2247 = vmatpush1.bf16.msra.mxu0 0
        %2248 = vmatprep.subr.bf16.mxu0 0
        %2249 = vmatpush1.bf16.msra.mxu0 0
        %2250 = vmatprep.subr.bf16.mxu0 0
        %2251 = vmatpush1.bf16.msra.mxu0 0
        %2252 = vmatprep.mubr.bf16.mxu0 0
        %2253 = vmatmul.mubr.bf16.gmra.mrb[0].mxu0 %v2209
        %v2254 = vpop.f32.mrb[0].mxu0
        %v2255 = vadd.f32 0.0, %v2254
        %v2256 = vpop.f32.mrb[0].mxu0
        %v2257 = vpop.f32.mrb[0].mxu0
        %v2258 = vadd.f32 0.0, %v2257
        %v2259 = vpop.f32.mrb[0].mxu0
        %2260 = vmatprep.mubr.bf16.mxu0 0
        %2261 = vmatmul.mubr.bf16.gmra.mrb[0].mxu0 %v2212
        %v2262 = vpop.f32.mrb[0].mxu0
        %v2263 = vadd.f32 0.0, %v2262
        %v2264 = vpop.f32.mrb[0].mxu0
        %v2265 = vpop.f32.mrb[0].mxu0
        %v2266 = vadd.f32 0.0, %v2265
        %v2267 = vpop.f32.mrb[0].mxu0
        %2268 = vmatprep.mubr.bf16.mxu0 0
        %2269 = vmatmul.mubr.bf16.gmra.mrb[0].mxu0 %v2215
        %v2270 = vpop.f32.mrb[0].mxu0
        %v2271 = vadd.f32 0.0, %v2270
        %v2272 = vpop.f32.mrb[0].mxu0
        %v2273 = vpop.f32.mrb[0].mxu0
        %v2274 = vadd.f32 0.0, %v2273
        %v2275 = vpop.f32.mrb[0].mxu0
        %2276 = vmatprep.mubr.bf16.mxu0 0
        %2277 = vmatmul.mubr.bf16.gmra.mrb[0].mxu0 %v2218
        %v2278 = vpop.f32.mrb[0].mxu0
        %v2279 = vadd.f32 0.0, %v2278
        %v2280 = vpop.f32.mrb[0].mxu0
        %v2281 = vpop.f32.mrb[0].mxu0
        %v2282 = vadd.f32 0.0, %v2281
        %v2283 = vpop.f32.mrb[0].mxu0
        %2284 = vdwg.mxu0
        %2293 = vrot.lane.b32.xlu0 %v1683, 32
        %v2294 = vpop.permute.xlu0 %2293
        %2295 = vrot.lane.b32.xlu0 %v1686, 32
        %v2296 = vpop.permute.xlu0 %2295
        %2297 = vrot.lane.b32.xlu0 %v1691, 32
        %v2298 = vpop.permute.xlu0 %2297
        %2299 = vrot.lane.b32.xlu0 %v1694, 32
        %v2300 = vpop.permute.xlu0 %2299
        %2301 = vrot.lane.b32.xlu0 %v1699, 32
        %v2302 = vpop.permute.xlu0 %2301
        %2303 = vrot.lane.b32.xlu0 %v1702, 32
        %v2304 = vpop.permute.xlu0 %2303
        %2305 = vrot.lane.b32.xlu0 %v1707, 32
        %v2306 = vpop.permute.xlu0 %2305
        %2307 = vrot.lane.b32.xlu0 %v1710, 32
        %v2308 = vpop.permute.xlu0 %2307
        %2325 = vrot.lane.b32.xlu0 %v1969, 64
        %v2326 = vpop.permute.xlu0 %2325
        %2327 = vrot.lane.b32.xlu0 %v1972, 64
        %v2328 = vpop.permute.xlu0 %2327
        %2329 = vrot.lane.b32.xlu0 %v1977, 64
        %v2330 = vpop.permute.xlu0 %2329
        %2331 = vrot.lane.b32.xlu0 %v1980, 64
        %v2332 = vpop.permute.xlu0 %2331
        %2333 = vrot.lane.b32.xlu0 %v1985, 64
        %v2334 = vpop.permute.xlu0 %2333
        %2335 = vrot.lane.b32.xlu0 %v1988, 64
        %v2336 = vpop.permute.xlu0 %2335
        %2337 = vrot.lane.b32.xlu0 %v1993, 64
        %v2338 = vpop.permute.xlu0 %2337
        %2339 = vrot.lane.b32.xlu0 %v1996, 64
        %v2340 = vpop.permute.xlu0 %2339
        %2357 = vrot.lane.b32.xlu0 %v2255, 96
        %v2358 = vpop.permute.xlu0 %2357
        %2359 = vrot.lane.b32.xlu0 %v2258, 96
        %v2360 = vpop.permute.xlu0 %2359
        %2361 = vrot.lane.b32.xlu0 %v2263, 96
        %v2362 = vpop.permute.xlu0 %2361
        %2363 = vrot.lane.b32.xlu0 %v2266, 96
        %v2364 = vpop.permute.xlu0 %2363
        %2365 = vrot.lane.b32.xlu0 %v2271, 96
        %v2366 = vpop.permute.xlu0 %2365
        %2367 = vrot.lane.b32.xlu0 %v2274, 96
        %v2368 = vpop.permute.xlu0 %2367
        %2369 = vrot.lane.b32.xlu0 %v2279, 96
        %v2370 = vpop.permute.xlu0 %2369
        %2371 = vrot.lane.b32.xlu0 %v2282, 96
        %v2372 = vpop.permute.xlu0 %2371
        %v2381 = vsel %vm1155, %v1385, %v2294
        %v2382 = vsel %vm1155, %v1388, %v2296
        %v2383 = vsel %vm1155, %v1393, %v2298
        %v2384 = vsel %vm1155, %v1396, %v2300
        %v2385 = vsel %vm1155, %v1401, %v2302
        %v2386 = vsel %vm1155, %v1404, %v2304
        %v2387 = vsel %vm1155, %v1409, %v2306
        %v2388 = vsel %vm1155, %v1412, %v2308
        %v2389 = vsel %vm1245, %v2381, %v2326
        %v2390 = vsel %vm1245, %v2382, %v2328
        %v2391 = vsel %vm1245, %v2383, %v2330
        %v2392 = vsel %vm1245, %v2384, %v2332
        %v2393 = vsel %vm1245, %v2385, %v2334
        %v2394 = vsel %vm1245, %v2386, %v2336
        %v2395 = vsel %vm1245, %v2387, %v2338
        %v2396 = vsel %vm1245, %v2388, %v2340
        %vm2397 = vcmask 785408
        %v2398 = vsel %vm2397, %v2389, %v2358
        %v2399 = vsel %vm2397, %v2390, %v2360
        %v2400 = vsel %vm2397, %v2391, %v2362
        %v2401 = vsel %vm2397, %v2392, %v2364
        %v2402 = vsel %vm2397, %v2393, %v2366
        %v2403 = vsel %vm2397, %v2394, %v2368
        %v2404 = vsel %vm2397, %v2395, %v2370
        %v2405 = vsel %vm2397, %v2396, %v2372
        %v2406 = vpack.c.bf16 %v2399, %v2398
        %v2407 = vpack.c.bf16 %v2401, %v2400
        %v2408 = vpack.c.bf16 %v2403, %v2402
        %v2409 = vpack.c.bf16 %v2405, %v2404
        %v2410 = vld [vmem:[#allocation8] sm:$0xf]
        %v2411 = vld [vmem:[#allocation8 + $0x4] sm:$0xf]
        %v2412 = vld [vmem:[#allocation8 + $0x8] sm:$0xf]
        %v2413 = vld [vmem:[#allocation8 + $0xc] sm:$0xf]
        %v2414 = vld [vmem:[#allocation8 + $0x10] sm:$0xf]
        %v2415 = vld [vmem:[#allocation8 + $0x14] sm:$0xf]
        %v2416 = vld [vmem:[#allocation8 + $0x18] sm:$0xf]
        %v2417 = vld [vmem:[#allocation8 + $0x1c] sm:$0xf]
        %v2418 = vld [vmem:[#allocation8 + $0x20] sm:$0xf]
        %v2419 = vld [vmem:[#allocation8 + $0x24] sm:$0xf]
        %v2420 = vld [vmem:[#allocation8 + $0x28] sm:$0xf]
        %v2421 = vld [vmem:[#allocation8 + $0x2c] sm:$0xf]
        %v2422 = vld [vmem:[#allocation8 + $0x30] sm:$0xf]
        %v2423 = vld [vmem:[#allocation8 + $0x34] sm:$0xf]
        %v2424 = vld [vmem:[#allocation8 + $0x38] sm:$0xf]
        %v2425 = vld [vmem:[#allocation8 + $0x3c] sm:$0xf]
        %v2426 = vld [vmem:[%s6] sm:$0x1]
        %v2428 = vlaneseq
        %v2429 = vshrl.u32 %v2428, 7
        %v2430 = vsub.s32 0, %v2429
        %v2431 = vrot.slane %v2426, %v2430
        %v2449 = vunpack.c.l.b16 %v2410
        %v2450 = vunpack.c.l.b16 %v2411
        %v2451 = vunpack.c.l.b16 %v2412
        %v2452 = vunpack.c.l.b16 %v2413
        %v2453 = vunpack.c.l.b16 %v2414
        %v2454 = vunpack.c.l.b16 %v2415
        %v2455 = vunpack.c.l.b16 %v2416
        %v2456 = vunpack.c.l.b16 %v2417
        %v2457 = vunpack.c.l.b16 %v2418
        %v2458 = vunpack.c.l.b16 %v2419
        %v2459 = vunpack.c.l.b16 %v2420
        %v2460 = vunpack.c.l.b16 %v2421
        %v2461 = vunpack.c.l.b16 %v2422
        %v2462 = vunpack.c.l.b16 %v2423
        %v2463 = vunpack.c.l.b16 %v2424
        %v2464 = vunpack.c.l.b16 %v2425
        %v2465 = vpack.c.b16 %v2450, %v2449
        %v2466 = vpack.c.b16 %v2452, %v2451
        %v2467 = vpack.c.b16 %v2454, %v2453
        %v2468 = vpack.c.b16 %v2456, %v2455
        %v2469 = vpack.c.b16 %v2458, %v2457
        %v2470 = vpack.c.b16 %v2460, %v2459
        %v2471 = vpack.c.b16 %v2462, %v2461
        %v2472 = vpack.c.b16 %v2464, %v2463
        %2481 = vmatprep.subr.bf16.mxu0 0
        %2482 = vmatpush1.bf16.msra.mxu0 %v2465
        %2483 = vmatprep.subr.bf16.mxu0 0
        %2484 = vmatpush1.bf16.msra.mxu0 %v2466
        %2485 = vmatprep.subr.bf16.mxu0 0
        %2486 = vmatpush1.bf16.msra.mxu0 %v2467
        %2487 = vmatprep.subr.bf16.mxu0 0
        %2488 = vmatpush1.bf16.msra.mxu0 %v2468
        %2489 = vmatprep.subr.bf16.mxu0 0
        %2490 = vmatpush1.bf16.msra.mxu0 %v2469
        %2491 = vmatprep.subr.bf16.mxu0 0
        %2492 = vmatpush1.bf16.msra.mxu0 %v2470
        %2493 = vmatprep.subr.bf16.mxu0 0
        %2494 = vmatpush1.bf16.msra.mxu0 %v2471
        %2495 = vmatprep.subr.bf16.mxu0 0
        %2496 = vmatpush1.bf16.msra.mxu0 %v2472
        %2497 = vmatprep.subr.bf16.mxu0 0
        %2498 = vmatpush1.bf16.msra.mxu0 0
        %2499 = vmatprep.subr.bf16.mxu0 0
        %2500 = vmatpush1.bf16.msra.mxu0 0
        %2501 = vmatprep.subr.bf16.mxu0 0
        %2502 = vmatpush1.bf16.msra.mxu0 0
        %2503 = vmatprep.subr.bf16.mxu0 0
        %2504 = vmatpush1.bf16.msra.mxu0 0
        %2505 = vmatprep.subr.bf16.mxu0 0
        %2506 = vmatpush1.bf16.msra.mxu0 0
        %2507 = vmatprep.subr.bf16.mxu0 0
        %2508 = vmatpush1.bf16.msra.mxu0 0
        %2509 = vmatprep.subr.bf16.mxu0 0
        %2510 = vmatpush1.bf16.msra.mxu0 0
        %2511 = vmatprep.subr.bf16.mxu0 0
        %2512 = vmatpush1.bf16.msra.mxu0 0
        %2513 = vmatprep.mubr.bf16.mxu0 0
        %2514 = vmatmul.mubr.bf16.gmra.mrb[0].mxu0 %v2406
        %v2515 = vpop.f32.mrb[0].mxu0
        %v2516 = vadd.f32 %v2431, %v2515
        %v2517 = vpop.f32.mrb[0].mxu0
        %v2518 = vpop.f32.mrb[0].mxu0
        %v2519 = vadd.f32 %v2431, %v2518
        %v2520 = vpop.f32.mrb[0].mxu0
        %2521 = vmatprep.mubr.bf16.mxu0 0
        %2522 = vmatmul.mubr.bf16.gmra.mrb[0].mxu0 %v2407
        %v2523 = vpop.f32.mrb[0].mxu0
        %v2524 = vadd.f32 %v2431, %v2523
        %v2525 = vpop.f32.mrb[0].mxu0
        %v2526 = vpop.f32.mrb[0].mxu0
        %v2527 = vadd.f32 %v2431, %v2526
        %v2528 = vpop.f32.mrb[0].mxu0
        %2529 = vmatprep.mubr.bf16.mxu0 0
        %2530 = vmatmul.mubr.bf16.gmra.mrb[0].mxu0 %v2408
        %v2531 = vpop.f32.mrb[0].mxu0
        %v2532 = vadd.f32 %v2431, %v2531
        %v2533 = vpop.f32.mrb[0].mxu0
        %v2534 = vpop.f32.mrb[0].mxu0
        %v2535 = vadd.f32 %v2431, %v2534
        %v2536 = vpop.f32.mrb[0].mxu0
        %2537 = vmatprep.mubr.bf16.mxu0 0
        %2538 = vmatmul.mubr.bf16.gmra.mrb[0].mxu0 %v2409
        %v2539 = vpop.f32.mrb[0].mxu0
        %v2540 = vadd.f32 %v2431, %v2539
        %v2541 = vpop.f32.mrb[0].mxu0
        %v2542 = vpop.f32.mrb[0].mxu0
        %v2543 = vadd.f32 %v2431, %v2542
        %v2544 = vpop.f32.mrb[0].mxu0
        %2545 = vdwg.mxu0
        %v2546 = vadd.f32 %v657, %v2516
        %v2547 = vadd.f32 %v658, %v2519
        %v2548 = vadd.f32 %v659, %v2524
        %v2549 = vadd.f32 %v660, %v2527
        %v2550 = vadd.f32 %v661, %v2532
        %v2551 = vadd.f32 %v662, %v2535
        %v2552 = vadd.f32 %v663, %v2540
        %v2553 = vadd.f32 %v664, %v2543
        %v2554 = vld [vmem:[%s8] sm:$0x1]
        %v2555 = vld [vmem:[%s9] sm:$0x1]
        %2556 = vadd.xlane.f32.xlu0 %v2546
        %v2557 = vpop.xlane.xlu0 %2556
        %2558 = vadd.xlane.f32.xlu0 %v2547
        %v2559 = vpop.xlane.xlu0 %2558
        %2560 = vadd.xlane.f32.xlu0 %v2548
        %v2561 = vpop.xlane.xlu0 %2560
        %2562 = vadd.xlane.f32.xlu0 %v2549
        %v2563 = vpop.xlane.xlu0 %2562
        %2564 = vadd.xlane.f32.xlu0 %v2550
        %v2565 = vpop.xlane.xlu0 %2564
        %2566 = vadd.xlane.f32.xlu0 %v2551
        %v2567 = vpop.xlane.xlu0 %2566
        %2568 = vadd.xlane.f32.xlu0 %v2552
        %v2569 = vpop.xlane.xlu0 %2568
        %2570 = vadd.xlane.f32.xlu0 %v2553
        %v2571 = vpop.xlane.xlu0 %2570
        %v2572 = vmul.f32 %v2557, %v683
        %v2573 = vmul.f32 %v2559, %v683
        %v2574 = vmul.f32 %v2561, %v683
        %v2575 = vmul.f32 %v2563, %v683
        %v2576 = vmul.f32 %v2565, %v683
        %v2577 = vmul.f32 %v2567, %v683
        %v2578 = vmul.f32 %v2569, %v683
        %v2579 = vmul.f32 %v2571, %v683
        %v2580 = vsub.f32 %v2546, %v2572
        %v2581 = vsub.f32 %v2547, %v2573
        %v2582 = vsub.f32 %v2548, %v2574
        %v2583 = vsub.f32 %v2549, %v2575
        %v2584 = vsub.f32 %v2550, %v2576
        %v2585 = vsub.f32 %v2551, %v2577
        %v2586 = vsub.f32 %v2552, %v2578
        %v2587 = vsub.f32 %v2553, %v2579
        %v2588 = vmul.f32 %v2580, %v2580
        %v2589 = vmul.f32 %v2581, %v2581
        %v2590 = vmul.f32 %v2582, %v2582
        %v2591 = vmul.f32 %v2583, %v2583
        %v2592 = vmul.f32 %v2584, %v2584
        %v2593 = vmul.f32 %v2585, %v2585
        %v2594 = vmul.f32 %v2586, %v2586
        %v2595 = vmul.f32 %v2587, %v2587
        %2596 = vadd.xlane.f32.xlu0 %v2588
        %v2597 = vpop.xlane.xlu0 %2596
        %2598 = vadd.xlane.f32.xlu0 %v2589
        %v2599 = vpop.xlane.xlu0 %2598
        %2600 = vadd.xlane.f32.xlu0 %v2590
        %v2601 = vpop.xlane.xlu0 %2600
        %2602 = vadd.xlane.f32.xlu0 %v2591
        %v2603 = vpop.xlane.xlu0 %2602
        %2604 = vadd.xlane.f32.xlu0 %v2592
        %v2605 = vpop.xlane.xlu0 %2604
        %2606 = vadd.xlane.f32.xlu0 %v2593
        %v2607 = vpop.xlane.xlu0 %2606
        %2608 = vadd.xlane.f32.xlu0 %v2594
        %v2609 = vpop.xlane.xlu0 %2608
        %2610 = vadd.xlane.f32.xlu0 %v2595
        %v2611 = vpop.xlane.xlu0 %2610
        %v2612 = vmul.f32 %v2597, %v683
        %v2613 = vmul.f32 %v2599, %v683
        %v2614 = vmul.f32 %v2601, %v683
        %v2615 = vmul.f32 %v2603, %v683
        %v2616 = vmul.f32 %v2605, %v683
        %v2617 = vmul.f32 %v2607, %v683
        %v2618 = vmul.f32 %v2609, %v683
        %v2619 = vmul.f32 %v2611, %v683
        %v2620 = vadd.f32 %v2612, 1e-05
        %v2621 = vadd.f32 %v2613, 1e-05
        %v2622 = vadd.f32 %v2614, 1e-05
        %v2623 = vadd.f32 %v2615, 1e-05
        %v2624 = vadd.f32 %v2616, 1e-05
        %v2625 = vadd.f32 %v2617, 1e-05
        %v2626 = vadd.f32 %v2618, 1e-05
        %v2627 = vadd.f32 %v2619, 1e-05
        %v2628 = vrsqrt.pop %v2620
        %v2629 = vrsqrt.pop %v2621
        %v2630 = vrsqrt.pop %v2622
        %v2631 = vrsqrt.pop %v2623
        %v2632 = vrsqrt.pop %v2624
        %v2633 = vrsqrt.pop %v2625
        %v2634 = vrsqrt.pop %v2626
        %v2635 = vrsqrt.pop %v2627
        %v2636 = vmul.f32 %v2580, %v2628
        %v2637 = vmul.f32 %v2581, %v2629
        %v2638 = vmul.f32 %v2582, %v2630
        %v2639 = vmul.f32 %v2583, %v2631
        %v2640 = vmul.f32 %v2584, %v2632
        %v2641 = vmul.f32 %v2585, %v2633
        %v2642 = vmul.f32 %v2586, %v2634
        %v2643 = vmul.f32 %v2587, %v2635
        %v2645 = vlaneseq
        %v2646 = vshrl.u32 %v2645, 7
        %v2647 = vsub.s32 0, %v2646
        %v2648 = vrot.slane %v2554, %v2647
        %v2650 = vmul.f32 %v2636, %v2648
        %v2651 = vmul.f32 %v2637, %v2648
        %v2652 = vmul.f32 %v2638, %v2648
        %v2653 = vmul.f32 %v2639, %v2648
        %v2654 = vmul.f32 %v2640, %v2648
        %v2655 = vmul.f32 %v2641, %v2648
        %v2656 = vmul.f32 %v2642, %v2648
        %v2657 = vmul.f32 %v2643, %v2648
        %v2659 = vlaneseq
        %v2660 = vshrl.u32 %v2659, 7
        %v2661 = vsub.s32 0, %v2660
        %v2662 = vrot.slane %v2555, %v2661
        %v2664 = vadd.f32 %v2650, %v2662
        %v2665 = vadd.f32 %v2651, %v2662
        %v2666 = vadd.f32 %v2652, %v2662
        %v2667 = vadd.f32 %v2653, %v2662
        %v2668 = vadd.f32 %v2654, %v2662
        %v2669 = vadd.f32 %v2655, %v2662
        %v2670 = vadd.f32 %v2656, %v2662
        %v2671 = vadd.f32 %v2657, %v2662
        %v2672 = vpack.c.bf16 %v2665, %v2664
        %v2673 = vpack.c.bf16 %v2667, %v2666
        %v2674 = vpack.c.bf16 %v2669, %v2668
        %v2675 = vpack.c.bf16 %v2671, %v2670
        %v2676 = vld [vmem:[#allocation11] sm:$0xff]
        %v2677 = vld [vmem:[#allocation11 + $0x8] sm:$0xff]
        %v2678 = vld [vmem:[#allocation11 + $0x10] sm:$0xff]
        %v2679 = vld [vmem:[#allocation11 + $0x18] sm:$0xff]
        %v2680 = vld [vmem:[#allocation11 + $0x20] sm:$0xff]
        %v2681 = vld [vmem:[#allocation11 + $0x28] sm:$0xff]
        %v2682 = vld [vmem:[#allocation11 + $0x30] sm:$0xff]
        %v2683 = vld [vmem:[#allocation11 + $0x38] sm:$0xff]
        %v2684 = vld [vmem:[#allocation11 + $0x40] sm:$0xff]
        %v2685 = vld [vmem:[#allocation11 + $0x48] sm:$0xff]
        %v2686 = vld [vmem:[#allocation11 + $0x50] sm:$0xff]
        %v2687 = vld [vmem:[#allocation11 + $0x58] sm:$0xff]
        %v2688 = vld [vmem:[#allocation11 + $0x60] sm:$0xff]
        %v2689 = vld [vmem:[#allocation11 + $0x68] sm:$0xff]
        %v2690 = vld [vmem:[#allocation11 + $0x70] sm:$0xff]
        %v2691 = vld [vmem:[#allocation11 + $0x78] sm:$0xff]
        %v2692 = vld [vmem:[#allocation12] sm:$0x3]
        %v2694 = vlaneseq
        %v2695 = vshrl.u32 %v2694, 7
        %v2696 = vsub.s32 0, %v2695
        %v2697 = vrot.slane %v2692, %v2696
        %v2698 = vlaneseq
        %v2699 = vshrl.u32 %v2698, 7
        %v2700 = vsub.s32 1, %v2699
        %v2701 = vrot.slane %v2692, %v2700
        %v2720 = vunpack.c.l.b16 %v2676
        %v2721 = vunpack.c.h.b16 %v2676
        %v2722 = vunpack.c.l.b16 %v2677
        %v2723 = vunpack.c.h.b16 %v2677
        %v2724 = vunpack.c.l.b16 %v2678
        %v2725 = vunpack.c.h.b16 %v2678
        %v2726 = vunpack.c.l.b16 %v2679
        %v2727 = vunpack.c.h.b16 %v2679
        %v2728 = vunpack.c.l.b16 %v2680
        %v2729 = vunpack.c.h.b16 %v2680
        %v2730 = vunpack.c.l.b16 %v2681
        %v2731 = vunpack.c.h.b16 %v2681
        %v2732 = vunpack.c.l.b16 %v2682
        %v2733 = vunpack.c.h.b16 %v2682
        %v2734 = vunpack.c.l.b16 %v2683
        %v2735 = vunpack.c.h.b16 %v2683
        %v2736 = vunpack.c.l.b16 %v2684
        %v2737 = vunpack.c.h.b16 %v2684
        %v2738 = vunpack.c.l.b16 %v2685
        %v2739 = vunpack.c.h.b16 %v2685
        %v2740 = vunpack.c.l.b16 %v2686
        %v2741 = vunpack.c.h.b16 %v2686
        %v2742 = vunpack.c.l.b16 %v2687
        %v2743 = vunpack.c.h.b16 %v2687
        %v2744 = vunpack.c.l.b16 %v2688
        %v2745 = vunpack.c.h.b16 %v2688
        %v2746 = vunpack.c.l.b16 %v2689
        %v2747 = vunpack.c.h.b16 %v2689
        %v2748 = vunpack.c.l.b16 %v2690
        %v2749 = vunpack.c.h.b16 %v2690
        %v2750 = vunpack.c.l.b16 %v2691
        %v2751 = vunpack.c.h.b16 %v2691
        %v2752 = vpack.c.b16 %v2722, %v2720
        %v2753 = vpack.c.b16 %v2723, %v2721
        %v2754 = vpack.c.b16 %v2726, %v2724
        %v2755 = vpack.c.b16 %v2727, %v2725
        %v2756 = vpack.c.b16 %v2730, %v2728
        %v2757 = vpack.c.b16 %v2731, %v2729
        %v2758 = vpack.c.b16 %v2734, %v2732
        %v2759 = vpack.c.b16 %v2735, %v2733
        %v2760 = vpack.c.b16 %v2738, %v2736
        %v2761 = vpack.c.b16 %v2739, %v2737
        %v2762 = vpack.c.b16 %v2742, %v2740
        %v2763 = vpack.c.b16 %v2743, %v2741
        %v2764 = vpack.c.b16 %v2746, %v2744
        %v2765 = vpack.c.b16 %v2747, %v2745
        %v2766 = vpack.c.b16 %v2750, %v2748
        %v2767 = vpack.c.b16 %v2751, %v2749
        %2784 = vmatprep.subr.bf16.mxu0 %v2753
        %2785 = vmatpush1.bf16.msra.mxu0 %v2752
        %2786 = vmatprep.subr.bf16.mxu0 %v2755
        %2787 = vmatpush1.bf16.msra.mxu0 %v2754
        %2788 = vmatprep.subr.bf16.mxu0 %v2757
        %2789 = vmatpush1.bf16.msra.mxu0 %v2756
        %2790 = vmatprep.subr.bf16.mxu0 %v2759
        %2791 = vmatpush1.bf16.msra.mxu0 %v2758
        %2792 = vmatprep.subr.bf16.mxu0 %v2761
        %2793 = vmatpush1.bf16.msra.mxu0 %v2760
        %2794 = vmatprep.subr.bf16.mxu0 %v2763
        %2795 = vmatpush1.bf16.msra.mxu0 %v2762
        %2796 = vmatprep.subr.bf16.mxu0 %v2765
        %2797 = vmatpush1.bf16.msra.mxu0 %v2764
        %2798 = vmatprep.subr.bf16.mxu0 %v2767
        %2799 = vmatpush1.bf16.msra.mxu0 %v2766
        %2800 = vmatprep.subr.bf16.mxu0 0
        %2801 = vmatpush1.bf16.msra.mxu0 0
        %2802 = vmatprep.subr.bf16.mxu0 0
        %2803 = vmatpush1.bf16.msra.mxu0 0
        %2804 = vmatprep.subr.bf16.mxu0 0
        %2805 = vmatpush1.bf16.msra.mxu0 0
        %2806 = vmatprep.subr.bf16.mxu0 0
        %2807 = vmatpush1.bf16.msra.mxu0 0
        %2808 = vmatprep.subr.bf16.mxu0 0
        %2809 = vmatpush1.bf16.msra.mxu0 0
        %2810 = vmatprep.subr.bf16.mxu0 0
        %2811 = vmatpush1.bf16.msra.mxu0 0
        %2812 = vmatprep.subr.bf16.mxu0 0
        %2813 = vmatpush1.bf16.msra.mxu0 0
        %2814 = vmatprep.subr.bf16.mxu0 0
        %2815 = vmatpush1.bf16.msra.mxu0 0
        %2816 = vmatprep.mubr.bf16.mxu0 0
        %2817 = vmatmul.mubr.bf16.gmra.mrb[0].mxu0 %v2672
        %v2818 = vpop.f32.mrb[0].mxu0
        %v2819 = vadd.f32 %v2697, %v2818
        %v2820 = vpop.f32.mrb[0].mxu0
        %v2821 = vadd.f32 %v2701, %v2820
        %v2822 = vpop.f32.mrb[0].mxu0
        %v2823 = vadd.f32 %v2697, %v2822
        %v2824 = vpop.f32.mrb[0].mxu0
        %v2825 = vadd.f32 %v2701, %v2824
        %2826 = vmatprep.mubr.bf16.mxu0 0
        %2827 = vmatmul.mubr.bf16.gmra.mrb[0].mxu0 %v2673
        %v2828 = vpop.f32.mrb[0].mxu0
        %v2829 = vadd.f32 %v2697, %v2828
        %v2830 = vpop.f32.mrb[0].mxu0
        %v2831 = vadd.f32 %v2701, %v2830
        %v2832 = vpop.f32.mrb[0].mxu0
        %v2833 = vadd.f32 %v2697, %v2832
        %v2834 = vpop.f32.mrb[0].mxu0
        %v2835 = vadd.f32 %v2701, %v2834
        %2836 = vmatprep.mubr.bf16.mxu0 0
        %2837 = vmatmul.mubr.bf16.gmra.mrb[0].mxu0 %v2674
        %v2838 = vpop.f32.mrb[0].mxu0
        %v2839 = vadd.f32 %v2697, %v2838
        %v2840 = vpop.f32.mrb[0].mxu0
        %v2841 = vadd.f32 %v2701, %v2840
        %v2842 = vpop.f32.mrb[0].mxu0
        %v2843 = vadd.f32 %v2697, %v2842
        %v2844 = vpop.f32.mrb[0].mxu0
        %v2845 = vadd.f32 %v2701, %v2844
        %2846 = vmatprep.mubr.bf16.mxu0 0
        %2847 = vmatmul.mubr.bf16.gmra.mrb[0].mxu0 %v2675
        %v2848 = vpop.f32.mrb[0].mxu0
        %v2849 = vadd.f32 %v2697, %v2848
        %v2850 = vpop.f32.mrb[0].mxu0
        %v2851 = vadd.f32 %v2701, %v2850
        %v2852 = vpop.f32.mrb[0].mxu0
        %v2853 = vadd.f32 %v2697, %v2852
        %v2854 = vpop.f32.mrb[0].mxu0
        %v2855 = vadd.f32 %v2701, %v2854
        %2856 = vdwg.mxu0
        %v2857 = vmul.f32 %v2819, 0.5
        %v2858 = vmul.f32 %v2821, 0.5
        %v2859 = vmul.f32 %v2823, 0.5
        %v2860 = vmul.f32 %v2825, 0.5
        %v2861 = vmul.f32 %v2829, 0.5
        %v2862 = vmul.f32 %v2831, 0.5
        %v2863 = vmul.f32 %v2833, 0.5
        %v2864 = vmul.f32 %v2835, 0.5
        %v2865 = vmul.f32 %v2839, 0.5
        %v2866 = vmul.f32 %v2841, 0.5
        %v2867 = vmul.f32 %v2843, 0.5
        %v2868 = vmul.f32 %v2845, 0.5
        %v2869 = vmul.f32 %v2849, 0.5
        %v2870 = vmul.f32 %v2851, 0.5
        %v2871 = vmul.f32 %v2853, 0.5
        %v2872 = vmul.f32 %v2855, 0.5
        %v2873 = vmul.f32 %v2819, 0.044715
        %v2874 = vmul.f32 %v2821, 0.044715
        %v2875 = vmul.f32 %v2823, 0.044715
        %v2876 = vmul.f32 %v2825, 0.044715
        %v2877 = vmul.f32 %v2829, 0.044715
        %v2878 = vmul.f32 %v2831, 0.044715
        %v2879 = vmul.f32 %v2833, 0.044715
        %v2880 = vmul.f32 %v2835, 0.044715
        %v2881 = vmul.f32 %v2839, 0.044715
        %v2882 = vmul.f32 %v2841, 0.044715
        %v2883 = vmul.f32 %v2843, 0.044715
        %v2884 = vmul.f32 %v2845, 0.044715
        %v2885 = vmul.f32 %v2849, 0.044715
        %v2886 = vmul.f32 %v2851, 0.044715
        %v2887 = vmul.f32 %v2853, 0.044715
        %v2888 = vmul.f32 %v2855, 0.044715
        %v2889 = vmul.f32 %v2873, %v2819
        %v2890 = vmul.f32 %v2874, %v2821
        %v2891 = vmul.f32 %v2875, %v2823
        %v2892 = vmul.f32 %v2876, %v2825
        %v2893 = vmul.f32 %v2877, %v2829
        %v2894 = vmul.f32 %v2878, %v2831
        %v2895 = vmul.f32 %v2879, %v2833
        %v2896 = vmul.f32 %v2880, %v2835
        %v2897 = vmul.f32 %v2881, %v2839
        %v2898 = vmul.f32 %v2882, %v2841
        %v2899 = vmul.f32 %v2883, %v2843
        %v2900 = vmul.f32 %v2884, %v2845
        %v2901 = vmul.f32 %v2885, %v2849
        %v2902 = vmul.f32 %v2886, %v2851
        %v2903 = vmul.f32 %v2887, %v2853
        %v2904 = vmul.f32 %v2888, %v2855
        %v2905 = vmul.f32 %v2889, %v2819
        %v2906 = vmul.f32 %v2890, %v2821
        %v2907 = vmul.f32 %v2891, %v2823
        %v2908 = vmul.f32 %v2892, %v2825
        %v2909 = vmul.f32 %v2893, %v2829
        %v2910 = vmul.f32 %v2894, %v2831
        %v2911 = vmul.f32 %v2895, %v2833
        %v2912 = vmul.f32 %v2896, %v2835
        %v2913 = vmul.f32 %v2897, %v2839
        %v2914 = vmul.f32 %v2898, %v2841
        %v2915 = vmul.f32 %v2899, %v2843
        %v2916 = vmul.f32 %v2900, %v2845
        %v2917 = vmul.f32 %v2901, %v2849
        %v2918 = vmul.f32 %v2902, %v2851
        %v2919 = vmul.f32 %v2903, %v2853
        %v2920 = vmul.f32 %v2904, %v2855
        %v2921 = vadd.f32 %v2819, %v2905
        %v2922 = vadd.f32 %v2821, %v2906
        %v2923 = vadd.f32 %v2823, %v2907
        %v2924 = vadd.f32 %v2825, %v2908
        %v2925 = vadd.f32 %v2829, %v2909
        %v2926 = vadd.f32 %v2831, %v2910
        %v2927 = vadd.f32 %v2833, %v2911
        %v2928 = vadd.f32 %v2835, %v2912
        %v2929 = vadd.f32 %v2839, %v2913
        %v2930 = vadd.f32 %v2841, %v2914
        %v2931 = vadd.f32 %v2843, %v2915
        %v2932 = vadd.f32 %v2845, %v2916
        %v2933 = vadd.f32 %v2849, %v2917
        %v2934 = vadd.f32 %v2851, %v2918
        %v2935 = vadd.f32 %v2853, %v2919
        %v2936 = vadd.f32 %v2855, %v2920
        %v2937 = vmul.f32 %v2921, 0.7978846
        %v2938 = vmul.f32 %v2922, 0.7978846
        %v2939 = vmul.f32 %v2923, 0.7978846
        %v2940 = vmul.f32 %v2924, 0.7978846
        %v2941 = vmul.f32 %v2925, 0.7978846
        %v2942 = vmul.f32 %v2926, 0.7978846
        %v2943 = vmul.f32 %v2927, 0.7978846
        %v2944 = vmul.f32 %v2928, 0.7978846
        %v2945 = vmul.f32 %v2929, 0.7978846
        %v2946 = vmul.f32 %v2930, 0.7978846
        %v2947 = vmul.f32 %v2931, 0.7978846
        %v2948 = vmul.f32 %v2932, 0.7978846
        %v2949 = vmul.f32 %v2933, 0.7978846
        %v2950 = vmul.f32 %v2934, 0.7978846
        %v2951 = vmul.f32 %v2935, 0.7978846
        %v2952 = vmul.f32 %v2936, 0.7978846
        %v2953 = vtanh.pop %v2937
        %v2954 = vtanh.pop %v2938
        %v2955 = vtanh.pop %v2939
        %v2956 = vtanh.pop %v2940
        %v2957 = vtanh.pop %v2941
        %v2958 = vtanh.pop %v2942
        %v2959 = vtanh.pop %v2943
        %v2960 = vtanh.pop %v2944
        %v2961 = vtanh.pop %v2945
        %v2962 = vtanh.pop %v2946
        %v2963 = vtanh.pop %v2947
        %v2964 = vtanh.pop %v2948
        %v2965 = vtanh.pop %v2949
        %v2966 = vtanh.pop %v2950
        %v2967 = vtanh.pop %v2951
        %v2968 = vtanh.pop %v2952
        %v2969 = vadd.f32 %v2953, 1.0
        %v2970 = vadd.f32 %v2954, 1.0
        %v2971 = vadd.f32 %v2955, 1.0
        %v2972 = vadd.f32 %v2956, 1.0
        %v2973 = vadd.f32 %v2957, 1.0
        %v2974 = vadd.f32 %v2958, 1.0
        %v2975 = vadd.f32 %v2959, 1.0
        %v2976 = vadd.f32 %v2960, 1.0
        %v2977 = vadd.f32 %v2961, 1.0
        %v2978 = vadd.f32 %v2962, 1.0
        %v2979 = vadd.f32 %v2963, 1.0
        %v2980 = vadd.f32 %v2964, 1.0
        %v2981 = vadd.f32 %v2965, 1.0
        %v2982 = vadd.f32 %v2966, 1.0
        %v2983 = vadd.f32 %v2967, 1.0
        %v2984 = vadd.f32 %v2968, 1.0
        %v2985 = vmul.f32 %v2857, %v2969
        %v2986 = vmul.f32 %v2858, %v2970
        %v2987 = vmul.f32 %v2859, %v2971
        %v2988 = vmul.f32 %v2860, %v2972
        %v2989 = vmul.f32 %v2861, %v2973
        %v2990 = vmul.f32 %v2862, %v2974
        %v2991 = vmul.f32 %v2863, %v2975
        %v2992 = vmul.f32 %v2864, %v2976
        %v2993 = vmul.f32 %v2865, %v2977
        %v2994 = vmul.f32 %v2866, %v2978
        %v2995 = vmul.f32 %v2867, %v2979
        %v2996 = vmul.f32 %v2868, %v2980
        %v2997 = vmul.f32 %v2869, %v2981
        %v2998 = vmul.f32 %v2870, %v2982
        %v2999 = vmul.f32 %v2871, %v2983
        %v3000 = vmul.f32 %v2872, %v2984
        %v3001 = vpack.c.bf16 %v2987, %v2985
        %v3002 = vpack.c.bf16 %v2988, %v2986
        %v3003 = vpack.c.bf16 %v2991, %v2989
        %v3004 = vpack.c.bf16 %v2992, %v2990
        %v3005 = vpack.c.bf16 %v2995, %v2993
        %v3006 = vpack.c.bf16 %v2996, %v2994
        %v3007 = vpack.c.bf16 %v2999, %v2997
        %v3008 = vpack.c.bf16 %v3000, %v2998
        %v3009 = vld [vmem:[#allocation14] sm:$0xf]
        %v3010 = vld [vmem:[#allocation14 + $0x4] sm:$0xf]
        %v3011 = vld [vmem:[#allocation14 + $0x8] sm:$0xf]
        %v3012 = vld [vmem:[#allocation14 + $0xc] sm:$0xf]
        %v3013 = vld [vmem:[#allocation14 + $0x10] sm:$0xf]
        %v3014 = vld [vmem:[#allocation14 + $0x14] sm:$0xf]
        %v3015 = vld [vmem:[#allocation14 + $0x18] sm:$0xf]
        %v3016 = vld [vmem:[#allocation14 + $0x1c] sm:$0xf]
        %v3017 = vld [vmem:[#allocation14 + $0x20] sm:$0xf]
        %v3018 = vld [vmem:[#allocation14 + $0x24] sm:$0xf]
        %v3019 = vld [vmem:[#allocation14 + $0x28] sm:$0xf]
        %v3020 = vld [vmem:[#allocation14 + $0x2c] sm:$0xf]
        %v3021 = vld [vmem:[#allocation14 + $0x30] sm:$0xf]
        %v3022 = vld [vmem:[#allocation14 + $0x34] sm:$0xf]
        %v3023 = vld [vmem:[#allocation14 + $0x38] sm:$0xf]
        %v3024 = vld [vmem:[#allocation14 + $0x3c] sm:$0xf]
        %v3025 = vld [vmem:[#allocation14 + $0x40] sm:$0xf]
        %v3026 = vld [vmem:[#allocation14 + $0x44] sm:$0xf]
        %v3027 = vld [vmem:[#allocation14 + $0x48] sm:$0xf]
        %v3028 = vld [vmem:[#allocation14 + $0x4c] sm:$0xf]
        %v3029 = vld [vmem:[#allocation14 + $0x50] sm:$0xf]
        %v3030 = vld [vmem:[#allocation14 + $0x54] sm:$0xf]
        %v3031 = vld [vmem:[#allocation14 + $0x58] sm:$0xf]
        %v3032 = vld [vmem:[#allocation14 + $0x5c] sm:$0xf]
        %v3033 = vld [vmem:[#allocation14 + $0x60] sm:$0xf]
        %v3034 = vld [vmem:[#allocation14 + $0x64] sm:$0xf]
        %v3035 = vld [vmem:[#allocation14 + $0x68] sm:$0xf]
        %v3036 = vld [vmem:[#allocation14 + $0x6c] sm:$0xf]
        %v3037 = vld [vmem:[#allocation14 + $0x70] sm:$0xf]
        %v3038 = vld [vmem:[#allocation14 + $0x74] sm:$0xf]
        %v3039 = vld [vmem:[#allocation14 + $0x78] sm:$0xf]
        %v3040 = vld [vmem:[#allocation14 + $0x7c] sm:$0xf]
        %v3041 = vld [vmem:[#allocation15] sm:$0x1]
        %v3043 = vlaneseq
        %v3044 = vshrl.u32 %v3043, 7
        %v3045 = vsub.s32 0, %v3044
        %v3046 = vrot.slane %v3041, %v3045
        %v3080 = vunpack.c.l.b16 %v3009
        %v3081 = vunpack.c.l.b16 %v3010
        %v3082 = vunpack.c.l.b16 %v3011
        %v3083 = vunpack.c.l.b16 %v3012
        %v3084 = vunpack.c.l.b16 %v3013
        %v3085 = vunpack.c.l.b16 %v3014
        %v3086 = vunpack.c.l.b16 %v3015
        %v3087 = vunpack.c.l.b16 %v3016
        %v3088 = vunpack.c.l.b16 %v3017
        %v3089 = vunpack.c.l.b16 %v3018
        %v3090 = vunpack.c.l.b16 %v3019
        %v3091 = vunpack.c.l.b16 %v3020
        %v3092 = vunpack.c.l.b16 %v3021
        %v3093 = vunpack.c.l.b16 %v3022
        %v3094 = vunpack.c.l.b16 %v3023
        %v3095 = vunpack.c.l.b16 %v3024
        %v3096 = vunpack.c.l.b16 %v3025
        %v3097 = vunpack.c.l.b16 %v3026
        %v3098 = vunpack.c.l.b16 %v3027
        %v3099 = vunpack.c.l.b16 %v3028
        %v3100 = vunpack.c.l.b16 %v3029
        %v3101 = vunpack.c.l.b16 %v3030
        %v3102 = vunpack.c.l.b16 %v3031
        %v3103 = vunpack.c.l.b16 %v3032
        %v3104 = vunpack.c.l.b16 %v3033
        %v3105 = vunpack.c.l.b16 %v3034
        %v3106 = vunpack.c.l.b16 %v3035
        %v3107 = vunpack.c.l.b16 %v3036
        %v3108 = vunpack.c.l.b16 %v3037
        %v3109 = vunpack.c.l.b16 %v3038
        %v3110 = vunpack.c.l.b16 %v3039
        %v3111 = vunpack.c.l.b16 %v3040
        %v3112 = vpack.c.b16 %v3081, %v3080
        %v3113 = vpack.c.b16 %v3083, %v3082
        %v3114 = vpack.c.b16 %v3085, %v3084
        %v3115 = vpack.c.b16 %v3087, %v3086
        %v3116 = vpack.c.b16 %v3089, %v3088
        %v3117 = vpack.c.b16 %v3091, %v3090
        %v3118 = vpack.c.b16 %v3093, %v3092
        %v3119 = vpack.c.b16 %v3095, %v3094
        %v3120 = vpack.c.b16 %v3097, %v3096
        %v3121 = vpack.c.b16 %v3099, %v3098
        %v3122 = vpack.c.b16 %v3101, %v3100
        %v3123 = vpack.c.b16 %v3103, %v3102
        %v3124 = vpack.c.b16 %v3105, %v3104
        %v3125 = vpack.c.b16 %v3107, %v3106
        %v3126 = vpack.c.b16 %v3109, %v3108
        %v3127 = vpack.c.b16 %v3111, %v3110
        %3144 = vmatprep.subr.bf16.mxu0 0
        %3145 = vmatpush1.bf16.msra.mxu0 %v3112
        %3146 = vmatprep.subr.bf16.mxu0 0
        %3147 = vmatpush1.bf16.msra.mxu0 %v3113
        %3148 = vmatprep.subr.bf16.mxu0 0
        %3149 = vmatpush1.bf16.msra.mxu0 %v3114
        %3150 = vmatprep.subr.bf16.mxu0 0
        %3151 = vmatpush1.bf16.msra.mxu0 %v3115
        %3152 = vmatprep.subr.bf16.mxu0 0
        %3153 = vmatpush1.bf16.msra.mxu0 %v3116
        %3154 = vmatprep.subr.bf16.mxu0 0
        %3155 = vmatpush1.bf16.msra.mxu0 %v3117
        %3156 = vmatprep.subr.bf16.mxu0 0
        %3157 = vmatpush1.bf16.msra.mxu0 %v3118
        %3158 = vmatprep.subr.bf16.mxu0 0
        %3159 = vmatpush1.bf16.msra.mxu0 %v3119
        %3160 = vmatprep.subr.bf16.mxu0 0
        %3161 = vmatpush1.bf16.msra.mxu0 %v3120
        %3162 = vmatprep.subr.bf16.mxu0 0
        %3163 = vmatpush1.bf16.msra.mxu0 %v3121
        %3164 = vmatprep.subr.bf16.mxu0 0
        %3165 = vmatpush1.bf16.msra.mxu0 %v3122
        %3166 = vmatprep.subr.bf16.mxu0 0
        %3167 = vmatpush1.bf16.msra.mxu0 %v3123
        %3168 = vmatprep.subr.bf16.mxu0 0
        %3169 = vmatpush1.bf16.msra.mxu0 %v3124
        %3170 = vmatprep.subr.bf16.mxu0 0
        %3171 = vmatpush1.bf16.msra.mxu0 %v3125
        %3172 = vmatprep.subr.bf16.mxu0 0
        %3173 = vmatpush1.bf16.msra.mxu0 %v3126
        %3174 = vmatprep.subr.bf16.mxu0 0
        %3175 = vmatpush1.bf16.msra.mxu0 %v3127
        %3176 = vmatprep.mubr.bf16.mxu0 %v3002
        %3177 = vmatmul.mubr.bf16.gmra.mrb[0].mxu0 %v3001
        %v3178 = vpop.f32.mrb[0].mxu0
        %v3179 = vadd.f32 %v3046, %v3178
        %v3180 = vpop.f32.mrb[0].mxu0
        %v3181 = vpop.f32.mrb[0].mxu0
        %v3182 = vadd.f32 %v3046, %v3181
        %v3183 = vpop.f32.mrb[0].mxu0
        %3184 = vmatprep.mubr.bf16.mxu0 %v3004
        %3185 = vmatmul.mubr.bf16.gmra.mrb[0].mxu0 %v3003
        %v3186 = vpop.f32.mrb[0].mxu0
        %v3187 = vadd.f32 %v3046, %v3186
        %v3188 = vpop.f32.mrb[0].mxu0
        %v3189 = vpop.f32.mrb[0].mxu0
        %v3190 = vadd.f32 %v3046, %v3189
        %v3191 = vpop.f32.mrb[0].mxu0
        %3192 = vmatprep.mubr.bf16.mxu0 %v3006
        %3193 = vmatmul.mubr.bf16.gmra.mrb[0].mxu0 %v3005
        %v3194 = vpop.f32.mrb[0].mxu0
        %v3195 = vadd.f32 %v3046, %v3194
        %v3196 = vpop.f32.mrb[0].mxu0
        %v3197 = vpop.f32.mrb[0].mxu0
        %v3198 = vadd.f32 %v3046, %v3197
        %v3199 = vpop.f32.mrb[0].mxu0
        %3200 = vmatprep.mubr.bf16.mxu0 %v3008
        %3201 = vmatmul.mubr.bf16.gmra.mrb[0].mxu0 %v3007
        %v3202 = vpop.f32.mrb[0].mxu0
        %v3203 = vadd.f32 %v3046, %v3202
        %v3204 = vpop.f32.mrb[0].mxu0
        %v3205 = vpop.f32.mrb[0].mxu0
        %v3206 = vadd.f32 %v3046, %v3205
        %v3207 = vpop.f32.mrb[0].mxu0
        %3208 = vdwg.mxu0
        %v3209 = vadd.f32 %v2546, %v3179
        %v3210 = vadd.f32 %v2547, %v3182
        %v3211 = vadd.f32 %v2548, %v3187
        %v3212 = vadd.f32 %v2549, %v3190
        %v3213 = vadd.f32 %v2550, %v3195
        %v3214 = vadd.f32 %v2551, %v3198
        %v3215 = vadd.f32 %v2552, %v3203
        %v3216 = vadd.f32 %v2553, %v3206
        %s3217 = scalar_lea.vmem %s1, 1
        %v3218 = vld [vmem:[%s3217] sm:$0x1]
        %s3219 = scalar_lea.vmem %s2, 1
        %v3220 = vld [vmem:[%s3219] sm:$0x1]
        %3221 = vadd.xlane.f32.xlu0 %v3209
        %v3222 = vpop.xlane.xlu0 %3221
        %3223 = vadd.xlane.f32.xlu0 %v3210
        %v3224 = vpop.xlane.xlu0 %3223
        %3225 = vadd.xlane.f32.xlu0 %v3211
        %v3226 = vpop.xlane.xlu0 %3225
        %3227 = vadd.xlane.f32.xlu0 %v3212
        %v3228 = vpop.xlane.xlu0 %3227
        %3229 = vadd.xlane.f32.xlu0 %v3213
        %v3230 = vpop.xlane.xlu0 %3229
        %3231 = vadd.xlane.f32.xlu0 %v3214
        %v3232 = vpop.xlane.xlu0 %3231
        %3233 = vadd.xlane.f32.xlu0 %v3215
        %v3234 = vpop.xlane.xlu0 %3233
        %3235 = vadd.xlane.f32.xlu0 %v3216
        %v3236 = vpop.xlane.xlu0 %3235
        %v3237 = vmul.f32 %v3222, %v683
        %v3238 = vmul.f32 %v3224, %v683
        %v3239 = vmul.f32 %v3226, %v683
        %v3240 = vmul.f32 %v3228, %v683
        %v3241 = vmul.f32 %v3230, %v683
        %v3242 = vmul.f32 %v3232, %v683
        %v3243 = vmul.f32 %v3234, %v683
        %v3244 = vmul.f32 %v3236, %v683
        %v3245 = vsub.f32 %v3209, %v3237
        %v3246 = vsub.f32 %v3210, %v3238
        %v3247 = vsub.f32 %v3211, %v3239
        %v3248 = vsub.f32 %v3212, %v3240
        %v3249 = vsub.f32 %v3213, %v3241
        %v3250 = vsub.f32 %v3214, %v3242
        %v3251 = vsub.f32 %v3215, %v3243
        %v3252 = vsub.f32 %v3216, %v3244
        %v3253 = vmul.f32 %v3245, %v3245
        %v3254 = vmul.f32 %v3246, %v3246
        %v3255 = vmul.f32 %v3247, %v3247
        %v3256 = vmul.f32 %v3248, %v3248
        %v3257 = vmul.f32 %v3249, %v3249
        %v3258 = vmul.f32 %v3250, %v3250
        %v3259 = vmul.f32 %v3251, %v3251
        %v3260 = vmul.f32 %v3252, %v3252
        %3261 = vadd.xlane.f32.xlu0 %v3253
        %v3262 = vpop.xlane.xlu0 %3261
        %3263 = vadd.xlane.f32.xlu0 %v3254
        %v3264 = vpop.xlane.xlu0 %3263
        %3265 = vadd.xlane.f32.xlu0 %v3255
        %v3266 = vpop.xlane.xlu0 %3265
        %3267 = vadd.xlane.f32.xlu0 %v3256
        %v3268 = vpop.xlane.xlu0 %3267
        %3269 = vadd.xlane.f32.xlu0 %v3257
        %v3270 = vpop.xlane.xlu0 %3269
        %3271 = vadd.xlane.f32.xlu0 %v3258
        %v3272 = vpop.xlane.xlu0 %3271
        %3273 = vadd.xlane.f32.xlu0 %v3259
        %v3274 = vpop.xlane.xlu0 %3273
        %3275 = vadd.xlane.f32.xlu0 %v3260
        %v3276 = vpop.xlane.xlu0 %3275
        %v3277 = vmul.f32 %v3262, %v683
        %v3278 = vmul.f32 %v3264, %v683
        %v3279 = vmul.f32 %v3266, %v683
        %v3280 = vmul.f32 %v3268, %v683
        %v3281 = vmul.f32 %v3270, %v683
        %v3282 = vmul.f32 %v3272, %v683
        %v3283 = vmul.f32 %v3274, %v683
        %v3284 = vmul.f32 %v3276, %v683
        %v3285 = vadd.f32 %v3277, 1e-05
        %v3286 = vadd.f32 %v3278, 1e-05
        %v3287 = vadd.f32 %v3279, 1e-05
        %v3288 = vadd.f32 %v3280, 1e-05
        %v3289 = vadd.f32 %v3281, 1e-05
        %v3290 = vadd.f32 %v3282, 1e-05
        %v3291 = vadd.f32 %v3283, 1e-05
        %v3292 = vadd.f32 %v3284, 1e-05
        %v3293 = vrsqrt.pop %v3285
        %v3294 = vrsqrt.pop %v3286
        %v3295 = vrsqrt.pop %v3287
        %v3296 = vrsqrt.pop %v3288
        %v3297 = vrsqrt.pop %v3289
        %v3298 = vrsqrt.pop %v3290
        %v3299 = vrsqrt.pop %v3291
        %v3300 = vrsqrt.pop %v3292
        %v3301 = vmul.f32 %v3245, %v3293
        %v3302 = vmul.f32 %v3246, %v3294
        %v3303 = vmul.f32 %v3247, %v3295
        %v3304 = vmul.f32 %v3248, %v3296
        %v3305 = vmul.f32 %v3249, %v3297
        %v3306 = vmul.f32 %v3250, %v3298
        %v3307 = vmul.f32 %v3251, %v3299
        %v3308 = vmul.f32 %v3252, %v3300
        %v3310 = vlaneseq
        %v3311 = vshrl.u32 %v3310, 7
        %v3312 = vsub.s32 0, %v3311
        %v3313 = vrot.slane %v3218, %v3312
        %v3315 = vmul.f32 %v3301, %v3313
        %v3316 = vmul.f32 %v3302, %v3313
        %v3317 = vmul.f32 %v3303, %v3313
        %v3318 = vmul.f32 %v3304, %v3313
        %v3319 = vmul.f32 %v3305, %v3313
        %v3320 = vmul.f32 %v3306, %v3313
        %v3321 = vmul.f32 %v3307, %v3313
        %v3322 = vmul.f32 %v3308, %v3313
        %v3324 = vlaneseq
        %v3325 = vshrl.u32 %v3324, 7
        %v3326 = vsub.s32 0, %v3325
        %v3327 = vrot.slane %v3220, %v3326
        %v3329 = vadd.f32 %v3315, %v3327
        %v3330 = vadd.f32 %v3316, %v3327
        %v3331 = vadd.f32 %v3317, %v3327
        %v3332 = vadd.f32 %v3318, %v3327
        %v3333 = vadd.f32 %v3319, %v3327
        %v3334 = vadd.f32 %v3320, %v3327
        %v3335 = vadd.f32 %v3321, %v3327
        %v3336 = vadd.f32 %v3322, %v3327
        %v3337 = vpack.c.bf16 %v3330, %v3329
        %v3338 = vpack.c.bf16 %v3332, %v3331
        %v3339 = vpack.c.bf16 %v3334, %v3333
        %v3340 = vpack.c.bf16 %v3336, %v3335
        %s3341 = scalar_lea.vmem [#allocation6], 192
        %v3342 = vld [vmem:[%s3341] sm:$0xff]
        %v3343 = vld [vmem:[%s3341 + $0x8] sm:$0xf]
        %v3344 = vld [vmem:[%s3341 + $0xc] sm:$0xff]
        %v3345 = vld [vmem:[%s3341 + $0x14] sm:$0xf]
        %v3346 = vld [vmem:[%s3341 + $0x18] sm:$0xff]
        %v3347 = vld [vmem:[%s3341 + $0x20] sm:$0xf]
        %v3348 = vld [vmem:[%s3341 + $0x24] sm:$0xff]
        %v3349 = vld [vmem:[%s3341 + $0x2c] sm:$0xf]
        %v3350 = vld [vmem:[%s3341 + $0x30] sm:$0xff]
        %v3351 = vld [vmem:[%s3341 + $0x38] sm:$0xf]
        %v3352 = vld [vmem:[%s3341 + $0x3c] sm:$0xff]
        %v3353 = vld [vmem:[%s3341 + $0x44] sm:$0xf]
        %v3354 = vld [vmem:[%s3341 + $0x48] sm:$0xff]
        %v3355 = vld [vmem:[%s3341 + $0x50] sm:$0xf]
        %v3356 = vld [vmem:[%s3341 + $0x54] sm:$0xff]
        %v3357 = vld [vmem:[%s3341 + $0x5c] sm:$0xf]
        %v3358 = vld [vmem:[%s3341 + $0x60] sm:$0xff]
        %v3359 = vld [vmem:[%s3341 + $0x68] sm:$0xf]
        %v3360 = vld [vmem:[%s3341 + $0x6c] sm:$0xff]
        %v3361 = vld [vmem:[%s3341 + $0x74] sm:$0xf]
        %v3362 = vld [vmem:[%s3341 + $0x78] sm:$0xff]
        %v3363 = vld [vmem:[%s3341 + $0x80] sm:$0xf]
        %v3364 = vld [vmem:[%s3341 + $0x84] sm:$0xff]
        %v3365 = vld [vmem:[%s3341 + $0x8c] sm:$0xf]
        %v3366 = vld [vmem:[%s3341 + $0x90] sm:$0xff]
        %v3367 = vld [vmem:[%s3341 + $0x98] sm:$0xf]
        %v3368 = vld [vmem:[%s3341 + $0x9c] sm:$0xff]
        %v3369 = vld [vmem:[%s3341 + $0xa4] sm:$0xf]
        %v3370 = vld [vmem:[%s3341 + $0xa8] sm:$0xff]
        %v3371 = vld [vmem:[%s3341 + $0xb0] sm:$0xf]
        %v3372 = vld [vmem:[%s3341 + $0xb4] sm:$0xff]
        %v3373 = vld [vmem:[%s3341 + $0xbc] sm:$0xf]
        %s3374 = scalar_lea.vmem %s4, 3
        %v3375 = vld [vmem:[%s3374] sm:$0x7]
        %v3377 = vlaneseq
        %v3378 = vshrl.u32 %v3377, 7
        %v3379 = vsub.s32 0, %v3378
        %v3380 = vrot.slane %v3375, %v3379
        %v3381 = vlaneseq
        %v3382 = vshrl.u32 %v3381, 7
        %v3383 = vsub.s32 1, %v3382
        %v3384 = vrot.slane %v3375, %v3383
        %v3385 = vlaneseq
        %v3386 = vshrl.u32 %v3385, 7
        %v3387 = vsub.s32 2, %v3386
        %v3388 = vrot.slane %v3375, %v3387
        %v3424 = vunpack.c.l.b16 %v3342
        %v3425 = vunpack.c.h.b16 %v3342
        %v3426 = vunpack.c.l.b16 %v3343
        %v3427 = vunpack.c.l.b16 %v3344
        %v3428 = vunpack.c.h.b16 %v3344
        %v3429 = vunpack.c.l.b16 %v3345
        %v3430 = vunpack.c.l.b16 %v3346
        %v3431 = vunpack.c.h.b16 %v3346
        %v3432 = vunpack.c.l.b16 %v3347
        %v3433 = vunpack.c.l.b16 %v3348
        %v3434 = vunpack.c.h.b16 %v3348
        %v3435 = vunpack.c.l.b16 %v3349
        %v3436 = vunpack.c.l.b16 %v3350
        %v3437 = vunpack.c.h.b16 %v3350
        %v3438 = vunpack.c.l.b16 %v3351
        %v3439 = vunpack.c.l.b16 %v3352
        %v3440 = vunpack.c.h.b16 %v3352
        %v3441 = vunpack.c.l.b16 %v3353
        %v3442 = vunpack.c.l.b16 %v3354
        %v3443 = vunpack.c.h.b16 %v3354
        %v3444 = vunpack.c.l.b16 %v3355
        %v3445 = vunpack.c.l.b16 %v3356
        %v3446 = vunpack.c.h.b16 %v3356
        %v3447 = vunpack.c.l.b16 %v3357
        %v3448 = vunpack.c.l.b16 %v3358
        %v3449 = vunpack.c.h.b16 %v3358
        %v3450 = vunpack.c.l.b16 %v3359
        %v3451 = vunpack.c.l.b16 %v3360
        %v3452 = vunpack.c.h.b16 %v3360
        %v3453 = vunpack.c.l.b16 %v3361
        %v3454 = vunpack.c.l.b16 %v3362
        %v3455 = vunpack.c.h.b16 %v3362
        %v3456 = vunpack.c.l.b16 %v3363
        %v3457 = vunpack.c.l.b16 %v3364
        %v3458 = vunpack.c.h.b16 %v3364
        %v3459 = vunpack.c.l.b16 %v3365
        %v3460 = vunpack.c.l.b16 %v3366
        %v3461 = vunpack.c.h.b16 %v3366
        %v3462 = vunpack.c.l.b16 %v3367
        %v3463 = vunpack.c.l.b16 %v3368
        %v3464 = vunpack.c.h.b16 %v3368
        %v3465 = vunpack.c.l.b16 %v3369
        %v3466 = vunpack.c.l.b16 %v3370
        %v3467 = vunpack.c.h.b16 %v3370
        %v3468 = vunpack.c.l.b16 %v3371
        %v3469 = vunpack.c.l.b16 %v3372
        %v3470 = vunpack.c.h.b16 %v3372
        %v3471 = vunpack.c.l.b16 %v3373
        %v3472 = vpack.c.b16 %v3427, %v3424
        %v3473 = vpack.c.b16 %v3428, %v3425
        %v3474 = vpack.c.b16 %v3429, %v3426
        %v3475 = vpack.c.b16 %v3433, %v3430
        %v3476 = vpack.c.b16 %v3434, %v3431
        %v3477 = vpack.c.b16 %v3435, %v3432
        %v3478 = vpack.c.b16 %v3439, %v3436
        %v3479 = vpack.c.b16 %v3440, %v3437
        %v3480 = vpack.c.b16 %v3441, %v3438
        %v3481 = vpack.c.b16 %v3445, %v3442
        %v3482 = vpack.c.b16 %v3446, %v3443
        %v3483 = vpack.c.b16 %v3447, %v3444
        %v3484 = vpack.c.b16 %v3451, %v3448
        %v3485 = vpack.c.b16 %v3452, %v3449
        %v3486 = vpack.c.b16 %v3453, %v3450
        %v3487 = vpack.c.b16 %v3457, %v3454
        %v3488 = vpack.c.b16 %v3458, %v3455
        %v3489 = vpack.c.b16 %v3459, %v3456
        %v3490 = vpack.c.b16 %v3463, %v3460
        %v3491 = vpack.c.b16 %v3464, %v3461
        %v3492 = vpack.c.b16 %v3465, %v3462
        %v3493 = vpack.c.b16 %v3469, %v3466
        %v3494 = vpack.c.b16 %v3470, %v3467
        %v3495 = vpack.c.b16 %v3471, %v3468
        %3520 = vmatprep.subr.bf16.mxu0 %v3473
        %3521 = vmatpush1.bf16.msra.mxu0 %v3472
        %3522 = vmatprep.subr.bf16.mxu0 %v3476
        %3523 = vmatpush1.bf16.msra.mxu0 %v3475
        %3524 = vmatprep.subr.bf16.mxu0 %v3479
        %3525 = vmatpush1.bf16.msra.mxu0 %v3478
        %3526 = vmatprep.subr.bf16.mxu0 %v3482
        %3527 = vmatpush1.bf16.msra.mxu0 %v3481
        %3528 = vmatprep.subr.bf16.mxu0 %v3485
        %3529 = vmatpush1.bf16.msra.mxu0 %v3484
        %3530 = vmatprep.subr.bf16.mxu0 %v3488
        %3531 = vmatpush1.bf16.msra.mxu0 %v3487
        %3532 = vmatprep.subr.bf16.mxu0 %v3491
        %3533 = vmatpush1.bf16.msra.mxu0 %v3490
        %3534 = vmatprep.subr.bf16.mxu0 %v3494
        %3535 = vmatpush1.bf16.msra.mxu0 %v3493
        %3536 = vmatprep.subr.bf16.mxu0 0
        %3537 = vmatpush1.bf16.msra.mxu0 0
        %3538 = vmatprep.subr.bf16.mxu0 0
        %3539 = vmatpush1.bf16.msra.mxu0 0
        %3540 = vmatprep.subr.bf16.mxu0 0
        %3541 = vmatpush1.bf16.msra.mxu0 0
        %3542 = vmatprep.subr.bf16.mxu0 0
        %3543 = vmatpush1.bf16.msra.mxu0 0
        %3544 = vmatprep.subr.bf16.mxu0 0
        %3545 = vmatpush1.bf16.msra.mxu0 0
        %3546 = vmatprep.subr.bf16.mxu0 0
        %3547 = vmatpush1.bf16.msra.mxu0 0
        %3548 = vmatprep.subr.bf16.mxu0 0
        %3549 = vmatpush1.bf16.msra.mxu0 0
        %3550 = vmatprep.subr.bf16.mxu0 0
        %3551 = vmatpush1.bf16.msra.mxu0 0
        %3552 = vmatprep.mubr.bf16.mxu0 0
        %3553 = vmatmul.mubr.bf16.gmra.mrb[0].mxu0 %v3337
        %v3554 = vpop.f32.mrb[0].mxu0
        %v3555 = vadd.f32 %v3380, %v3554
        %v3556 = vpop.f32.mrb[0].mxu0
        %v3557 = vadd.f32 %v3384, %v3556
        %v3558 = vpop.f32.mrb[0].mxu0
        %v3559 = vadd.f32 %v3380, %v3558
        %v3560 = vpop.f32.mrb[0].mxu0
        %v3561 = vadd.f32 %v3384, %v3560
        %3562 = vmatprep.mubr.bf16.mxu0 0
        %3563 = vmatmul.mubr.bf16.gmra.mrb[0].mxu0 %v3338
        %v3564 = vpop.f32.mrb[0].mxu0
        %v3565 = vadd.f32 %v3380, %v3564
        %v3566 = vpop.f32.mrb[0].mxu0
        %v3567 = vadd.f32 %v3384, %v3566
        %v3568 = vpop.f32.mrb[0].mxu0
        %v3569 = vadd.f32 %v3380, %v3568
        %v3570 = vpop.f32.mrb[0].mxu0
        %v3571 = vadd.f32 %v3384, %v3570
        %3572 = vmatprep.mubr.bf16.mxu0 0
        %3573 = vmatmul.mubr.bf16.gmra.mrb[0].mxu0 %v3339
        %v3574 = vpop.f32.mrb[0].mxu0
        %v3575 = vadd.f32 %v3380, %v3574
        %v3576 = vpop.f32.mrb[0].mxu0
        %v3577 = vadd.f32 %v3384, %v3576
        %v3578 = vpop.f32.mrb[0].mxu0
        %v3579 = vadd.f32 %v3380, %v3578
        %v3580 = vpop.f32.mrb[0].mxu0
        %v3581 = vadd.f32 %v3384, %v3580
        %3582 = vmatprep.mubr.bf16.mxu0 0
        %3583 = vmatmul.mubr.bf16.gmra.mrb[0].mxu0 %v3340
        %v3584 = vpop.f32.mrb[0].mxu0
        %v3585 = vadd.f32 %v3380, %v3584
        %v3586 = vpop.f32.mrb[0].mxu0
        %v3587 = vadd.f32 %v3384, %v3586
        %v3588 = vpop.f32.mrb[0].mxu0
        %v3589 = vadd.f32 %v3380, %v3588
        %v3590 = vpop.f32.mrb[0].mxu0
        %v3591 = vadd.f32 %v3384, %v3590
        %3592 = vdwg.mxu0
        %3593 = vmatprep.subr.bf16.mxu0 0
        %3594 = vmatpush1.bf16.msra.mxu0 %v3474
        %3595 = vmatprep.subr.bf16.mxu0 0
        %3596 = vmatpush1.bf16.msra.mxu0 %v3477
        %3597 = vmatprep.subr.bf16.mxu0 0
        %3598 = vmatpush1.bf16.msra.mxu0 %v3480
        %3599 = vmatprep.subr.bf16.mxu0 0
        %3600 = vmatpush1.bf16.msra.mxu0 %v3483
        %3601 = vmatprep.subr.bf16.mxu0 0
        %3602 = vmatpush1.bf16.msra.mxu0 %v3486
        %3603 = vmatprep.subr.bf16.mxu0 0
        %3604 = vmatpush1.bf16.msra.mxu0 %v3489
        %3605 = vmatprep.subr.bf16.mxu0 0
        %3606 = vmatpush1.bf16.msra.mxu0 %v3492
        %3607 = vmatprep.subr.bf16.mxu0 0
        %3608 = vmatpush1.bf16.msra.mxu0 %v3495
        %3609 = vmatprep.subr.bf16.mxu0 0
        %3610 = vmatpush1.bf16.msra.mxu0 0
        %3611 = vmatprep.subr.bf16.mxu0 0
        %3612 = vmatpush1.bf16.msra.mxu0 0
        %3613 = vmatprep.subr.bf16.mxu0 0
        %3614 = vmatpush1.bf16.msra.mxu0 0
        %3615 = vmatprep.subr.bf16.mxu0 0
        %3616 = vmatpush1.bf16.msra.mxu0 0
        %3617 = vmatprep.subr.bf16.mxu0 0
        %3618 = vmatpush1.bf16.msra.mxu0 0
        %3619 = vmatprep.subr.bf16.mxu0 0
        %3620 = vmatpush1.bf16.msra.mxu0 0
        %3621 = vmatprep.subr.bf16.mxu0 0
        %3622 = vmatpush1.bf16.msra.mxu0 0
        %3623 = vmatprep.subr.bf16.mxu0 0
        %3624 = vmatpush1.bf16.msra.mxu0 0
        %3625 = vmatprep.mubr.bf16.mxu0 0
        %3626 = vmatmul.mubr.bf16.gmra.mrb[0].mxu0 %v3337
        %v3627 = vpop.f32.mrb[0].mxu0
        %v3628 = vadd.f32 %v3388, %v3627
        %v3629 = vpop.f32.mrb[0].mxu0
        %v3630 = vpop.f32.mrb[0].mxu0
        %v3631 = vadd.f32 %v3388, %v3630
        %v3632 = vpop.f32.mrb[0].mxu0
        %3633 = vmatprep.mubr.bf16.mxu0 0
        %3634 = vmatmul.mubr.bf16.gmra.mrb[0].mxu0 %v3338
        %v3635 = vpop.f32.mrb[0].mxu0
        %v3636 = vadd.f32 %v3388, %v3635
        %v3637 = vpop.f32.mrb[0].mxu0
        %v3638 = vpop.f32.mrb[0].mxu0
        %v3639 = vadd.f32 %v3388, %v3638
        %v3640 = vpop.f32.mrb[0].mxu0
        %3641 = vmatprep.mubr.bf16.mxu0 0
        %3642 = vmatmul.mubr.bf16.gmra.mrb[0].mxu0 %v3339
        %v3643 = vpop.f32.mrb[0].mxu0
        %v3644 = vadd.f32 %v3388, %v3643
        %v3645 = vpop.f32.mrb[0].mxu0
        %v3646 = vpop.f32.mrb[0].mxu0
        %v3647 = vadd.f32 %v3388, %v3646
        %v3648 = vpop.f32.mrb[0].mxu0
        %3649 = vmatprep.mubr.bf16.mxu0 0
        %3650 = vmatmul.mubr.bf16.gmra.mrb[0].mxu0 %v3340
        %v3651 = vpop.f32.mrb[0].mxu0
        %v3652 = vadd.f32 %v3388, %v3651
        %v3653 = vpop.f32.mrb[0].mxu0
        %v3654 = vpop.f32.mrb[0].mxu0
        %v3655 = vadd.f32 %v3388, %v3654
        %v3656 = vpop.f32.mrb[0].mxu0
        %3657 = vdwg.mxu0
        %s3658 = scalar_lea.vmem [#allocation9], 256
        %v3659 = vld [vmem:[%s3658] sm:$0xff]
        %v3660 = vld [vmem:[%s3658 + $0x8] sm:$0xff]
        %v3661 = vld [vmem:[%s3658 + $0x10] sm:$0xff]
        %v3662 = vld [vmem:[%s3658 + $0x18] sm:$0xff]
        %v3663 = vld [vmem:[%s3658 + $0x20] sm:$0xff]
        %v3664 = vld [vmem:[%s3658 + $0x28] sm:$0xff]
        %v3665 = vld [vmem:[%s3658 + $0x30] sm:$0xff]
        %v3666 = vld [vmem:[%s3658 + $0x38] sm:$0xff]
        %v3667 = vld [vmem:[%s3658 + $0x40] sm:$0xff]
        %v3668 = vld [vmem:[%s3658 + $0x48] sm:$0xff]
        %v3669 = vld [vmem:[%s3658 + $0x50] sm:$0xff]
        %v3670 = vld [vmem:[%s3658 + $0x58] sm:$0xff]
        %v3671 = vld [vmem:[%s3658 + $0x60] sm:$0xff]
        %v3672 = vld [vmem:[%s3658 + $0x68] sm:$0xff]
        %v3673 = vld [vmem:[%s3658 + $0x70] sm:$0xff]
        %v3674 = vld [vmem:[%s3658 + $0x78] sm:$0xff]
        %v3675 = vld [vmem:[%s3658 + $0x80] sm:$0xff]
        %v3676 = vld [vmem:[%s3658 + $0x88] sm:$0xff]
        %v3677 = vld [vmem:[%s3658 + $0x90] sm:$0xff]
        %v3678 = vld [vmem:[%s3658 + $0x98] sm:$0xff]
        %v3679 = vld [vmem:[%s3658 + $0xa0] sm:$0xff]
        %v3680 = vld [vmem:[%s3658 + $0xa8] sm:$0xff]
        %v3681 = vld [vmem:[%s3658 + $0xb0] sm:$0xff]
        %v3682 = vld [vmem:[%s3658 + $0xb8] sm:$0xff]
        %v3683 = vld [vmem:[%s3658 + $0xc0] sm:$0xff]
        %v3684 = vld [vmem:[%s3658 + $0xc8] sm:$0xff]
        %v3685 = vld [vmem:[%s3658 + $0xd0] sm:$0xff]
        %v3686 = vld [vmem:[%s3658 + $0xd8] sm:$0xff]
        %v3687 = vld [vmem:[%s3658 + $0xe0] sm:$0xff]
        %v3688 = vld [vmem:[%s3658 + $0xe8] sm:$0xff]
        %v3689 = vld [vmem:[%s3658 + $0xf0] sm:$0xff]
        %v3690 = vld [vmem:[%s3658 + $0xf8] sm:$0xff]
        %v3691 = vmul.f32 %v3555, 0.17677669
        %v3692 = vmul.f32 %v3559, 0.17677669
        %v3693 = vmul.f32 %v3565, 0.17677669
        %v3694 = vmul.f32 %v3569, 0.17677669
        %v3695 = vmul.f32 %v3575, 0.17677669
        %v3696 = vmul.f32 %v3579, 0.17677669
        %v3697 = vmul.f32 %v3585, 0.17677669
        %v3698 = vmul.f32 %v3589, 0.17677669
        %v3699 = vpack.c.bf16 %v3692, %v3691
        %v3700 = vpack.c.bf16 %v3694, %v3693
        %v3701 = vpack.c.bf16 %v3696, %v3695
        %v3702 = vpack.c.bf16 %v3698, %v3697
        %v3703 = vpack.c.bf16 %v3561, %v3557
        %v3704 = vpack.c.bf16 %v3571, %v3567
        %v3705 = vpack.c.bf16 %v3581, %v3577
        %v3706 = vpack.c.bf16 %v3591, %v3587
        %v3707 = vpack.c.bf16 %v3631, %v3628
        %v3708 = vpack.c.bf16 %v3639, %v3636
        %v3709 = vpack.c.bf16 %v3647, %v3644
        %v3710 = vpack.c.bf16 %v3655, %v3652
        %v3712 = vsel %vm1155, %v3699, 0
        %v3715 = vsel %vm1155, %v3700, 0
        %v3718 = vsel %vm1155, %v3701, 0
        %v3721 = vsel %vm1155, %v3702, 0
        %v3724 = vsel %vm1155, %v3703, 0
        %v3727 = vsel %vm1155, %v3704, 0
        %v3730 = vsel %vm1155, %v3705, 0
        %v3733 = vsel %vm1155, %v3706, 0
        %3735 = vmatprep.subr.bf16.mxu0 0
        %3736 = vmatpush1.bf16.xpose.msra.mxu0 %v3724
        %3737 = vmatprep.subr.bf16.mxu0 0
        %3738 = vmatpush1.bf16.xpose.msra.mxu0 %v3727
        %3739 = vmatprep.subr.bf16.mxu0 0
        %3740 = vmatpush1.bf16.xpose.msra.mxu0 %v3730
        %3741 = vmatprep.subr.bf16.mxu0 0
        %3742 = vmatpush1.bf16.xpose.msra.mxu0 %v3733
        %3743 = vmatprep.subr.bf16.mxu0 0
        %3744 = vmatpush1.bf16.xpose.msra.mxu0 0
        %3745 = vmatprep.subr.bf16.mxu0 0
        %3746 = vmatpush1.bf16.xpose.msra.mxu0 0
        %3747 = vmatprep.subr.bf16.mxu0 0
        %3748 = vmatpush1.bf16.xpose.msra.mxu0 0
        %3749 = vmatprep.subr.bf16.mxu0 0
        %3750 = vmatpush1.bf16.xpose.msra.mxu0 0
        %3751 = vmatprep.subr.bf16.mxu0 0
        %3752 = vmatpush1.bf16.xpose.msra.mxu0 0
        %3753 = vmatprep.subr.bf16.mxu0 0
        %3754 = vmatpush1.bf16.xpose.msra.mxu0 0
        %3755 = vmatprep.subr.bf16.mxu0 0
        %3756 = vmatpush1.bf16.xpose.msra.mxu0 0
        %3757 = vmatprep.subr.bf16.mxu0 0
        %3758 = vmatpush1.bf16.xpose.msra.mxu0 0
        %3759 = vmatprep.subr.bf16.mxu0 0
        %3760 = vmatpush1.bf16.xpose.msra.mxu0 0
        %3761 = vmatprep.subr.bf16.mxu0 0
        %3762 = vmatpush1.bf16.xpose.msra.mxu0 0
        %3763 = vmatprep.subr.bf16.mxu0 0
        %3764 = vmatpush1.bf16.xpose.msra.mxu0 0
        %3765 = vmatprep.subr.bf16.mxu0 0
        %3766 = vmatpush1.bf16.xpose.msra.mxu0 0
        %3767 = vmatprep.mubr.bf16.mxu0 0
        %3768 = vmatmul.mubr.bf16.gmra.mrb[0].mxu0 %v3712
        %v3769 = vpop.f32.mrb[0].mxu0
        %v3770 = vadd.f32 %v3659, %v3769
        %v3771 = vpop.f32.mrb[0].mxu0
        %v3772 = vpop.f32.mrb[0].mxu0
        %v3773 = vadd.f32 %v3660, %v3772
        %v3774 = vpop.f32.mrb[0].mxu0
        %3775 = vmatprep.mubr.bf16.mxu0 0
        %3776 = vmatmul.mubr.bf16.gmra.mrb[0].mxu0 %v3715
        %v3777 = vpop.f32.mrb[0].mxu0
        %v3778 = vadd.f32 %v3661, %v3777
        %v3779 = vpop.f32.mrb[0].mxu0
        %v3780 = vpop.f32.mrb[0].mxu0
        %v3781 = vadd.f32 %v3662, %v3780
        %v3782 = vpop.f32.mrb[0].mxu0
        %3783 = vmatprep.mubr.bf16.mxu0 0
        %3784 = vmatmul.mubr.bf16.gmra.mrb[0].mxu0 %v3718
        %v3785 = vpop.f32.mrb[0].mxu0
        %v3786 = vadd.f32 %v3663, %v3785
        %v3787 = vpop.f32.mrb[0].mxu0
        %v3788 = vpop.f32.mrb[0].mxu0
        %v3789 = vadd.f32 %v3664, %v3788
        %v3790 = vpop.f32.mrb[0].mxu0
        %3791 = vmatprep.mubr.bf16.mxu0 0
        %3792 = vmatmul.mubr.bf16.gmra.mrb[0].mxu0 %v3721
        %v3793 = vpop.f32.mrb[0].mxu0
        %v3794 = vadd.f32 %v3665, %v3793
        %v3795 = vpop.f32.mrb[0].mxu0
        %v3796 = vpop.f32.mrb[0].mxu0
        %v3797 = vadd.f32 %v3666, %v3796
        %v3798 = vpop.f32.mrb[0].mxu0
        %3799 = vdwg.mxu0
        %v3800 = vsel %vm1245, %v3770, -inf
        %3801 = vmax.xlane.f32.xlu0 %v3800
        %v3802 = vpop.xlane.xlu0 %3801
        %v3803 = vsel %vm1245, %v3773, -inf
        %3804 = vmax.xlane.f32.xlu0 %v3803
        %v3805 = vpop.xlane.xlu0 %3804
        %v3806 = vsel %vm1245, %v3778, -inf
        %3807 = vmax.xlane.f32.xlu0 %v3806
        %v3808 = vpop.xlane.xlu0 %3807
        %v3809 = vsel %vm1245, %v3781, -inf
        %3810 = vmax.xlane.f32.xlu0 %v3809
        %v3811 = vpop.xlane.xlu0 %3810
        %v3812 = vsel %vm1245, %v3786, -inf
        %3813 = vmax.xlane.f32.xlu0 %v3812
        %v3814 = vpop.xlane.xlu0 %3813
        %v3815 = vsel %vm1245, %v3789, -inf
        %3816 = vmax.xlane.f32.xlu0 %v3815
        %v3817 = vpop.xlane.xlu0 %3816
        %v3818 = vsel %vm1245, %v3794, -inf
        %3819 = vmax.xlane.f32.xlu0 %v3818
        %v3820 = vpop.xlane.xlu0 %3819
        %v3821 = vsel %vm1245, %v3797, -inf
        %3822 = vmax.xlane.f32.xlu0 %v3821
        %v3823 = vpop.xlane.xlu0 %3822
        %v3824 = vsub.f32 %v3770, %v3802
        %v3825 = vsub.f32 %v3773, %v3805
        %v3826 = vsub.f32 %v3778, %v3808
        %v3827 = vsub.f32 %v3781, %v3811
        %v3828 = vsub.f32 %v3786, %v3814
        %v3829 = vsub.f32 %v3789, %v3817
        %v3830 = vsub.f32 %v3794, %v3820
        %v3831 = vsub.f32 %v3797, %v3823
        %v3832 = vmul.f32 %v3824, 1.442695
        %v3833 = vpow.pop %v3832
        %v3834 = vmul.f32 %v3825, 1.442695
        %v3835 = vpow.pop %v3834
        %v3836 = vmul.f32 %v3826, 1.442695
        %v3837 = vpow.pop %v3836
        %v3838 = vmul.f32 %v3827, 1.442695
        %v3839 = vpow.pop %v3838
        %v3840 = vmul.f32 %v3828, 1.442695
        %v3841 = vpow.pop %v3840
        %v3842 = vmul.f32 %v3829, 1.442695
        %v3843 = vpow.pop %v3842
        %v3844 = vmul.f32 %v3830, 1.442695
        %v3845 = vpow.pop %v3844
        %v3846 = vmul.f32 %v3831, 1.442695
        %v3847 = vpow.pop %v3846
        %v3848 = vsel %vm1245, %v3833, 0.0
        %3849 = vadd.xlane.f32.xlu0 %v3848
        %v3850 = vpop.xlane.xlu0 %3849
        %v3851 = vsel %vm1245, %v3835, 0.0
        %3852 = vadd.xlane.f32.xlu0 %v3851
        %v3853 = vpop.xlane.xlu0 %3852
        %v3854 = vsel %vm1245, %v3837, 0.0
        %3855 = vadd.xlane.f32.xlu0 %v3854
        %v3856 = vpop.xlane.xlu0 %3855
        %v3857 = vsel %vm1245, %v3839, 0.0
        %3858 = vadd.xlane.f32.xlu0 %v3857
        %v3859 = vpop.xlane.xlu0 %3858
        %v3860 = vsel %vm1245, %v3841, 0.0
        %3861 = vadd.xlane.f32.xlu0 %v3860
        %v3862 = vpop.xlane.xlu0 %3861
        %v3863 = vsel %vm1245, %v3843, 0.0
        %3864 = vadd.xlane.f32.xlu0 %v3863
        %v3865 = vpop.xlane.xlu0 %3864
        %v3866 = vsel %vm1245, %v3845, 0.0
        %3867 = vadd.xlane.f32.xlu0 %v3866
        %v3868 = vpop.xlane.xlu0 %3867
        %v3869 = vsel %vm1245, %v3847, 0.0
        %3870 = vadd.xlane.f32.xlu0 %v3869
        %v3871 = vpop.xlane.xlu0 %3870
        %v3872 = vrcp.pop %v3850
        %v3873 = vrcp.pop %v3853
        %v3874 = vrcp.pop %v3856
        %v3875 = vrcp.pop %v3859
        %v3876 = vrcp.pop %v3862
        %v3877 = vrcp.pop %v3865
        %v3878 = vrcp.pop %v3868
        %v3879 = vrcp.pop %v3871
        %v3880 = vmul.f32 %v3833, %v3872
        %v3881 = vmul.f32 %v3835, %v3873
        %v3882 = vmul.f32 %v3837, %v3874
        %v3883 = vmul.f32 %v3839, %v3875
        %v3884 = vmul.f32 %v3841, %v3876
        %v3885 = vmul.f32 %v3843, %v3877
        %v3886 = vmul.f32 %v3845, %v3878
        %v3887 = vmul.f32 %v3847, %v3879
        %v3888 = vpack.c.bf16 %v3881, %v3880
        %v3889 = vpack.c.bf16 %v3883, %v3882
        %v3890 = vpack.c.bf16 %v3885, %v3884
        %v3891 = vpack.c.bf16 %v3887, %v3886
        %v3893 = vsel %vm1245, %v3888, 0
        %v3896 = vsel %vm1245, %v3889, 0
        %v3899 = vsel %vm1245, %v3890, 0
        %v3902 = vsel %vm1245, %v3891, 0
        %3904 = vmatprep.subr.bf16.mxu0 0
        %3905 = vmatpush1.bf16.msra.mxu0 %v3707
        %3906 = vmatprep.subr.bf16.mxu0 0
        %3907 = vmatpush1.bf16.msra.mxu0 %v3708
        %3908 = vmatprep.subr.bf16.mxu0 0
        %3909 = vmatpush1.bf16.msra.mxu0 %v3709
        %3910 = vmatprep.subr.bf16.mxu0 0
        %3911 = vmatpush1.bf16.msra.mxu0 %v3710
        %3912 = vmatprep.subr.bf16.mxu0 0
        %3913 = vmatpush1.bf16.msra.mxu0 0
        %3914 = vmatprep.subr.bf16.mxu0 0
        %3915 = vmatpush1.bf16.msra.mxu0 0
        %3916 = vmatprep.subr.bf16.mxu0 0
        %3917 = vmatpush1.bf16.msra.mxu0 0
        %3918 = vmatprep.subr.bf16.mxu0 0
        %3919 = vmatpush1.bf16.msra.mxu0 0
        %3920 = vmatprep.subr.bf16.mxu0 0
        %3921 = vmatpush1.bf16.msra.mxu0 0
        %3922 = vmatprep.subr.bf16.mxu0 0
        %3923 = vmatpush1.bf16.msra.mxu0 0
        %3924 = vmatprep.subr.bf16.mxu0 0
        %3925 = vmatpush1.bf16.msra.mxu0 0
        %3926 = vmatprep.subr.bf16.mxu0 0
        %3927 = vmatpush1.bf16.msra.mxu0 0
        %3928 = vmatprep.subr.bf16.mxu0 0
        %3929 = vmatpush1.bf16.msra.mxu0 0
        %3930 = vmatprep.subr.bf16.mxu0 0
        %3931 = vmatpush1.bf16.msra.mxu0 0
        %3932 = vmatprep.subr.bf16.mxu0 0
        %3933 = vmatpush1.bf16.msra.mxu0 0
        %3934 = vmatprep.subr.bf16.mxu0 0
        %3935 = vmatpush1.bf16.msra.mxu0 0
        %3936 = vmatprep.mubr.bf16.mxu0 0
        %3937 = vmatmul.mubr.bf16.gmra.mrb[0].mxu0 %v3893
        %v3938 = vpop.f32.mrb[0].mxu0
        %v3939 = vadd.f32 0.0, %v3938
        %v3940 = vpop.f32.mrb[0].mxu0
        %v3941 = vpop.f32.mrb[0].mxu0
        %v3942 = vadd.f32 0.0, %v3941
        %v3943 = vpop.f32.mrb[0].mxu0
        %3944 = vmatprep.mubr.bf16.mxu0 0
        %3945 = vmatmul.mubr.bf16.gmra.mrb[0].mxu0 %v3896
        %v3946 = vpop.f32.mrb[0].mxu0
        %v3947 = vadd.f32 0.0, %v3946
        %v3948 = vpop.f32.mrb[0].mxu0
        %v3949 = vpop.f32.mrb[0].mxu0
        %v3950 = vadd.f32 0.0, %v3949
        %v3951 = vpop.f32.mrb[0].mxu0
        %3952 = vmatprep.mubr.bf16.mxu0 0
        %3953 = vmatmul.mubr.bf16.gmra.mrb[0].mxu0 %v3899
        %v3954 = vpop.f32.mrb[0].mxu0
        %v3955 = vadd.f32 0.0, %v3954
        %v3956 = vpop.f32.mrb[0].mxu0
        %v3957 = vpop.f32.mrb[0].mxu0
        %v3958 = vadd.f32 0.0, %v3957
        %v3959 = vpop.f32.mrb[0].mxu0
        %3960 = vmatprep.mubr.bf16.mxu0 0
        %3961 = vmatmul.mubr.bf16.gmra.mrb[0].mxu0 %v3902
        %v3962 = vpop.f32.mrb[0].mxu0
        %v3963 = vadd.f32 0.0, %v3962
        %v3964 = vpop.f32.mrb[0].mxu0
        %v3965 = vpop.f32.mrb[0].mxu0
        %v3966 = vadd.f32 0.0, %v3965
        %v3967 = vpop.f32.mrb[0].mxu0
        %3968 = vdwg.mxu0
        %3973 = vrot.lane.b32.xlu0 %v3699, 96
        %v3974 = vpop.permute.xlu0 %3973
        %3975 = vrot.lane.b32.xlu0 %v3700, 96
        %v3976 = vpop.permute.xlu0 %3975
        %3977 = vrot.lane.b32.xlu0 %v3701, 96
        %v3978 = vpop.permute.xlu0 %3977
        %3979 = vrot.lane.b32.xlu0 %v3702, 96
        %v3980 = vpop.permute.xlu0 %3979
        %3985 = vrot.lane.b32.xlu0 %v3703, 96
        %v3986 = vpop.permute.xlu0 %3985
        %3987 = vrot.lane.b32.xlu0 %v3704, 96
        %v3988 = vpop.permute.xlu0 %3987
        %3989 = vrot.lane.b32.xlu0 %v3705, 96
        %v3990 = vpop.permute.xlu0 %3989
        %3991 = vrot.lane.b32.xlu0 %v3706, 96
        %v3992 = vpop.permute.xlu0 %3991
        %v3994 = vsel %vm1155, %v3974, 0
        %v3997 = vsel %vm1155, %v3976, 0
        %v4000 = vsel %vm1155, %v3978, 0
        %v4003 = vsel %vm1155, %v3980, 0
        %v4006 = vsel %vm1155, %v3986, 0
        %v4009 = vsel %vm1155, %v3988, 0
        %v4012 = vsel %vm1155, %v3990, 0
        %v4015 = vsel %vm1155, %v3992, 0
        %4017 = vmatprep.subr.bf16.mxu0 0
        %4018 = vmatpush1.bf16.xpose.msra.mxu0 %v4006
        %4019 = vmatprep.subr.bf16.mxu0 0
        %4020 = vmatpush1.bf16.xpose.msra.mxu0 %v4009
        %4021 = vmatprep.subr.bf16.mxu0 0
        %4022 = vmatpush1.bf16.xpose.msra.mxu0 %v4012
        %4023 = vmatprep.subr.bf16.mxu0 0
        %4024 = vmatpush1.bf16.xpose.msra.mxu0 %v4015
        %4025 = vmatprep.subr.bf16.mxu0 0
        %4026 = vmatpush1.bf16.xpose.msra.mxu0 0
        %4027 = vmatprep.subr.bf16.mxu0 0
        %4028 = vmatpush1.bf16.xpose.msra.mxu0 0
        %4029 = vmatprep.subr.bf16.mxu0 0
        %4030 = vmatpush1.bf16.xpose.msra.mxu0 0
        %4031 = vmatprep.subr.bf16.mxu0 0
        %4032 = vmatpush1.bf16.xpose.msra.mxu0 0
        %4033 = vmatprep.subr.bf16.mxu0 0
        %4034 = vmatpush1.bf16.xpose.msra.mxu0 0
        %4035 = vmatprep.subr.bf16.mxu0 0
        %4036 = vmatpush1.bf16.xpose.msra.mxu0 0
        %4037 = vmatprep.subr.bf16.mxu0 0
        %4038 = vmatpush1.bf16.xpose.msra.mxu0 0
        %4039 = vmatprep.subr.bf16.mxu0 0
        %4040 = vmatpush1.bf16.xpose.msra.mxu0 0
        %4041 = vmatprep.subr.bf16.mxu0 0
        %4042 = vmatpush1.bf16.xpose.msra.mxu0 0
        %4043 = vmatprep.subr.bf16.mxu0 0
        %4044 = vmatpush1.bf16.xpose.msra.mxu0 0
        %4045 = vmatprep.subr.bf16.mxu0 0
        %4046 = vmatpush1.bf16.xpose.msra.mxu0 0
        %4047 = vmatprep.subr.bf16.mxu0 0
        %4048 = vmatpush1.bf16.xpose.msra.mxu0 0
        %4049 = vmatprep.mubr.bf16.mxu0 0
        %4050 = vmatmul.mubr.bf16.gmra.mrb[0].mxu0 %v3994
        %v4051 = vpop.f32.mrb[0].mxu0
        %v4052 = vadd.f32 %v3667, %v4051
        %v4053 = vpop.f32.mrb[0].mxu0
        %v4054 = vpop.f32.mrb[0].mxu0
        %v4055 = vadd.f32 %v3668, %v4054
        %v4056 = vpop.f32.mrb[0].mxu0
        %4057 = vmatprep.mubr.bf16.mxu0 0
        %4058 = vmatmul.mubr.bf16.gmra.mrb[0].mxu0 %v3997
        %v4059 = vpop.f32.mrb[0].mxu0
        %v4060 = vadd.f32 %v3669, %v4059
        %v4061 = vpop.f32.mrb[0].mxu0
        %v4062 = vpop.f32.mrb[0].mxu0
        %v4063 = vadd.f32 %v3670, %v4062
        %v4064 = vpop.f32.mrb[0].mxu0
        %4065 = vmatprep.mubr.bf16.mxu0 0
        %4066 = vmatmul.mubr.bf16.gmra.mrb[0].mxu0 %v4000
        %v4067 = vpop.f32.mrb[0].mxu0
        %v4068 = vadd.f32 %v3671, %v4067
        %v4069 = vpop.f32.mrb[0].mxu0
        %v4070 = vpop.f32.mrb[0].mxu0
        %v4071 = vadd.f32 %v3672, %v4070
        %v4072 = vpop.f32.mrb[0].mxu0
        %4073 = vmatprep.mubr.bf16.mxu0 0
        %4074 = vmatmul.mubr.bf16.gmra.mrb[0].mxu0 %v4003
        %v4075 = vpop.f32.mrb[0].mxu0
        %v4076 = vadd.f32 %v3673, %v4075
        %v4077 = vpop.f32.mrb[0].mxu0
        %v4078 = vpop.f32.mrb[0].mxu0
        %v4079 = vadd.f32 %v3674, %v4078
        %v4080 = vpop.f32.mrb[0].mxu0
        %4081 = vdwg.mxu0
        %v4082 = vsel %vm1245, %v4052, -inf
        %4083 = vmax.xlane.f32.xlu0 %v4082
        %v4084 = vpop.xlane.xlu0 %4083
        %v4085 = vsel %vm1245, %v4055, -inf
        %4086 = vmax.xlane.f32.xlu0 %v4085
        %v4087 = vpop.xlane.xlu0 %4086
        %v4088 = vsel %vm1245, %v4060, -inf
        %4089 = vmax.xlane.f32.xlu0 %v4088
        %v4090 = vpop.xlane.xlu0 %4089
        %v4091 = vsel %vm1245, %v4063, -inf
        %4092 = vmax.xlane.f32.xlu0 %v4091
        %v4093 = vpop.xlane.xlu0 %4092
        %v4094 = vsel %vm1245, %v4068, -inf
        %4095 = vmax.xlane.f32.xlu0 %v4094
        %v4096 = vpop.xlane.xlu0 %4095
        %v4097 = vsel %vm1245, %v4071, -inf
        %4098 = vmax.xlane.f32.xlu0 %v4097
        %v4099 = vpop.xlane.xlu0 %4098
        %v4100 = vsel %vm1245, %v4076, -inf
        %4101 = vmax.xlane.f32.xlu0 %v4100
        %v4102 = vpop.xlane.xlu0 %4101
        %v4103 = vsel %vm1245, %v4079, -inf
        %4104 = vmax.xlane.f32.xlu0 %v4103
        %v4105 = vpop.xlane.xlu0 %4104
        %v4106 = vsub.f32 %v4052, %v4084
        %v4107 = vsub.f32 %v4055, %v4087
        %v4108 = vsub.f32 %v4060, %v4090
        %v4109 = vsub.f32 %v4063, %v4093
        %v4110 = vsub.f32 %v4068, %v4096
        %v4111 = vsub.f32 %v4071, %v4099
        %v4112 = vsub.f32 %v4076, %v4102
        %v4113 = vsub.f32 %v4079, %v4105
        %v4114 = vmul.f32 %v4106, 1.442695
        %v4115 = vpow.pop %v4114
        %v4116 = vmul.f32 %v4107, 1.442695
        %v4117 = vpow.pop %v4116
        %v4118 = vmul.f32 %v4108, 1.442695
        %v4119 = vpow.pop %v4118
        %v4120 = vmul.f32 %v4109, 1.442695
        %v4121 = vpow.pop %v4120
        %v4122 = vmul.f32 %v4110, 1.442695
        %v4123 = vpow.pop %v4122
        %v4124 = vmul.f32 %v4111, 1.442695
        %v4125 = vpow.pop %v4124
        %v4126 = vmul.f32 %v4112, 1.442695
        %v4127 = vpow.pop %v4126
        %v4128 = vmul.f32 %v4113, 1.442695
        %v4129 = vpow.pop %v4128
        %v4130 = vsel %vm1245, %v4115, 0.0
        %4131 = vadd.xlane.f32.xlu0 %v4130
        %v4132 = vpop.xlane.xlu0 %4131
        %v4133 = vsel %vm1245, %v4117, 0.0
        %4134 = vadd.xlane.f32.xlu0 %v4133
        %v4135 = vpop.xlane.xlu0 %4134
        %v4136 = vsel %vm1245, %v4119, 0.0
        %4137 = vadd.xlane.f32.xlu0 %v4136
        %v4138 = vpop.xlane.xlu0 %4137
        %v4139 = vsel %vm1245, %v4121, 0.0
        %4140 = vadd.xlane.f32.xlu0 %v4139
        %v4141 = vpop.xlane.xlu0 %4140
        %v4142 = vsel %vm1245, %v4123, 0.0
        %4143 = vadd.xlane.f32.xlu0 %v4142
        %v4144 = vpop.xlane.xlu0 %4143
        %v4145 = vsel %vm1245, %v4125, 0.0
        %4146 = vadd.xlane.f32.xlu0 %v4145
        %v4147 = vpop.xlane.xlu0 %4146
        %v4148 = vsel %vm1245, %v4127, 0.0
        %4149 = vadd.xlane.f32.xlu0 %v4148
        %v4150 = vpop.xlane.xlu0 %4149
        %v4151 = vsel %vm1245, %v4129, 0.0
        %4152 = vadd.xlane.f32.xlu0 %v4151
        %v4153 = vpop.xlane.xlu0 %4152
        %v4154 = vrcp.pop %v4132
        %v4155 = vrcp.pop %v4135
        %v4156 = vrcp.pop %v4138
        %v4157 = vrcp.pop %v4141
        %v4158 = vrcp.pop %v4144
        %v4159 = vrcp.pop %v4147
        %v4160 = vrcp.pop %v4150
        %v4161 = vrcp.pop %v4153
        %v4162 = vmul.f32 %v4115, %v4154
        %v4163 = vmul.f32 %v4117, %v4155
        %v4164 = vmul.f32 %v4119, %v4156
        %v4165 = vmul.f32 %v4121, %v4157
        %v4166 = vmul.f32 %v4123, %v4158
        %v4167 = vmul.f32 %v4125, %v4159
        %v4168 = vmul.f32 %v4127, %v4160
        %v4169 = vmul.f32 %v4129, %v4161
        %v4170 = vpack.c.bf16 %v4163, %v4162
        %v4171 = vpack.c.bf16 %v4165, %v4164
        %v4172 = vpack.c.bf16 %v4167, %v4166
        %v4173 = vpack.c.bf16 %v4169, %v4168
        %4178 = vrot.lane.b32.xlu0 %v3707, 96
        %v4179 = vpop.permute.xlu0 %4178
        %4180 = vrot.lane.b32.xlu0 %v3708, 96
        %v4181 = vpop.permute.xlu0 %4180
        %4182 = vrot.lane.b32.xlu0 %v3709, 96
        %v4183 = vpop.permute.xlu0 %4182
        %4184 = vrot.lane.b32.xlu0 %v3710, 96
        %v4185 = vpop.permute.xlu0 %4184
        %v4191 = vsel %vm1245, %v4170, 0
        %v4194 = vsel %vm1245, %v4171, 0
        %v4197 = vsel %vm1245, %v4172, 0
        %v4200 = vsel %vm1245, %v4173, 0
        %4202 = vmatprep.subr.bf16.mxu0 0
        %4203 = vmatpush1.bf16.msra.mxu0 %v4179
        %4204 = vmatprep.subr.bf16.mxu0 0
        %4205 = vmatpush1.bf16.msra.mxu0 %v4181
        %4206 = vmatprep.subr.bf16.mxu0 0
        %4207 = vmatpush1.bf16.msra.mxu0 %v4183
        %4208 = vmatprep.subr.bf16.mxu0 0
        %4209 = vmatpush1.bf16.msra.mxu0 %v4185
        %4210 = vmatprep.subr.bf16.mxu0 0
        %4211 = vmatpush1.bf16.msra.mxu0 0
        %4212 = vmatprep.subr.bf16.mxu0 0
        %4213 = vmatpush1.bf16.msra.mxu0 0
        %4214 = vmatprep.subr.bf16.mxu0 0
        %4215 = vmatpush1.bf16.msra.mxu0 0
        %4216 = vmatprep.subr.bf16.mxu0 0
        %4217 = vmatpush1.bf16.msra.mxu0 0
        %4218 = vmatprep.subr.bf16.mxu0 0
        %4219 = vmatpush1.bf16.msra.mxu0 0
        %4220 = vmatprep.subr.bf16.mxu0 0
        %4221 = vmatpush1.bf16.msra.mxu0 0
        %4222 = vmatprep.subr.bf16.mxu0 0
        %4223 = vmatpush1.bf16.msra.mxu0 0
        %4224 = vmatprep.subr.bf16.mxu0 0
        %4225 = vmatpush1.bf16.msra.mxu0 0
        %4226 = vmatprep.subr.bf16.mxu0 0
        %4227 = vmatpush1.bf16.msra.mxu0 0
        %4228 = vmatprep.subr.bf16.mxu0 0
        %4229 = vmatpush1.bf16.msra.mxu0 0
        %4230 = vmatprep.subr.bf16.mxu0 0
        %4231 = vmatpush1.bf16.msra.mxu0 0
        %4232 = vmatprep.subr.bf16.mxu0 0
        %4233 = vmatpush1.bf16.msra.mxu0 0
        %4234 = vmatprep.mubr.bf16.mxu0 0
        %4235 = vmatmul.mubr.bf16.gmra.mrb[0].mxu0 %v4191
        %v4236 = vpop.f32.mrb[0].mxu0
        %v4237 = vadd.f32 0.0, %v4236
        %v4238 = vpop.f32.mrb[0].mxu0
        %v4239 = vpop.f32.mrb[0].mxu0
        %v4240 = vadd.f32 0.0, %v4239
        %v4241 = vpop.f32.mrb[0].mxu0
        %4242 = vmatprep.mubr.bf16.mxu0 0
        %4243 = vmatmul.mubr.bf16.gmra.mrb[0].mxu0 %v4194
        %v4244 = vpop.f32.mrb[0].mxu0
        %v4245 = vadd.f32 0.0, %v4244
        %v4246 = vpop.f32.mrb[0].mxu0
        %v4247 = vpop.f32.mrb[0].mxu0
        %v4248 = vadd.f32 0.0, %v4247
        %v4249 = vpop.f32.mrb[0].mxu0
        %4250 = vmatprep.mubr.bf16.mxu0 0
        %4251 = vmatmul.mubr.bf16.gmra.mrb[0].mxu0 %v4197
        %v4252 = vpop.f32.mrb[0].mxu0
        %v4253 = vadd.f32 0.0, %v4252
        %v4254 = vpop.f32.mrb[0].mxu0
        %v4255 = vpop.f32.mrb[0].mxu0
        %v4256 = vadd.f32 0.0, %v4255
        %v4257 = vpop.f32.mrb[0].mxu0
        %4258 = vmatprep.mubr.bf16.mxu0 0
        %4259 = vmatmul.mubr.bf16.gmra.mrb[0].mxu0 %v4200
        %v4260 = vpop.f32.mrb[0].mxu0
        %v4261 = vadd.f32 0.0, %v4260
        %v4262 = vpop.f32.mrb[0].mxu0
        %v4263 = vpop.f32.mrb[0].mxu0
        %v4264 = vadd.f32 0.0, %v4263
        %v4265 = vpop.f32.mrb[0].mxu0
        %4266 = vdwg.mxu0
        %4267 = vrot.lane.b32.xlu0 %v3699, 64
        %v4268 = vpop.permute.xlu0 %4267
        %4269 = vrot.lane.b32.xlu0 %v3700, 64
        %v4270 = vpop.permute.xlu0 %4269
        %4271 = vrot.lane.b32.xlu0 %v3701, 64
        %v4272 = vpop.permute.xlu0 %4271
        %4273 = vrot.lane.b32.xlu0 %v3702, 64
        %v4274 = vpop.permute.xlu0 %4273
        %4275 = vrot.lane.b32.xlu0 %v3703, 64
        %v4276 = vpop.permute.xlu0 %4275
        %4277 = vrot.lane.b32.xlu0 %v3704, 64
        %v4278 = vpop.permute.xlu0 %4277
        %4279 = vrot.lane.b32.xlu0 %v3705, 64
        %v4280 = vpop.permute.xlu0 %4279
        %4281 = vrot.lane.b32.xlu0 %v3706, 64
        %v4282 = vpop.permute.xlu0 %4281
        %v4284 = vsel %vm1155, %v4268, 0
        %v4287 = vsel %vm1155, %v4270, 0
        %v4290 = vsel %vm1155, %v4272, 0
        %v4293 = vsel %vm1155, %v4274, 0
        %v4296 = vsel %vm1155, %v4276, 0
        %v4299 = vsel %vm1155, %v4278, 0
        %v4302 = vsel %vm1155, %v4280, 0
        %v4305 = vsel %vm1155, %v4282, 0
        %4307 = vmatprep.subr.bf16.mxu0 0
        %4308 = vmatpush1.bf16.xpose.msra.mxu0 %v4296
        %4309 = vmatprep.subr.bf16.mxu0 0
        %4310 = vmatpush1.bf16.xpose.msra.mxu0 %v4299
        %4311 = vmatprep.subr.bf16.mxu0 0
        %4312 = vmatpush1.bf16.xpose.msra.mxu0 %v4302
        %4313 = vmatprep.subr.bf16.mxu0 0
        %4314 = vmatpush1.bf16.xpose.msra.mxu0 %v4305
        %4315 = vmatprep.subr.bf16.mxu0 0
        %4316 = vmatpush1.bf16.xpose.msra.mxu0 0
        %4317 = vmatprep.subr.bf16.mxu0 0
        %4318 = vmatpush1.bf16.xpose.msra.mxu0 0
        %4319 = vmatprep.subr.bf16.mxu0 0
        %4320 = vmatpush1.bf16.xpose.msra.mxu0 0
        %4321 = vmatprep.subr.bf16.mxu0 0
        %4322 = vmatpush1.bf16.xpose.msra.mxu0 0
        %4323 = vmatprep.subr.bf16.mxu0 0
        %4324 = vmatpush1.bf16.xpose.msra.mxu0 0
        %4325 = vmatprep.subr.bf16.mxu0 0
        %4326 = vmatpush1.bf16.xpose.msra.mxu0 0
        %4327 = vmatprep.subr.bf16.mxu0 0
        %4328 = vmatpush1.bf16.xpose.msra.mxu0 0
        %4329 = vmatprep.subr.bf16.mxu0 0
        %4330 = vmatpush1.bf16.xpose.msra.mxu0 0
        %4331 = vmatprep.subr.bf16.mxu0 0
        %4332 = vmatpush1.bf16.xpose.msra.mxu0 0
        %4333 = vmatprep.subr.bf16.mxu0 0
        %4334 = vmatpush1.bf16.xpose.msra.mxu0 0
        %4335 = vmatprep.subr.bf16.mxu0 0
        %4336 = vmatpush1.bf16.xpose.msra.mxu0 0
        %4337 = vmatprep.subr.bf16.mxu0 0
        %4338 = vmatpush1.bf16.xpose.msra.mxu0 0
        %4339 = vmatprep.mubr.bf16.mxu0 0
        %4340 = vmatmul.mubr.bf16.gmra.mrb[0].mxu0 %v4284
        %v4341 = vpop.f32.mrb[0].mxu0
        %v4342 = vadd.f32 %v3675, %v4341
        %v4343 = vpop.f32.mrb[0].mxu0
        %v4344 = vpop.f32.mrb[0].mxu0
        %v4345 = vadd.f32 %v3676, %v4344
        %v4346 = vpop.f32.mrb[0].mxu0
        %4347 = vmatprep.mubr.bf16.mxu0 0
        %4348 = vmatmul.mubr.bf16.gmra.mrb[0].mxu0 %v4287
        %v4349 = vpop.f32.mrb[0].mxu0
        %v4350 = vadd.f32 %v3677, %v4349
        %v4351 = vpop.f32.mrb[0].mxu0
        %v4352 = vpop.f32.mrb[0].mxu0
        %v4353 = vadd.f32 %v3678, %v4352
        %v4354 = vpop.f32.mrb[0].mxu0
        %4355 = vmatprep.mubr.bf16.mxu0 0
        %4356 = vmatmul.mubr.bf16.gmra.mrb[0].mxu0 %v4290
        %v4357 = vpop.f32.mrb[0].mxu0
        %v4358 = vadd.f32 %v3679, %v4357
        %v4359 = vpop.f32.mrb[0].mxu0
        %v4360 = vpop.f32.mrb[0].mxu0
        %v4361 = vadd.f32 %v3680, %v4360
        %v4362 = vpop.f32.mrb[0].mxu0
        %4363 = vmatprep.mubr.bf16.mxu0 0
        %4364 = vmatmul.mubr.bf16.gmra.mrb[0].mxu0 %v4293
        %v4365 = vpop.f32.mrb[0].mxu0
        %v4366 = vadd.f32 %v3681, %v4365
        %v4367 = vpop.f32.mrb[0].mxu0
        %v4368 = vpop.f32.mrb[0].mxu0
        %v4369 = vadd.f32 %v3682, %v4368
        %v4370 = vpop.f32.mrb[0].mxu0
        %4371 = vdwg.mxu0
        %v4372 = vsel %vm1245, %v4342, -inf
        %4373 = vmax.xlane.f32.xlu0 %v4372
        %v4374 = vpop.xlane.xlu0 %4373
        %v4375 = vsel %vm1245, %v4345, -inf
        %4376 = vmax.xlane.f32.xlu0 %v4375
        %v4377 = vpop.xlane.xlu0 %4376
        %v4378 = vsel %vm1245, %v4350, -inf
        %4379 = vmax.xlane.f32.xlu0 %v4378
        %v4380 = vpop.xlane.xlu0 %4379
        %v4381 = vsel %vm1245, %v4353, -inf
        %4382 = vmax.xlane.f32.xlu0 %v4381
        %v4383 = vpop.xlane.xlu0 %4382
        %v4384 = vsel %vm1245, %v4358, -inf
        %4385 = vmax.xlane.f32.xlu0 %v4384
        %v4386 = vpop.xlane.xlu0 %4385
        %v4387 = vsel %vm1245, %v4361, -inf
        %4388 = vmax.xlane.f32.xlu0 %v4387
        %v4389 = vpop.xlane.xlu0 %4388
        %v4390 = vsel %vm1245, %v4366, -inf
        %4391 = vmax.xlane.f32.xlu0 %v4390
        %v4392 = vpop.xlane.xlu0 %4391
        %v4393 = vsel %vm1245, %v4369, -inf
        %4394 = vmax.xlane.f32.xlu0 %v4393
        %v4395 = vpop.xlane.xlu0 %4394
        %v4396 = vsub.f32 %v4342, %v4374
        %v4397 = vsub.f32 %v4345, %v4377
        %v4398 = vsub.f32 %v4350, %v4380
        %v4399 = vsub.f32 %v4353, %v4383
        %v4400 = vsub.f32 %v4358, %v4386
        %v4401 = vsub.f32 %v4361, %v4389
        %v4402 = vsub.f32 %v4366, %v4392
        %v4403 = vsub.f32 %v4369, %v4395
        %v4404 = vmul.f32 %v4396, 1.442695
        %v4405 = vpow.pop %v4404
        %v4406 = vmul.f32 %v4397, 1.442695
        %v4407 = vpow.pop %v4406
        %v4408 = vmul.f32 %v4398, 1.442695
        %v4409 = vpow.pop %v4408
        %v4410 = vmul.f32 %v4399, 1.442695
        %v4411 = vpow.pop %v4410
        %v4412 = vmul.f32 %v4400, 1.442695
        %v4413 = vpow.pop %v4412
        %v4414 = vmul.f32 %v4401, 1.442695
        %v4415 = vpow.pop %v4414
        %v4416 = vmul.f32 %v4402, 1.442695
        %v4417 = vpow.pop %v4416
        %v4418 = vmul.f32 %v4403, 1.442695
        %v4419 = vpow.pop %v4418
        %v4420 = vsel %vm1245, %v4405, 0.0
        %4421 = vadd.xlane.f32.xlu0 %v4420
        %v4422 = vpop.xlane.xlu0 %4421
        %v4423 = vsel %vm1245, %v4407, 0.0
        %4424 = vadd.xlane.f32.xlu0 %v4423
        %v4425 = vpop.xlane.xlu0 %4424
        %v4426 = vsel %vm1245, %v4409, 0.0
        %4427 = vadd.xlane.f32.xlu0 %v4426
        %v4428 = vpop.xlane.xlu0 %4427
        %v4429 = vsel %vm1245, %v4411, 0.0
        %4430 = vadd.xlane.f32.xlu0 %v4429
        %v4431 = vpop.xlane.xlu0 %4430
        %v4432 = vsel %vm1245, %v4413, 0.0
        %4433 = vadd.xlane.f32.xlu0 %v4432
        %v4434 = vpop.xlane.xlu0 %4433
        %v4435 = vsel %vm1245, %v4415, 0.0
        %4436 = vadd.xlane.f32.xlu0 %v4435
        %v4437 = vpop.xlane.xlu0 %4436
        %v4438 = vsel %vm1245, %v4417, 0.0
        %4439 = vadd.xlane.f32.xlu0 %v4438
        %v4440 = vpop.xlane.xlu0 %4439
        %v4441 = vsel %vm1245, %v4419, 0.0
        %4442 = vadd.xlane.f32.xlu0 %v4441
        %v4443 = vpop.xlane.xlu0 %4442
        %v4444 = vrcp.pop %v4422
        %v4445 = vrcp.pop %v4425
        %v4446 = vrcp.pop %v4428
        %v4447 = vrcp.pop %v4431
        %v4448 = vrcp.pop %v4434
        %v4449 = vrcp.pop %v4437
        %v4450 = vrcp.pop %v4440
        %v4451 = vrcp.pop %v4443
        %v4452 = vmul.f32 %v4405, %v4444
        %v4453 = vmul.f32 %v4407, %v4445
        %v4454 = vmul.f32 %v4409, %v4446
        %v4455 = vmul.f32 %v4411, %v4447
        %v4456 = vmul.f32 %v4413, %v4448
        %v4457 = vmul.f32 %v4415, %v4449
        %v4458 = vmul.f32 %v4417, %v4450
        %v4459 = vmul.f32 %v4419, %v4451
        %v4460 = vpack.c.bf16 %v4453, %v4452
        %v4461 = vpack.c.bf16 %v4455, %v4454
        %v4462 = vpack.c.bf16 %v4457, %v4456
        %v4463 = vpack.c.bf16 %v4459, %v4458
        %4464 = vrot.lane.b32.xlu0 %v3707, 64
        %v4465 = vpop.permute.xlu0 %4464
        %4466 = vrot.lane.b32.xlu0 %v3708, 64
        %v4467 = vpop.permute.xlu0 %4466
        %4468 = vrot.lane.b32.xlu0 %v3709, 64
        %v4469 = vpop.permute.xlu0 %4468
        %4470 = vrot.lane.b32.xlu0 %v3710, 64
        %v4471 = vpop.permute.xlu0 %4470
        %v4477 = vsel %vm1245, %v4460, 0
        %v4480 = vsel %vm1245, %v4461, 0
        %v4483 = vsel %vm1245, %v4462, 0
        %v4486 = vsel %vm1245, %v4463, 0
        %4488 = vmatprep.subr.bf16.mxu0 0
        %4489 = vmatpush1.bf16.msra.mxu0 %v4465
        %4490 = vmatprep.subr.bf16.mxu0 0
        %4491 = vmatpush1.bf16.msra.mxu0 %v4467
        %4492 = vmatprep.subr.bf16.mxu0 0
        %4493 = vmatpush1.bf16.msra.mxu0 %v4469
        %4494 = vmatprep.subr.bf16.mxu0 0
        %4495 = vmatpush1.bf16.msra.mxu0 %v4471
        %4496 = vmatprep.subr.bf16.mxu0 0
        %4497 = vmatpush1.bf16.msra.mxu0 0
        %4498 = vmatprep.subr.bf16.mxu0 0
        %4499 = vmatpush1.bf16.msra.mxu0 0
        %4500 = vmatprep.subr.bf16.mxu0 0
        %4501 = vmatpush1.bf16.msra.mxu0 0
        %4502 = vmatprep.subr.bf16.mxu0 0
        %4503 = vmatpush1.bf16.msra.mxu0 0
        %4504 = vmatprep.subr.bf16.mxu0 0
        %4505 = vmatpush1.bf16.msra.mxu0 0
        %4506 = vmatprep.subr.bf16.mxu0 0
        %4507 = vmatpush1.bf16.msra.mxu0 0
        %4508 = vmatprep.subr.bf16.mxu0 0
        %4509 = vmatpush1.bf16.msra.mxu0 0
        %4510 = vmatprep.subr.bf16.mxu0 0
        %4511 = vmatpush1.bf16.msra.mxu0 0
        %4512 = vmatprep.subr.bf16.mxu0 0
        %4513 = vmatpush1.bf16.msra.mxu0 0
        %4514 = vmatprep.subr.bf16.mxu0 0
        %4515 = vmatpush1.bf16.msra.mxu0 0
        %4516 = vmatprep.subr.bf16.mxu0 0
        %4517 = vmatpush1.bf16.msra.mxu0 0
        %4518 = vmatprep.subr.bf16.mxu0 0
        %4519 = vmatpush1.bf16.msra.mxu0 0
        %4520 = vmatprep.mubr.bf16.mxu0 0
        %4521 = vmatmul.mubr.bf16.gmra.mrb[0].mxu0 %v4477
        %v4522 = vpop.f32.mrb[0].mxu0
        %v4523 = vadd.f32 0.0, %v4522
        %v4524 = vpop.f32.mrb[0].mxu0
        %v4525 = vpop.f32.mrb[0].mxu0
        %v4526 = vadd.f32 0.0, %v4525
        %v4527 = vpop.f32.mrb[0].mxu0
        %4528 = vmatprep.mubr.bf16.mxu0 0
        %4529 = vmatmul.mubr.bf16.gmra.mrb[0].mxu0 %v4480
        %v4530 = vpop.f32.mrb[0].mxu0
        %v4531 = vadd.f32 0.0, %v4530
        %v4532 = vpop.f32.mrb[0].mxu0
        %v4533 = vpop.f32.mrb[0].mxu0
        %v4534 = vadd.f32 0.0, %v4533
        %v4535 = vpop.f32.mrb[0].mxu0
        %4536 = vmatprep.mubr.bf16.mxu0 0
        %4537 = vmatmul.mubr.bf16.gmra.mrb[0].mxu0 %v4483
        %v4538 = vpop.f32.mrb[0].mxu0
        %v4539 = vadd.f32 0.0, %v4538
        %v4540 = vpop.f32.mrb[0].mxu0
        %v4541 = vpop.f32.mrb[0].mxu0
        %v4542 = vadd.f32 0.0, %v4541
        %v4543 = vpop.f32.mrb[0].mxu0
        %4544 = vmatprep.mubr.bf16.mxu0 0
        %4545 = vmatmul.mubr.bf16.gmra.mrb[0].mxu0 %v4486
        %v4546 = vpop.f32.mrb[0].mxu0
        %v4547 = vadd.f32 0.0, %v4546
        %v4548 = vpop.f32.mrb[0].mxu0
        %v4549 = vpop.f32.mrb[0].mxu0
        %v4550 = vadd.f32 0.0, %v4549
        %v4551 = vpop.f32.mrb[0].mxu0
        %4552 = vdwg.mxu0
        %4553 = vrot.lane.b32.xlu0 %v3699, 32
        %v4554 = vpop.permute.xlu0 %4553
        %4555 = vrot.lane.b32.xlu0 %v3700, 32
        %v4556 = vpop.permute.xlu0 %4555
        %4557 = vrot.lane.b32.xlu0 %v3701, 32
        %v4558 = vpop.permute.xlu0 %4557
        %4559 = vrot.lane.b32.xlu0 %v3702, 32
        %v4560 = vpop.permute.xlu0 %4559
        %4561 = vrot.lane.b32.xlu0 %v3703, 32
        %v4562 = vpop.permute.xlu0 %4561
        %4563 = vrot.lane.b32.xlu0 %v3704, 32
        %v4564 = vpop.permute.xlu0 %4563
        %4565 = vrot.lane.b32.xlu0 %v3705, 32
        %v4566 = vpop.permute.xlu0 %4565
        %4567 = vrot.lane.b32.xlu0 %v3706, 32
        %v4568 = vpop.permute.xlu0 %4567
        %v4570 = vsel %vm1155, %v4554, 0
        %v4573 = vsel %vm1155, %v4556, 0
        %v4576 = vsel %vm1155, %v4558, 0
        %v4579 = vsel %vm1155, %v4560, 0
        %v4582 = vsel %vm1155, %v4562, 0
        %v4585 = vsel %vm1155, %v4564, 0
        %v4588 = vsel %vm1155, %v4566, 0
        %v4591 = vsel %vm1155, %v4568, 0
        %4593 = vmatprep.subr.bf16.mxu0 0
        %4594 = vmatpush1.bf16.xpose.msra.mxu0 %v4582
        %4595 = vmatprep.subr.bf16.mxu0 0
        %4596 = vmatpush1.bf16.xpose.msra.mxu0 %v4585
        %4597 = vmatprep.subr.bf16.mxu0 0
        %4598 = vmatpush1.bf16.xpose.msra.mxu0 %v4588
        %4599 = vmatprep.subr.bf16.mxu0 0
        %4600 = vmatpush1.bf16.xpose.msra.mxu0 %v4591
        %4601 = vmatprep.subr.bf16.mxu0 0
        %4602 = vmatpush1.bf16.xpose.msra.mxu0 0
        %4603 = vmatprep.subr.bf16.mxu0 0
        %4604 = vmatpush1.bf16.xpose.msra.mxu0 0
        %4605 = vmatprep.subr.bf16.mxu0 0
        %4606 = vmatpush1.bf16.xpose.msra.mxu0 0
        %4607 = vmatprep.subr.bf16.mxu0 0
        %4608 = vmatpush1.bf16.xpose.msra.mxu0 0
        %4609 = vmatprep.subr.bf16.mxu0 0
        %4610 = vmatpush1.bf16.xpose.msra.mxu0 0
        %4611 = vmatprep.subr.bf16.mxu0 0
        %4612 = vmatpush1.bf16.xpose.msra.mxu0 0
        %4613 = vmatprep.subr.bf16.mxu0 0
        %4614 = vmatpush1.bf16.xpose.msra.mxu0 0
        %4615 = vmatprep.subr.bf16.mxu0 0
        %4616 = vmatpush1.bf16.xpose.msra.mxu0 0
        %4617 = vmatprep.subr.bf16.mxu0 0
        %4618 = vmatpush1.bf16.xpose.msra.mxu0 0
        %4619 = vmatprep.subr.bf16.mxu0 0
        %4620 = vmatpush1.bf16.xpose.msra.mxu0 0
        %4621 = vmatprep.subr.bf16.mxu0 0
        %4622 = vmatpush1.bf16.xpose.msra.mxu0 0
        %4623 = vmatprep.subr.bf16.mxu0 0
        %4624 = vmatpush1.bf16.xpose.msra.mxu0 0
        %4625 = vmatprep.mubr.bf16.mxu0 0
        %4626 = vmatmul.mubr.bf16.gmra.mrb[0].mxu0 %v4570
        %v4627 = vpop.f32.mrb[0].mxu0
        %v4628 = vadd.f32 %v3683, %v4627
        %v4629 = vpop.f32.mrb[0].mxu0
        %v4630 = vpop.f32.mrb[0].mxu0
        %v4631 = vadd.f32 %v3684, %v4630
        %v4632 = vpop.f32.mrb[0].mxu0
        %4633 = vmatprep.mubr.bf16.mxu0 0
        %4634 = vmatmul.mubr.bf16.gmra.mrb[0].mxu0 %v4573
        %v4635 = vpop.f32.mrb[0].mxu0
        %v4636 = vadd.f32 %v3685, %v4635
        %v4637 = vpop.f32.mrb[0].mxu0
        %v4638 = vpop.f32.mrb[0].mxu0
        %v4639 = vadd.f32 %v3686, %v4638
        %v4640 = vpop.f32.mrb[0].mxu0
        %4641 = vmatprep.mubr.bf16.mxu0 0
        %4642 = vmatmul.mubr.bf16.gmra.mrb[0].mxu0 %v4576
        %v4643 = vpop.f32.mrb[0].mxu0
        %v4644 = vadd.f32 %v3687, %v4643
        %v4645 = vpop.f32.mrb[0].mxu0
        %v4646 = vpop.f32.mrb[0].mxu0
        %v4647 = vadd.f32 %v3688, %v4646
        %v4648 = vpop.f32.mrb[0].mxu0
        %4649 = vmatprep.mubr.bf16.mxu0 0
        %4650 = vmatmul.mubr.bf16.gmra.mrb[0].mxu0 %v4579
        %v4651 = vpop.f32.mrb[0].mxu0
        %v4652 = vadd.f32 %v3689, %v4651
        %v4653 = vpop.f32.mrb[0].mxu0
        %v4654 = vpop.f32.mrb[0].mxu0
        %v4655 = vadd.f32 %v3690, %v4654
        %v4656 = vpop.f32.mrb[0].mxu0
        %4657 = vdwg.mxu0
        %v4658 = vsel %vm1245, %v4628, -inf
        %4659 = vmax.xlane.f32.xlu0 %v4658
        %v4660 = vpop.xlane.xlu0 %4659
        %v4661 = vsel %vm1245, %v4631, -inf
        %4662 = vmax.xlane.f32.xlu0 %v4661
        %v4663 = vpop.xlane.xlu0 %4662
        %v4664 = vsel %vm1245, %v4636, -inf
        %4665 = vmax.xlane.f32.xlu0 %v4664
        %v4666 = vpop.xlane.xlu0 %4665
        %v4667 = vsel %vm1245, %v4639, -inf
        %4668 = vmax.xlane.f32.xlu0 %v4667
        %v4669 = vpop.xlane.xlu0 %4668
        %v4670 = vsel %vm1245, %v4644, -inf
        %4671 = vmax.xlane.f32.xlu0 %v4670
        %v4672 = vpop.xlane.xlu0 %4671
        %v4673 = vsel %vm1245, %v4647, -inf
        %4674 = vmax.xlane.f32.xlu0 %v4673
        %v4675 = vpop.xlane.xlu0 %4674
        %v4676 = vsel %vm1245, %v4652, -inf
        %4677 = vmax.xlane.f32.xlu0 %v4676
        %v4678 = vpop.xlane.xlu0 %4677
        %v4679 = vsel %vm1245, %v4655, -inf
        %4680 = vmax.xlane.f32.xlu0 %v4679
        %v4681 = vpop.xlane.xlu0 %4680
        %v4682 = vsub.f32 %v4628, %v4660
        %v4683 = vsub.f32 %v4631, %v4663
        %v4684 = vsub.f32 %v4636, %v4666
        %v4685 = vsub.f32 %v4639, %v4669
        %v4686 = vsub.f32 %v4644, %v4672
        %v4687 = vsub.f32 %v4647, %v4675
        %v4688 = vsub.f32 %v4652, %v4678
        %v4689 = vsub.f32 %v4655, %v4681
        %v4690 = vmul.f32 %v4682, 1.442695
        %v4691 = vpow.pop %v4690
        %v4692 = vmul.f32 %v4683, 1.442695
        %v4693 = vpow.pop %v4692
        %v4694 = vmul.f32 %v4684, 1.442695
        %v4695 = vpow.pop %v4694
        %v4696 = vmul.f32 %v4685, 1.442695
        %v4697 = vpow.pop %v4696
        %v4698 = vmul.f32 %v4686, 1.442695
        %v4699 = vpow.pop %v4698
        %v4700 = vmul.f32 %v4687, 1.442695
        %v4701 = vpow.pop %v4700
        %v4702 = vmul.f32 %v4688, 1.442695
        %v4703 = vpow.pop %v4702
        %v4704 = vmul.f32 %v4689, 1.442695
        %v4705 = vpow.pop %v4704
        %v4706 = vsel %vm1245, %v4691, 0.0
        %4707 = vadd.xlane.f32.xlu0 %v4706
        %v4708 = vpop.xlane.xlu0 %4707
        %v4709 = vsel %vm1245, %v4693, 0.0
        %4710 = vadd.xlane.f32.xlu0 %v4709
        %v4711 = vpop.xlane.xlu0 %4710
        %v4712 = vsel %vm1245, %v4695, 0.0
        %4713 = vadd.xlane.f32.xlu0 %v4712
        %v4714 = vpop.xlane.xlu0 %4713
        %v4715 = vsel %vm1245, %v4697, 0.0
        %4716 = vadd.xlane.f32.xlu0 %v4715
        %v4717 = vpop.xlane.xlu0 %4716
        %v4718 = vsel %vm1245, %v4699, 0.0
        %4719 = vadd.xlane.f32.xlu0 %v4718
        %v4720 = vpop.xlane.xlu0 %4719
        %v4721 = vsel %vm1245, %v4701, 0.0
        %4722 = vadd.xlane.f32.xlu0 %v4721
        %v4723 = vpop.xlane.xlu0 %4722
        %v4724 = vsel %vm1245, %v4703, 0.0
        %4725 = vadd.xlane.f32.xlu0 %v4724
        %v4726 = vpop.xlane.xlu0 %4725
        %v4727 = vsel %vm1245, %v4705, 0.0
        %4728 = vadd.xlane.f32.xlu0 %v4727
        %v4729 = vpop.xlane.xlu0 %4728
        %v4730 = vrcp.pop %v4708
        %v4731 = vrcp.pop %v4711
        %v4732 = vrcp.pop %v4714
        %v4733 = vrcp.pop %v4717
        %v4734 = vrcp.pop %v4720
        %v4735 = vrcp.pop %v4723
        %v4736 = vrcp.pop %v4726
        %v4737 = vrcp.pop %v4729
        %v4738 = vmul.f32 %v4691, %v4730
        %v4739 = vmul.f32 %v4693, %v4731
        %v4740 = vmul.f32 %v4695, %v4732
        %v4741 = vmul.f32 %v4697, %v4733
        %v4742 = vmul.f32 %v4699, %v4734
        %v4743 = vmul.f32 %v4701, %v4735
        %v4744 = vmul.f32 %v4703, %v4736
        %v4745 = vmul.f32 %v4705, %v4737
        %v4746 = vpack.c.bf16 %v4739, %v4738
        %v4747 = vpack.c.bf16 %v4741, %v4740
        %v4748 = vpack.c.bf16 %v4743, %v4742
        %v4749 = vpack.c.bf16 %v4745, %v4744
        %4750 = vrot.lane.b32.xlu0 %v3707, 32
        %v4751 = vpop.permute.xlu0 %4750
        %4752 = vrot.lane.b32.xlu0 %v3708, 32
        %v4753 = vpop.permute.xlu0 %4752
        %4754 = vrot.lane.b32.xlu0 %v3709, 32
        %v4755 = vpop.permute.xlu0 %4754
        %4756 = vrot.lane.b32.xlu0 %v3710, 32
        %v4757 = vpop.permute.xlu0 %4756
        %v4763 = vsel %vm1245, %v4746, 0
        %v4766 = vsel %vm1245, %v4747, 0
        %v4769 = vsel %vm1245, %v4748, 0
        %v4772 = vsel %vm1245, %v4749, 0
        %4774 = vmatprep.subr.bf16.mxu0 0
        %4775 = vmatpush1.bf16.msra.mxu0 %v4751
        %4776 = vmatprep.subr.bf16.mxu0 0
        %4777 = vmatpush1.bf16.msra.mxu0 %v4753
        %4778 = vmatprep.subr.bf16.mxu0 0
        %4779 = vmatpush1.bf16.msra.mxu0 %v4755
        %4780 = vmatprep.subr.bf16.mxu0 0
        %4781 = vmatpush1.bf16.msra.mxu0 %v4757
        %4782 = vmatprep.subr.bf16.mxu0 0
        %4783 = vmatpush1.bf16.msra.mxu0 0
        %4784 = vmatprep.subr.bf16.mxu0 0
        %4785 = vmatpush1.bf16.msra.mxu0 0
        %4786 = vmatprep.subr.bf16.mxu0 0
        %4787 = vmatpush1.bf16.msra.mxu0 0
        %4788 = vmatprep.subr.bf16.mxu0 0
        %4789 = vmatpush1.bf16.msra.mxu0 0
        %4790 = vmatprep.subr.bf16.mxu0 0
        %4791 = vmatpush1.bf16.msra.mxu0 0
        %4792 = vmatprep.subr.bf16.mxu0 0
        %4793 = vmatpush1.bf16.msra.mxu0 0
        %4794 = vmatprep.subr.bf16.mxu0 0
        %4795 = vmatpush1.bf16.msra.mxu0 0
        %4796 = vmatprep.subr.bf16.mxu0 0
        %4797 = vmatpush1.bf16.msra.mxu0 0
        %4798 = vmatprep.subr.bf16.mxu0 0
        %4799 = vmatpush1.bf16.msra.mxu0 0
        %4800 = vmatprep.subr.bf16.mxu0 0
        %4801 = vmatpush1.bf16.msra.mxu0 0
        %4802 = vmatprep.subr.bf16.mxu0 0
        %4803 = vmatpush1.bf16.msra.mxu0 0
        %4804 = vmatprep.subr.bf16.mxu0 0
        %4805 = vmatpush1.bf16.msra.mxu0 0
        %4806 = vmatprep.mubr.bf16.mxu0 0
        %4807 = vmatmul.mubr.bf16.gmra.mrb[0].mxu0 %v4763
        %v4808 = vpop.f32.mrb[0].mxu0
        %v4809 = vadd.f32 0.0, %v4808
        %v4810 = vpop.f32.mrb[0].mxu0
        %v4811 = vpop.f32.mrb[0].mxu0
        %v4812 = vadd.f32 0.0, %v4811
        %v4813 = vpop.f32.mrb[0].mxu0
        %4814 = vmatprep.mubr.bf16.mxu0 0
        %4815 = vmatmul.mubr.bf16.gmra.mrb[0].mxu0 %v4766
        %v4816 = vpop.f32.mrb[0].mxu0
        %v4817 = vadd.f32 0.0, %v4816
        %v4818 = vpop.f32.mrb[0].mxu0
        %v4819 = vpop.f32.mrb[0].mxu0
        %v4820 = vadd.f32 0.0, %v4819
        %v4821 = vpop.f32.mrb[0].mxu0
        %4822 = vmatprep.mubr.bf16.mxu0 0
        %4823 = vmatmul.mubr.bf16.gmra.mrb[0].mxu0 %v4769
        %v4824 = vpop.f32.mrb[0].mxu0
        %v4825 = vadd.f32 0.0, %v4824
        %v4826 = vpop.f32.mrb[0].mxu0
        %v4827 = vpop.f32.mrb[0].mxu0
        %v4828 = vadd.f32 0.0, %v4827
        %v4829 = vpop.f32.mrb[0].mxu0
        %4830 = vmatprep.mubr.bf16.mxu0 0
        %4831 = vmatmul.mubr.bf16.gmra.mrb[0].mxu0 %v4772
        %v4832 = vpop.f32.mrb[0].mxu0
        %v4833 = vadd.f32 0.0, %v4832
        %v4834 = vpop.f32.mrb[0].mxu0
        %v4835 = vpop.f32.mrb[0].mxu0
        %v4836 = vadd.f32 0.0, %v4835
        %v4837 = vpop.f32.mrb[0].mxu0
        %4838 = vdwg.mxu0
        %4847 = vrot.lane.b32.xlu0 %v4237, 32
        %v4848 = vpop.permute.xlu0 %4847
        %4849 = vrot.lane.b32.xlu0 %v4240, 32
        %v4850 = vpop.permute.xlu0 %4849
        %4851 = vrot.lane.b32.xlu0 %v4245, 32
        %v4852 = vpop.permute.xlu0 %4851
        %4853 = vrot.lane.b32.xlu0 %v4248, 32
        %v4854 = vpop.permute.xlu0 %4853
        %4855 = vrot.lane.b32.xlu0 %v4253, 32
        %v4856 = vpop.permute.xlu0 %4855
        %4857 = vrot.lane.b32.xlu0 %v4256, 32
        %v4858 = vpop.permute.xlu0 %4857
        %4859 = vrot.lane.b32.xlu0 %v4261, 32
        %v4860 = vpop.permute.xlu0 %4859
        %4861 = vrot.lane.b32.xlu0 %v4264, 32
        %v4862 = vpop.permute.xlu0 %4861
        %4879 = vrot.lane.b32.xlu0 %v4523, 64
        %v4880 = vpop.permute.xlu0 %4879
        %4881 = vrot.lane.b32.xlu0 %v4526, 64
        %v4882 = vpop.permute.xlu0 %4881
        %4883 = vrot.lane.b32.xlu0 %v4531, 64
        %v4884 = vpop.permute.xlu0 %4883
        %4885 = vrot.lane.b32.xlu0 %v4534, 64
        %v4886 = vpop.permute.xlu0 %4885
        %4887 = vrot.lane.b32.xlu0 %v4539, 64
        %v4888 = vpop.permute.xlu0 %4887
        %4889 = vrot.lane.b32.xlu0 %v4542, 64
        %v4890 = vpop.permute.xlu0 %4889
        %4891 = vrot.lane.b32.xlu0 %v4547, 64
        %v4892 = vpop.permute.xlu0 %4891
        %4893 = vrot.lane.b32.xlu0 %v4550, 64
        %v4894 = vpop.permute.xlu0 %4893
        %4911 = vrot.lane.b32.xlu0 %v4809, 96
        %v4912 = vpop.permute.xlu0 %4911
        %4913 = vrot.lane.b32.xlu0 %v4812, 96
        %v4914 = vpop.permute.xlu0 %4913
        %4915 = vrot.lane.b32.xlu0 %v4817, 96
        %v4916 = vpop.permute.xlu0 %4915
        %4917 = vrot.lane.b32.xlu0 %v4820, 96
        %v4918 = vpop.permute.xlu0 %4917
        %4919 = vrot.lane.b32.xlu0 %v4825, 96
        %v4920 = vpop.permute.xlu0 %4919
        %4921 = vrot.lane.b32.xlu0 %v4828, 96
        %v4922 = vpop.permute.xlu0 %4921
        %4923 = vrot.lane.b32.xlu0 %v4833, 96
        %v4924 = vpop.permute.xlu0 %4923
        %4925 = vrot.lane.b32.xlu0 %v4836, 96
        %v4926 = vpop.permute.xlu0 %4925
        %v4935 = vsel %vm1155, %v3939, %v4848
        %v4936 = vsel %vm1155, %v3942, %v4850
        %v4937 = vsel %vm1155, %v3947, %v4852
        %v4938 = vsel %vm1155, %v3950, %v4854
        %v4939 = vsel %vm1155, %v3955, %v4856
        %v4940 = vsel %vm1155, %v3958, %v4858
        %v4941 = vsel %vm1155, %v3963, %v4860
        %v4942 = vsel %vm1155, %v3966, %v4862
        %v4943 = vsel %vm1245, %v4935, %v4880
        %v4944 = vsel %vm1245, %v4936, %v4882
        %v4945 = vsel %vm1245, %v4937, %v4884
        %v4946 = vsel %vm1245, %v4938, %v4886
        %v4947 = vsel %vm1245, %v4939, %v4888
        %v4948 = vsel %vm1245, %v4940, %v4890
        %v4949 = vsel %vm1245, %v4941, %v4892
        %v4950 = vsel %vm1245, %v4942, %v4894
        %v4951 = vsel %vm2397, %v4943, %v4912
        %v4952 = vsel %vm2397, %v4944, %v4914
        %v4953 = vsel %vm2397, %v4945, %v4916
        %v4954 = vsel %vm2397, %v4946, %v4918
        %v4955 = vsel %vm2397, %v4947, %v4920
        %v4956 = vsel %vm2397, %v4948, %v4922
        %v4957 = vsel %vm2397, %v4949, %v4924
        %v4958 = vsel %vm2397, %v4950, %v4926
        %v4959 = vpack.c.bf16 %v4952, %v4951
        %v4960 = vpack.c.bf16 %v4954, %v4953
        %v4961 = vpack.c.bf16 %v4956, %v4955
        %v4962 = vpack.c.bf16 %v4958, %v4957
        %s4963 = scalar_lea.vmem [#allocation8], 64
        %v4964 = vld [vmem:[%s4963] sm:$0xf]
        %v4965 = vld [vmem:[%s4963 + $0x4] sm:$0xf]
        %v4966 = vld [vmem:[%s4963 + $0x8] sm:$0xf]
        %v4967 = vld [vmem:[%s4963 + $0xc] sm:$0xf]
        %v4968 = vld [vmem:[%s4963 + $0x10] sm:$0xf]
        %v4969 = vld [vmem:[%s4963 + $0x14] sm:$0xf]
        %v4970 = vld [vmem:[%s4963 + $0x18] sm:$0xf]
        %v4971 = vld [vmem:[%s4963 + $0x1c] sm:$0xf]
        %v4972 = vld [vmem:[%s4963 + $0x20] sm:$0xf]
        %v4973 = vld [vmem:[%s4963 + $0x24] sm:$0xf]
        %v4974 = vld [vmem:[%s4963 + $0x28] sm:$0xf]
        %v4975 = vld [vmem:[%s4963 + $0x2c] sm:$0xf]
        %v4976 = vld [vmem:[%s4963 + $0x30] sm:$0xf]
        %v4977 = vld [vmem:[%s4963 + $0x34] sm:$0xf]
        %v4978 = vld [vmem:[%s4963 + $0x38] sm:$0xf]
        %v4979 = vld [vmem:[%s4963 + $0x3c] sm:$0xf]
        %s4980 = scalar_lea.vmem %s6, 1
        %v4981 = vld [vmem:[%s4980] sm:$0x1]
        %v4983 = vlaneseq
        %v4984 = vshrl.u32 %v4983, 7
        %v4985 = vsub.s32 0, %v4984
        %v4986 = vrot.slane %v4981, %v4985
        %v5004 = vunpack.c.l.b16 %v4964
        %v5005 = vunpack.c.l.b16 %v4965
        %v5006 = vunpack.c.l.b16 %v4966
        %v5007 = vunpack.c.l.b16 %v4967
        %v5008 = vunpack.c.l.b16 %v4968
        %v5009 = vunpack.c.l.b16 %v4969
        %v5010 = vunpack.c.l.b16 %v4970
        %v5011 = vunpack.c.l.b16 %v4971
        %v5012 = vunpack.c.l.b16 %v4972
        %v5013 = vunpack.c.l.b16 %v4973
        %v5014 = vunpack.c.l.b16 %v4974
        %v5015 = vunpack.c.l.b16 %v4975
        %v5016 = vunpack.c.l.b16 %v4976
        %v5017 = vunpack.c.l.b16 %v4977
        %v5018 = vunpack.c.l.b16 %v4978
        %v5019 = vunpack.c.l.b16 %v4979
        %v5020 = vpack.c.b16 %v5005, %v5004
        %v5021 = vpack.c.b16 %v5007, %v5006
        %v5022 = vpack.c.b16 %v5009, %v5008
        %v5023 = vpack.c.b16 %v5011, %v5010
        %v5024 = vpack.c.b16 %v5013, %v5012
        %v5025 = vpack.c.b16 %v5015, %v5014
        %v5026 = vpack.c.b16 %v5017, %v5016
        %v5027 = vpack.c.b16 %v5019, %v5018
        %5036 = vmatprep.subr.bf16.mxu0 0
        %5037 = vmatpush1.bf16.msra.mxu0 %v5020
        %5038 = vmatprep.subr.bf16.mxu0 0
        %5039 = vmatpush1.bf16.msra.mxu0 %v5021
        %5040 = vmatprep.subr.bf16.mxu0 0
        %5041 = vmatpush1.bf16.msra.mxu0 %v5022
        %5042 = vmatprep.subr.bf16.mxu0 0
        %5043 = vmatpush1.bf16.msra.mxu0 %v5023
        %5044 = vmatprep.subr.bf16.mxu0 0
        %5045 = vmatpush1.bf16.msra.mxu0 %v5024
        %5046 = vmatprep.subr.bf16.mxu0 0
        %5047 = vmatpush1.bf16.msra.mxu0 %v5025
        %5048 = vmatprep.subr.bf16.mxu0 0
        %5049 = vmatpush1.bf16.msra.mxu0 %v5026
        %5050 = vmatprep.subr.bf16.mxu0 0
        %5051 = vmatpush1.bf16.msra.mxu0 %v5027
        %5052 = vmatprep.subr.bf16.mxu0 0
        %5053 = vmatpush1.bf16.msra.mxu0 0
        %5054 = vmatprep.subr.bf16.mxu0 0
        %5055 = vmatpush1.bf16.msra.mxu0 0
        %5056 = vmatprep.subr.bf16.mxu0 0
        %5057 = vmatpush1.bf16.msra.mxu0 0
        %5058 = vmatprep.subr.bf16.mxu0 0
        %5059 = vmatpush1.bf16.msra.mxu0 0
        %5060 = vmatprep.subr.bf16.mxu0 0
        %5061 = vmatpush1.bf16.msra.mxu0 0
        %5062 = vmatprep.subr.bf16.mxu0 0
        %5063 = vmatpush1.bf16.msra.mxu0 0
        %5064 = vmatprep.subr.bf16.mxu0 0
        %5065 = vmatpush1.bf16.msra.mxu0 0
        %5066 = vmatprep.subr.bf16.mxu0 0
        %5067 = vmatpush1.bf16.msra.mxu0 0
        %5068 = vmatprep.mubr.bf16.mxu0 0
        %5069 = vmatmul.mubr.bf16.gmra.mrb[0].mxu0 %v4959
        %v5070 = vpop.f32.mrb[0].mxu0
        %v5071 = vadd.f32 %v4986, %v5070
        %v5072 = vpop.f32.mrb[0].mxu0
        %v5073 = vpop.f32.mrb[0].mxu0
        %v5074 = vadd.f32 %v4986, %v5073
        %v5075 = vpop.f32.mrb[0].mxu0
        %5076 = vmatprep.mubr.bf16.mxu0 0
        %5077 = vmatmul.mubr.bf16.gmra.mrb[0].mxu0 %v4960
        %v5078 = vpop.f32.mrb[0].mxu0
        %v5079 = vadd.f32 %v4986, %v5078
        %v5080 = vpop.f32.mrb[0].mxu0
        %v5081 = vpop.f32.mrb[0].mxu0
        %v5082 = vadd.f32 %v4986, %v5081
        %v5083 = vpop.f32.mrb[0].mxu0
        %5084 = vmatprep.mubr.bf16.mxu0 0
        %5085 = vmatmul.mubr.bf16.gmra.mrb[0].mxu0 %v4961
        %v5086 = vpop.f32.mrb[0].mxu0
        %v5087 = vadd.f32 %v4986, %v5086
        %v5088 = vpop.f32.mrb[0].mxu0
        %v5089 = vpop.f32.mrb[0].mxu0
        %v5090 = vadd.f32 %v4986, %v5089
        %v5091 = vpop.f32.mrb[0].mxu0
        %5092 = vmatprep.mubr.bf16.mxu0 0
        %5093 = vmatmul.mubr.bf16.gmra.mrb[0].mxu0 %v4962
        %v5094 = vpop.f32.mrb[0].mxu0
        %v5095 = vadd.f32 %v4986, %v5094
        %v5096 = vpop.f32.mrb[0].mxu0
        %v5097 = vpop.f32.mrb[0].mxu0
        %v5098 = vadd.f32 %v4986, %v5097
        %v5099 = vpop.f32.mrb[0].mxu0
        %5100 = vdwg.mxu0
        %v5101 = vadd.f32 %v3209, %v5071
        %v5102 = vadd.f32 %v3210, %v5074
        %v5103 = vadd.f32 %v3211, %v5079
        %v5104 = vadd.f32 %v3212, %v5082
        %v5105 = vadd.f32 %v3213, %v5087
        %v5106 = vadd.f32 %v3214, %v5090
        %v5107 = vadd.f32 %v3215, %v5095
        %v5108 = vadd.f32 %v3216, %v5098
        %s5109 = scalar_lea.vmem %s8, 1
        %v5110 = vld [vmem:[%s5109] sm:$0x1]
        %s5111 = scalar_lea.vmem %s9, 1
        %v5112 = vld [vmem:[%s5111] sm:$0x1]
        %5113 = vadd.xlane.f32.xlu0 %v5101
        %v5114 = vpop.xlane.xlu0 %5113
        %5115 = vadd.xlane.f32.xlu0 %v5102
        %v5116 = vpop.xlane.xlu0 %5115
        %5117 = vadd.xlane.f32.xlu0 %v5103
        %v5118 = vpop.xlane.xlu0 %5117
        %5119 = vadd.xlane.f32.xlu0 %v5104
        %v5120 = vpop.xlane.xlu0 %5119
        %5121 = vadd.xlane.f32.xlu0 %v5105
        %v5122 = vpop.xlane.xlu0 %5121
        %5123 = vadd.xlane.f32.xlu0 %v5106
        %v5124 = vpop.xlane.xlu0 %5123
        %5125 = vadd.xlane.f32.xlu0 %v5107
        %v5126 = vpop.xlane.xlu0 %5125
        %5127 = vadd.xlane.f32.xlu0 %v5108
        %v5128 = vpop.xlane.xlu0 %5127
        %v5129 = vmul.f32 %v5114, %v683
        %v5130 = vmul.f32 %v5116, %v683
        %v5131 = vmul.f32 %v5118, %v683
        %v5132 = vmul.f32 %v5120, %v683
        %v5133 = vmul.f32 %v5122, %v683
        %v5134 = vmul.f32 %v5124, %v683
        %v5135 = vmul.f32 %v5126, %v683
        %v5136 = vmul.f32 %v5128, %v683
        %v5137 = vsub.f32 %v5101, %v5129
        %v5138 = vsub.f32 %v5102, %v5130
        %v5139 = vsub.f32 %v5103, %v5131
        %v5140 = vsub.f32 %v5104, %v5132
        %v5141 = vsub.f32 %v5105, %v5133
        %v5142 = vsub.f32 %v5106, %v5134
        %v5143 = vsub.f32 %v5107, %v5135
        %v5144 = vsub.f32 %v5108, %v5136
        %v5145 = vmul.f32 %v5137, %v5137
        %v5146 = vmul.f32 %v5138, %v5138
        %v5147 = vmul.f32 %v5139, %v5139
        %v5148 = vmul.f32 %v5140, %v5140
        %v5149 = vmul.f32 %v5141, %v5141
        %v5150 = vmul.f32 %v5142, %v5142
        %v5151 = vmul.f32 %v5143, %v5143
        %v5152 = vmul.f32 %v5144, %v5144
        %5153 = vadd.xlane.f32.xlu0 %v5145
        %v5154 = vpop.xlane.xlu0 %5153
        %5155 = vadd.xlane.f32.xlu0 %v5146
        %v5156 = vpop.xlane.xlu0 %5155
        %5157 = vadd.xlane.f32.xlu0 %v5147
        %v5158 = vpop.xlane.xlu0 %5157
        %5159 = vadd.xlane.f32.xlu0 %v5148
        %v5160 = vpop.xlane.xlu0 %5159
        %5161 = vadd.xlane.f32.xlu0 %v5149
        %v5162 = vpop.xlane.xlu0 %5161
        %5163 = vadd.xlane.f32.xlu0 %v5150
        %v5164 = vpop.xlane.xlu0 %5163
        %5165 = vadd.xlane.f32.xlu0 %v5151
        %v5166 = vpop.xlane.xlu0 %5165
        %5167 = vadd.xlane.f32.xlu0 %v5152
        %v5168 = vpop.xlane.xlu0 %5167
        %v5169 = vmul.f32 %v5154, %v683
        %v5170 = vmul.f32 %v5156, %v683
        %v5171 = vmul.f32 %v5158, %v683
        %v5172 = vmul.f32 %v5160, %v683
        %v5173 = vmul.f32 %v5162, %v683
        %v5174 = vmul.f32 %v5164, %v683
        %v5175 = vmul.f32 %v5166, %v683
        %v5176 = vmul.f32 %v5168, %v683
        %v5177 = vadd.f32 %v5169, 1e-05
        %v5178 = vadd.f32 %v5170, 1e-05
        %v5179 = vadd.f32 %v5171, 1e-05
        %v5180 = vadd.f32 %v5172, 1e-05
        %v5181 = vadd.f32 %v5173, 1e-05
        %v5182 = vadd.f32 %v5174, 1e-05
        %v5183 = vadd.f32 %v5175, 1e-05
        %v5184 = vadd.f32 %v5176, 1e-05
        %v5185 = vrsqrt.pop %v5177
        %v5186 = vrsqrt.pop %v5178
        %v5187 = vrsqrt.pop %v5179
        %v5188 = vrsqrt.pop %v5180
        %v5189 = vrsqrt.pop %v5181
        %v5190 = vrsqrt.pop %v5182
        %v5191 = vrsqrt.pop %v5183
        %v5192 = vrsqrt.pop %v5184
        %v5193 = vmul.f32 %v5137, %v5185
        %v5194 = vmul.f32 %v5138, %v5186
        %v5195 = vmul.f32 %v5139, %v5187
        %v5196 = vmul.f32 %v5140, %v5188
        %v5197 = vmul.f32 %v5141, %v5189
        %v5198 = vmul.f32 %v5142, %v5190
        %v5199 = vmul.f32 %v5143, %v5191
        %v5200 = vmul.f32 %v5144, %v5192
        %v5202 = vlaneseq
        %v5203 = vshrl.u32 %v5202, 7
        %v5204 = vsub.s32 0, %v5203
        %v5205 = vrot.slane %v5110, %v5204
        %v5207 = vmul.f32 %v5193, %v5205
        %v5208 = vmul.f32 %v5194, %v5205
        %v5209 = vmul.f32 %v5195, %v5205
        %v5210 = vmul.f32 %v5196, %v5205
        %v5211 = vmul.f32 %v5197, %v5205
        %v5212 = vmul.f32 %v5198, %v5205
        %v5213 = vmul.f32 %v5199, %v5205
        %v5214 = vmul.f32 %v5200, %v5205
        %v5216 = vlaneseq
        %v5217 = vshrl.u32 %v5216, 7
        %v5218 = vsub.s32 0, %v5217
        %v5219 = vrot.slane %v5112, %v5218
        %v5221 = vadd.f32 %v5207, %v5219
        %v5222 = vadd.f32 %v5208, %v5219
        %v5223 = vadd.f32 %v5209, %v5219
        %v5224 = vadd.f32 %v5210, %v5219
        %v5225 = vadd.f32 %v5211, %v5219
        %v5226 = vadd.f32 %v5212, %v5219
        %v5227 = vadd.f32 %v5213, %v5219
        %v5228 = vadd.f32 %v5214, %v5219
        %v5229 = vpack.c.bf16 %v5222, %v5221
        %v5230 = vpack.c.bf16 %v5224, %v5223
        %v5231 = vpack.c.bf16 %v5226, %v5225
        %v5232 = vpack.c.bf16 %v5228, %v5227
        %s5233 = scalar_lea.vmem [#allocation11], 128
        %v5234 = vld [vmem:[%s5233] sm:$0xff]
        %v5235 = vld [vmem:[%s5233 + $0x8] sm:$0xff]
        %v5236 = vld [vmem:[%s5233 + $0x10] sm:$0xff]
        %v5237 = vld [vmem:[%s5233 + $0x18] sm:$0xff]
        %v5238 = vld [vmem:[%s5233 + $0x20] sm:$0xff]
        %v5239 = vld [vmem:[%s5233 + $0x28] sm:$0xff]
        %v5240 = vld [vmem:[%s5233 + $0x30] sm:$0xff]
        %v5241 = vld [vmem:[%s5233 + $0x38] sm:$0xff]
        %v5242 = vld [vmem:[%s5233 + $0x40] sm:$0xff]
        %v5243 = vld [vmem:[%s5233 + $0x48] sm:$0xff]
        %v5244 = vld [vmem:[%s5233 + $0x50] sm:$0xff]
        %v5245 = vld [vmem:[%s5233 + $0x58] sm:$0xff]
        %v5246 = vld [vmem:[%s5233 + $0x60] sm:$0xff]
        %v5247 = vld [vmem:[%s5233 + $0x68] sm:$0xff]
        %v5248 = vld [vmem:[%s5233 + $0x70] sm:$0xff]
        %v5249 = vld [vmem:[%s5233 + $0x78] sm:$0xff]
        %s5250 = scalar_lea.vmem [#allocation12], 2
        %v5251 = vld [vmem:[%s5250] sm:$0x3]
        %v5253 = vlaneseq
        %v5254 = vshrl.u32 %v5253, 7
        %v5255 = vsub.s32 0, %v5254
        %v5256 = vrot.slane %v5251, %v5255
        %v5257 = vlaneseq
        %v5258 = vshrl.u32 %v5257, 7
        %v5259 = vsub.s32 1, %v5258
        %v5260 = vrot.slane %v5251, %v5259
        %v5279 = vunpack.c.l.b16 %v5234
        %v5280 = vunpack.c.h.b16 %v5234
        %v5281 = vunpack.c.l.b16 %v5235
        %v5282 = vunpack.c.h.b16 %v5235
        %v5283 = vunpack.c.l.b16 %v5236
        %v5284 = vunpack.c.h.b16 %v5236
        %v5285 = vunpack.c.l.b16 %v5237
        %v5286 = vunpack.c.h.b16 %v5237
        %v5287 = vunpack.c.l.b16 %v5238
        %v5288 = vunpack.c.h.b16 %v5238
        %v5289 = vunpack.c.l.b16 %v5239
        %v5290 = vunpack.c.h.b16 %v5239
        %v5291 = vunpack.c.l.b16 %v5240
        %v5292 = vunpack.c.h.b16 %v5240
        %v5293 = vunpack.c.l.b16 %v5241
        %v5294 = vunpack.c.h.b16 %v5241
        %v5295 = vunpack.c.l.b16 %v5242
        %v5296 = vunpack.c.h.b16 %v5242
        %v5297 = vunpack.c.l.b16 %v5243
        %v5298 = vunpack.c.h.b16 %v5243
        %v5299 = vunpack.c.l.b16 %v5244
        %v5300 = vunpack.c.h.b16 %v5244
        %v5301 = vunpack.c.l.b16 %v5245
        %v5302 = vunpack.c.h.b16 %v5245
        %v5303 = vunpack.c.l.b16 %v5246
        %v5304 = vunpack.c.h.b16 %v5246
        %v5305 = vunpack.c.l.b16 %v5247
        %v5306 = vunpack.c.h.b16 %v5247
        %v5307 = vunpack.c.l.b16 %v5248
        %v5308 = vunpack.c.h.b16 %v5248
        %v5309 = vunpack.c.l.b16 %v5249
        %v5310 = vunpack.c.h.b16 %v5249
        %v5311 = vpack.c.b16 %v5281, %v5279
        %v5312 = vpack.c.b16 %v5282, %v5280
        %v5313 = vpack.c.b16 %v5285, %v5283
        %v5314 = vpack.c.b16 %v5286, %v5284
        %v5315 = vpack.c.b16 %v5289, %v5287
        %v5316 = vpack.c.b16 %v5290, %v5288
        %v5317 = vpack.c.b16 %v5293, %v5291
        %v5318 = vpack.c.b16 %v5294, %v5292
        %v5319 = vpack.c.b16 %v5297, %v5295
        %v5320 = vpack.c.b16 %v5298, %v5296
        %v5321 = vpack.c.b16 %v5301, %v5299
        %v5322 = vpack.c.b16 %v5302, %v5300
        %v5323 = vpack.c.b16 %v5305, %v5303
        %v5324 = vpack.c.b16 %v5306, %v5304
        %v5325 = vpack.c.b16 %v5309, %v5307
        %v5326 = vpack.c.b16 %v5310, %v5308
        %5343 = vmatprep.subr.bf16.mxu0 %v5312
        %5344 = vmatpush1.bf16.msra.mxu0 %v5311
        %5345 = vmatprep.subr.bf16.mxu0 %v5314
        %5346 = vmatpush1.bf16.msra.mxu0 %v5313
        %5347 = vmatprep.subr.bf16.mxu0 %v5316
        %5348 = vmatpush1.bf16.msra.mxu0 %v5315
        %5349 = vmatprep.subr.bf16.mxu0 %v5318
        %5350 = vmatpush1.bf16.msra.mxu0 %v5317
        %5351 = vmatprep.subr.bf16.mxu0 %v5320
        %5352 = vmatpush1.bf16.msra.mxu0 %v5319
        %5353 = vmatprep.subr.bf16.mxu0 %v5322
        %5354 = vmatpush1.bf16.msra.mxu0 %v5321
        %5355 = vmatprep.subr.bf16.mxu0 %v5324
        %5356 = vmatpush1.bf16.msra.mxu0 %v5323
        %5357 = vmatprep.subr.bf16.mxu0 %v5326
        %5358 = vmatpush1.bf16.msra.mxu0 %v5325
        %5359 = vmatprep.subr.bf16.mxu0 0
        %5360 = vmatpush1.bf16.msra.mxu0 0
        %5361 = vmatprep.subr.bf16.mxu0 0
        %5362 = vmatpush1.bf16.msra.mxu0 0
        %5363 = vmatprep.subr.bf16.mxu0 0
        %5364 = vmatpush1.bf16.msra.mxu0 0
        %5365 = vmatprep.subr.bf16.mxu0 0
        %5366 = vmatpush1.bf16.msra.mxu0 0
        %5367 = vmatprep.subr.bf16.mxu0 0
        %5368 = vmatpush1.bf16.msra.mxu0 0
        %5369 = vmatprep.subr.bf16.mxu0 0
        %5370 = vmatpush1.bf16.msra.mxu0 0
        %5371 = vmatprep.subr.bf16.mxu0 0
        %5372 = vmatpush1.bf16.msra.mxu0 0
        %5373 = vmatprep.subr.bf16.mxu0 0
        %5374 = vmatpush1.bf16.msra.mxu0 0
        %5375 = vmatprep.mubr.bf16.mxu0 0
        %5376 = vmatmul.mubr.bf16.gmra.mrb[0].mxu0 %v5229
        %v5377 = vpop.f32.mrb[0].mxu0
        %v5378 = vadd.f32 %v5256, %v5377
        %v5379 = vpop.f32.mrb[0].mxu0
        %v5380 = vadd.f32 %v5260, %v5379
        %v5381 = vpop.f32.mrb[0].mxu0
        %v5382 = vadd.f32 %v5256, %v5381
        %v5383 = vpop.f32.mrb[0].mxu0
        %v5384 = vadd.f32 %v5260, %v5383
        %5385 = vmatprep.mubr.bf16.mxu0 0
        %5386 = vmatmul.mubr.bf16.gmra.mrb[0].mxu0 %v5230
        %v5387 = vpop.f32.mrb[0].mxu0
        %v5388 = vadd.f32 %v5256, %v5387
        %v5389 = vpop.f32.mrb[0].mxu0
        %v5390 = vadd.f32 %v5260, %v5389
        %v5391 = vpop.f32.mrb[0].mxu0
        %v5392 = vadd.f32 %v5256, %v5391
        %v5393 = vpop.f32.mrb[0].mxu0
        %v5394 = vadd.f32 %v5260, %v5393
        %5395 = vmatprep.mubr.bf16.mxu0 0
        %5396 = vmatmul.mubr.bf16.gmra.mrb[0].mxu0 %v5231
        %v5397 = vpop.f32.mrb[0].mxu0
        %v5398 = vadd.f32 %v5256, %v5397
        %v5399 = vpop.f32.mrb[0].mxu0
        %v5400 = vadd.f32 %v5260, %v5399
        %v5401 = vpop.f32.mrb[0].mxu0
        %v5402 = vadd.f32 %v5256, %v5401
        %v5403 = vpop.f32.mrb[0].mxu0
        %v5404 = vadd.f32 %v5260, %v5403
        %5405 = vmatprep.mubr.bf16.mxu0 0
        %5406 = vmatmul.mubr.bf16.gmra.mrb[0].mxu0 %v5232
        %v5407 = vpop.f32.mrb[0].mxu0
        %v5408 = vadd.f32 %v5256, %v5407
        %v5409 = vpop.f32.mrb[0].mxu0
        %v5410 = vadd.f32 %v5260, %v5409
        %v5411 = vpop.f32.mrb[0].mxu0
        %v5412 = vadd.f32 %v5256, %v5411
        %v5413 = vpop.f32.mrb[0].mxu0
        %v5414 = vadd.f32 %v5260, %v5413
        %5415 = vdwg.mxu0
        %v5416 = vmul.f32 %v5378, 0.5
        %v5417 = vmul.f32 %v5380, 0.5
        %v5418 = vmul.f32 %v5382, 0.5
        %v5419 = vmul.f32 %v5384, 0.5
        %v5420 = vmul.f32 %v5388, 0.5
        %v5421 = vmul.f32 %v5390, 0.5
        %v5422 = vmul.f32 %v5392, 0.5
        %v5423 = vmul.f32 %v5394, 0.5
        %v5424 = vmul.f32 %v5398, 0.5
        %v5425 = vmul.f32 %v5400, 0.5
        %v5426 = vmul.f32 %v5402, 0.5
        %v5427 = vmul.f32 %v5404, 0.5
        %v5428 = vmul.f32 %v5408, 0.5
        %v5429 = vmul.f32 %v5410, 0.5
        %v5430 = vmul.f32 %v5412, 0.5
        %v5431 = vmul.f32 %v5414, 0.5
        %v5432 = vmul.f32 %v5378, 0.044715
        %v5433 = vmul.f32 %v5380, 0.044715
        %v5434 = vmul.f32 %v5382, 0.044715
        %v5435 = vmul.f32 %v5384, 0.044715
        %v5436 = vmul.f32 %v5388, 0.044715
        %v5437 = vmul.f32 %v5390, 0.044715
        %v5438 = vmul.f32 %v5392, 0.044715
        %v5439 = vmul.f32 %v5394, 0.044715
        %v5440 = vmul.f32 %v5398, 0.044715
        %v5441 = vmul.f32 %v5400, 0.044715
        %v5442 = vmul.f32 %v5402, 0.044715
        %v5443 = vmul.f32 %v5404, 0.044715
        %v5444 = vmul.f32 %v5408, 0.044715
        %v5445 = vmul.f32 %v5410, 0.044715
        %v5446 = vmul.f32 %v5412, 0.044715
        %v5447 = vmul.f32 %v5414, 0.044715
        %v5448 = vmul.f32 %v5432, %v5378
        %v5449 = vmul.f32 %v5433, %v5380
        %v5450 = vmul.f32 %v5434, %v5382
        %v5451 = vmul.f32 %v5435, %v5384
        %v5452 = vmul.f32 %v5436, %v5388
        %v5453 = vmul.f32 %v5437, %v5390
        %v5454 = vmul.f32 %v5438, %v5392
        %v5455 = vmul.f32 %v5439, %v5394
        %v5456 = vmul.f32 %v5440, %v5398
        %v5457 = vmul.f32 %v5441, %v5400
        %v5458 = vmul.f32 %v5442, %v5402
        %v5459 = vmul.f32 %v5443, %v5404
        %v5460 = vmul.f32 %v5444, %v5408
        %v5461 = vmul.f32 %v5445, %v5410
        %v5462 = vmul.f32 %v5446, %v5412
        %v5463 = vmul.f32 %v5447, %v5414
        %v5464 = vmul.f32 %v5448, %v5378
        %v5465 = vmul.f32 %v5449, %v5380
        %v5466 = vmul.f32 %v5450, %v5382
        %v5467 = vmul.f32 %v5451, %v5384
        %v5468 = vmul.f32 %v5452, %v5388
        %v5469 = vmul.f32 %v5453, %v5390
        %v5470 = vmul.f32 %v5454, %v5392
        %v5471 = vmul.f32 %v5455, %v5394
        %v5472 = vmul.f32 %v5456, %v5398
        %v5473 = vmul.f32 %v5457, %v5400
        %v5474 = vmul.f32 %v5458, %v5402
        %v5475 = vmul.f32 %v5459, %v5404
        %v5476 = vmul.f32 %v5460, %v5408
        %v5477 = vmul.f32 %v5461, %v5410
        %v5478 = vmul.f32 %v5462, %v5412
        %v5479 = vmul.f32 %v5463, %v5414
        %v5480 = vadd.f32 %v5378, %v5464
        %v5481 = vadd.f32 %v5380, %v5465
        %v5482 = vadd.f32 %v5382, %v5466
        %v5483 = vadd.f32 %v5384, %v5467
        %v5484 = vadd.f32 %v5388, %v5468
        %v5485 = vadd.f32 %v5390, %v5469
        %v5486 = vadd.f32 %v5392, %v5470
        %v5487 = vadd.f32 %v5394, %v5471
        %v5488 = vadd.f32 %v5398, %v5472
        %v5489 = vadd.f32 %v5400, %v5473
        %v5490 = vadd.f32 %v5402, %v5474
        %v5491 = vadd.f32 %v5404, %v5475
        %v5492 = vadd.f32 %v5408, %v5476
        %v5493 = vadd.f32 %v5410, %v5477
        %v5494 = vadd.f32 %v5412, %v5478
        %v5495 = vadd.f32 %v5414, %v5479
        %v5496 = vmul.f32 %v5480, 0.7978846
        %v5497 = vmul.f32 %v5481, 0.7978846
        %v5498 = vmul.f32 %v5482, 0.7978846
        %v5499 = vmul.f32 %v5483, 0.7978846
        %v5500 = vmul.f32 %v5484, 0.7978846
        %v5501 = vmul.f32 %v5485, 0.7978846
        %v5502 = vmul.f32 %v5486, 0.7978846
        %v5503 = vmul.f32 %v5487, 0.7978846
        %v5504 = vmul.f32 %v5488, 0.7978846
        %v5505 = vmul.f32 %v5489, 0.7978846
        %v5506 = vmul.f32 %v5490, 0.7978846
        %v5507 = vmul.f32 %v5491, 0.7978846
        %v5508 = vmul.f32 %v5492, 0.7978846
        %v5509 = vmul.f32 %v5493, 0.7978846
        %v5510 = vmul.f32 %v5494, 0.7978846
        %v5511 = vmul.f32 %v5495, 0.7978846
        %v5512 = vtanh.pop %v5496
        %v5513 = vtanh.pop %v5497
        %v5514 = vtanh.pop %v5498
        %v5515 = vtanh.pop %v5499
        %v5516 = vtanh.pop %v5500
        %v5517 = vtanh.pop %v5501
        %v5518 = vtanh.pop %v5502
        %v5519 = vtanh.pop %v5503
        %v5520 = vtanh.pop %v5504
        %v5521 = vtanh.pop %v5505
        %v5522 = vtanh.pop %v5506
        %v5523 = vtanh.pop %v5507
        %v5524 = vtanh.pop %v5508
        %v5525 = vtanh.pop %v5509
        %v5526 = vtanh.pop %v5510
        %v5527 = vtanh.pop %v5511
        %v5528 = vadd.f32 %v5512, 1.0
        %v5529 = vadd.f32 %v5513, 1.0
        %v5530 = vadd.f32 %v5514, 1.0
        %v5531 = vadd.f32 %v5515, 1.0
        %v5532 = vadd.f32 %v5516, 1.0
        %v5533 = vadd.f32 %v5517, 1.0
        %v5534 = vadd.f32 %v5518, 1.0
        %v5535 = vadd.f32 %v5519, 1.0
        %v5536 = vadd.f32 %v5520, 1.0
        %v5537 = vadd.f32 %v5521, 1.0
        %v5538 = vadd.f32 %v5522, 1.0
        %v5539 = vadd.f32 %v5523, 1.0
        %v5540 = vadd.f32 %v5524, 1.0
        %v5541 = vadd.f32 %v5525, 1.0
        %v5542 = vadd.f32 %v5526, 1.0
        %v5543 = vadd.f32 %v5527, 1.0
        %v5544 = vmul.f32 %v5416, %v5528
        %v5545 = vmul.f32 %v5417, %v5529
        %v5546 = vmul.f32 %v5418, %v5530
        %v5547 = vmul.f32 %v5419, %v5531
        %v5548 = vmul.f32 %v5420, %v5532
        %v5549 = vmul.f32 %v5421, %v5533
        %v5550 = vmul.f32 %v5422, %v5534
        %v5551 = vmul.f32 %v5423, %v5535
        %v5552 = vmul.f32 %v5424, %v5536
        %v5553 = vmul.f32 %v5425, %v5537
        %v5554 = vmul.f32 %v5426, %v5538
        %v5555 = vmul.f32 %v5427, %v5539
        %v5556 = vmul.f32 %v5428, %v5540
        %v5557 = vmul.f32 %v5429, %v5541
        %v5558 = vmul.f32 %v5430, %v5542
        %v5559 = vmul.f32 %v5431, %v5543
        %v5560 = vpack.c.bf16 %v5546, %v5544
        %v5561 = vpack.c.bf16 %v5547, %v5545
        %v5562 = vpack.c.bf16 %v5550, %v5548
        %v5563 = vpack.c.bf16 %v5551, %v5549
        %v5564 = vpack.c.bf16 %v5554, %v5552
        %v5565 = vpack.c.bf16 %v5555, %v5553
        %v5566 = vpack.c.bf16 %v5558, %v5556
        %v5567 = vpack.c.bf16 %v5559, %v5557
        %s5568 = scalar_lea.vmem [#allocation14], 128
        %v5569 = vld [vmem:[%s5568] sm:$0xf]
        %v5570 = vld [vmem:[%s5568 + $0x4] sm:$0xf]
        %v5571 = vld [vmem:[%s5568 + $0x8] sm:$0xf]
        %v5572 = vld [vmem:[%s5568 + $0xc] sm:$0xf]
        %v5573 = vld [vmem:[%s5568 + $0x10] sm:$0xf]
        %v5574 = vld [vmem:[%s5568 + $0x14] sm:$0xf]
        %v5575 = vld [vmem:[%s5568 + $0x18] sm:$0xf]
        %v5576 = vld [vmem:[%s5568 + $0x1c] sm:$0xf]
        %v5577 = vld [vmem:[%s5568 + $0x20] sm:$0xf]
        %v5578 = vld [vmem:[%s5568 + $0x24] sm:$0xf]
        %v5579 = vld [vmem:[%s5568 + $0x28] sm:$0xf]
        %v5580 = vld [vmem:[%s5568 + $0x2c] sm:$0xf]
        %v5581 = vld [vmem:[%s5568 + $0x30] sm:$0xf]
        %v5582 = vld [vmem:[%s5568 + $0x34] sm:$0xf]
        %v5583 = vld [vmem:[%s5568 + $0x38] sm:$0xf]
        %v5584 = vld [vmem:[%s5568 + $0x3c] sm:$0xf]
        %v5585 = vld [vmem:[%s5568 + $0x40] sm:$0xf]
        %v5586 = vld [vmem:[%s5568 + $0x44] sm:$0xf]
        %v5587 = vld [vmem:[%s5568 + $0x48] sm:$0xf]
        %v5588 = vld [vmem:[%s5568 + $0x4c] sm:$0xf]
        %v5589 = vld [vmem:[%s5568 + $0x50] sm:$0xf]
        %v5590 = vld [vmem:[%s5568 + $0x54] sm:$0xf]
        %v5591 = vld [vmem:[%s5568 + $0x58] sm:$0xf]
        %v5592 = vld [vmem:[%s5568 + $0x5c] sm:$0xf]
        %v5593 = vld [vmem:[%s5568 + $0x60] sm:$0xf]
        %v5594 = vld [vmem:[%s5568 + $0x64] sm:$0xf]
        %v5595 = vld [vmem:[%s5568 + $0x68] sm:$0xf]
        %v5596 = vld [vmem:[%s5568 + $0x6c] sm:$0xf]
        %v5597 = vld [vmem:[%s5568 + $0x70] sm:$0xf]
        %v5598 = vld [vmem:[%s5568 + $0x74] sm:$0xf]
        %v5599 = vld [vmem:[%s5568 + $0x78] sm:$0xf]
        %v5600 = vld [vmem:[%s5568 + $0x7c] sm:$0xf]
        %s5601 = scalar_lea.vmem [#allocation15], 1
        %v5602 = vld [vmem:[%s5601] sm:$0x1]
        %v5604 = vlaneseq
        %v5605 = vshrl.u32 %v5604, 7
        %v5606 = vsub.s32 0, %v5605
        %v5607 = vrot.slane %v5602, %v5606
        %v5641 = vunpack.c.l.b16 %v5569
        %v5642 = vunpack.c.l.b16 %v5570
        %v5643 = vunpack.c.l.b16 %v5571
        %v5644 = vunpack.c.l.b16 %v5572
        %v5645 = vunpack.c.l.b16 %v5573
        %v5646 = vunpack.c.l.b16 %v5574
        %v5647 = vunpack.c.l.b16 %v5575
        %v5648 = vunpack.c.l.b16 %v5576
        %v5649 = vunpack.c.l.b16 %v5577
        %v5650 = vunpack.c.l.b16 %v5578
        %v5651 = vunpack.c.l.b16 %v5579
        %v5652 = vunpack.c.l.b16 %v5580
        %v5653 = vunpack.c.l.b16 %v5581
        %v5654 = vunpack.c.l.b16 %v5582
        %v5655 = vunpack.c.l.b16 %v5583
        %v5656 = vunpack.c.l.b16 %v5584
        %v5657 = vunpack.c.l.b16 %v5585
        %v5658 = vunpack.c.l.b16 %v5586
        %v5659 = vunpack.c.l.b16 %v5587
        %v5660 = vunpack.c.l.b16 %v5588
        %v5661 = vunpack.c.l.b16 %v5589
        %v5662 = vunpack.c.l.b16 %v5590
        %v5663 = vunpack.c.l.b16 %v5591
        %v5664 = vunpack.c.l.b16 %v5592
        %v5665 = vunpack.c.l.b16 %v5593
        %v5666 = vunpack.c.l.b16 %v5594
        %v5667 = vunpack.c.l.b16 %v5595
        %v5668 = vunpack.c.l.b16 %v5596
        %v5669 = vunpack.c.l.b16 %v5597
        %v5670 = vunpack.c.l.b16 %v5598
        %v5671 = vunpack.c.l.b16 %v5599
        %v5672 = vunpack.c.l.b16 %v5600
        %v5673 = vpack.c.b16 %v5642, %v5641
        %v5674 = vpack.c.b16 %v5644, %v5643
        %v5675 = vpack.c.b16 %v5646, %v5645
        %v5676 = vpack.c.b16 %v5648, %v5647
        %v5677 = vpack.c.b16 %v5650, %v5649
        %v5678 = vpack.c.b16 %v5652, %v5651
        %v5679 = vpack.c.b16 %v5654, %v5653
        %v5680 = vpack.c.b16 %v5656, %v5655
        %v5681 = vpack.c.b16 %v5658, %v5657
        %v5682 = vpack.c.b16 %v5660, %v5659
        %v5683 = vpack.c.b16 %v5662, %v5661
        %v5684 = vpack.c.b16 %v5664, %v5663
        %v5685 = vpack.c.b16 %v5666, %v5665
        %v5686 = vpack.c.b16 %v5668, %v5667
        %v5687 = vpack.c.b16 %v5670, %v5669
        %v5688 = vpack.c.b16 %v5672, %v5671
        %5705 = vmatprep.subr.bf16.mxu0 0
        %5706 = vmatpush1.bf16.msra.mxu0 %v5673
        %5707 = vmatprep.subr.bf16.mxu0 0
        %5708 = vmatpush1.bf16.msra.mxu0 %v5674
        %5709 = vmatprep.subr.bf16.mxu0 0
        %5710 = vmatpush1.bf16.msra.mxu0 %v5675
        %5711 = vmatprep.subr.bf16.mxu0 0
        %5712 = vmatpush1.bf16.msra.mxu0 %v5676
        %5713 = vmatprep.subr.bf16.mxu0 0
        %5714 = vmatpush1.bf16.msra.mxu0 %v5677
        %5715 = vmatprep.subr.bf16.mxu0 0
        %5716 = vmatpush1.bf16.msra.mxu0 %v5678
        %5717 = vmatprep.subr.bf16.mxu0 0
        %5718 = vmatpush1.bf16.msra.mxu0 %v5679
        %5719 = vmatprep.subr.bf16.mxu0 0
        %5720 = vmatpush1.bf16.msra.mxu0 %v5680
        %5721 = vmatprep.subr.bf16.mxu0 0
        %5722 = vmatpush1.bf16.msra.mxu0 %v5681
        %5723 = vmatprep.subr.bf16.mxu0 0
        %5724 = vmatpush1.bf16.msra.mxu0 %v5682
        %5725 = vmatprep.subr.bf16.mxu0 0
        %5726 = vmatpush1.bf16.msra.mxu0 %v5683
        %5727 = vmatprep.subr.bf16.mxu0 0
        %5728 = vmatpush1.bf16.msra.mxu0 %v5684
        %5729 = vmatprep.subr.bf16.mxu0 0
        %5730 = vmatpush1.bf16.msra.mxu0 %v5685
        %5731 = vmatprep.subr.bf16.mxu0 0
        %5732 = vmatpush1.bf16.msra.mxu0 %v5686
        %5733 = vmatprep.subr.bf16.mxu0 0
        %5734 = vmatpush1.bf16.msra.mxu0 %v5687
        %5735 = vmatprep.subr.bf16.mxu0 0
        %5736 = vmatpush1.bf16.msra.mxu0 %v5688
        %5737 = vmatprep.mubr.bf16.mxu0 %v5561
        %5738 = vmatmul.mubr.bf16.gmra.mrb[0].mxu0 %v5560
        %v5739 = vpop.f32.mrb[0].mxu0
        %v5740 = vadd.f32 %v5607, %v5739
        %v5741 = vpop.f32.mrb[0].mxu0
        %v5742 = vpop.f32.mrb[0].mxu0
        %v5743 = vadd.f32 %v5607, %v5742
        %v5744 = vpop.f32.mrb[0].mxu0
        %5745 = vmatprep.mubr.bf16.mxu0 %v5563
        %5746 = vmatmul.mubr.bf16.gmra.mrb[0].mxu0 %v5562
        %v5747 = vpop.f32.mrb[0].mxu0
        %v5748 = vadd.f32 %v5607, %v5747
        %v5749 = vpop.f32.mrb[0].mxu0
        %v5750 = vpop.f32.mrb[0].mxu0
        %v5751 = vadd.f32 %v5607, %v5750
        %v5752 = vpop.f32.mrb[0].mxu0
        %5753 = vmatprep.mubr.bf16.mxu0 %v5565
        %5754 = vmatmul.mubr.bf16.gmra.mrb[0].mxu0 %v5564
        %v5755 = vpop.f32.mrb[0].mxu0
        %v5756 = vadd.f32 %v5607, %v5755
        %v5757 = vpop.f32.mrb[0].mxu0
        %v5758 = vpop.f32.mrb[0].mxu0
        %v5759 = vadd.f32 %v5607, %v5758
        %v5760 = vpop.f32.mrb[0].mxu0
        %5761 = vmatprep.mubr.bf16.mxu0 %v5567
        %5762 = vmatmul.mubr.bf16.gmra.mrb[0].mxu0 %v5566
        %v5763 = vpop.f32.mrb[0].mxu0
        %v5764 = vadd.f32 %v5607, %v5763
        %v5765 = vpop.f32.mrb[0].mxu0
        %v5766 = vpop.f32.mrb[0].mxu0
        %v5767 = vadd.f32 %v5607, %v5766
        %v5768 = vpop.f32.mrb[0].mxu0
        %5769 = vdwg.mxu0
        %v5770 = vadd.f32 %v5101, %v5740
        %v5771 = vadd.f32 %v5102, %v5743
        %v5772 = vadd.f32 %v5103, %v5748
        %v5773 = vadd.f32 %v5104, %v5751
        %v5774 = vadd.f32 %v5105, %v5756
        %v5775 = vadd.f32 %v5106, %v5759
        %v5776 = vadd.f32 %v5107, %v5764
        %v5777 = vadd.f32 %v5108, %v5767
        %5778 = vst [vmem:[#allocation2] sm:$0xff] 0.0
        %5779 = vst [vmem:[#allocation2 + $0x8] sm:$0x3] 0.0
        %5780 = vst [vmem:[#allocation2 + $0x10] sm:$0xff] 0.0
        %5781 = vst [vmem:[#allocation2 + $0x18] sm:$0x3] 0.0
        %5782 = vst [vmem:[#allocation2 + $0x20] sm:$0xff] 0.0
        %5783 = vst [vmem:[#allocation2 + $0x28] sm:$0x3] 0.0
        %5784 = vst [vmem:[#allocation2 + $0x30] sm:$0xff] 0.0
        %5785 = vst [vmem:[#allocation2 + $0x38] sm:$0x3] 0.0
        %5786 = vst [vmem:[#allocation2 + $0x40] sm:$0xff] 0.0
        %5787 = vst [vmem:[#allocation2 + $0x48] sm:$0x3] 0.0
        %5788 = vst [vmem:[#allocation2 + $0x50] sm:$0xff] 0.0
        %5789 = vst [vmem:[#allocation2 + $0x58] sm:$0x3] 0.0
        %5790 = vst [vmem:[#allocation2 + $0x60] sm:$0xff] 0.0
        %5791 = vst [vmem:[#allocation2 + $0x68] sm:$0x3] 0.0
        %5792 = vst [vmem:[#allocation2 + $0x70] sm:$0xff] 0.0
        %5793 = vst [vmem:[#allocation2 + $0x78] sm:$0x3] 0.0
        %5794 = vst [vmem:[#allocation2 + $0x80] sm:$0xff] 0.0
        %5795 = vst [vmem:[#allocation2 + $0x88] sm:$0x3] 0.0
        %5796 = vst [vmem:[#allocation2 + $0x90] sm:$0xff] 0.0
        %5797 = vst [vmem:[#allocation2 + $0x98] sm:$0x3] 0.0
        %s5798 = scalar_lea.vmem [#allocation2], 16
        %5799 = vst [vmem:[%s5798 + $0x1] sm:$0xff] %v5770
        %5800 = vst [vmem:[%s5798 + $0x11] sm:$0xff] %v5771
        %5801 = vst [vmem:[%s5798 + $0x21] sm:$0xff] %v5772
        %5802 = vst [vmem:[%s5798 + $0x31] sm:$0xff] %v5773
        %5803 = vst [vmem:[%s5798 + $0x41] sm:$0xff] %v5774
        %5804 = vst [vmem:[%s5798 + $0x51] sm:$0xff] %v5775
        %5805 = vst [vmem:[%s5798 + $0x61] sm:$0xff] %v5776
        %5806 = vst [vmem:[%s5798 + $0x71] sm:$0xff] %v5777
        %v5807 = vld [vmem:[#allocation2] sm:$0xff]
        %v5808 = vld [vmem:[#allocation2 + $0x8] sm:$0x3]
        %v5809 = vld [vmem:[#allocation2 + $0x10] sm:$0xff]
        %v5810 = vld [vmem:[#allocation2 + $0x18] sm:$0x3]
        %v5811 = vld [vmem:[#allocation2 + $0x20] sm:$0xff]
        %v5812 = vld [vmem:[#allocation2 + $0x28] sm:$0x3]
        %v5813 = vld [vmem:[#allocation2 + $0x30] sm:$0xff]
        %v5814 = vld [vmem:[#allocation2 + $0x38] sm:$0x3]
        %v5815 = vld [vmem:[#allocation2 + $0x40] sm:$0xff]
        %v5816 = vld [vmem:[#allocation2 + $0x48] sm:$0x3]
        %v5817 = vld [vmem:[#allocation2 + $0x50] sm:$0xff]
        %v5818 = vld [vmem:[#allocation2 + $0x58] sm:$0x3]
        %v5819 = vld [vmem:[#allocation2 + $0x60] sm:$0xff]
        %v5820 = vld [vmem:[#allocation2 + $0x68] sm:$0x3]
        %v5821 = vld [vmem:[#allocation2 + $0x70] sm:$0xff]
        %v5822 = vld [vmem:[#allocation2 + $0x78] sm:$0x3]
        %v5823 = vld [vmem:[#allocation2 + $0x80] sm:$0xff]
        %v5824 = vld [vmem:[#allocation2 + $0x88] sm:$0x3]
        %v5825 = vld [vmem:[#allocation2 + $0x90] sm:$0xff]
        %v5826 = vld [vmem:[#allocation2 + $0x98] sm:$0x3]
        %v5827 = vpack.c.bf16 %v5809, %v5807
        %v5828 = vpack.c.bf16 %v5813, %v5811
        %v5829 = vpack.c.bf16 %v5817, %v5815
        %v5830 = vpack.c.bf16 %v5821, %v5819
        %vm5847 = vcmask 1046528
        %v5848 = vrot.slane %v5807, 1
        %v5849 = vrot.slane %v5808, 1
        %v5850 = vsel %vm5847, %v5848, %v5849
        %v5851 = vrot.slane %v5809, 1
        %v5852 = vrot.slane %v5810, 1
        %v5853 = vsel %vm5847, %v5851, %v5852
        %v5854 = vrot.slane %v5811, 1
        %v5855 = vrot.slane %v5812, 1
        %v5856 = vsel %vm5847, %v5854, %v5855
        %v5857 = vrot.slane %v5813, 1
        %v5858 = vrot.slane %v5814, 1
        %v5859 = vsel %vm5847, %v5857, %v5858
        %v5860 = vrot.slane %v5815, 1
        %v5861 = vrot.slane %v5816, 1
        %v5862 = vsel %vm5847, %v5860, %v5861
        %v5863 = vrot.slane %v5817, 1
        %v5864 = vrot.slane %v5818, 1
        %v5865 = vsel %vm5847, %v5863, %v5864
        %v5866 = vrot.slane %v5819, 1
        %v5867 = vrot.slane %v5820, 1
        %v5868 = vsel %vm5847, %v5866, %v5867
        %v5869 = vrot.slane %v5821, 1
        %v5870 = vrot.slane %v5822, 1
        %v5871 = vsel %vm5847, %v5869, %v5870
        %v5880 = vpack.c.bf16 %v5853, %v5850
        %v5881 = vpack.c.bf16 %v5859, %v5856
        %v5882 = vpack.c.bf16 %v5865, %v5862
        %v5883 = vpack.c.bf16 %v5871, %v5868
        %vm5884 = vcmask 1045504
        %v5885 = vrot.slane %v5807, 2
        %v5886 = vrot.slane %v5808, 2
        %v5887 = vsel %vm5884, %v5885, %v5886
        %v5888 = vrot.slane %v5809, 2
        %v5889 = vrot.slane %v5810, 2
        %v5890 = vsel %vm5884, %v5888, %v5889
        %v5891 = vrot.slane %v5811, 2
        %v5892 = vrot.slane %v5812, 2
        %v5893 = vsel %vm5884, %v5891, %v5892
        %v5894 = vrot.slane %v5813, 2
        %v5895 = vrot.slane %v5814, 2
        %v5896 = vsel %vm5884, %v5894, %v5895
        %v5897 = vrot.slane %v5815, 2
        %v5898 = vrot.slane %v5816, 2
        %v5899 = vsel %vm5884, %v5897, %v5898
        %v5900 = vrot.slane %v5817, 2
        %v5901 = vrot.slane %v5818, 2
        %v5902 = vsel %vm5884, %v5900, %v5901
        %v5903 = vrot.slane %v5819, 2
        %v5904 = vrot.slane %v5820, 2
        %v5905 = vsel %vm5884, %v5903, %v5904
        %v5906 = vrot.slane %v5821, 2
        %v5907 = vrot.slane %v5822, 2
        %v5908 = vsel %vm5884, %v5906, %v5907
        %v5917 = vpack.c.bf16 %v5890, %v5887
        %v5918 = vpack.c.bf16 %v5896, %v5893
        %v5919 = vpack.c.bf16 %v5902, %v5899
        %v5920 = vpack.c.bf16 %v5908, %v5905
        %v5921 = vpack.c.bf16 %v5811, %v5809
        %v5922 = vpack.c.bf16 %v5815, %v5813
        %v5923 = vpack.c.bf16 %v5819, %v5817
        %v5924 = vpack.c.bf16 %v5823, %v5821
        %v5927 = vrot.slane %v5823, 1
        %v5928 = vrot.slane %v5824, 1
        %v5929 = vsel %vm5847, %v5927, %v5928
        %v5931 = vpack.c.bf16 %v5856, %v5853
        %v5932 = vpack.c.bf16 %v5862, %v5859
        %v5933 = vpack.c.bf16 %v5868, %v5865
        %v5934 = vpack.c.bf16 %v5929, %v5871
        %v5935 = vrot.slane %v5823, 2
        %v5936 = vrot.slane %v5824, 2
        %v5937 = vsel %vm5884, %v5935, %v5936
        %v5939 = vpack.c.bf16 %v5893, %v5890
        %v5940 = vpack.c.bf16 %v5899, %v5896
        %v5941 = vpack.c.bf16 %v5905, %v5902
        %v5942 = vpack.c.bf16 %v5937, %v5908
        %v5943 = vpack.c.bf16 %v5825, %v5823
        %v5946 = vrot.slane %v5825, 1
        %v5947 = vrot.slane %v5826, 1
        %v5948 = vsel %vm5847, %v5946, %v5947
        %v5950 = vpack.c.bf16 %v5948, %v5929
        %v5951 = vrot.slane %v5825, 2
        %v5952 = vrot.slane %v5826, 2
        %v5953 = vsel %vm5884, %v5951, %v5952
        %v5955 = vpack.c.bf16 %v5953, %v5937
        %v5956 = vld [vmem:[#allocation17] sm:$0xf]
        %v5957 = vld [vmem:[#allocation17 + $0x4] sm:$0xf]
        %v5958 = vld [vmem:[#allocation17 + $0x8] sm:$0xf]
        %v5959 = vld [vmem:[#allocation17 + $0xc] sm:$0xf]
        %v5960 = vld [vmem:[#allocation17 + $0x10] sm:$0xf]
        %v5961 = vld [vmem:[#allocation17 + $0x14] sm:$0xf]
        %v5962 = vld [vmem:[#allocation17 + $0x18] sm:$0xf]
        %v5963 = vld [vmem:[#allocation17 + $0x1c] sm:$0xf]
        %v5964 = vld [vmem:[#allocation17 + $0x20] sm:$0xf]
        %v5965 = vld [vmem:[#allocation17 + $0x24] sm:$0xf]
        %v5966 = vld [vmem:[#allocation17 + $0x28] sm:$0xf]
        %v5967 = vld [vmem:[#allocation17 + $0x2c] sm:$0xf]
        %v5968 = vld [vmem:[#allocation17 + $0x30] sm:$0xf]
        %v5969 = vld [vmem:[#allocation17 + $0x34] sm:$0xf]
        %v5970 = vld [vmem:[#allocation17 + $0x38] sm:$0xf]
        %v5971 = vld [vmem:[#allocation17 + $0x3c] sm:$0xf]
        %v5972 = vld [vmem:[#allocation17 + $0x40] sm:$0xf]
        %v5973 = vld [vmem:[#allocation17 + $0x44] sm:$0xf]
        %v5974 = vld [vmem:[#allocation17 + $0x48] sm:$0xf]
        %v5975 = vld [vmem:[#allocation17 + $0x4c] sm:$0xf]
        %v5976 = vld [vmem:[#allocation17 + $0x50] sm:$0xf]
        %v5977 = vld [vmem:[#allocation17 + $0x54] sm:$0xf]
        %v5978 = vld [vmem:[#allocation17 + $0x58] sm:$0xf]
        %v5979 = vld [vmem:[#allocation17 + $0x5c] sm:$0xf]
        %v5980 = vld [vmem:[#allocation17 + $0x60] sm:$0xf]
        %v5981 = vld [vmem:[#allocation17 + $0x64] sm:$0xf]
        %v5982 = vld [vmem:[#allocation17 + $0x68] sm:$0xf]
        %v5983 = vld [vmem:[#allocation17 + $0x6c] sm:$0xf]
        %v5984 = vld [vmem:[#allocation17 + $0x70] sm:$0xf]
        %v5985 = vld [vmem:[#allocation17 + $0x74] sm:$0xf]
        %v5986 = vld [vmem:[#allocation17 + $0x78] sm:$0xf]
        %v5987 = vld [vmem:[#allocation17 + $0x7c] sm:$0xf]
        %v5988 = vld [vmem:[#allocation17 + $0x80] sm:$0xf]
        %v5989 = vld [vmem:[#allocation17 + $0x84] sm:$0xf]
        %v5990 = vld [vmem:[#allocation17 + $0x88] sm:$0xf]
        %v5991 = vld [vmem:[#allocation17 + $0x8c] sm:$0xf]
        %v5992 = vld [vmem:[#allocation17 + $0x90] sm:$0xf]
        %v5993 = vld [vmem:[#allocation17 + $0x94] sm:$0xf]
        %v5994 = vld [vmem:[#allocation17 + $0x98] sm:$0xf]
        %v5995 = vld [vmem:[#allocation17 + $0x9c] sm:$0xf]
        %v5996 = vld [vmem:[#allocation17 + $0xa0] sm:$0xf]
        %v5997 = vld [vmem:[#allocation17 + $0xa4] sm:$0xf]
        %v5998 = vld [vmem:[#allocation17 + $0xa8] sm:$0xf]
        %v5999 = vld [vmem:[#allocation17 + $0xac] sm:$0xf]
        %v6000 = vld [vmem:[#allocation17 + $0xb0] sm:$0xf]
        %v6001 = vld [vmem:[#allocation17 + $0xb4] sm:$0xf]
        %v6002 = vld [vmem:[#allocation17 + $0xb8] sm:$0xf]
        %v6003 = vld [vmem:[#allocation17 + $0xbc] sm:$0xf]
        %v6004 = vld [vmem:[#allocation17 + $0xc0] sm:$0xf]
        %v6005 = vld [vmem:[#allocation17 + $0xc4] sm:$0xf]
        %v6006 = vld [vmem:[#allocation17 + $0xc8] sm:$0xf]
        %v6007 = vld [vmem:[#allocation17 + $0xcc] sm:$0xf]
        %v6008 = vld [vmem:[#allocation17 + $0xd0] sm:$0xf]
        %v6009 = vld [vmem:[#allocation17 + $0xd4] sm:$0xf]
        %v6010 = vld [vmem:[#allocation17 + $0xd8] sm:$0xf]
        %v6011 = vld [vmem:[#allocation17 + $0xdc] sm:$0xf]
        %v6012 = vld [vmem:[#allocation17 + $0xe0] sm:$0xf]
        %v6013 = vld [vmem:[#allocation17 + $0xe4] sm:$0xf]
        %v6014 = vld [vmem:[#allocation17 + $0xe8] sm:$0xf]
        %v6015 = vld [vmem:[#allocation17 + $0xec] sm:$0xf]
        %v6016 = vld [vmem:[#allocation17 + $0xf0] sm:$0xf]
        %v6017 = vld [vmem:[#allocation17 + $0xf4] sm:$0xf]
        %v6018 = vld [vmem:[#allocation17 + $0xf8] sm:$0xf]
        %v6019 = vld [vmem:[#allocation17 + $0xfc] sm:$0xf]
        %v6020 = vld [vmem:[#allocation17 + $0x100] sm:$0xf]
        %v6021 = vld [vmem:[#allocation17 + $0x104] sm:$0xf]
        %v6022 = vld [vmem:[#allocation17 + $0x108] sm:$0xf]
        %v6023 = vld [vmem:[#allocation17 + $0x10c] sm:$0xf]
        %v6024 = vld [vmem:[#allocation17 + $0x110] sm:$0xf]
        %v6025 = vld [vmem:[#allocation17 + $0x114] sm:$0xf]
        %v6026 = vld [vmem:[#allocation17 + $0x118] sm:$0xf]
        %v6027 = vld [vmem:[#allocation17 + $0x11c] sm:$0xf]
        %v6028 = vld [vmem:[#allocation17 + $0x120] sm:$0xf]
        %v6029 = vld [vmem:[#allocation17 + $0x124] sm:$0xf]
        %v6030 = vld [vmem:[#allocation17 + $0x128] sm:$0xf]
        %v6031 = vld [vmem:[#allocation17 + $0x12c] sm:$0xf]
        %v6032 = vld [vmem:[#allocation17 + $0x130] sm:$0xf]
        %v6033 = vld [vmem:[#allocation17 + $0x134] sm:$0xf]
        %v6034 = vld [vmem:[#allocation17 + $0x138] sm:$0xf]
        %v6035 = vld [vmem:[#allocation17 + $0x13c] sm:$0xf]
        %v6036 = vld [vmem:[#allocation17 + $0x140] sm:$0xf]
        %v6037 = vld [vmem:[#allocation17 + $0x144] sm:$0xf]
        %v6038 = vld [vmem:[#allocation17 + $0x148] sm:$0xf]
        %v6039 = vld [vmem:[#allocation17 + $0x14c] sm:$0xf]
        %v6040 = vld [vmem:[#allocation17 + $0x150] sm:$0xf]
        %v6041 = vld [vmem:[#allocation17 + $0x154] sm:$0xf]
        %v6042 = vld [vmem:[#allocation17 + $0x158] sm:$0xf]
        %v6043 = vld [vmem:[#allocation17 + $0x15c] sm:$0xf]
        %v6044 = vld [vmem:[#allocation17 + $0x160] sm:$0xf]
        %v6045 = vld [vmem:[#allocation17 + $0x164] sm:$0xf]
        %v6046 = vld [vmem:[#allocation17 + $0x168] sm:$0xf]
        %v6047 = vld [vmem:[#allocation17 + $0x16c] sm:$0xf]
        %v6048 = vld [vmem:[#allocation17 + $0x170] sm:$0xf]
        %v6049 = vld [vmem:[#allocation17 + $0x174] sm:$0xf]
        %v6050 = vld [vmem:[#allocation17 + $0x178] sm:$0xf]
        %v6051 = vld [vmem:[#allocation17 + $0x17c] sm:$0xf]
        %v6052 = vld [vmem:[#allocation17 + $0x180] sm:$0xf]
        %v6053 = vld [vmem:[#allocation17 + $0x184] sm:$0xf]
        %v6054 = vld [vmem:[#allocation17 + $0x188] sm:$0xf]
        %v6055 = vld [vmem:[#allocation17 + $0x18c] sm:$0xf]
        %v6056 = vld [vmem:[#allocation17 + $0x190] sm:$0xf]
        %v6057 = vld [vmem:[#allocation17 + $0x194] sm:$0xf]
        %v6058 = vld [vmem:[#allocation17 + $0x198] sm:$0xf]
        %v6059 = vld [vmem:[#allocation17 + $0x19c] sm:$0xf]
        %v6060 = vld [vmem:[#allocation17 + $0x1a0] sm:$0xf]
        %v6061 = vld [vmem:[#allocation17 + $0x1a4] sm:$0xf]
        %v6062 = vld [vmem:[#allocation17 + $0x1a8] sm:$0xf]
        %v6063 = vld [vmem:[#allocation17 + $0x1ac] sm:$0xf]
        %v6064 = vld [vmem:[#allocation17 + $0x1b0] sm:$0xf]
        %v6065 = vld [vmem:[#allocation17 + $0x1b4] sm:$0xf]
        %v6066 = vld [vmem:[#allocation17 + $0x1b8] sm:$0xf]
        %v6067 = vld [vmem:[#allocation17 + $0x1bc] sm:$0xf]
        %v6068 = vld [vmem:[#allocation17 + $0x1c0] sm:$0xf]
        %v6069 = vld [vmem:[#allocation17 + $0x1c4] sm:$0xf]
        %v6070 = vld [vmem:[#allocation17 + $0x1c8] sm:$0xf]
        %v6071 = vld [vmem:[#allocation17 + $0x1cc] sm:$0xf]
        %v6072 = vld [vmem:[#allocation17 + $0x1d0] sm:$0xf]
        %v6073 = vld [vmem:[#allocation17 + $0x1d4] sm:$0xf]
        %v6074 = vld [vmem:[#allocation17 + $0x1d8] sm:$0xf]
        %v6075 = vld [vmem:[#allocation17 + $0x1dc] sm:$0xf]
        %v6076 = vld [vmem:[#allocation17 + $0x1e0] sm:$0xf]
        %v6077 = vld [vmem:[#allocation17 + $0x1e4] sm:$0xf]
        %v6078 = vld [vmem:[#allocation17 + $0x1e8] sm:$0xf]
        %v6079 = vld [vmem:[#allocation17 + $0x1ec] sm:$0xf]
        %v6080 = vld [vmem:[#allocation17 + $0x1f0] sm:$0xf]
        %v6081 = vld [vmem:[#allocation17 + $0x1f4] sm:$0xf]
        %v6082 = vld [vmem:[#allocation17 + $0x1f8] sm:$0xf]
        %v6083 = vld [vmem:[#allocation17 + $0x1fc] sm:$0xf]
        %v6084 = vld [vmem:[#allocation17 + $0x200] sm:$0xf]
        %v6085 = vld [vmem:[#allocation17 + $0x204] sm:$0xf]
        %v6086 = vld [vmem:[#allocation17 + $0x208] sm:$0xf]
        %v6087 = vld [vmem:[#allocation17 + $0x20c] sm:$0xf]
        %v6088 = vld [vmem:[#allocation17 + $0x210] sm:$0xf]
        %v6089 = vld [vmem:[#allocation17 + $0x214] sm:$0xf]
        %v6090 = vld [vmem:[#allocation17 + $0x218] sm:$0xf]
        %v6091 = vld [vmem:[#allocation17 + $0x21c] sm:$0xf]
        %v6092 = vld [vmem:[#allocation17 + $0x220] sm:$0xf]
        %v6093 = vld [vmem:[#allocation17 + $0x224] sm:$0xf]
        %v6094 = vld [vmem:[#allocation17 + $0x228] sm:$0xf]
        %v6095 = vld [vmem:[#allocation17 + $0x22c] sm:$0xf]
        %v6096 = vld [vmem:[#allocation17 + $0x230] sm:$0xf]
        %v6097 = vld [vmem:[#allocation17 + $0x234] sm:$0xf]
        %v6098 = vld [vmem:[#allocation17 + $0x238] sm:$0xf]
        %v6099 = vld [vmem:[#allocation17 + $0x23c] sm:$0xf]
        %v6100 = vld [vmem:[%s15] sm:$0x1]
        %v6102 = vlaneseq
        %v6103 = vshrl.u32 %v6102, 7
        %v6104 = vsub.s32 0, %v6103
        %v6105 = vrot.slane %v6100, %v6104
        %v6251 = vunpack.c.l.b16 %v5956
        %v6252 = vunpack.c.l.b16 %v5957
        %v6253 = vunpack.c.l.b16 %v5958
        %v6254 = vunpack.c.l.b16 %v5959
        %v6255 = vunpack.c.l.b16 %v5960
        %v6256 = vunpack.c.l.b16 %v5961
        %v6257 = vunpack.c.l.b16 %v5962
        %v6258 = vunpack.c.l.b16 %v5963
        %v6259 = vunpack.c.l.b16 %v5964
        %v6260 = vunpack.c.l.b16 %v5965
        %v6261 = vunpack.c.l.b16 %v5966
        %v6262 = vunpack.c.l.b16 %v5967
        %v6263 = vunpack.c.l.b16 %v5968
        %v6264 = vunpack.c.l.b16 %v5969
        %v6265 = vunpack.c.l.b16 %v5970
        %v6266 = vunpack.c.l.b16 %v5971
        %v6267 = vunpack.c.l.b16 %v5972
        %v6268 = vunpack.c.l.b16 %v5973
        %v6269 = vunpack.c.l.b16 %v5974
        %v6270 = vunpack.c.l.b16 %v5975
        %v6271 = vunpack.c.l.b16 %v5976
        %v6272 = vunpack.c.l.b16 %v5977
        %v6273 = vunpack.c.l.b16 %v5978
        %v6274 = vunpack.c.l.b16 %v5979
        %v6275 = vunpack.c.l.b16 %v5980
        %v6276 = vunpack.c.l.b16 %v5981
        %v6277 = vunpack.c.l.b16 %v5982
        %v6278 = vunpack.c.l.b16 %v5983
        %v6279 = vunpack.c.l.b16 %v5984
        %v6280 = vunpack.c.l.b16 %v5985
        %v6281 = vunpack.c.l.b16 %v5986
        %v6282 = vunpack.c.l.b16 %v5987
        %v6283 = vunpack.c.l.b16 %v5988
        %v6284 = vunpack.c.l.b16 %v5989
        %v6285 = vunpack.c.l.b16 %v5990
        %v6286 = vunpack.c.l.b16 %v5991
        %v6287 = vunpack.c.l.b16 %v5992
        %v6288 = vunpack.c.l.b16 %v5993
        %v6289 = vunpack.c.l.b16 %v5994
        %v6290 = vunpack.c.l.b16 %v5995
        %v6291 = vunpack.c.l.b16 %v5996
        %v6292 = vunpack.c.l.b16 %v5997
        %v6293 = vunpack.c.l.b16 %v5998
        %v6294 = vunpack.c.l.b16 %v5999
        %v6295 = vunpack.c.l.b16 %v6000
        %v6296 = vunpack.c.l.b16 %v6001
        %v6297 = vunpack.c.l.b16 %v6002
        %v6298 = vunpack.c.l.b16 %v6003
        %v6299 = vunpack.c.l.b16 %v6004
        %v6300 = vunpack.c.l.b16 %v6005
        %v6301 = vunpack.c.l.b16 %v6006
        %v6302 = vunpack.c.l.b16 %v6007
        %v6303 = vunpack.c.l.b16 %v6008
        %v6304 = vunpack.c.l.b16 %v6009
        %v6305 = vunpack.c.l.b16 %v6010
        %v6306 = vunpack.c.l.b16 %v6011
        %v6307 = vunpack.c.l.b16 %v6012
        %v6308 = vunpack.c.l.b16 %v6013
        %v6309 = vunpack.c.l.b16 %v6014
        %v6310 = vunpack.c.l.b16 %v6015
        %v6311 = vunpack.c.l.b16 %v6016
        %v6312 = vunpack.c.l.b16 %v6017
        %v6313 = vunpack.c.l.b16 %v6018
        %v6314 = vunpack.c.l.b16 %v6019
        %v6315 = vunpack.c.l.b16 %v6020
        %v6316 = vunpack.c.l.b16 %v6021
        %v6317 = vunpack.c.l.b16 %v6022
        %v6318 = vunpack.c.l.b16 %v6023
        %v6319 = vunpack.c.l.b16 %v6024
        %v6320 = vunpack.c.l.b16 %v6025
        %v6321 = vunpack.c.l.b16 %v6026
        %v6322 = vunpack.c.l.b16 %v6027
        %v6323 = vunpack.c.l.b16 %v6028
        %v6324 = vunpack.c.l.b16 %v6029
        %v6325 = vunpack.c.l.b16 %v6030
        %v6326 = vunpack.c.l.b16 %v6031
        %v6327 = vunpack.c.l.b16 %v6032
        %v6328 = vunpack.c.l.b16 %v6033
        %v6329 = vunpack.c.l.b16 %v6034
        %v6330 = vunpack.c.l.b16 %v6035
        %v6331 = vunpack.c.l.b16 %v6036
        %v6332 = vunpack.c.l.b16 %v6037
        %v6333 = vunpack.c.l.b16 %v6038
        %v6334 = vunpack.c.l.b16 %v6039
        %v6335 = vunpack.c.l.b16 %v6040
        %v6336 = vunpack.c.l.b16 %v6041
        %v6337 = vunpack.c.l.b16 %v6042
        %v6338 = vunpack.c.l.b16 %v6043
        %v6339 = vunpack.c.l.b16 %v6044
        %v6340 = vunpack.c.l.b16 %v6045
        %v6341 = vunpack.c.l.b16 %v6046
        %v6342 = vunpack.c.l.b16 %v6047
        %v6343 = vunpack.c.l.b16 %v6048
        %v6344 = vunpack.c.l.b16 %v6049
        %v6345 = vunpack.c.l.b16 %v6050
        %v6346 = vunpack.c.l.b16 %v6051
        %v6347 = vunpack.c.l.b16 %v6052
        %v6348 = vunpack.c.l.b16 %v6053
        %v6349 = vunpack.c.l.b16 %v6054
        %v6350 = vunpack.c.l.b16 %v6055
        %v6351 = vunpack.c.l.b16 %v6056
        %v6352 = vunpack.c.l.b16 %v6057
        %v6353 = vunpack.c.l.b16 %v6058
        %v6354 = vunpack.c.l.b16 %v6059
        %v6355 = vunpack.c.l.b16 %v6060
        %v6356 = vunpack.c.l.b16 %v6061
        %v6357 = vunpack.c.l.b16 %v6062
        %v6358 = vunpack.c.l.b16 %v6063
        %v6359 = vunpack.c.l.b16 %v6064
        %v6360 = vunpack.c.l.b16 %v6065
        %v6361 = vunpack.c.l.b16 %v6066
        %v6362 = vunpack.c.l.b16 %v6067
        %v6363 = vunpack.c.l.b16 %v6068
        %v6364 = vunpack.c.l.b16 %v6069
        %v6365 = vunpack.c.l.b16 %v6070
        %v6366 = vunpack.c.l.b16 %v6071
        %v6367 = vunpack.c.l.b16 %v6072
        %v6368 = vunpack.c.l.b16 %v6073
        %v6369 = vunpack.c.l.b16 %v6074
        %v6370 = vunpack.c.l.b16 %v6075
        %v6371 = vunpack.c.l.b16 %v6076
        %v6372 = vunpack.c.l.b16 %v6077
        %v6373 = vunpack.c.l.b16 %v6078
        %v6374 = vunpack.c.l.b16 %v6079
        %v6375 = vunpack.c.l.b16 %v6080
        %v6376 = vunpack.c.l.b16 %v6081
        %v6377 = vunpack.c.l.b16 %v6082
        %v6378 = vunpack.c.l.b16 %v6083
        %v6379 = vunpack.c.l.b16 %v6084
        %v6380 = vunpack.c.l.b16 %v6085
        %v6381 = vunpack.c.l.b16 %v6086
        %v6382 = vunpack.c.l.b16 %v6087
        %v6383 = vunpack.c.l.b16 %v6088
        %v6384 = vunpack.c.l.b16 %v6089
        %v6385 = vunpack.c.l.b16 %v6090
        %v6386 = vunpack.c.l.b16 %v6091
        %v6387 = vunpack.c.l.b16 %v6092
        %v6388 = vunpack.c.l.b16 %v6093
        %v6389 = vunpack.c.l.b16 %v6094
        %v6390 = vunpack.c.l.b16 %v6095
        %v6391 = vunpack.c.l.b16 %v6096
        %v6392 = vunpack.c.l.b16 %v6097
        %v6393 = vunpack.c.l.b16 %v6098
        %v6394 = vunpack.c.l.b16 %v6099
        %v6395 = vpack.c.b16 %v6252, %v6251
        %v6396 = vpack.c.b16 %v6254, %v6253
        %v6397 = vpack.c.b16 %v6256, %v6255
        %v6398 = vpack.c.b16 %v6258, %v6257
        %v6399 = vpack.c.b16 %v6260, %v6259
        %v6400 = vpack.c.b16 %v6262, %v6261
        %v6401 = vpack.c.b16 %v6264, %v6263
        %v6402 = vpack.c.b16 %v6266, %v6265
        %v6403 = vpack.c.b16 %v6268, %v6267
        %v6404 = vpack.c.b16 %v6270, %v6269
        %v6405 = vpack.c.b16 %v6272, %v6271
        %v6406 = vpack.c.b16 %v6274, %v6273
        %v6407 = vpack.c.b16 %v6276, %v6275
        %v6408 = vpack.c.b16 %v6278, %v6277
        %v6409 = vpack.c.b16 %v6280, %v6279
        %v6410 = vpack.c.b16 %v6282, %v6281
        %v6411 = vpack.c.b16 %v6284, %v6283
        %v6412 = vpack.c.b16 %v6286, %v6285
        %v6413 = vpack.c.b16 %v6288, %v6287
        %v6414 = vpack.c.b16 %v6290, %v6289
        %v6415 = vpack.c.b16 %v6292, %v6291
        %v6416 = vpack.c.b16 %v6294, %v6293
        %v6417 = vpack.c.b16 %v6296, %v6295
        %v6418 = vpack.c.b16 %v6298, %v6297
        %v6419 = vpack.c.b16 %v6300, %v6299
        %v6420 = vpack.c.b16 %v6302, %v6301
        %v6421 = vpack.c.b16 %v6304, %v6303
        %v6422 = vpack.c.b16 %v6306, %v6305
        %v6423 = vpack.c.b16 %v6308, %v6307
        %v6424 = vpack.c.b16 %v6310, %v6309
        %v6425 = vpack.c.b16 %v6312, %v6311
        %v6426 = vpack.c.b16 %v6314, %v6313
        %v6427 = vpack.c.b16 %v6316, %v6315
        %v6428 = vpack.c.b16 %v6318, %v6317
        %v6429 = vpack.c.b16 %v6320, %v6319
        %v6430 = vpack.c.b16 %v6322, %v6321
        %v6431 = vpack.c.b16 %v6324, %v6323
        %v6432 = vpack.c.b16 %v6326, %v6325
        %v6433 = vpack.c.b16 %v6328, %v6327
        %v6434 = vpack.c.b16 %v6330, %v6329
        %v6435 = vpack.c.b16 %v6332, %v6331
        %v6436 = vpack.c.b16 %v6334, %v6333
        %v6437 = vpack.c.b16 %v6336, %v6335
        %v6438 = vpack.c.b16 %v6338, %v6337
        %v6439 = vpack.c.b16 %v6340, %v6339
        %v6440 = vpack.c.b16 %v6342, %v6341
        %v6441 = vpack.c.b16 %v6344, %v6343
        %v6442 = vpack.c.b16 %v6346, %v6345
        %v6443 = vpack.c.b16 %v6348, %v6347
        %v6444 = vpack.c.b16 %v6350, %v6349
        %v6445 = vpack.c.b16 %v6352, %v6351
        %v6446 = vpack.c.b16 %v6354, %v6353
        %v6447 = vpack.c.b16 %v6356, %v6355
        %v6448 = vpack.c.b16 %v6358, %v6357
        %v6449 = vpack.c.b16 %v6360, %v6359
        %v6450 = vpack.c.b16 %v6362, %v6361
        %v6451 = vpack.c.b16 %v6364, %v6363
        %v6452 = vpack.c.b16 %v6366, %v6365
        %v6453 = vpack.c.b16 %v6368, %v6367
        %v6454 = vpack.c.b16 %v6370, %v6369
        %v6455 = vpack.c.b16 %v6372, %v6371
        %v6456 = vpack.c.b16 %v6374, %v6373
        %v6457 = vpack.c.b16 %v6376, %v6375
        %v6458 = vpack.c.b16 %v6378, %v6377
        %v6459 = vpack.c.b16 %v6380, %v6379
        %v6460 = vpack.c.b16 %v6382, %v6381
        %v6461 = vpack.c.b16 %v6384, %v6383
        %v6462 = vpack.c.b16 %v6386, %v6385
        %v6463 = vpack.c.b16 %v6388, %v6387
        %v6464 = vpack.c.b16 %v6390, %v6389
        %v6465 = vpack.c.b16 %v6392, %v6391
        %v6466 = vpack.c.b16 %v6394, %v6393
        %6539 = vmatprep.subr.bf16.mxu0 0
        %6540 = vmatpush1.bf16.msra.mxu0 %v6395
        %6541 = vmatprep.subr.bf16.mxu0 0
        %6542 = vmatpush1.bf16.msra.mxu0 %v6396
        %6543 = vmatprep.subr.bf16.mxu0 0
        %6544 = vmatpush1.bf16.msra.mxu0 %v6397
        %6545 = vmatprep.subr.bf16.mxu0 0
        %6546 = vmatpush1.bf16.msra.mxu0 %v6398
        %6547 = vmatprep.subr.bf16.mxu0 0
        %6548 = vmatpush1.bf16.msra.mxu0 %v6399
        %6549 = vmatprep.subr.bf16.mxu0 0
        %6550 = vmatpush1.bf16.msra.mxu0 %v6400
        %6551 = vmatprep.subr.bf16.mxu0 0
        %6552 = vmatpush1.bf16.msra.mxu0 %v6401
        %6553 = vmatprep.subr.bf16.mxu0 0
        %6554 = vmatpush1.bf16.msra.mxu0 %v6402
        %6555 = vmatprep.subr.bf16.mxu0 0
        %6556 = vmatpush1.bf16.msra.mxu0 %v6403
        %6557 = vmatprep.subr.bf16.mxu0 0
        %6558 = vmatpush1.bf16.msra.mxu0 %v6404
        %6559 = vmatprep.subr.bf16.mxu0 0
        %6560 = vmatpush1.bf16.msra.mxu0 %v6405
        %6561 = vmatprep.subr.bf16.mxu0 0
        %6562 = vmatpush1.bf16.msra.mxu0 %v6406
        %6563 = vmatprep.subr.bf16.mxu0 0
        %6564 = vmatpush1.bf16.msra.mxu0 %v6407
        %6565 = vmatprep.subr.bf16.mxu0 0
        %6566 = vmatpush1.bf16.msra.mxu0 %v6408
        %6567 = vmatprep.subr.bf16.mxu0 0
        %6568 = vmatpush1.bf16.msra.mxu0 %v6409
        %6569 = vmatprep.subr.bf16.mxu0 0
        %6570 = vmatpush1.bf16.msra.mxu0 %v6410
        %6571 = vmatprep.mubr.bf16.mxu0 %v5880
        %6572 = vmatmul.mubr.bf16.gmra.mrb[0].mxu0 %v5827
        %v6573 = vpop.f32.mrb[0].mxu0
        %v6574 = vadd.f32 %v6105, %v6573
        %v6575 = vpop.f32.mrb[0].mxu0
        %v6576 = vpop.f32.mrb[0].mxu0
        %v6577 = vadd.f32 %v6105, %v6576
        %v6578 = vpop.f32.mrb[0].mxu0
        %6579 = vmatprep.mubr.bf16.mxu0 %v5881
        %6580 = vmatmul.mubr.bf16.gmra.mrb[0].mxu0 %v5828
        %v6581 = vpop.f32.mrb[0].mxu0
        %v6582 = vadd.f32 %v6105, %v6581
        %v6583 = vpop.f32.mrb[0].mxu0
        %v6584 = vpop.f32.mrb[0].mxu0
        %v6585 = vadd.f32 %v6105, %v6584
        %v6586 = vpop.f32.mrb[0].mxu0
        %6587 = vmatprep.mubr.bf16.mxu0 %v5882
        %6588 = vmatmul.mubr.bf16.gmra.mrb[0].mxu0 %v5829
        %v6589 = vpop.f32.mrb[0].mxu0
        %v6590 = vadd.f32 %v6105, %v6589
        %v6591 = vpop.f32.mrb[0].mxu0
        %v6592 = vpop.f32.mrb[0].mxu0
        %v6593 = vadd.f32 %v6105, %v6592
        %v6594 = vpop.f32.mrb[0].mxu0
        %6595 = vmatprep.mubr.bf16.mxu0 %v5883
        %6596 = vmatmul.mubr.bf16.gmra.mrb[0].mxu0 %v5830
        %v6597 = vpop.f32.mrb[0].mxu0
        %v6598 = vadd.f32 %v6105, %v6597
        %v6599 = vpop.f32.mrb[0].mxu0
        %v6600 = vpop.f32.mrb[0].mxu0
        %v6601 = vadd.f32 %v6105, %v6600
        %v6602 = vpop.f32.mrb[0].mxu0
        %6603 = vdwg.mxu0
        %6604 = vmatprep.subr.bf16.mxu0 0
        %6605 = vmatpush1.bf16.msra.mxu0 %v6411
        %6606 = vmatprep.subr.bf16.mxu0 0
        %6607 = vmatpush1.bf16.msra.mxu0 %v6412
        %6608 = vmatprep.subr.bf16.mxu0 0
        %6609 = vmatpush1.bf16.msra.mxu0 %v6413
        %6610 = vmatprep.subr.bf16.mxu0 0
        %6611 = vmatpush1.bf16.msra.mxu0 %v6414
        %6612 = vmatprep.subr.bf16.mxu0 0
        %6613 = vmatpush1.bf16.msra.mxu0 %v6415
        %6614 = vmatprep.subr.bf16.mxu0 0
        %6615 = vmatpush1.bf16.msra.mxu0 %v6416
        %6616 = vmatprep.subr.bf16.mxu0 0
        %6617 = vmatpush1.bf16.msra.mxu0 %v6417
        %6618 = vmatprep.subr.bf16.mxu0 0
        %6619 = vmatpush1.bf16.msra.mxu0 %v6418
        %6620 = vmatprep.subr.bf16.mxu0 0
        %6621 = vmatpush1.bf16.msra.mxu0 %v6419
        %6622 = vmatprep.subr.bf16.mxu0 0
        %6623 = vmatpush1.bf16.msra.mxu0 %v6420
        %6624 = vmatprep.subr.bf16.mxu0 0
        %6625 = vmatpush1.bf16.msra.mxu0 %v6421
        %6626 = vmatprep.subr.bf16.mxu0 0
        %6627 = vmatpush1.bf16.msra.mxu0 %v6422
        %6628 = vmatprep.subr.bf16.mxu0 0
        %6629 = vmatpush1.bf16.msra.mxu0 %v6423
        %6630 = vmatprep.subr.bf16.mxu0 0
        %6631 = vmatpush1.bf16.msra.mxu0 %v6424
        %6632 = vmatprep.subr.bf16.mxu0 0
        %6633 = vmatpush1.bf16.msra.mxu0 %v6425
        %6634 = vmatprep.subr.bf16.mxu0 0
        %6635 = vmatpush1.bf16.msra.mxu0 %v6426
        %6636 = vmatprep.mubr.bf16.mxu0 %v5921
        %6637 = vmatmul.mubr.bf16.gmra.mrb[0].mxu0 %v5917
        %v6638 = vpop.f32.mrb[0].mxu0
        %v6639 = vadd.f32 %v6574, %v6638
        %v6640 = vpop.f32.mrb[0].mxu0
        %v6641 = vpop.f32.mrb[0].mxu0
        %v6642 = vadd.f32 %v6577, %v6641
        %v6643 = vpop.f32.mrb[0].mxu0
        %6644 = vmatprep.mubr.bf16.mxu0 %v5922
        %6645 = vmatmul.mubr.bf16.gmra.mrb[0].mxu0 %v5918
        %v6646 = vpop.f32.mrb[0].mxu0
        %v6647 = vadd.f32 %v6582, %v6646
        %v6648 = vpop.f32.mrb[0].mxu0
        %v6649 = vpop.f32.mrb[0].mxu0
        %v6650 = vadd.f32 %v6585, %v6649
        %v6651 = vpop.f32.mrb[0].mxu0
        %6652 = vmatprep.mubr.bf16.mxu0 %v5923
        %6653 = vmatmul.mubr.bf16.gmra.mrb[0].mxu0 %v5919
        %v6654 = vpop.f32.mrb[0].mxu0
        %v6655 = vadd.f32 %v6590, %v6654
        %v6656 = vpop.f32.mrb[0].mxu0
        %v6657 = vpop.f32.mrb[0].mxu0
        %v6658 = vadd.f32 %v6593, %v6657
        %v6659 = vpop.f32.mrb[0].mxu0
        %6660 = vmatprep.mubr.bf16.mxu0 %v5924
        %6661 = vmatmul.mubr.bf16.gmra.mrb[0].mxu0 %v5920
        %v6662 = vpop.f32.mrb[0].mxu0
        %v6663 = vadd.f32 %v6598, %v6662
        %v6664 = vpop.f32.mrb[0].mxu0
        %v6665 = vpop.f32.mrb[0].mxu0
        %v6666 = vadd.f32 %v6601, %v6665
        %v6667 = vpop.f32.mrb[0].mxu0
        %6668 = vdwg.mxu0
        %6669 = vmatprep.subr.bf16.mxu0 0
        %6670 = vmatpush1.bf16.msra.mxu0 %v6427
        %6671 = vmatprep.subr.bf16.mxu0 0
        %6672 = vmatpush1.bf16.msra.mxu0 %v6428
        %6673 = vmatprep.subr.bf16.mxu0 0
        %6674 = vmatpush1.bf16.msra.mxu0 %v6429
        %6675 = vmatprep.subr.bf16.mxu0 0
        %6676 = vmatpush1.bf16.msra.mxu0 %v6430
        %6677 = vmatprep.subr.bf16.mxu0 0
        %6678 = vmatpush1.bf16.msra.mxu0 %v6431
        %6679 = vmatprep.subr.bf16.mxu0 0
        %6680 = vmatpush1.bf16.msra.mxu0 %v6432
        %6681 = vmatprep.subr.bf16.mxu0 0
        %6682 = vmatpush1.bf16.msra.mxu0 %v6433
        %6683 = vmatprep.subr.bf16.mxu0 0
        %6684 = vmatpush1.bf16.msra.mxu0 %v6434
        %6685 = vmatprep.subr.bf16.mxu0 0
        %6686 = vmatpush1.bf16.msra.mxu0 %v6435
        %6687 = vmatprep.subr.bf16.mxu0 0
        %6688 = vmatpush1.bf16.msra.mxu0 %v6436
        %6689 = vmatprep.subr.bf16.mxu0 0
        %6690 = vmatpush1.bf16.msra.mxu0 %v6437
        %6691 = vmatprep.subr.bf16.mxu0 0
        %6692 = vmatpush1.bf16.msra.mxu0 %v6438
        %6693 = vmatprep.subr.bf16.mxu0 0
        %6694 = vmatpush1.bf16.msra.mxu0 %v6439
        %6695 = vmatprep.subr.bf16.mxu0 0
        %6696 = vmatpush1.bf16.msra.mxu0 %v6440
        %6697 = vmatprep.subr.bf16.mxu0 0
        %6698 = vmatpush1.bf16.msra.mxu0 %v6441
        %6699 = vmatprep.subr.bf16.mxu0 0
        %6700 = vmatpush1.bf16.msra.mxu0 %v6442
        %6701 = vmatprep.mubr.bf16.mxu0 %v5939
        %6702 = vmatmul.mubr.bf16.gmra.mrb[0].mxu0 %v5931
        %v6703 = vpop.f32.mrb[0].mxu0
        %v6704 = vadd.f32 %v6639, %v6703
        %v6705 = vpop.f32.mrb[0].mxu0
        %v6706 = vpop.f32.mrb[0].mxu0
        %v6707 = vadd.f32 %v6642, %v6706
        %v6708 = vpop.f32.mrb[0].mxu0
        %6709 = vmatprep.mubr.bf16.mxu0 %v5940
        %6710 = vmatmul.mubr.bf16.gmra.mrb[0].mxu0 %v5932
        %v6711 = vpop.f32.mrb[0].mxu0
        %v6712 = vadd.f32 %v6647, %v6711
        %v6713 = vpop.f32.mrb[0].mxu0
        %v6714 = vpop.f32.mrb[0].mxu0
        %v6715 = vadd.f32 %v6650, %v6714
        %v6716 = vpop.f32.mrb[0].mxu0
        %6717 = vmatprep.mubr.bf16.mxu0 %v5941
        %6718 = vmatmul.mubr.bf16.gmra.mrb[0].mxu0 %v5933
        %v6719 = vpop.f32.mrb[0].mxu0
        %v6720 = vadd.f32 %v6655, %v6719
        %v6721 = vpop.f32.mrb[0].mxu0
        %v6722 = vpop.f32.mrb[0].mxu0
        %v6723 = vadd.f32 %v6658, %v6722
        %v6724 = vpop.f32.mrb[0].mxu0
        %6725 = vmatprep.mubr.bf16.mxu0 %v5942
        %6726 = vmatmul.mubr.bf16.gmra.mrb[0].mxu0 %v5934
        %v6727 = vpop.f32.mrb[0].mxu0
        %v6728 = vadd.f32 %v6663, %v6727
        %v6729 = vpop.f32.mrb[0].mxu0
        %v6730 = vpop.f32.mrb[0].mxu0
        %v6731 = vadd.f32 %v6666, %v6730
        %v6732 = vpop.f32.mrb[0].mxu0
        %6733 = vdwg.mxu0
        %6734 = vmatprep.subr.bf16.mxu0 0
        %6735 = vmatpush1.bf16.msra.mxu0 %v6443
        %6736 = vmatprep.subr.bf16.mxu0 0
        %6737 = vmatpush1.bf16.msra.mxu0 %v6444
        %6738 = vmatprep.subr.bf16.mxu0 0
        %6739 = vmatpush1.bf16.msra.mxu0 %v6445
        %6740 = vmatprep.subr.bf16.mxu0 0
        %6741 = vmatpush1.bf16.msra.mxu0 %v6446
        %6742 = vmatprep.subr.bf16.mxu0 0
        %6743 = vmatpush1.bf16.msra.mxu0 %v6447
        %6744 = vmatprep.subr.bf16.mxu0 0
        %6745 = vmatpush1.bf16.msra.mxu0 %v6448
        %6746 = vmatprep.subr.bf16.mxu0 0
        %6747 = vmatpush1.bf16.msra.mxu0 %v6449
        %6748 = vmatprep.subr.bf16.mxu0 0
        %6749 = vmatpush1.bf16.msra.mxu0 %v6450
        %6750 = vmatprep.subr.bf16.mxu0 0
        %6751 = vmatpush1.bf16.msra.mxu0 %v6451
        %6752 = vmatprep.subr.bf16.mxu0 0
        %6753 = vmatpush1.bf16.msra.mxu0 %v6452
        %6754 = vmatprep.subr.bf16.mxu0 0
        %6755 = vmatpush1.bf16.msra.mxu0 %v6453
        %6756 = vmatprep.subr.bf16.mxu0 0
        %6757 = vmatpush1.bf16.msra.mxu0 %v6454
        %6758 = vmatprep.subr.bf16.mxu0 0
        %6759 = vmatpush1.bf16.msra.mxu0 %v6455
        %6760 = vmatprep.subr.bf16.mxu0 0
        %6761 = vmatpush1.bf16.msra.mxu0 %v6456
        %6762 = vmatprep.subr.bf16.mxu0 0
        %6763 = vmatpush1.bf16.msra.mxu0 %v6457
        %6764 = vmatprep.subr.bf16.mxu0 0
        %6765 = vmatpush1.bf16.msra.mxu0 %v6458
        %6766 = vmatprep.mubr.bf16.mxu0 %v5881
        %6767 = vmatmul.mubr.bf16.gmra.mrb[0].mxu0 %v5828
        %v6768 = vpop.f32.mrb[0].mxu0
        %v6769 = vadd.f32 %v6704, %v6768
        %v6770 = vpop.f32.mrb[0].mxu0
        %v6771 = vpop.f32.mrb[0].mxu0
        %v6772 = vadd.f32 %v6707, %v6771
        %v6773 = vpop.f32.mrb[0].mxu0
        %6774 = vmatprep.mubr.bf16.mxu0 %v5882
        %6775 = vmatmul.mubr.bf16.gmra.mrb[0].mxu0 %v5829
        %v6776 = vpop.f32.mrb[0].mxu0
        %v6777 = vadd.f32 %v6712, %v6776
        %v6778 = vpop.f32.mrb[0].mxu0
        %v6779 = vpop.f32.mrb[0].mxu0
        %v6780 = vadd.f32 %v6715, %v6779
        %v6781 = vpop.f32.mrb[0].mxu0
        %6782 = vmatprep.mubr.bf16.mxu0 %v5883
        %6783 = vmatmul.mubr.bf16.gmra.mrb[0].mxu0 %v5830
        %v6784 = vpop.f32.mrb[0].mxu0
        %v6785 = vadd.f32 %v6720, %v6784
        %v6786 = vpop.f32.mrb[0].mxu0
        %v6787 = vpop.f32.mrb[0].mxu0
        %v6788 = vadd.f32 %v6723, %v6787
        %v6789 = vpop.f32.mrb[0].mxu0
        %6790 = vmatprep.mubr.bf16.mxu0 %v5950
        %6791 = vmatmul.mubr.bf16.gmra.mrb[0].mxu0 %v5943
        %v6792 = vpop.f32.mrb[0].mxu0
        %v6793 = vadd.f32 %v6728, %v6792
        %v6794 = vpop.f32.mrb[0].mxu0
        %v6795 = vpop.f32.mrb[0].mxu0
        %v6796 = vadd.f32 %v6731, %v6795
        %v6797 = vpop.f32.mrb[0].mxu0
        %6798 = vdwg.mxu0
        %6799 = vmatprep.subr.bf16.mxu0 0
        %6800 = vmatpush1.bf16.msra.mxu0 %v6459
        %6801 = vmatprep.subr.bf16.mxu0 0
        %6802 = vmatpush1.bf16.msra.mxu0 %v6460
        %6803 = vmatprep.subr.bf16.mxu0 0
        %6804 = vmatpush1.bf16.msra.mxu0 %v6461
        %6805 = vmatprep.subr.bf16.mxu0 0
        %6806 = vmatpush1.bf16.msra.mxu0 %v6462
        %6807 = vmatprep.subr.bf16.mxu0 0
        %6808 = vmatpush1.bf16.msra.mxu0 %v6463
        %6809 = vmatprep.subr.bf16.mxu0 0
        %6810 = vmatpush1.bf16.msra.mxu0 %v6464
        %6811 = vmatprep.subr.bf16.mxu0 0
        %6812 = vmatpush1.bf16.msra.mxu0 %v6465
        %6813 = vmatprep.subr.bf16.mxu0 0
        %6814 = vmatpush1.bf16.msra.mxu0 %v6466
        %6815 = vmatprep.subr.bf16.mxu0 0
        %6816 = vmatpush1.bf16.msra.mxu0 0
        %6817 = vmatprep.subr.bf16.mxu0 0
        %6818 = vmatpush1.bf16.msra.mxu0 0
        %6819 = vmatprep.subr.bf16.mxu0 0
        %6820 = vmatpush1.bf16.msra.mxu0 0
        %6821 = vmatprep.subr.bf16.mxu0 0
        %6822 = vmatpush1.bf16.msra.mxu0 0
        %6823 = vmatprep.subr.bf16.mxu0 0
        %6824 = vmatpush1.bf16.msra.mxu0 0
        %6825 = vmatprep.subr.bf16.mxu0 0
        %6826 = vmatpush1.bf16.msra.mxu0 0
        %6827 = vmatprep.subr.bf16.mxu0 0
        %6828 = vmatpush1.bf16.msra.mxu0 0
        %6829 = vmatprep.subr.bf16.mxu0 0
        %6830 = vmatpush1.bf16.msra.mxu0 0
        %6831 = vmatprep.mubr.bf16.mxu0 0
        %6832 = vmatmul.mubr.bf16.gmra.mrb[0].mxu0 %v5918
        %v6833 = vpop.f32.mrb[0].mxu0
        %v6834 = vadd.f32 %v6769, %v6833
        %v6835 = vpop.f32.mrb[0].mxu0
        %v6836 = vpop.f32.mrb[0].mxu0
        %v6837 = vadd.f32 %v6772, %v6836
        %v6838 = vpop.f32.mrb[0].mxu0
        %6839 = vmatprep.mubr.bf16.mxu0 0
        %6840 = vmatmul.mubr.bf16.gmra.mrb[0].mxu0 %v5919
        %v6841 = vpop.f32.mrb[0].mxu0
        %v6842 = vadd.f32 %v6777, %v6841
        %v6843 = vpop.f32.mrb[0].mxu0
        %v6844 = vpop.f32.mrb[0].mxu0
        %v6845 = vadd.f32 %v6780, %v6844
        %v6846 = vpop.f32.mrb[0].mxu0
        %6847 = vmatprep.mubr.bf16.mxu0 0
        %6848 = vmatmul.mubr.bf16.gmra.mrb[0].mxu0 %v5920
        %v6849 = vpop.f32.mrb[0].mxu0
        %v6850 = vadd.f32 %v6785, %v6849
        %v6851 = vpop.f32.mrb[0].mxu0
        %v6852 = vpop.f32.mrb[0].mxu0
        %v6853 = vadd.f32 %v6788, %v6852
        %v6854 = vpop.f32.mrb[0].mxu0
        %6855 = vmatprep.mubr.bf16.mxu0 0
        %6856 = vmatmul.mubr.bf16.gmra.mrb[0].mxu0 %v5955
        %v6857 = vpop.f32.mrb[0].mxu0
        %v6858 = vadd.f32 %v6793, %v6857
        %v6859 = vpop.f32.mrb[0].mxu0
        %v6860 = vpop.f32.mrb[0].mxu0
        %v6861 = vadd.f32 %v6796, %v6860
        %v6862 = vpop.f32.mrb[0].mxu0
        %6863 = vdwg.mxu0
        %v6864 = vmax.f32 %v6834, 0.0
        %v6865 = vmax.f32 %v6837, 0.0
        %v6866 = vmax.f32 %v6842, 0.0
        %v6867 = vmax.f32 %v6845, 0.0
        %v6868 = vmax.f32 %v6850, 0.0
        %v6869 = vmax.f32 %v6853, 0.0
        %v6870 = vmax.f32 %v6858, 0.0
        %v6871 = vmax.f32 %v6861, 0.0
        %6872 = vst [vmem:[%s655] sm:$0xff] %v6864
        %6873 = vst [vmem:[%s655 + $0x8] sm:$0xff] %v6865
        %6874 = vst [vmem:[%s655 + $0x10] sm:$0xff] %v6866
        %6875 = vst [vmem:[%s655 + $0x18] sm:$0xff] %v6867
        %6876 = vst [vmem:[%s655 + $0x20] sm:$0xff] %v6868
        %6877 = vst [vmem:[%s655 + $0x28] sm:$0xff] %v6869
        %6878 = vst [vmem:[%s655 + $0x30] sm:$0xff] %v6870
        %6879 = vst [vmem:[%s655 + $0x38] sm:$0xff] %v6871
        %s6880 = sand.u32 %s386, 1
        %s6881 = scalar_lea.sflag [#allocation5], %s6880
        %s6882 = sand.u32 %s386, 1
        %s6883 = smul.addr %s6882, 64
        %s6884 = scalar_lea.vmem [#allocation18], %s6883
        // Predicated region
        $region121: #{basic_layer_forward.1} parent=83 // pred_check
          %p6885 = pneg %p396
        $region122: #{basic_layer_forward.1} parent=83 // pred_check_branch
          %6887 = sbr.rel (%p6885) target = $region124
        $region123: #{basic_layer_forward.1} parent=83 // pred_region
          %s6889 = ssub.s32 1024, 1024
          %6890 = vsyncadd %s6881, %s6889
          %s6891 = smul.addr %s37, 8
          %s6892 = smul.addr %s6891, 128
          %s6893 = scalar_lea.hbm %s16, %s6892
          %s6894 = sshll.u32 %s6884, 4
          %s6895 = int_to_ptr.vmem [resolvable:$true] %s6894
          %6900 = dma.vmem_to_hbm [thread:$0]  %s6895, 1024, %s6893, %s6881, 128, 128, 8
        $region124: #{basic_layer_forward.1} parent=83 // pred_fallthru
          _
      $region84: #{basic_layer_forward.1} parent=5 // pred_fallthru
        _
      %p6901 = scmp.le.s32.totalorder 2, %s32
      // Predicated region
      $region125: #{basic_layer_forward.1} parent=5 // pred_check
        %p6902 = pneg %p6901
      $region126: #{basic_layer_forward.1} parent=5 // pred_check_branch
        %6904 = sbr.rel (%p6902) target = $region128
      $region127: #{basic_layer_forward.1} parent=5 // pred_region
        %s6905 = ssub.s32 %s32, 2
        // Predicated region
        $region129: #{basic_layer_forward.1} parent=127 // pred_check
          %p6906 = pneg %p402
        $region130: #{basic_layer_forward.1} parent=127 // pred_check_branch
          %6908 = sbr.rel (%p6906) target = $region132
        $region131: #{basic_layer_forward.1} parent=127 // pred_region
          %s6909 = sand.u32 %s387, 1
          %s6910 = scalar_lea.sflag [#allocation5], %s6909
          %s6911 = sand.u32 %s387, 1
          %s6912 = smul.addr %s6911, 64
          %s6913 = scalar_lea.vmem [#allocation18], %s6912
          %6914 = dma.done %s6910, 1024
        $region132: #{basic_layer_forward.1} parent=127 // pred_fallthru
          _
      $region128: #{basic_layer_forward.1} parent=5 // pred_fallthru
        _
    $region6: #{basic_layer_forward.1} parent=1 // loop_footer
      %s36 = sadd.s32 1, %s32
    $region7: #{basic_layer_forward.1} parent=1 // loop_footer_branch
      %31 = sbr.rel target = $region3
    $region8: #{basic_layer_forward.1} parent=1 // loop_exit
      _
    %6915 = vsyncpa [#allocation4], 1
    %s6916 = scalar_lea.sflag [#allocation4], 1
    %6917 = vsyncpa %s6916, 1
    %6918 = vsyncpa [#allocation7], 1
    %6919 = vsyncpa [#allocation10], 1
    %6920 = vsyncpa [#allocation13], 1
    %6921 = vsyncpa [#allocation16], 1
    %6922 = vsyncpa [#allocation5], 1
    %s6923 = scalar_lea.sflag [#allocation5], 1
    %6924 = vsyncpa %s6923, 1

</llo_original>
